<compile_context>
chip_gen: v7x
topology: tpu7x:2x2x1
jax: 0.10.0
libtpu: 0.0.40
codegen_flags: <defaults>
</compile_context>

<pallas_src>
import jax
import jax.numpy as jnp
from jax import lax
from jax.experimental import pallas as pl
from jax.experimental.pallas import tpu as pltpu  # noqa: F401

# ----------------------------- configuration (small, consistent with the module) ---------------
B = 2                       # batch
IN_CH = 3                   # image channels
IMG = 16                    # image spatial size
PATCH = 8                   # patch size
GRID = IMG // PATCH         # 2
NUM_PATCHES = GRID * GRID   # 4
EMBED = 32                  # embed_dim
NUM_HEADS = 4
HEAD_DIM = EMBED // NUM_HEADS
MLP_HIDDEN = 4 * EMBED      # timm default mlp_ratio=4
DEPTH = 2                   # number of blocks
NUM_CLASSES = 7
N_TOK = NUM_PATCHES + 1     # cls token + patches = 5
N_PAD = 8                   # tokens padded to one sublane tile per batch
LSTM_HID = 16               # rnn_hidden_dim
LSTM_LAYERS = 2             # num_lstm_layers (kernel written for exactly 2 layers)
FIX_DIM = 2                 # num_dim_fixation
FIX_LEN = 6                 # fixation sequence length
LN_EPS = 1e-6               # timm ViT LayerNorm eps
SCALE = HEAD_DIM ** -0.5

SLAB_LANES = 128            # lane width of the packed parameter slab
OUT_ROWS = 8                # single padded output slab
OUT_LANES = 128
ATT_COL = 64                # lane offset of the attention-map region in the output slab


# ----------------------------- in-kernel helpers ------------------------------------------------

def _layernorm(x, g, b):
    mu = jnp.mean(x, axis=-1, keepdims=True)
    var = jnp.mean(jnp.square(x - mu), axis=-1, keepdims=True)
    return (x - mu) * lax.rsqrt(var + LN_EPS) * g + b


def _gelu(x):
    # TODO(synk): tanh-approx GELU (EUP tanh slot instead of the erf polynomial on the VPU);
    # deviates from the module's exact erf nn.GELU at ~1e-3 relative level.
    c = 0.7978845608028654  # sqrt(2/pi)
    return 0.5 * x * (1.0 + jnp.tanh(c * (x + 0.044715 * x * x * x)))


# ----------------------------- single fused forward kernel --------------------------------------

def make_kernel(offsets):
    """Kernel closure over static (row_offset, rows, cols) slab layout."""

    def kernel(slab_ref, patches_ref, fix_ref, out_ref):
        f32 = jnp.float32

        def gp(name):
            off, r, c = offsets[name]
            return slab_ref[off:off + r, 0:c]          # static slice of the resident param slab

        # --- static masks for the padded (N_PAD=8) token axis ---
        lane = lax.broadcasted_iota(jnp.int32, (1, N_PAD), 1)
        kmask = jnp.where(lane < N_TOK, 0.0, -1e9).astype(f32)                       # pad keys
        key_keep = jnp.where((lane >= 1) & (lane < N_TOK), 1.0, 0.0).astype(f32)     # keys 1..4
        row = lax.broadcasted_iota(jnp.int32, (N_PAD, 1), 0)
        q_keep = jnp.where((row >= 1) & (row < N_TOK), 1.0, 0.0).astype(f32)         # queries 1..4

        # --- patch embed; cls / pos / patch-bias pre-folded into tok_bias host-side ---
        x = jnp.dot(patches_ref[...], gp("patch_w"),
                    preferred_element_type=f32) + gp("tok_bias")                     # (B*N_PAD, E)
        # norm_pre / pos_drop are Identity in default timm ViT (inference)

        # --- expert blocks ---
        attn_rows = []                                   # reduced attention rows of the LAST block
        for d in range(DEPTH):
            qw, qb = gp(f"qkv_w{d}"), gp(f"qkv_b{d}")
            pw, pb = gp(f"proj_w{d}"), gp(f"proj_b{d}")
            qkv = jnp.dot(x, qw, preferred_element_type=f32) + qb                    # (B*N_PAD, 3E)
            y_parts = []
            for b in range(B):
                blk = qkv[b * N_PAD:(b + 1) * N_PAD, :]                              # aligned rows
                yb = None
                for h in range(NUM_HEADS):
                    c0 = h * HEAD_DIM
                    q = blk[:, c0:c0 + HEAD_DIM]
                    k = blk[:, EMBED + c0:EMBED + c0 + HEAD_DIM]
                    v = blk[:, 2 * EMBED + c0:2 * EMBED + c0 + HEAD_DIM]
                    s = lax.dot_general(q, k, (((1,), (1,)), ((), ())),
                                        preferred_element_type=f32) * SCALE + kmask  # (8,8)
                    s = s - jnp.max(s, axis=-1, keepdims=True)
                    e = jnp.exp(s)
                    p = e * pl.reciprocal(jnp.sum(e, axis=-1, keepdims=True), approx=True)
                    if d == DEPTH - 1:
                        # attn[:, :, 1:, 1:]; / sum(dim=3); sum(dim=2) — reduced in-register
                        pk = p * key_keep
                        rs = jnp.sum(pk, axis=-1, keepdims=True)
                        attn_rows.append(
                            jnp.sum(pk * (q_keep * pl.reciprocal(rs, approx=True)),
                                    axis=0, keepdims=True))                          # (1, N_PAD)
                    ph = jnp.dot(p, v, preferred_element_type=f32)                    # (N_PAD, hd)
                    contrib = jnp.dot(ph, pw[c0:c0 + HEAD_DIM, :],
                                      preferred_element_type=f32)                    # (N_PAD, E)
                    yb = contrib if yb is None else yb + contrib
                y_parts.append(yb)
            y = jnp.concatenate(y_parts, axis=0) + pb                                 # (B*N_PAD, E)

            # expert block tail: x = attn_out; x = x + LN1(x); x = x + LN2(MLP(x))
            x = y + _layernorm(y, gp(f"ln1_g{d}"), gp(f"ln1_b{d}"))
            hmid = _gelu(jnp.dot(x, gp(f"mlp_w1{d}"), preferred_element_type=f32)
                         + gp(f"mlp_b1{d}"))
            m = jnp.dot(hmid, gp(f"mlp_w2{d}"), preferred_element_type=f32) + gp(f"mlp_b2{d}")
            x = x + _layernorm(m, gp(f"ln2_g{d}"), gp(f"ln2_b{d}"))

        attn_slab = jnp.concatenate(attn_rows, axis=0)                                # (B*H, N_PAD)

        # --- final norm + cls feature per batch (rows 0 and N_PAD) ---
        xn = _layernorm(x, gp("norm_g"), gp("norm_b"))
        feat = jnp.concatenate([xn[b * N_PAD:b * N_PAD + 1, :] for b in range(B)], axis=0)  # (B,E)

        # --- 2-layer LSTM (batch_first, zero init, gate order i,f,g,o, bias = b_ih + b_hh) ---
        Hh = LSTM_HID

        def cell(gates, c):
            sg = jax.nn.sigmoid(gates)                       # one EUP pass over the whole 4H block
            gg = jnp.tanh(gates[:, 2 * Hh:3 * Hh])
            c_new = sg[:, Hh:2 * Hh] * c + sg[:, 0:Hh] * gg
            h_new = sg[:, 3 * Hh:4 * Hh] * jnp.tanh(c_new)
            return h_new, c_new

        # layer 0: input gates pre-batched over all timesteps (time-major rows)
        xg0 = jnp.dot(fix_ref[...], gp("lstm_wih0"), preferred_element_type=f32) + gp("lstm_b0")
        whh0 = gp("lstm_whh0")
        h0 = jnp.zeros((B, Hh), f32)
        c0 = jnp.zeros((B, Hh), f32)
        h0_steps = []
        for t in range(FIX_LEN):                            # fully unrolled; h/c stay in vregs
            g = xg0[t * B:(t + 1) * B, :] + jnp.dot(h0, whh0, preferred_element_type=f32)
            h0, c0 = cell(g, c0)
            h0_steps.append(h0)

        # layer 1: its input gates computed as ONE batched matmul over all layer-0 hiddens
        xg1 = (jnp.dot(jnp.concatenate(h0_steps, axis=0), gp("lstm_wih1"),
                       preferred_element_type=f32) + gp("lstm_b1"))
        whh1 = gp("lstm_whh1")
        h1 = jnp.zeros((B, Hh), f32)
        c1 = jnp.zeros((B, Hh), f32)
        for t in range(FIX_LEN):
            g = xg1[t * B:(t + 1) * B, :] + jnp.dot(h1, whh1, preferred_element_type=f32)
            h1, c1 = cell(g, c1)

        # --- head: split matmul (feat|h0|h1 blocks of head_w) avoids the 32/16/16 lane concat ---
        hw = gp("head_w")
        logits = (jnp.dot(feat, hw[0:EMBED, :], preferred_element_type=f32)
                  + jnp.dot(h0, hw[EMBED:EMBED + Hh, :], preferred_element_type=f32)
                  + jnp.dot(h1, hw[EMBED + Hh:EMBED + 2 * Hh, :], preferred_element_type=f32)
                  + gp("head_b"))                                                     # (B, classes)

        # --- single padded output slab: logits at [0:B, 0:7], attention at [0:8, 64:72] ---
        out_ref[...] = jnp.zeros((OUT_ROWS, OUT_LANES), f32)
        out_ref[0:B, 0:NUM_CLASSES] = logits
        out_ref[0:B * NUM_HEADS, ATT_COL:ATT_COL + N_PAD] = attn_slab

    return kernel


# ----------------------------- host-side layout plumbing (no compute) ---------------------------

def extract_patches_padded(img):
    # Unfold NCHW image into per-patch pixel rows (c, u, v ordering, patches row-major), padded to
    # N_PAD rows per batch: [cls slot (zeros), NUM_PATCHES patch rows, zero pad rows].
    d = IN_CH * PATCH * PATCH
    x = img.reshape(B, IN_CH, GRID, PATCH, GRID, PATCH)
    x = x.transpose(0, 2, 4, 1, 3, 5).reshape(B, NUM_PATCHES, d)
    z_cls = jnp.zeros((B, 1, d), jnp.float32)
    z_pad = jnp.zeros((B, N_PAD - N_TOK, d), jnp.float32)
    return jnp.concatenate([z_cls, x, z_pad], axis=1).reshape(B * N_PAD, d)


def build_forward(offsets):
    kernel = make_kernel(offsets)

    def forward(slab, img, fixation_sequence):
        patches = extract_patches_padded(img)                                   # (B*N_PAD, 192)
        fix_tb = jnp.transpose(fixation_sequence, (1, 0, 2)).reshape(FIX_LEN * B, FIX_DIM)
        out = pl.pallas_call(
            kernel,
            out_shape=jax.ShapeDtypeStruct((OUT_ROWS, OUT_LANES), jnp.float32),
        )(slab, patches, fix_tb)
        logits = out[:B, :NUM_CLASSES]
        attn = out[:B * NUM_HEADS, ATT_COL + 1:ATT_COL + N_TOK]                 # keys 1..4
        return logits, attn.reshape(B, NUM_HEADS, NUM_PATCHES)

    return forward


# ----------------------------- deterministic parameter init + slab packing ----------------------

def init_params_packed(key):
    keys = iter(jax.random.split(key, 48))

    def nrm(shape, scale=0.02):
        return scale * jax.random.normal(next(keys), shape, jnp.float32)

    # raw parameters (weight-porting note: patch_w must be the Conv2d weight reshaped to
    # (E, C*p*p) then transposed with (c,u,v) ordering matching extract_patches_padded;
    # lstm_b* must be b_ih + b_hh summed)
    patch_w = nrm((IN_CH * PATCH * PATCH, EMBED))
    patch_b = nrm((1, EMBED))
    cls_tok = nrm((1, EMBED))
    pos = nrm((N_TOK, EMBED))
    tok_bias = jnp.concatenate(
        [cls_tok + pos[0:1],
         patch_b + pos[1:],
         jnp.zeros((N_PAD - N_TOK, EMBED), jnp.float32)], axis=0)               # (N_PAD, E)
    tok_bias_full = jnp.tile(tok_bias, (B, 1))                                   # (B*N_PAD, E)

    entries = [
        ("patch_w", patch_w),
        ("tok_bias", tok_bias_full),
        ("norm_g", jnp.ones((1, EMBED), jnp.float32)),
        ("norm_b", jnp.zeros((1, EMBED), jnp.float32)),
    ]
    for d in range(DEPTH):
        entries += [
            (f"qkv_w{d}", nrm((EMBED, 3 * EMBED))),
            (f"qkv_b{d}", nrm((1, 3 * EMBED))),
            (f"proj_w{d}", nrm((EMBED, EMBED))),
            (f"proj_b{d}", nrm((1, EMBED))),
            (f"ln1_g{d}", jnp.ones((1, EMBED), jnp.float32)),
            (f"ln1_b{d}", jnp.zeros((1, EMBED), jnp.float32)),
            (f"mlp_w1{d}", nrm((EMBED, MLP_HIDDEN))),
            (f"mlp_b1{d}", nrm((1, MLP_HIDDEN))),
            (f"mlp_w2{d}", nrm((MLP_HIDDEN, EMBED))),
            (f"mlp_b2{d}", nrm((1, EMBED))),
            (f"ln2_g{d}", jnp.ones((1, EMBED), jnp.float32)),
            (f"ln2_b{d}", jnp.zeros((1, EMBED), jnp.float32)),
        ]
    entries += [
        ("lstm_wih0", nrm((FIX_DIM, 4 * LSTM_HID), 0.1)),
        ("lstm_whh0", nrm((LSTM_HID, 4 * LSTM_HID), 0.1)),
        ("lstm_b0", nrm((1, 4 * LSTM_HID), 0.1)),
        ("lstm_wih1", nrm((LSTM_HID, 4 * LSTM_HID), 0.1)),
        ("lstm_whh1", nrm((LSTM_HID, 4 * LSTM_HID), 0.1)),
        ("lstm_b1", nrm((1, 4 * LSTM_HID), 0.1)),
        ("head_w", nrm((EMBED + LSTM_LAYERS * LSTM_HID, NUM_CLASSES))),
        ("head_b", nrm((1, NUM_CLASSES))),
    ]

    # pack into one lane-dense slab; every entry starts on an 8-row (sublane-tile) boundary
    offsets = {}
    blocks = []
    row = 0
    for name, arr in entries:
        arr = jnp.asarray(arr, jnp.float32)
        r, c = arr.shape
        rp = ((r + 7) // 8) * 8
        buf = jnp.zeros((rp, SLAB_LANES), jnp.float32).at[:r, :c].set(arr)
        blocks.append(buf)
        offsets[name] = (row, r, c)
        row += rp
    slab = jnp.concatenate(blocks, axis=0)                                       # (944, 128)
    return slab, offsets


# ----------------------------- run ---------------------------------------------------------------

if __name__ == "__main__":
    key = jax.random.PRNGKey(0)
    kp, ki, kf = jax.random.split(key, 3)
    slab, offsets = init_params_packed(kp)
    img = jax.random.normal(ki, (B, IN_CH, IMG, IMG), jnp.float32)
    fix = jax.random.normal(kf, (B, FIX_LEN, FIX_DIM), jnp.float32)

    forward = jax.jit(build_forward(offsets))
    logits, attn = forward(slab, img, fix)
    jax.block_until_ready((logits, attn))

    assert logits.shape == (B, NUM_CLASSES)
    assert attn.shape == (B, NUM_HEADS, NUM_PATCHES)
    assert bool(jnp.all(jnp.isfinite(logits))) and bool(jnp.all(jnp.isfinite(attn)))
    print("KERNEL_OK")
</pallas_src>

<mosaic_0001>
module attributes {stable_mosaic.version = 11 : i64} {
  func.func @kernel(%arg0: memref<944x128xf32, #tpu.memory_space<vmem>>, %arg1: memref<16x192xf32, #tpu.memory_space<vmem>>, %arg2: memref<12x2xf32, #tpu.memory_space<vmem>>, %arg3: memref<8x128xf32, #tpu.memory_space<vmem>>) attributes {dimension_semantics = [], scalar_prefetch = 0 : i64, scratch_operands = 0 : i64, tpu.core_type = #tpu.core_type<tc>} {
    %0 = tpu.iota {dimensions = array<i32: 1>} : vector<1x8xi32>
    %c5_i32 = arith.constant 5 : i32
    %1 = vector.broadcast %c5_i32 : i32 to vector<1x8xi32>
    %2 = arith.cmpi slt, %0, %1 : vector<1x8xi32>
    %cst = arith.constant 0.000000e+00 : f32
    %cst_0 = arith.constant -1.000000e+09 : f32
    %3 = vector.broadcast %cst : f32 to vector<1x8xf32>
    %4 = vector.broadcast %cst_0 : f32 to vector<1x8xf32>
    %5 = arith.select %2, %3, %4 : vector<1x8xi1>, vector<1x8xf32>
    %c1_i32 = arith.constant 1 : i32
    %6 = vector.broadcast %c1_i32 : i32 to vector<1x8xi32>
    %7 = arith.cmpi sge, %0, %6 : vector<1x8xi32>
    %c5_i32_1 = arith.constant 5 : i32
    %8 = vector.broadcast %c5_i32_1 : i32 to vector<1x8xi32>
    %9 = arith.cmpi slt, %0, %8 : vector<1x8xi32>
    %10 = arith.andi %7, %9 : vector<1x8xi1>
    %cst_2 = arith.constant 1.000000e+00 : f32
    %cst_3 = arith.constant 0.000000e+00 : f32
    %11 = vector.broadcast %cst_2 : f32 to vector<1x8xf32>
    %12 = vector.broadcast %cst_3 : f32 to vector<1x8xf32>
    %13 = arith.select %10, %11, %12 : vector<1x8xi1>, vector<1x8xf32>
    %14 = tpu.iota {dimensions = array<i32: 0>} : vector<8x1xi32>
    %c1_i32_4 = arith.constant 1 : i32
    %15 = vector.broadcast %c1_i32_4 : i32 to vector<8x1xi32>
    %16 = arith.cmpi sge, %14, %15 : vector<8x1xi32>
    %c5_i32_5 = arith.constant 5 : i32
    %17 = vector.broadcast %c5_i32_5 : i32 to vector<8x1xi32>
    %18 = arith.cmpi slt, %14, %17 : vector<8x1xi32>
    %19 = arith.andi %16, %18 : vector<8x1xi1>
    %cst_6 = arith.constant 1.000000e+00 : f32
    %cst_7 = arith.constant 0.000000e+00 : f32
    %20 = vector.broadcast %cst_6 : f32 to vector<8x1xf32>
    %21 = vector.broadcast %cst_7 : f32 to vector<8x1xf32>
    %22 = arith.select %19, %20, %21 : vector<8x1xi1>, vector<8x1xf32>
    %c0 = arith.constant 0 : index
    %c0_8 = arith.constant 0 : index
    %23 = vector.load %arg1[%c0, %c0_8] : memref<16x192xf32, #tpu.memory_space<vmem>>, vector<16x192xf32>
    %c0_9 = arith.constant 0 : index
    %c0_10 = arith.constant 0 : index
    %24 = vector.load %arg0[%c0_9, %c0_10] : memref<944x128xf32, #tpu.memory_space<vmem>>, vector<192x32xf32>
    %cst_11 = arith.constant dense<0.000000e+00> : vector<16x32xf32>
    %25 = tpu.matmul %23, %24, %cst_11 {dimension_numbers = #tpu.dot_dimension_numbers<[1], [0], [0], [1], [0, 0, 1, 1], [], []>} : vector<16x192xf32>, vector<192x32xf32>, vector<16x32xf32> -> vector<16x32xf32>
    %c192 = arith.constant 192 : index
    %c0_12 = arith.constant 0 : index
    %26 = vector.load %arg0[%c192, %c0_12] : memref<944x128xf32, #tpu.memory_space<vmem>>, vector<16x32xf32>
    %27 = arith.addf %25, %26 : vector<16x32xf32>
    %c224 = arith.constant 224 : index
    %c0_13 = arith.constant 0 : index
    %28 = vector.load %arg0[%c224, %c0_13] : memref<944x128xf32, #tpu.memory_space<vmem>>, vector<32x96xf32>
    %c256 = arith.constant 256 : index
    %c0_14 = arith.constant 0 : index
    %29 = vector.load %arg0[%c256, %c0_14] : memref<944x128xf32, #tpu.memory_space<vmem>>, vector<1x96xf32>
    %c264 = arith.constant 264 : index
    %c0_15 = arith.constant 0 : index
    %30 = vector.load %arg0[%c264, %c0_15] : memref<944x128xf32, #tpu.memory_space<vmem>>, vector<32x32xf32>
    %c296 = arith.constant 296 : index
    %c0_16 = arith.constant 0 : index
    %31 = vector.load %arg0[%c296, %c0_16] : memref<944x128xf32, #tpu.memory_space<vmem>>, vector<1x32xf32>
    %cst_17 = arith.constant dense<0.000000e+00> : vector<16x96xf32>
    %32 = tpu.matmul %27, %28, %cst_17 {dimension_numbers = #tpu.dot_dimension_numbers<[1], [0], [0], [1], [0, 0, 1, 1], [], []>} : vector<16x32xf32>, vector<32x96xf32>, vector<16x96xf32> -> vector<16x96xf32>
    %33 = vector.broadcast %29 : vector<1x96xf32> to vector<16x96xf32>
    %34 = arith.addf %32, %33 : vector<16x96xf32>
    %35 = vector.extract_strided_slice %34 {offsets = [0, 0], sizes = [8, 96], strides = [1, 1]} : vector<16x96xf32> to vector<8x96xf32>
    %36 = vector.extract_strided_slice %35 {offsets = [0, 0], sizes = [8, 8], strides = [1, 1]} : vector<8x96xf32> to vector<8x8xf32>
    %37 = vector.extract_strided_slice %35 {offsets = [0, 32], sizes = [8, 8], strides = [1, 1]} : vector<8x96xf32> to vector<8x8xf32>
    %38 = vector.extract_strided_slice %35 {offsets = [0, 64], sizes = [8, 8], strides = [1, 1]} : vector<8x96xf32> to vector<8x8xf32>
    %cst_18 = arith.constant dense<0.000000e+00> : vector<8x8xf32>
    %39 = tpu.matmul %36, %37, %cst_18 {dimension_numbers = #tpu.dot_dimension_numbers<[1], [1], [0], [0], [0, 0, 1, 0], [], []>} : vector<8x8xf32>, vector<8x8xf32>, vector<8x8xf32> -> vector<8x8xf32>
    %cst_19 = arith.constant 0.353553385 : f32
    %40 = vector.broadcast %cst_19 : f32 to vector<8x8xf32>
    %41 = arith.mulf %39, %40 : vector<8x8xf32>
    %42 = vector.broadcast %5 : vector<1x8xf32> to vector<8x8xf32>
    %43 = arith.addf %41, %42 : vector<8x8xf32>
    %cst_20 = arith.constant dense<0xFF800000> : vector<8xf32>
    %44 = vector.multi_reduction <maximumf>, %43, %cst_20 [1] : vector<8x8xf32> to vector<8xf32>
    %45 = vector.shape_cast %44 : vector<8xf32> to vector<8x1xf32>
    %46 = vector.broadcast %45 : vector<8x1xf32> to vector<8x8xf32>
    %47 = arith.subf %43, %46 : vector<8x8xf32>
    %48 = math.exp %47 : vector<8x8xf32>
    %cst_21 = arith.constant dense<0.000000e+00> : vector<8xf32>
    %49 = vector.multi_reduction <add>, %48, %cst_21 [1] : vector<8x8xf32> to vector<8xf32>
    %50 = vector.shape_cast %49 : vector<8xf32> to vector<8x1xf32>
    %51 = tpu.reciprocal %50 {approx = true} : vector<8x1xf32> -> vector<8x1xf32>
    %52 = vector.broadcast %51 : vector<8x1xf32> to vector<8x8xf32>
    %53 = arith.mulf %48, %52 : vector<8x8xf32>
    %cst_22 = arith.constant dense<0.000000e+00> : vector<8x8xf32>
    %54 = tpu.matmul %53, %38, %cst_22 {dimension_numbers = #tpu.dot_dimension_numbers<[1], [0], [0], [1], [0, 0, 1, 1], [], []>} : vector<8x8xf32>, vector<8x8xf32>, vector<8x8xf32> -> vector<8x8xf32>
    %55 = vector.extract_strided_slice %30 {offsets = [0, 0], sizes = [8, 32], strides = [1, 1]} : vector<32x32xf32> to vector<8x32xf32>
    %cst_23 = arith.constant dense<0.000000e+00> : vector<8x32xf32>
    %56 = tpu.matmul %54, %55, %cst_23 {dimension_numbers = #tpu.dot_dimension_numbers<[1], [0], [0], [1], [0, 0, 1, 1], [], []>} : vector<8x8xf32>, vector<8x32xf32>, vector<8x32xf32> -> vector<8x32xf32>
    %57 = vector.extract_strided_slice %35 {offsets = [0, 8], sizes = [8, 8], strides = [1, 1]} : vector<8x96xf32> to vector<8x8xf32>
    %58 = vector.extract_strided_slice %35 {offsets = [0, 40], sizes = [8, 8], strides = [1, 1]} : vector<8x96xf32> to vector<8x8xf32>
    %59 = vector.extract_strided_slice %35 {offsets = [0, 72], sizes = [8, 8], strides = [1, 1]} : vector<8x96xf32> to vector<8x8xf32>
    %cst_24 = arith.constant dense<0.000000e+00> : vector<8x8xf32>
    %60 = tpu.matmul %57, %58, %cst_24 {dimension_numbers = #tpu.dot_dimension_numbers<[1], [1], [0], [0], [0, 0, 1, 0], [], []>} : vector<8x8xf32>, vector<8x8xf32>, vector<8x8xf32> -> vector<8x8xf32>
    %cst_25 = arith.constant 0.353553385 : f32
    %61 = vector.broadcast %cst_25 : f32 to vector<8x8xf32>
    %62 = arith.mulf %60, %61 : vector<8x8xf32>
    %63 = vector.broadcast %5 : vector<1x8xf32> to vector<8x8xf32>
    %64 = arith.addf %62, %63 : vector<8x8xf32>
    %cst_26 = arith.constant dense<0xFF800000> : vector<8xf32>
    %65 = vector.multi_reduction <maximumf>, %64, %cst_26 [1] : vector<8x8xf32> to vector<8xf32>
    %66 = vector.shape_cast %65 : vector<8xf32> to vector<8x1xf32>
    %67 = vector.broadcast %66 : vector<8x1xf32> to vector<8x8xf32>
    %68 = arith.subf %64, %67 : vector<8x8xf32>
    %69 = math.exp %68 : vector<8x8xf32>
    %cst_27 = arith.constant dense<0.000000e+00> : vector<8xf32>
    %70 = vector.multi_reduction <add>, %69, %cst_27 [1] : vector<8x8xf32> to vector<8xf32>
    %71 = vector.shape_cast %70 : vector<8xf32> to vector<8x1xf32>
    %72 = tpu.reciprocal %71 {approx = true} : vector<8x1xf32> -> vector<8x1xf32>
    %73 = vector.broadcast %72 : vector<8x1xf32> to vector<8x8xf32>
    %74 = arith.mulf %69, %73 : vector<8x8xf32>
    %cst_28 = arith.constant dense<0.000000e+00> : vector<8x8xf32>
    %75 = tpu.matmul %74, %59, %cst_28 {dimension_numbers = #tpu.dot_dimension_numbers<[1], [0], [0], [1], [0, 0, 1, 1], [], []>} : vector<8x8xf32>, vector<8x8xf32>, vector<8x8xf32> -> vector<8x8xf32>
    %76 = vector.extract_strided_slice %30 {offsets = [8, 0], sizes = [8, 32], strides = [1, 1]} : vector<32x32xf32> to vector<8x32xf32>
    %cst_29 = arith.constant dense<0.000000e+00> : vector<8x32xf32>
    %77 = tpu.matmul %75, %76, %cst_29 {dimension_numbers = #tpu.dot_dimension_numbers<[1], [0], [0], [1], [0, 0, 1, 1], [], []>} : vector<8x8xf32>, vector<8x32xf32>, vector<8x32xf32> -> vector<8x32xf32>
    %78 = arith.addf %56, %77 : vector<8x32xf32>
    %79 = vector.extract_strided_slice %35 {offsets = [0, 16], sizes = [8, 8], strides = [1, 1]} : vector<8x96xf32> to vector<8x8xf32>
    %80 = vector.extract_strided_slice %35 {offsets = [0, 48], sizes = [8, 8], strides = [1, 1]} : vector<8x96xf32> to vector<8x8xf32>
    %81 = vector.extract_strided_slice %35 {offsets = [0, 80], sizes = [8, 8], strides = [1, 1]} : vector<8x96xf32> to vector<8x8xf32>
    %cst_30 = arith.constant dense<0.000000e+00> : vector<8x8xf32>
    %82 = tpu.matmul %79, %80, %cst_30 {dimension_numbers = #tpu.dot_dimension_numbers<[1], [1], [0], [0], [0, 0, 1, 0], [], []>} : vector<8x8xf32>, vector<8x8xf32>, vector<8x8xf32> -> vector<8x8xf32>
    %cst_31 = arith.constant 0.353553385 : f32
    %83 = vector.broadcast %cst_31 : f32 to vector<8x8xf32>
    %84 = arith.mulf %82, %83 : vector<8x8xf32>
    %85 = vector.broadcast %5 : vector<1x8xf32> to vector<8x8xf32>
    %86 = arith.addf %84, %85 : vector<8x8xf32>
    %cst_32 = arith.constant dense<0xFF800000> : vector<8xf32>
    %87 = vector.multi_reduction <maximumf>, %86, %cst_32 [1] : vector<8x8xf32> to vector<8xf32>
    %88 = vector.shape_cast %87 : vector<8xf32> to vector<8x1xf32>
    %89 = vector.broadcast %88 : vector<8x1xf32> to vector<8x8xf32>
    %90 = arith.subf %86, %89 : vector<8x8xf32>
    %91 = math.exp %90 : vector<8x8xf32>
    %cst_33 = arith.constant dense<0.000000e+00> : vector<8xf32>
    %92 = vector.multi_reduction <add>, %91, %cst_33 [1] : vector<8x8xf32> to vector<8xf32>
    %93 = vector.shape_cast %92 : vector<8xf32> to vector<8x1xf32>
    %94 = tpu.reciprocal %93 {approx = true} : vector<8x1xf32> -> vector<8x1xf32>
    %95 = vector.broadcast %94 : vector<8x1xf32> to vector<8x8xf32>
    %96 = arith.mulf %91, %95 : vector<8x8xf32>
    %cst_34 = arith.constant dense<0.000000e+00> : vector<8x8xf32>
    %97 = tpu.matmul %96, %81, %cst_34 {dimension_numbers = #tpu.dot_dimension_numbers<[1], [0], [0], [1], [0, 0, 1, 1], [], []>} : vector<8x8xf32>, vector<8x8xf32>, vector<8x8xf32> -> vector<8x8xf32>
    %98 = vector.extract_strided_slice %30 {offsets = [16, 0], sizes = [8, 32], strides = [1, 1]} : vector<32x32xf32> to vector<8x32xf32>
    %cst_35 = arith.constant dense<0.000000e+00> : vector<8x32xf32>
    %99 = tpu.matmul %97, %98, %cst_35 {dimension_numbers = #tpu.dot_dimension_numbers<[1], [0], [0], [1], [0, 0, 1, 1], [], []>} : vector<8x8xf32>, vector<8x32xf32>, vector<8x32xf32> -> vector<8x32xf32>
    %100 = arith.addf %78, %99 : vector<8x32xf32>
    %101 = vector.extract_strided_slice %35 {offsets = [0, 24], sizes = [8, 8], strides = [1, 1]} : vector<8x96xf32> to vector<8x8xf32>
    %102 = vector.extract_strided_slice %35 {offsets = [0, 56], sizes = [8, 8], strides = [1, 1]} : vector<8x96xf32> to vector<8x8xf32>
    %103 = vector.extract_strided_slice %35 {offsets = [0, 88], sizes = [8, 8], strides = [1, 1]} : vector<8x96xf32> to vector<8x8xf32>
    %cst_36 = arith.constant dense<0.000000e+00> : vector<8x8xf32>
    %104 = tpu.matmul %101, %102, %cst_36 {dimension_numbers = #tpu.dot_dimension_numbers<[1], [1], [0], [0], [0, 0, 1, 0], [], []>} : vector<8x8xf32>, vector<8x8xf32>, vector<8x8xf32> -> vector<8x8xf32>
    %cst_37 = arith.constant 0.353553385 : f32
    %105 = vector.broadcast %cst_37 : f32 to vector<8x8xf32>
    %106 = arith.mulf %104, %105 : vector<8x8xf32>
    %107 = vector.broadcast %5 : vector<1x8xf32> to vector<8x8xf32>
    %108 = arith.addf %106, %107 : vector<8x8xf32>
    %cst_38 = arith.constant dense<0xFF800000> : vector<8xf32>
    %109 = vector.multi_reduction <maximumf>, %108, %cst_38 [1] : vector<8x8xf32> to vector<8xf32>
    %110 = vector.shape_cast %109 : vector<8xf32> to vector<8x1xf32>
    %111 = vector.broadcast %110 : vector<8x1xf32> to vector<8x8xf32>
    %112 = arith.subf %108, %111 : vector<8x8xf32>
    %113 = math.exp %112 : vector<8x8xf32>
    %cst_39 = arith.constant dense<0.000000e+00> : vector<8xf32>
    %114 = vector.multi_reduction <add>, %113, %cst_39 [1] : vector<8x8xf32> to vector<8xf32>
    %115 = vector.shape_cast %114 : vector<8xf32> to vector<8x1xf32>
    %116 = tpu.reciprocal %115 {approx = true} : vector<8x1xf32> -> vector<8x1xf32>
    %117 = vector.broadcast %116 : vector<8x1xf32> to vector<8x8xf32>
    %118 = arith.mulf %113, %117 : vector<8x8xf32>
    %cst_40 = arith.constant dense<0.000000e+00> : vector<8x8xf32>
    %119 = tpu.matmul %118, %103, %cst_40 {dimension_numbers = #tpu.dot_dimension_numbers<[1], [0], [0], [1], [0, 0, 1, 1], [], []>} : vector<8x8xf32>, vector<8x8xf32>, vector<8x8xf32> -> vector<8x8xf32>
    %120 = vector.extract_strided_slice %30 {offsets = [24, 0], sizes = [8, 32], strides = [1, 1]} : vector<32x32xf32> to vector<8x32xf32>
    %cst_41 = arith.constant dense<0.000000e+00> : vector<8x32xf32>
    %121 = tpu.matmul %119, %120, %cst_41 {dimension_numbers = #tpu.dot_dimension_numbers<[1], [0], [0], [1], [0, 0, 1, 1], [], []>} : vector<8x8xf32>, vector<8x32xf32>, vector<8x32xf32> -> vector<8x32xf32>
    %122 = arith.addf %100, %121 : vector<8x32xf32>
    %123 = vector.extract_strided_slice %34 {offsets = [8, 0], sizes = [8, 96], strides = [1, 1]} : vector<16x96xf32> to vector<8x96xf32>
    %124 = vector.extract_strided_slice %123 {offsets = [0, 0], sizes = [8, 8], strides = [1, 1]} : vector<8x96xf32> to vector<8x8xf32>
    %125 = vector.extract_strided_slice %123 {offsets = [0, 32], sizes = [8, 8], strides = [1, 1]} : vector<8x96xf32> to vector<8x8xf32>
    %126 = vector.extract_strided_slice %123 {offsets = [0, 64], sizes = [8, 8], strides = [1, 1]} : vector<8x96xf32> to vector<8x8xf32>
    %cst_42 = arith.constant dense<0.000000e+00> : vector<8x8xf32>
    %127 = tpu.matmul %124, %125, %cst_42 {dimension_numbers = #tpu.dot_dimension_numbers<[1], [1], [0], [0], [0, 0, 1, 0], [], []>} : vector<8x8xf32>, vector<8x8xf32>, vector<8x8xf32> -> vector<8x8xf32>
    %cst_43 = arith.constant 0.353553385 : f32
    %128 = vector.broadcast %cst_43 : f32 to vector<8x8xf32>
    %129 = arith.mulf %127, %128 : vector<8x8xf32>
    %130 = vector.broadcast %5 : vector<1x8xf32> to vector<8x8xf32>
    %131 = arith.addf %129, %130 : vector<8x8xf32>
    %cst_44 = arith.constant dense<0xFF800000> : vector<8xf32>
    %132 = vector.multi_reduction <maximumf>, %131, %cst_44 [1] : vector<8x8xf32> to vector<8xf32>
    %133 = vector.shape_cast %132 : vector<8xf32> to vector<8x1xf32>
    %134 = vector.broadcast %133 : vector<8x1xf32> to vector<8x8xf32>
    %135 = arith.subf %131, %134 : vector<8x8xf32>
    %136 = math.exp %135 : vector<8x8xf32>
    %cst_45 = arith.constant dense<0.000000e+00> : vector<8xf32>
    %137 = vector.multi_reduction <add>, %136, %cst_45 [1] : vector<8x8xf32> to vector<8xf32>
    %138 = vector.shape_cast %137 : vector<8xf32> to vector<8x1xf32>
    %139 = tpu.reciprocal %138 {approx = true} : vector<8x1xf32> -> vector<8x1xf32>
    %140 = vector.broadcast %139 : vector<8x1xf32> to vector<8x8xf32>
    %141 = arith.mulf %136, %140 : vector<8x8xf32>
    %cst_46 = arith.constant dense<0.000000e+00> : vector<8x8xf32>
    %142 = tpu.matmul %141, %126, %cst_46 {dimension_numbers = #tpu.dot_dimension_numbers<[1], [0], [0], [1], [0, 0, 1, 1], [], []>} : vector<8x8xf32>, vector<8x8xf32>, vector<8x8xf32> -> vector<8x8xf32>
    %143 = vector.extract_strided_slice %30 {offsets = [0, 0], sizes = [8, 32], strides = [1, 1]} : vector<32x32xf32> to vector<8x32xf32>
    %cst_47 = arith.constant dense<0.000000e+00> : vector<8x32xf32>
    %144 = tpu.matmul %142, %143, %cst_47 {dimension_numbers = #tpu.dot_dimension_numbers<[1], [0], [0], [1], [0, 0, 1, 1], [], []>} : vector<8x8xf32>, vector<8x32xf32>, vector<8x32xf32> -> vector<8x32xf32>
    %145 = vector.extract_strided_slice %123 {offsets = [0, 8], sizes = [8, 8], strides = [1, 1]} : vector<8x96xf32> to vector<8x8xf32>
    %146 = vector.extract_strided_slice %123 {offsets = [0, 40], sizes = [8, 8], strides = [1, 1]} : vector<8x96xf32> to vector<8x8xf32>
    %147 = vector.extract_strided_slice %123 {offsets = [0, 72], sizes = [8, 8], strides = [1, 1]} : vector<8x96xf32> to vector<8x8xf32>
    %cst_48 = arith.constant dense<0.000000e+00> : vector<8x8xf32>
    %148 = tpu.matmul %145, %146, %cst_48 {dimension_numbers = #tpu.dot_dimension_numbers<[1], [1], [0], [0], [0, 0, 1, 0], [], []>} : vector<8x8xf32>, vector<8x8xf32>, vector<8x8xf32> -> vector<8x8xf32>
    %cst_49 = arith.constant 0.353553385 : f32
    %149 = vector.broadcast %cst_49 : f32 to vector<8x8xf32>
    %150 = arith.mulf %148, %149 : vector<8x8xf32>
    %151 = vector.broadcast %5 : vector<1x8xf32> to vector<8x8xf32>
    %152 = arith.addf %150, %151 : vector<8x8xf32>
    %cst_50 = arith.constant dense<0xFF800000> : vector<8xf32>
    %153 = vector.multi_reduction <maximumf>, %152, %cst_50 [1] : vector<8x8xf32> to vector<8xf32>
    %154 = vector.shape_cast %153 : vector<8xf32> to vector<8x1xf32>
    %155 = vector.broadcast %154 : vector<8x1xf32> to vector<8x8xf32>
    %156 = arith.subf %152, %155 : vector<8x8xf32>
    %157 = math.exp %156 : vector<8x8xf32>
    %cst_51 = arith.constant dense<0.000000e+00> : vector<8xf32>
    %158 = vector.multi_reduction <add>, %157, %cst_51 [1] : vector<8x8xf32> to vector<8xf32>
    %159 = vector.shape_cast %158 : vector<8xf32> to vector<8x1xf32>
    %160 = tpu.reciprocal %159 {approx = true} : vector<8x1xf32> -> vector<8x1xf32>
    %161 = vector.broadcast %160 : vector<8x1xf32> to vector<8x8xf32>
    %162 = arith.mulf %157, %161 : vector<8x8xf32>
    %cst_52 = arith.constant dense<0.000000e+00> : vector<8x8xf32>
    %163 = tpu.matmul %162, %147, %cst_52 {dimension_numbers = #tpu.dot_dimension_numbers<[1], [0], [0], [1], [0, 0, 1, 1], [], []>} : vector<8x8xf32>, vector<8x8xf32>, vector<8x8xf32> -> vector<8x8xf32>
    %164 = vector.extract_strided_slice %30 {offsets = [8, 0], sizes = [8, 32], strides = [1, 1]} : vector<32x32xf32> to vector<8x32xf32>
    %cst_53 = arith.constant dense<0.000000e+00> : vector<8x32xf32>
    %165 = tpu.matmul %163, %164, %cst_53 {dimension_numbers = #tpu.dot_dimension_numbers<[1], [0], [0], [1], [0, 0, 1, 1], [], []>} : vector<8x8xf32>, vector<8x32xf32>, vector<8x32xf32> -> vector<8x32xf32>
    %166 = arith.addf %144, %165 : vector<8x32xf32>
    %167 = vector.extract_strided_slice %123 {offsets = [0, 16], sizes = [8, 8], strides = [1, 1]} : vector<8x96xf32> to vector<8x8xf32>
    %168 = vector.extract_strided_slice %123 {offsets = [0, 48], sizes = [8, 8], strides = [1, 1]} : vector<8x96xf32> to vector<8x8xf32>
    %169 = vector.extract_strided_slice %123 {offsets = [0, 80], sizes = [8, 8], strides = [1, 1]} : vector<8x96xf32> to vector<8x8xf32>
    %cst_54 = arith.constant dense<0.000000e+00> : vector<8x8xf32>
    %170 = tpu.matmul %167, %168, %cst_54 {dimension_numbers = #tpu.dot_dimension_numbers<[1], [1], [0], [0], [0, 0, 1, 0], [], []>} : vector<8x8xf32>, vector<8x8xf32>, vector<8x8xf32> -> vector<8x8xf32>
    %cst_55 = arith.constant 0.353553385 : f32
    %171 = vector.broadcast %cst_55 : f32 to vector<8x8xf32>
    %172 = arith.mulf %170, %171 : vector<8x8xf32>
    %173 = vector.broadcast %5 : vector<1x8xf32> to vector<8x8xf32>
    %174 = arith.addf %172, %173 : vector<8x8xf32>
    %cst_56 = arith.constant dense<0xFF800000> : vector<8xf32>
    %175 = vector.multi_reduction <maximumf>, %174, %cst_56 [1] : vector<8x8xf32> to vector<8xf32>
    %176 = vector.shape_cast %175 : vector<8xf32> to vector<8x1xf32>
    %177 = vector.broadcast %176 : vector<8x1xf32> to vector<8x8xf32>
    %178 = arith.subf %174, %177 : vector<8x8xf32>
    %179 = math.exp %178 : vector<8x8xf32>
    %cst_57 = arith.constant dense<0.000000e+00> : vector<8xf32>
    %180 = vector.multi_reduction <add>, %179, %cst_57 [1] : vector<8x8xf32> to vector<8xf32>
    %181 = vector.shape_cast %180 : vector<8xf32> to vector<8x1xf32>
    %182 = tpu.reciprocal %181 {approx = true} : vector<8x1xf32> -> vector<8x1xf32>
    %183 = vector.broadcast %182 : vector<8x1xf32> to vector<8x8xf32>
    %184 = arith.mulf %179, %183 : vector<8x8xf32>
    %cst_58 = arith.constant dense<0.000000e+00> : vector<8x8xf32>
    %185 = tpu.matmul %184, %169, %cst_58 {dimension_numbers = #tpu.dot_dimension_numbers<[1], [0], [0], [1], [0, 0, 1, 1], [], []>} : vector<8x8xf32>, vector<8x8xf32>, vector<8x8xf32> -> vector<8x8xf32>
    %186 = vector.extract_strided_slice %30 {offsets = [16, 0], sizes = [8, 32], strides = [1, 1]} : vector<32x32xf32> to vector<8x32xf32>
    %cst_59 = arith.constant dense<0.000000e+00> : vector<8x32xf32>
    %187 = tpu.matmul %185, %186, %cst_59 {dimension_numbers = #tpu.dot_dimension_numbers<[1], [0], [0], [1], [0, 0, 1, 1], [], []>} : vector<8x8xf32>, vector<8x32xf32>, vector<8x32xf32> -> vector<8x32xf32>
    %188 = arith.addf %166, %187 : vector<8x32xf32>
    %189 = vector.extract_strided_slice %123 {offsets = [0, 24], sizes = [8, 8], strides = [1, 1]} : vector<8x96xf32> to vector<8x8xf32>
    %190 = vector.extract_strided_slice %123 {offsets = [0, 56], sizes = [8, 8], strides = [1, 1]} : vector<8x96xf32> to vector<8x8xf32>
    %191 = vector.extract_strided_slice %123 {offsets = [0, 88], sizes = [8, 8], strides = [1, 1]} : vector<8x96xf32> to vector<8x8xf32>
    %cst_60 = arith.constant dense<0.000000e+00> : vector<8x8xf32>
    %192 = tpu.matmul %189, %190, %cst_60 {dimension_numbers = #tpu.dot_dimension_numbers<[1], [1], [0], [0], [0, 0, 1, 0], [], []>} : vector<8x8xf32>, vector<8x8xf32>, vector<8x8xf32> -> vector<8x8xf32>
    %cst_61 = arith.constant 0.353553385 : f32
    %193 = vector.broadcast %cst_61 : f32 to vector<8x8xf32>
    %194 = arith.mulf %192, %193 : vector<8x8xf32>
    %195 = vector.broadcast %5 : vector<1x8xf32> to vector<8x8xf32>
    %196 = arith.addf %194, %195 : vector<8x8xf32>
    %cst_62 = arith.constant dense<0xFF800000> : vector<8xf32>
    %197 = vector.multi_reduction <maximumf>, %196, %cst_62 [1] : vector<8x8xf32> to vector<8xf32>
    %198 = vector.shape_cast %197 : vector<8xf32> to vector<8x1xf32>
    %199 = vector.broadcast %198 : vector<8x1xf32> to vector<8x8xf32>
    %200 = arith.subf %196, %199 : vector<8x8xf32>
    %201 = math.exp %200 : vector<8x8xf32>
    %cst_63 = arith.constant dense<0.000000e+00> : vector<8xf32>
    %202 = vector.multi_reduction <add>, %201, %cst_63 [1] : vector<8x8xf32> to vector<8xf32>
    %203 = vector.shape_cast %202 : vector<8xf32> to vector<8x1xf32>
    %204 = tpu.reciprocal %203 {approx = true} : vector<8x1xf32> -> vector<8x1xf32>
    %205 = vector.broadcast %204 : vector<8x1xf32> to vector<8x8xf32>
    %206 = arith.mulf %201, %205 : vector<8x8xf32>
    %cst_64 = arith.constant dense<0.000000e+00> : vector<8x8xf32>
    %207 = tpu.matmul %206, %191, %cst_64 {dimension_numbers = #tpu.dot_dimension_numbers<[1], [0], [0], [1], [0, 0, 1, 1], [], []>} : vector<8x8xf32>, vector<8x8xf32>, vector<8x8xf32> -> vector<8x8xf32>
    %208 = vector.extract_strided_slice %30 {offsets = [24, 0], sizes = [8, 32], strides = [1, 1]} : vector<32x32xf32> to vector<8x32xf32>
    %cst_65 = arith.constant dense<0.000000e+00> : vector<8x32xf32>
    %209 = tpu.matmul %207, %208, %cst_65 {dimension_numbers = #tpu.dot_dimension_numbers<[1], [0], [0], [1], [0, 0, 1, 1], [], []>} : vector<8x8xf32>, vector<8x32xf32>, vector<8x32xf32> -> vector<8x32xf32>
    %210 = arith.addf %188, %209 : vector<8x32xf32>
    %211 = tpu.concatenate %122, %210 in 0 : vector<8x32xf32>, vector<8x32xf32> -> vector<16x32xf32>
    %212 = vector.broadcast %31 : vector<1x32xf32> to vector<16x32xf32>
    %213 = arith.addf %211, %212 : vector<16x32xf32>
    %c304 = arith.constant 304 : index
    %c0_66 = arith.constant 0 : index
    %214 = vector.load %arg0[%c304, %c0_66] : memref<944x128xf32, #tpu.memory_space<vmem>>, vector<1x32xf32>
    %c312 = arith.constant 312 : index
    %c0_67 = arith.constant 0 : index
    %215 = vector.load %arg0[%c312, %c0_67] : memref<944x128xf32, #tpu.memory_space<vmem>>, vector<1x32xf32>
    %cst_68 = arith.constant dense<0.000000e+00> : vector<16xf32>
    %216 = vector.multi_reduction <add>, %213, %cst_68 [1] : vector<16x32xf32> to vector<16xf32>
    %217 = vector.shape_cast %216 : vector<16xf32> to vector<16x1xf32>
    %cst_69 = arith.constant 3.200000e+01 : f32
    %218 = vector.broadcast %cst_69 : f32 to vector<16x1xf32>
    %219 = arith.divf %217, %218 : vector<16x1xf32>
    %220 = vector.broadcast %219 : vector<16x1xf32> to vector<16x32xf32>
    %221 = arith.subf %213, %220 : vector<16x32xf32>
    %222 = arith.mulf %221, %221 : vector<16x32xf32>
    %cst_70 = arith.constant dense<0.000000e+00> : vector<16xf32>
    %223 = vector.multi_reduction <add>, %222, %cst_70 [1] : vector<16x32xf32> to vector<16xf32>
    %224 = vector.shape_cast %223 : vector<16xf32> to vector<16x1xf32>
    %cst_71 = arith.constant 3.200000e+01 : f32
    %225 = vector.broadcast %cst_71 : f32 to vector<16x1xf32>
    %226 = arith.divf %224, %225 : vector<16x1xf32>
    %227 = vector.broadcast %219 : vector<16x1xf32> to vector<16x32xf32>
    %228 = arith.subf %213, %227 : vector<16x32xf32>
    %cst_72 = arith.constant 9.99999997E-7 : f32
    %229 = vector.broadcast %cst_72 : f32 to vector<16x1xf32>
    %230 = arith.addf %226, %229 : vector<16x1xf32>
    %231 = math.rsqrt %230 : vector<16x1xf32>
    %232 = vector.broadcast %231 : vector<16x1xf32> to vector<16x32xf32>
    %233 = arith.mulf %228, %232 : vector<16x32xf32>
    %234 = vector.broadcast %214 : vector<1x32xf32> to vector<16x32xf32>
    %235 = arith.mulf %233, %234 : vector<16x32xf32>
    %236 = vector.broadcast %215 : vector<1x32xf32> to vector<16x32xf32>
    %237 = arith.addf %235, %236 : vector<16x32xf32>
    %238 = arith.addf %213, %237 : vector<16x32xf32>
    %c320 = arith.constant 320 : index
    %c0_73 = arith.constant 0 : index
    %239 = vector.load %arg0[%c320, %c0_73] : memref<944x128xf32, #tpu.memory_space<vmem>>, vector<32x128xf32>
    %cst_74 = arith.constant dense<0.000000e+00> : vector<16x128xf32>
    %240 = tpu.matmul %238, %239, %cst_74 {dimension_numbers = #tpu.dot_dimension_numbers<[1], [0], [0], [1], [0, 0, 1, 1], [], []>} : vector<16x32xf32>, vector<32x128xf32>, vector<16x128xf32> -> vector<16x128xf32>
    %c352 = arith.constant 352 : index
    %c0_75 = arith.constant 0 : index
    %241 = vector.load %arg0[%c352, %c0_75] : memref<944x128xf32, #tpu.memory_space<vmem>>, vector<1x128xf32>
    %242 = vector.broadcast %241 : vector<1x128xf32> to vector<16x128xf32>
    %243 = arith.addf %240, %242 : vector<16x128xf32>
    %cst_76 = arith.constant 5.000000e-01 : f32
    %244 = vector.broadcast %cst_76 : f32 to vector<16x128xf32>
    %245 = arith.mulf %244, %243 : vector<16x128xf32>
    %cst_77 = arith.constant 4.471500e-02 : f32
    %246 = vector.broadcast %cst_77 : f32 to vector<16x128xf32>
    %247 = arith.mulf %246, %243 : vector<16x128xf32>
    %248 = arith.mulf %247, %243 : vector<16x128xf32>
    %249 = arith.mulf %248, %243 : vector<16x128xf32>
    %250 = arith.addf %243, %249 : vector<16x128xf32>
    %cst_78 = arith.constant 0.797884583 : f32
    %251 = vector.broadcast %cst_78 : f32 to vector<16x128xf32>
    %252 = arith.mulf %251, %250 : vector<16x128xf32>
    %253 = math.tanh %252 : vector<16x128xf32>
    %cst_79 = arith.constant 1.000000e+00 : f32
    %254 = vector.broadcast %cst_79 : f32 to vector<16x128xf32>
    %255 = arith.addf %254, %253 : vector<16x128xf32>
    %256 = arith.mulf %245, %255 : vector<16x128xf32>
    %c360 = arith.constant 360 : index
    %c0_80 = arith.constant 0 : index
    %257 = vector.load %arg0[%c360, %c0_80] : memref<944x128xf32, #tpu.memory_space<vmem>>, vector<128x32xf32>
    %cst_81 = arith.constant dense<0.000000e+00> : vector<16x32xf32>
    %258 = tpu.matmul %256, %257, %cst_81 {dimension_numbers = #tpu.dot_dimension_numbers<[1], [0], [0], [1], [0, 0, 1, 1], [], []>} : vector<16x128xf32>, vector<128x32xf32>, vector<16x32xf32> -> vector<16x32xf32>
    %c488 = arith.constant 488 : index
    %c0_82 = arith.constant 0 : index
    %259 = vector.load %arg0[%c488, %c0_82] : memref<944x128xf32, #tpu.memory_space<vmem>>, vector<1x32xf32>
    %260 = vector.broadcast %259 : vector<1x32xf32> to vector<16x32xf32>
    %261 = arith.addf %258, %260 : vector<16x32xf32>
    %c496 = arith.constant 496 : index
    %c0_83 = arith.constant 0 : index
    %262 = vector.load %arg0[%c496, %c0_83] : memref<944x128xf32, #tpu.memory_space<vmem>>, vector<1x32xf32>
    %c504 = arith.constant 504 : index
    %c0_84 = arith.constant 0 : index
    %263 = vector.load %arg0[%c504, %c0_84] : memref<944x128xf32, #tpu.memory_space<vmem>>, vector<1x32xf32>
    %cst_85 = arith.constant dense<0.000000e+00> : vector<16xf32>
    %264 = vector.multi_reduction <add>, %261, %cst_85 [1] : vector<16x32xf32> to vector<16xf32>
    %265 = vector.shape_cast %264 : vector<16xf32> to vector<16x1xf32>
    %cst_86 = arith.constant 3.200000e+01 : f32
    %266 = vector.broadcast %cst_86 : f32 to vector<16x1xf32>
    %267 = arith.divf %265, %266 : vector<16x1xf32>
    %268 = vector.broadcast %267 : vector<16x1xf32> to vector<16x32xf32>
    %269 = arith.subf %261, %268 : vector<16x32xf32>
    %270 = arith.mulf %269, %269 : vector<16x32xf32>
    %cst_87 = arith.constant dense<0.000000e+00> : vector<16xf32>
    %271 = vector.multi_reduction <add>, %270, %cst_87 [1] : vector<16x32xf32> to vector<16xf32>
    %272 = vector.shape_cast %271 : vector<16xf32> to vector<16x1xf32>
    %cst_88 = arith.constant 3.200000e+01 : f32
    %273 = vector.broadcast %cst_88 : f32 to vector<16x1xf32>
    %274 = arith.divf %272, %273 : vector<16x1xf32>
    %275 = vector.broadcast %267 : vector<16x1xf32> to vector<16x32xf32>
    %276 = arith.subf %261, %275 : vector<16x32xf32>
    %cst_89 = arith.constant 9.99999997E-7 : f32
    %277 = vector.broadcast %cst_89 : f32 to vector<16x1xf32>
    %278 = arith.addf %274, %277 : vector<16x1xf32>
    %279 = math.rsqrt %278 : vector<16x1xf32>
    %280 = vector.broadcast %279 : vector<16x1xf32> to vector<16x32xf32>
    %281 = arith.mulf %276, %280 : vector<16x32xf32>
    %282 = vector.broadcast %262 : vector<1x32xf32> to vector<16x32xf32>
    %283 = arith.mulf %281, %282 : vector<16x32xf32>
    %284 = vector.broadcast %263 : vector<1x32xf32> to vector<16x32xf32>
    %285 = arith.addf %283, %284 : vector<16x32xf32>
    %286 = arith.addf %238, %285 : vector<16x32xf32>
    %c512 = arith.constant 512 : index
    %c0_90 = arith.constant 0 : index
    %287 = vector.load %arg0[%c512, %c0_90] : memref<944x128xf32, #tpu.memory_space<vmem>>, vector<32x96xf32>
    %c544 = arith.constant 544 : index
    %c0_91 = arith.constant 0 : index
    %288 = vector.load %arg0[%c544, %c0_91] : memref<944x128xf32, #tpu.memory_space<vmem>>, vector<1x96xf32>
    %c552 = arith.constant 552 : index
    %c0_92 = arith.constant 0 : index
    %289 = vector.load %arg0[%c552, %c0_92] : memref<944x128xf32, #tpu.memory_space<vmem>>, vector<32x32xf32>
    %c584 = arith.constant 584 : index
    %c0_93 = arith.constant 0 : index
    %290 = vector.load %arg0[%c584, %c0_93] : memref<944x128xf32, #tpu.memory_space<vmem>>, vector<1x32xf32>
    %cst_94 = arith.constant dense<0.000000e+00> : vector<16x96xf32>
    %291 = tpu.matmul %286, %287, %cst_94 {dimension_numbers = #tpu.dot_dimension_numbers<[1], [0], [0], [1], [0, 0, 1, 1], [], []>} : vector<16x32xf32>, vector<32x96xf32>, vector<16x96xf32> -> vector<16x96xf32>
    %292 = vector.broadcast %288 : vector<1x96xf32> to vector<16x96xf32>
    %293 = arith.addf %291, %292 : vector<16x96xf32>
    %294 = vector.extract_strided_slice %293 {offsets = [0, 0], sizes = [8, 96], strides = [1, 1]} : vector<16x96xf32> to vector<8x96xf32>
    %295 = vector.extract_strided_slice %294 {offsets = [0, 0], sizes = [8, 8], strides = [1, 1]} : vector<8x96xf32> to vector<8x8xf32>
    %296 = vector.extract_strided_slice %294 {offsets = [0, 32], sizes = [8, 8], strides = [1, 1]} : vector<8x96xf32> to vector<8x8xf32>
    %297 = vector.extract_strided_slice %294 {offsets = [0, 64], sizes = [8, 8], strides = [1, 1]} : vector<8x96xf32> to vector<8x8xf32>
    %cst_95 = arith.constant dense<0.000000e+00> : vector<8x8xf32>
    %298 = tpu.matmul %295, %296, %cst_95 {dimension_numbers = #tpu.dot_dimension_numbers<[1], [1], [0], [0], [0, 0, 1, 0], [], []>} : vector<8x8xf32>, vector<8x8xf32>, vector<8x8xf32> -> vector<8x8xf32>
    %cst_96 = arith.constant 0.353553385 : f32
    %299 = vector.broadcast %cst_96 : f32 to vector<8x8xf32>
    %300 = arith.mulf %298, %299 : vector<8x8xf32>
    %301 = vector.broadcast %5 : vector<1x8xf32> to vector<8x8xf32>
    %302 = arith.addf %300, %301 : vector<8x8xf32>
    %cst_97 = arith.constant dense<0xFF800000> : vector<8xf32>
    %303 = vector.multi_reduction <maximumf>, %302, %cst_97 [1] : vector<8x8xf32> to vector<8xf32>
    %304 = vector.shape_cast %303 : vector<8xf32> to vector<8x1xf32>
    %305 = vector.broadcast %304 : vector<8x1xf32> to vector<8x8xf32>
    %306 = arith.subf %302, %305 : vector<8x8xf32>
    %307 = math.exp %306 : vector<8x8xf32>
    %cst_98 = arith.constant dense<0.000000e+00> : vector<8xf32>
    %308 = vector.multi_reduction <add>, %307, %cst_98 [1] : vector<8x8xf32> to vector<8xf32>
    %309 = vector.shape_cast %308 : vector<8xf32> to vector<8x1xf32>
    %310 = tpu.reciprocal %309 {approx = true} : vector<8x1xf32> -> vector<8x1xf32>
    %311 = vector.broadcast %310 : vector<8x1xf32> to vector<8x8xf32>
    %312 = arith.mulf %307, %311 : vector<8x8xf32>
    %313 = vector.broadcast %13 : vector<1x8xf32> to vector<8x8xf32>
    %314 = arith.mulf %312, %313 : vector<8x8xf32>
    %cst_99 = arith.constant dense<0.000000e+00> : vector<8xf32>
    %315 = vector.multi_reduction <add>, %314, %cst_99 [1] : vector<8x8xf32> to vector<8xf32>
    %316 = vector.shape_cast %315 : vector<8xf32> to vector<8x1xf32>
    %317 = tpu.reciprocal %316 {approx = true} : vector<8x1xf32> -> vector<8x1xf32>
    %318 = arith.mulf %22, %317 : vector<8x1xf32>
    %319 = vector.broadcast %318 : vector<8x1xf32> to vector<8x8xf32>
    %320 = arith.mulf %314, %319 : vector<8x8xf32>
    %cst_100 = arith.constant dense<0.000000e+00> : vector<8xf32>
    %321 = vector.multi_reduction <add>, %320, %cst_100 [0] : vector<8x8xf32> to vector<8xf32>
    %322 = vector.shape_cast %321 : vector<8xf32> to vector<1x8xf32>
    %cst_101 = arith.constant dense<0.000000e+00> : vector<8x8xf32>
    %323 = tpu.matmul %312, %297, %cst_101 {dimension_numbers = #tpu.dot_dimension_numbers<[1], [0], [0], [1], [0, 0, 1, 1], [], []>} : vector<8x8xf32>, vector<8x8xf32>, vector<8x8xf32> -> vector<8x8xf32>
    %324 = vector.extract_strided_slice %289 {offsets = [0, 0], sizes = [8, 32], strides = [1, 1]} : vector<32x32xf32> to vector<8x32xf32>
    %cst_102 = arith.constant dense<0.000000e+00> : vector<8x32xf32>
    %325 = tpu.matmul %323, %324, %cst_102 {dimension_numbers = #tpu.dot_dimension_numbers<[1], [0], [0], [1], [0, 0, 1, 1], [], []>} : vector<8x8xf32>, vector<8x32xf32>, vector<8x32xf32> -> vector<8x32xf32>
    %326 = vector.extract_strided_slice %294 {offsets = [0, 8], sizes = [8, 8], strides = [1, 1]} : vector<8x96xf32> to vector<8x8xf32>
    %327 = vector.extract_strided_slice %294 {offsets = [0, 40], sizes = [8, 8], strides = [1, 1]} : vector<8x96xf32> to vector<8x8xf32>
    %328 = vector.extract_strided_slice %294 {offsets = [0, 72], sizes = [8, 8], strides = [1, 1]} : vector<8x96xf32> to vector<8x8xf32>
    %cst_103 = arith.constant dense<0.000000e+00> : vector<8x8xf32>
    %329 = tpu.matmul %326, %327, %cst_103 {dimension_numbers = #tpu.dot_dimension_numbers<[1], [1], [0], [0], [0, 0, 1, 0], [], []>} : vector<8x8xf32>, vector<8x8xf32>, vector<8x8xf32> -> vector<8x8xf32>
    %cst_104 = arith.constant 0.353553385 : f32
    %330 = vector.broadcast %cst_104 : f32 to vector<8x8xf32>
    %331 = arith.mulf %329, %330 : vector<8x8xf32>
    %332 = vector.broadcast %5 : vector<1x8xf32> to vector<8x8xf32>
    %333 = arith.addf %331, %332 : vector<8x8xf32>
    %cst_105 = arith.constant dense<0xFF800000> : vector<8xf32>
    %334 = vector.multi_reduction <maximumf>, %333, %cst_105 [1] : vector<8x8xf32> to vector<8xf32>
    %335 = vector.shape_cast %334 : vector<8xf32> to vector<8x1xf32>
    %336 = vector.broadcast %335 : vector<8x1xf32> to vector<8x8xf32>
    %337 = arith.subf %333, %336 : vector<8x8xf32>
    %338 = math.exp %337 : vector<8x8xf32>
    %cst_106 = arith.constant dense<0.000000e+00> : vector<8xf32>
    %339 = vector.multi_reduction <add>, %338, %cst_106 [1] : vector<8x8xf32> to vector<8xf32>
    %340 = vector.shape_cast %339 : vector<8xf32> to vector<8x1xf32>
    %341 = tpu.reciprocal %340 {approx = true} : vector<8x1xf32> -> vector<8x1xf32>
    %342 = vector.broadcast %341 : vector<8x1xf32> to vector<8x8xf32>
    %343 = arith.mulf %338, %342 : vector<8x8xf32>
    %344 = vector.broadcast %13 : vector<1x8xf32> to vector<8x8xf32>
    %345 = arith.mulf %343, %344 : vector<8x8xf32>
    %cst_107 = arith.constant dense<0.000000e+00> : vector<8xf32>
    %346 = vector.multi_reduction <add>, %345, %cst_107 [1] : vector<8x8xf32> to vector<8xf32>
    %347 = vector.shape_cast %346 : vector<8xf32> to vector<8x1xf32>
    %348 = tpu.reciprocal %347 {approx = true} : vector<8x1xf32> -> vector<8x1xf32>
    %349 = arith.mulf %22, %348 : vector<8x1xf32>
    %350 = vector.broadcast %349 : vector<8x1xf32> to vector<8x8xf32>
    %351 = arith.mulf %345, %350 : vector<8x8xf32>
    %cst_108 = arith.constant dense<0.000000e+00> : vector<8xf32>
    %352 = vector.multi_reduction <add>, %351, %cst_108 [0] : vector<8x8xf32> to vector<8xf32>
    %353 = vector.shape_cast %352 : vector<8xf32> to vector<1x8xf32>
    %cst_109 = arith.constant dense<0.000000e+00> : vector<8x8xf32>
    %354 = tpu.matmul %343, %328, %cst_109 {dimension_numbers = #tpu.dot_dimension_numbers<[1], [0], [0], [1], [0, 0, 1, 1], [], []>} : vector<8x8xf32>, vector<8x8xf32>, vector<8x8xf32> -> vector<8x8xf32>
    %355 = vector.extract_strided_slice %289 {offsets = [8, 0], sizes = [8, 32], strides = [1, 1]} : vector<32x32xf32> to vector<8x32xf32>
    %cst_110 = arith.constant dense<0.000000e+00> : vector<8x32xf32>
    %356 = tpu.matmul %354, %355, %cst_110 {dimension_numbers = #tpu.dot_dimension_numbers<[1], [0], [0], [1], [0, 0, 1, 1], [], []>} : vector<8x8xf32>, vector<8x32xf32>, vector<8x32xf32> -> vector<8x32xf32>
    %357 = arith.addf %325, %356 : vector<8x32xf32>
    %358 = vector.extract_strided_slice %294 {offsets = [0, 16], sizes = [8, 8], strides = [1, 1]} : vector<8x96xf32> to vector<8x8xf32>
    %359 = vector.extract_strided_slice %294 {offsets = [0, 48], sizes = [8, 8], strides = [1, 1]} : vector<8x96xf32> to vector<8x8xf32>
    %360 = vector.extract_strided_slice %294 {offsets = [0, 80], sizes = [8, 8], strides = [1, 1]} : vector<8x96xf32> to vector<8x8xf32>
    %cst_111 = arith.constant dense<0.000000e+00> : vector<8x8xf32>
    %361 = tpu.matmul %358, %359, %cst_111 {dimension_numbers = #tpu.dot_dimension_numbers<[1], [1], [0], [0], [0, 0, 1, 0], [], []>} : vector<8x8xf32>, vector<8x8xf32>, vector<8x8xf32> -> vector<8x8xf32>
    %cst_112 = arith.constant 0.353553385 : f32
    %362 = vector.broadcast %cst_112 : f32 to vector<8x8xf32>
    %363 = arith.mulf %361, %362 : vector<8x8xf32>
    %364 = vector.broadcast %5 : vector<1x8xf32> to vector<8x8xf32>
    %365 = arith.addf %363, %364 : vector<8x8xf32>
    %cst_113 = arith.constant dense<0xFF800000> : vector<8xf32>
    %366 = vector.multi_reduction <maximumf>, %365, %cst_113 [1] : vector<8x8xf32> to vector<8xf32>
    %367 = vector.shape_cast %366 : vector<8xf32> to vector<8x1xf32>
    %368 = vector.broadcast %367 : vector<8x1xf32> to vector<8x8xf32>
    %369 = arith.subf %365, %368 : vector<8x8xf32>
    %370 = math.exp %369 : vector<8x8xf32>
    %cst_114 = arith.constant dense<0.000000e+00> : vector<8xf32>
    %371 = vector.multi_reduction <add>, %370, %cst_114 [1] : vector<8x8xf32> to vector<8xf32>
    %372 = vector.shape_cast %371 : vector<8xf32> to vector<8x1xf32>
    %373 = tpu.reciprocal %372 {approx = true} : vector<8x1xf32> -> vector<8x1xf32>
    %374 = vector.broadcast %373 : vector<8x1xf32> to vector<8x8xf32>
    %375 = arith.mulf %370, %374 : vector<8x8xf32>
    %376 = vector.broadcast %13 : vector<1x8xf32> to vector<8x8xf32>
    %377 = arith.mulf %375, %376 : vector<8x8xf32>
    %cst_115 = arith.constant dense<0.000000e+00> : vector<8xf32>
    %378 = vector.multi_reduction <add>, %377, %cst_115 [1] : vector<8x8xf32> to vector<8xf32>
    %379 = vector.shape_cast %378 : vector<8xf32> to vector<8x1xf32>
    %380 = tpu.reciprocal %379 {approx = true} : vector<8x1xf32> -> vector<8x1xf32>
    %381 = arith.mulf %22, %380 : vector<8x1xf32>
    %382 = vector.broadcast %381 : vector<8x1xf32> to vector<8x8xf32>
    %383 = arith.mulf %377, %382 : vector<8x8xf32>
    %cst_116 = arith.constant dense<0.000000e+00> : vector<8xf32>
    %384 = vector.multi_reduction <add>, %383, %cst_116 [0] : vector<8x8xf32> to vector<8xf32>
    %385 = vector.shape_cast %384 : vector<8xf32> to vector<1x8xf32>
    %cst_117 = arith.constant dense<0.000000e+00> : vector<8x8xf32>
    %386 = tpu.matmul %375, %360, %cst_117 {dimension_numbers = #tpu.dot_dimension_numbers<[1], [0], [0], [1], [0, 0, 1, 1], [], []>} : vector<8x8xf32>, vector<8x8xf32>, vector<8x8xf32> -> vector<8x8xf32>
    %387 = vector.extract_strided_slice %289 {offsets = [16, 0], sizes = [8, 32], strides = [1, 1]} : vector<32x32xf32> to vector<8x32xf32>
    %cst_118 = arith.constant dense<0.000000e+00> : vector<8x32xf32>
    %388 = tpu.matmul %386, %387, %cst_118 {dimension_numbers = #tpu.dot_dimension_numbers<[1], [0], [0], [1], [0, 0, 1, 1], [], []>} : vector<8x8xf32>, vector<8x32xf32>, vector<8x32xf32> -> vector<8x32xf32>
    %389 = arith.addf %357, %388 : vector<8x32xf32>
    %390 = vector.extract_strided_slice %294 {offsets = [0, 24], sizes = [8, 8], strides = [1, 1]} : vector<8x96xf32> to vector<8x8xf32>
    %391 = vector.extract_strided_slice %294 {offsets = [0, 56], sizes = [8, 8], strides = [1, 1]} : vector<8x96xf32> to vector<8x8xf32>
    %392 = vector.extract_strided_slice %294 {offsets = [0, 88], sizes = [8, 8], strides = [1, 1]} : vector<8x96xf32> to vector<8x8xf32>
    %cst_119 = arith.constant dense<0.000000e+00> : vector<8x8xf32>
    %393 = tpu.matmul %390, %391, %cst_119 {dimension_numbers = #tpu.dot_dimension_numbers<[1], [1], [0], [0], [0, 0, 1, 0], [], []>} : vector<8x8xf32>, vector<8x8xf32>, vector<8x8xf32> -> vector<8x8xf32>
    %cst_120 = arith.constant 0.353553385 : f32
    %394 = vector.broadcast %cst_120 : f32 to vector<8x8xf32>
    %395 = arith.mulf %393, %394 : vector<8x8xf32>
    %396 = vector.broadcast %5 : vector<1x8xf32> to vector<8x8xf32>
    %397 = arith.addf %395, %396 : vector<8x8xf32>
    %cst_121 = arith.constant dense<0xFF800000> : vector<8xf32>
    %398 = vector.multi_reduction <maximumf>, %397, %cst_121 [1] : vector<8x8xf32> to vector<8xf32>
    %399 = vector.shape_cast %398 : vector<8xf32> to vector<8x1xf32>
    %400 = vector.broadcast %399 : vector<8x1xf32> to vector<8x8xf32>
    %401 = arith.subf %397, %400 : vector<8x8xf32>
    %402 = math.exp %401 : vector<8x8xf32>
    %cst_122 = arith.constant dense<0.000000e+00> : vector<8xf32>
    %403 = vector.multi_reduction <add>, %402, %cst_122 [1] : vector<8x8xf32> to vector<8xf32>
    %404 = vector.shape_cast %403 : vector<8xf32> to vector<8x1xf32>
    %405 = tpu.reciprocal %404 {approx = true} : vector<8x1xf32> -> vector<8x1xf32>
    %406 = vector.broadcast %405 : vector<8x1xf32> to vector<8x8xf32>
    %407 = arith.mulf %402, %406 : vector<8x8xf32>
    %408 = vector.broadcast %13 : vector<1x8xf32> to vector<8x8xf32>
    %409 = arith.mulf %407, %408 : vector<8x8xf32>
    %cst_123 = arith.constant dense<0.000000e+00> : vector<8xf32>
    %410 = vector.multi_reduction <add>, %409, %cst_123 [1] : vector<8x8xf32> to vector<8xf32>
    %411 = vector.shape_cast %410 : vector<8xf32> to vector<8x1xf32>
    %412 = tpu.reciprocal %411 {approx = true} : vector<8x1xf32> -> vector<8x1xf32>
    %413 = arith.mulf %22, %412 : vector<8x1xf32>
    %414 = vector.broadcast %413 : vector<8x1xf32> to vector<8x8xf32>
    %415 = arith.mulf %409, %414 : vector<8x8xf32>
    %cst_124 = arith.constant dense<0.000000e+00> : vector<8xf32>
    %416 = vector.multi_reduction <add>, %415, %cst_124 [0] : vector<8x8xf32> to vector<8xf32>
    %417 = vector.shape_cast %416 : vector<8xf32> to vector<1x8xf32>
    %cst_125 = arith.constant dense<0.000000e+00> : vector<8x8xf32>
    %418 = tpu.matmul %407, %392, %cst_125 {dimension_numbers = #tpu.dot_dimension_numbers<[1], [0], [0], [1], [0, 0, 1, 1], [], []>} : vector<8x8xf32>, vector<8x8xf32>, vector<8x8xf32> -> vector<8x8xf32>
    %419 = vector.extract_strided_slice %289 {offsets = [24, 0], sizes = [8, 32], strides = [1, 1]} : vector<32x32xf32> to vector<8x32xf32>
    %cst_126 = arith.constant dense<0.000000e+00> : vector<8x32xf32>
    %420 = tpu.matmul %418, %419, %cst_126 {dimension_numbers = #tpu.dot_dimension_numbers<[1], [0], [0], [1], [0, 0, 1, 1], [], []>} : vector<8x8xf32>, vector<8x32xf32>, vector<8x32xf32> -> vector<8x32xf32>
    %421 = arith.addf %389, %420 : vector<8x32xf32>
    %422 = vector.extract_strided_slice %293 {offsets = [8, 0], sizes = [8, 96], strides = [1, 1]} : vector<16x96xf32> to vector<8x96xf32>
    %423 = vector.extract_strided_slice %422 {offsets = [0, 0], sizes = [8, 8], strides = [1, 1]} : vector<8x96xf32> to vector<8x8xf32>
    %424 = vector.extract_strided_slice %422 {offsets = [0, 32], sizes = [8, 8], strides = [1, 1]} : vector<8x96xf32> to vector<8x8xf32>
    %425 = vector.extract_strided_slice %422 {offsets = [0, 64], sizes = [8, 8], strides = [1, 1]} : vector<8x96xf32> to vector<8x8xf32>
    %cst_127 = arith.constant dense<0.000000e+00> : vector<8x8xf32>
    %426 = tpu.matmul %423, %424, %cst_127 {dimension_numbers = #tpu.dot_dimension_numbers<[1], [1], [0], [0], [0, 0, 1, 0], [], []>} : vector<8x8xf32>, vector<8x8xf32>, vector<8x8xf32> -> vector<8x8xf32>
    %cst_128 = arith.constant 0.353553385 : f32
    %427 = vector.broadcast %cst_128 : f32 to vector<8x8xf32>
    %428 = arith.mulf %426, %427 : vector<8x8xf32>
    %429 = vector.broadcast %5 : vector<1x8xf32> to vector<8x8xf32>
    %430 = arith.addf %428, %429 : vector<8x8xf32>
    %cst_129 = arith.constant dense<0xFF800000> : vector<8xf32>
    %431 = vector.multi_reduction <maximumf>, %430, %cst_129 [1] : vector<8x8xf32> to vector<8xf32>
    %432 = vector.shape_cast %431 : vector<8xf32> to vector<8x1xf32>
    %433 = vector.broadcast %432 : vector<8x1xf32> to vector<8x8xf32>
    %434 = arith.subf %430, %433 : vector<8x8xf32>
    %435 = math.exp %434 : vector<8x8xf32>
    %cst_130 = arith.constant dense<0.000000e+00> : vector<8xf32>
    %436 = vector.multi_reduction <add>, %435, %cst_130 [1] : vector<8x8xf32> to vector<8xf32>
    %437 = vector.shape_cast %436 : vector<8xf32> to vector<8x1xf32>
    %438 = tpu.reciprocal %437 {approx = true} : vector<8x1xf32> -> vector<8x1xf32>
    %439 = vector.broadcast %438 : vector<8x1xf32> to vector<8x8xf32>
    %440 = arith.mulf %435, %439 : vector<8x8xf32>
    %441 = vector.broadcast %13 : vector<1x8xf32> to vector<8x8xf32>
    %442 = arith.mulf %440, %441 : vector<8x8xf32>
    %cst_131 = arith.constant dense<0.000000e+00> : vector<8xf32>
    %443 = vector.multi_reduction <add>, %442, %cst_131 [1] : vector<8x8xf32> to vector<8xf32>
    %444 = vector.shape_cast %443 : vector<8xf32> to vector<8x1xf32>
    %445 = tpu.reciprocal %444 {approx = true} : vector<8x1xf32> -> vector<8x1xf32>
    %446 = arith.mulf %22, %445 : vector<8x1xf32>
    %447 = vector.broadcast %446 : vector<8x1xf32> to vector<8x8xf32>
    %448 = arith.mulf %442, %447 : vector<8x8xf32>
    %cst_132 = arith.constant dense<0.000000e+00> : vector<8xf32>
    %449 = vector.multi_reduction <add>, %448, %cst_132 [0] : vector<8x8xf32> to vector<8xf32>
    %450 = vector.shape_cast %449 : vector<8xf32> to vector<1x8xf32>
    %cst_133 = arith.constant dense<0.000000e+00> : vector<8x8xf32>
    %451 = tpu.matmul %440, %425, %cst_133 {dimension_numbers = #tpu.dot_dimension_numbers<[1], [0], [0], [1], [0, 0, 1, 1], [], []>} : vector<8x8xf32>, vector<8x8xf32>, vector<8x8xf32> -> vector<8x8xf32>
    %452 = vector.extract_strided_slice %289 {offsets = [0, 0], sizes = [8, 32], strides = [1, 1]} : vector<32x32xf32> to vector<8x32xf32>
    %cst_134 = arith.constant dense<0.000000e+00> : vector<8x32xf32>
    %453 = tpu.matmul %451, %452, %cst_134 {dimension_numbers = #tpu.dot_dimension_numbers<[1], [0], [0], [1], [0, 0, 1, 1], [], []>} : vector<8x8xf32>, vector<8x32xf32>, vector<8x32xf32> -> vector<8x32xf32>
    %454 = vector.extract_strided_slice %422 {offsets = [0, 8], sizes = [8, 8], strides = [1, 1]} : vector<8x96xf32> to vector<8x8xf32>
    %455 = vector.extract_strided_slice %422 {offsets = [0, 40], sizes = [8, 8], strides = [1, 1]} : vector<8x96xf32> to vector<8x8xf32>
    %456 = vector.extract_strided_slice %422 {offsets = [0, 72], sizes = [8, 8], strides = [1, 1]} : vector<8x96xf32> to vector<8x8xf32>
    %cst_135 = arith.constant dense<0.000000e+00> : vector<8x8xf32>
    %457 = tpu.matmul %454, %455, %cst_135 {dimension_numbers = #tpu.dot_dimension_numbers<[1], [1], [0], [0], [0, 0, 1, 0], [], []>} : vector<8x8xf32>, vector<8x8xf32>, vector<8x8xf32> -> vector<8x8xf32>
    %cst_136 = arith.constant 0.353553385 : f32
    %458 = vector.broadcast %cst_136 : f32 to vector<8x8xf32>
    %459 = arith.mulf %457, %458 : vector<8x8xf32>
    %460 = vector.broadcast %5 : vector<1x8xf32> to vector<8x8xf32>
    %461 = arith.addf %459, %460 : vector<8x8xf32>
    %cst_137 = arith.constant dense<0xFF800000> : vector<8xf32>
    %462 = vector.multi_reduction <maximumf>, %461, %cst_137 [1] : vector<8x8xf32> to vector<8xf32>
    %463 = vector.shape_cast %462 : vector<8xf32> to vector<8x1xf32>
    %464 = vector.broadcast %463 : vector<8x1xf32> to vector<8x8xf32>
    %465 = arith.subf %461, %464 : vector<8x8xf32>
    %466 = math.exp %465 : vector<8x8xf32>
    %cst_138 = arith.constant dense<0.000000e+00> : vector<8xf32>
    %467 = vector.multi_reduction <add>, %466, %cst_138 [1] : vector<8x8xf32> to vector<8xf32>
    %468 = vector.shape_cast %467 : vector<8xf32> to vector<8x1xf32>
    %469 = tpu.reciprocal %468 {approx = true} : vector<8x1xf32> -> vector<8x1xf32>
    %470 = vector.broadcast %469 : vector<8x1xf32> to vector<8x8xf32>
    %471 = arith.mulf %466, %470 : vector<8x8xf32>
    %472 = vector.broadcast %13 : vector<1x8xf32> to vector<8x8xf32>
    %473 = arith.mulf %471, %472 : vector<8x8xf32>
    %cst_139 = arith.constant dense<0.000000e+00> : vector<8xf32>
    %474 = vector.multi_reduction <add>, %473, %cst_139 [1] : vector<8x8xf32> to vector<8xf32>
    %475 = vector.shape_cast %474 : vector<8xf32> to vector<8x1xf32>
    %476 = tpu.reciprocal %475 {approx = true} : vector<8x1xf32> -> vector<8x1xf32>
    %477 = arith.mulf %22, %476 : vector<8x1xf32>
    %478 = vector.broadcast %477 : vector<8x1xf32> to vector<8x8xf32>
    %479 = arith.mulf %473, %478 : vector<8x8xf32>
    %cst_140 = arith.constant dense<0.000000e+00> : vector<8xf32>
    %480 = vector.multi_reduction <add>, %479, %cst_140 [0] : vector<8x8xf32> to vector<8xf32>
    %481 = vector.shape_cast %480 : vector<8xf32> to vector<1x8xf32>
    %cst_141 = arith.constant dense<0.000000e+00> : vector<8x8xf32>
    %482 = tpu.matmul %471, %456, %cst_141 {dimension_numbers = #tpu.dot_dimension_numbers<[1], [0], [0], [1], [0, 0, 1, 1], [], []>} : vector<8x8xf32>, vector<8x8xf32>, vector<8x8xf32> -> vector<8x8xf32>
    %483 = vector.extract_strided_slice %289 {offsets = [8, 0], sizes = [8, 32], strides = [1, 1]} : vector<32x32xf32> to vector<8x32xf32>
    %cst_142 = arith.constant dense<0.000000e+00> : vector<8x32xf32>
    %484 = tpu.matmul %482, %483, %cst_142 {dimension_numbers = #tpu.dot_dimension_numbers<[1], [0], [0], [1], [0, 0, 1, 1], [], []>} : vector<8x8xf32>, vector<8x32xf32>, vector<8x32xf32> -> vector<8x32xf32>
    %485 = arith.addf %453, %484 : vector<8x32xf32>
    %486 = vector.extract_strided_slice %422 {offsets = [0, 16], sizes = [8, 8], strides = [1, 1]} : vector<8x96xf32> to vector<8x8xf32>
    %487 = vector.extract_strided_slice %422 {offsets = [0, 48], sizes = [8, 8], strides = [1, 1]} : vector<8x96xf32> to vector<8x8xf32>
    %488 = vector.extract_strided_slice %422 {offsets = [0, 80], sizes = [8, 8], strides = [1, 1]} : vector<8x96xf32> to vector<8x8xf32>
    %cst_143 = arith.constant dense<0.000000e+00> : vector<8x8xf32>
    %489 = tpu.matmul %486, %487, %cst_143 {dimension_numbers = #tpu.dot_dimension_numbers<[1], [1], [0], [0], [0, 0, 1, 0], [], []>} : vector<8x8xf32>, vector<8x8xf32>, vector<8x8xf32> -> vector<8x8xf32>
    %cst_144 = arith.constant 0.353553385 : f32
    %490 = vector.broadcast %cst_144 : f32 to vector<8x8xf32>
    %491 = arith.mulf %489, %490 : vector<8x8xf32>
    %492 = vector.broadcast %5 : vector<1x8xf32> to vector<8x8xf32>
    %493 = arith.addf %491, %492 : vector<8x8xf32>
    %cst_145 = arith.constant dense<0xFF800000> : vector<8xf32>
    %494 = vector.multi_reduction <maximumf>, %493, %cst_145 [1] : vector<8x8xf32> to vector<8xf32>
    %495 = vector.shape_cast %494 : vector<8xf32> to vector<8x1xf32>
    %496 = vector.broadcast %495 : vector<8x1xf32> to vector<8x8xf32>
    %497 = arith.subf %493, %496 : vector<8x8xf32>
    %498 = math.exp %497 : vector<8x8xf32>
    %cst_146 = arith.constant dense<0.000000e+00> : vector<8xf32>
    %499 = vector.multi_reduction <add>, %498, %cst_146 [1] : vector<8x8xf32> to vector<8xf32>
    %500 = vector.shape_cast %499 : vector<8xf32> to vector<8x1xf32>
    %501 = tpu.reciprocal %500 {approx = true} : vector<8x1xf32> -> vector<8x1xf32>
    %502 = vector.broadcast %501 : vector<8x1xf32> to vector<8x8xf32>
    %503 = arith.mulf %498, %502 : vector<8x8xf32>
    %504 = vector.broadcast %13 : vector<1x8xf32> to vector<8x8xf32>
    %505 = arith.mulf %503, %504 : vector<8x8xf32>
    %cst_147 = arith.constant dense<0.000000e+00> : vector<8xf32>
    %506 = vector.multi_reduction <add>, %505, %cst_147 [1] : vector<8x8xf32> to vector<8xf32>
    %507 = vector.shape_cast %506 : vector<8xf32> to vector<8x1xf32>
    %508 = tpu.reciprocal %507 {approx = true} : vector<8x1xf32> -> vector<8x1xf32>
    %509 = arith.mulf %22, %508 : vector<8x1xf32>
    %510 = vector.broadcast %509 : vector<8x1xf32> to vector<8x8xf32>
    %511 = arith.mulf %505, %510 : vector<8x8xf32>
    %cst_148 = arith.constant dense<0.000000e+00> : vector<8xf32>
    %512 = vector.multi_reduction <add>, %511, %cst_148 [0] : vector<8x8xf32> to vector<8xf32>
    %513 = vector.shape_cast %512 : vector<8xf32> to vector<1x8xf32>
    %cst_149 = arith.constant dense<0.000000e+00> : vector<8x8xf32>
    %514 = tpu.matmul %503, %488, %cst_149 {dimension_numbers = #tpu.dot_dimension_numbers<[1], [0], [0], [1], [0, 0, 1, 1], [], []>} : vector<8x8xf32>, vector<8x8xf32>, vector<8x8xf32> -> vector<8x8xf32>
    %515 = vector.extract_strided_slice %289 {offsets = [16, 0], sizes = [8, 32], strides = [1, 1]} : vector<32x32xf32> to vector<8x32xf32>
    %cst_150 = arith.constant dense<0.000000e+00> : vector<8x32xf32>
    %516 = tpu.matmul %514, %515, %cst_150 {dimension_numbers = #tpu.dot_dimension_numbers<[1], [0], [0], [1], [0, 0, 1, 1], [], []>} : vector<8x8xf32>, vector<8x32xf32>, vector<8x32xf32> -> vector<8x32xf32>
    %517 = arith.addf %485, %516 : vector<8x32xf32>
    %518 = vector.extract_strided_slice %422 {offsets = [0, 24], sizes = [8, 8], strides = [1, 1]} : vector<8x96xf32> to vector<8x8xf32>
    %519 = vector.extract_strided_slice %422 {offsets = [0, 56], sizes = [8, 8], strides = [1, 1]} : vector<8x96xf32> to vector<8x8xf32>
    %520 = vector.extract_strided_slice %422 {offsets = [0, 88], sizes = [8, 8], strides = [1, 1]} : vector<8x96xf32> to vector<8x8xf32>
    %cst_151 = arith.constant dense<0.000000e+00> : vector<8x8xf32>
    %521 = tpu.matmul %518, %519, %cst_151 {dimension_numbers = #tpu.dot_dimension_numbers<[1], [1], [0], [0], [0, 0, 1, 0], [], []>} : vector<8x8xf32>, vector<8x8xf32>, vector<8x8xf32> -> vector<8x8xf32>
    %cst_152 = arith.constant 0.353553385 : f32
    %522 = vector.broadcast %cst_152 : f32 to vector<8x8xf32>
    %523 = arith.mulf %521, %522 : vector<8x8xf32>
    %524 = vector.broadcast %5 : vector<1x8xf32> to vector<8x8xf32>
    %525 = arith.addf %523, %524 : vector<8x8xf32>
    %cst_153 = arith.constant dense<0xFF800000> : vector<8xf32>
    %526 = vector.multi_reduction <maximumf>, %525, %cst_153 [1] : vector<8x8xf32> to vector<8xf32>
    %527 = vector.shape_cast %526 : vector<8xf32> to vector<8x1xf32>
    %528 = vector.broadcast %527 : vector<8x1xf32> to vector<8x8xf32>
    %529 = arith.subf %525, %528 : vector<8x8xf32>
    %530 = math.exp %529 : vector<8x8xf32>
    %cst_154 = arith.constant dense<0.000000e+00> : vector<8xf32>
    %531 = vector.multi_reduction <add>, %530, %cst_154 [1] : vector<8x8xf32> to vector<8xf32>
    %532 = vector.shape_cast %531 : vector<8xf32> to vector<8x1xf32>
    %533 = tpu.reciprocal %532 {approx = true} : vector<8x1xf32> -> vector<8x1xf32>
    %534 = vector.broadcast %533 : vector<8x1xf32> to vector<8x8xf32>
    %535 = arith.mulf %530, %534 : vector<8x8xf32>
    %536 = vector.broadcast %13 : vector<1x8xf32> to vector<8x8xf32>
    %537 = arith.mulf %535, %536 : vector<8x8xf32>
    %cst_155 = arith.constant dense<0.000000e+00> : vector<8xf32>
    %538 = vector.multi_reduction <add>, %537, %cst_155 [1] : vector<8x8xf32> to vector<8xf32>
    %539 = vector.shape_cast %538 : vector<8xf32> to vector<8x1xf32>
    %540 = tpu.reciprocal %539 {approx = true} : vector<8x1xf32> -> vector<8x1xf32>
    %541 = arith.mulf %22, %540 : vector<8x1xf32>
    %542 = vector.broadcast %541 : vector<8x1xf32> to vector<8x8xf32>
    %543 = arith.mulf %537, %542 : vector<8x8xf32>
    %cst_156 = arith.constant dense<0.000000e+00> : vector<8xf32>
    %544 = vector.multi_reduction <add>, %543, %cst_156 [0] : vector<8x8xf32> to vector<8xf32>
    %545 = vector.shape_cast %544 : vector<8xf32> to vector<1x8xf32>
    %cst_157 = arith.constant dense<0.000000e+00> : vector<8x8xf32>
    %546 = tpu.matmul %535, %520, %cst_157 {dimension_numbers = #tpu.dot_dimension_numbers<[1], [0], [0], [1], [0, 0, 1, 1], [], []>} : vector<8x8xf32>, vector<8x8xf32>, vector<8x8xf32> -> vector<8x8xf32>
    %547 = vector.extract_strided_slice %289 {offsets = [24, 0], sizes = [8, 32], strides = [1, 1]} : vector<32x32xf32> to vector<8x32xf32>
    %cst_158 = arith.constant dense<0.000000e+00> : vector<8x32xf32>
    %548 = tpu.matmul %546, %547, %cst_158 {dimension_numbers = #tpu.dot_dimension_numbers<[1], [0], [0], [1], [0, 0, 1, 1], [], []>} : vector<8x8xf32>, vector<8x32xf32>, vector<8x32xf32> -> vector<8x32xf32>
    %549 = arith.addf %517, %548 : vector<8x32xf32>
    %550 = tpu.concatenate %421, %549 in 0 : vector<8x32xf32>, vector<8x32xf32> -> vector<16x32xf32>
    %551 = vector.broadcast %290 : vector<1x32xf32> to vector<16x32xf32>
    %552 = arith.addf %550, %551 : vector<16x32xf32>
    %c592 = arith.constant 592 : index
    %c0_159 = arith.constant 0 : index
    %553 = vector.load %arg0[%c592, %c0_159] : memref<944x128xf32, #tpu.memory_space<vmem>>, vector<1x32xf32>
    %c600 = arith.constant 600 : index
    %c0_160 = arith.constant 0 : index
    %554 = vector.load %arg0[%c600, %c0_160] : memref<944x128xf32, #tpu.memory_space<vmem>>, vector<1x32xf32>
    %cst_161 = arith.constant dense<0.000000e+00> : vector<16xf32>
    %555 = vector.multi_reduction <add>, %552, %cst_161 [1] : vector<16x32xf32> to vector<16xf32>
    %556 = vector.shape_cast %555 : vector<16xf32> to vector<16x1xf32>
    %cst_162 = arith.constant 3.200000e+01 : f32
    %557 = vector.broadcast %cst_162 : f32 to vector<16x1xf32>
    %558 = arith.divf %556, %557 : vector<16x1xf32>
    %559 = vector.broadcast %558 : vector<16x1xf32> to vector<16x32xf32>
    %560 = arith.subf %552, %559 : vector<16x32xf32>
    %561 = arith.mulf %560, %560 : vector<16x32xf32>
    %cst_163 = arith.constant dense<0.000000e+00> : vector<16xf32>
    %562 = vector.multi_reduction <add>, %561, %cst_163 [1] : vector<16x32xf32> to vector<16xf32>
    %563 = vector.shape_cast %562 : vector<16xf32> to vector<16x1xf32>
    %cst_164 = arith.constant 3.200000e+01 : f32
    %564 = vector.broadcast %cst_164 : f32 to vector<16x1xf32>
    %565 = arith.divf %563, %564 : vector<16x1xf32>
    %566 = vector.broadcast %558 : vector<16x1xf32> to vector<16x32xf32>
    %567 = arith.subf %552, %566 : vector<16x32xf32>
    %cst_165 = arith.constant 9.99999997E-7 : f32
    %568 = vector.broadcast %cst_165 : f32 to vector<16x1xf32>
    %569 = arith.addf %565, %568 : vector<16x1xf32>
    %570 = math.rsqrt %569 : vector<16x1xf32>
    %571 = vector.broadcast %570 : vector<16x1xf32> to vector<16x32xf32>
    %572 = arith.mulf %567, %571 : vector<16x32xf32>
    %573 = vector.broadcast %553 : vector<1x32xf32> to vector<16x32xf32>
    %574 = arith.mulf %572, %573 : vector<16x32xf32>
    %575 = vector.broadcast %554 : vector<1x32xf32> to vector<16x32xf32>
    %576 = arith.addf %574, %575 : vector<16x32xf32>
    %577 = arith.addf %552, %576 : vector<16x32xf32>
    %c608 = arith.constant 608 : index
    %c0_166 = arith.constant 0 : index
    %578 = vector.load %arg0[%c608, %c0_166] : memref<944x128xf32, #tpu.memory_space<vmem>>, vector<32x128xf32>
    %cst_167 = arith.constant dense<0.000000e+00> : vector<16x128xf32>
    %579 = tpu.matmul %577, %578, %cst_167 {dimension_numbers = #tpu.dot_dimension_numbers<[1], [0], [0], [1], [0, 0, 1, 1], [], []>} : vector<16x32xf32>, vector<32x128xf32>, vector<16x128xf32> -> vector<16x128xf32>
    %c640 = arith.constant 640 : index
    %c0_168 = arith.constant 0 : index
    %580 = vector.load %arg0[%c640, %c0_168] : memref<944x128xf32, #tpu.memory_space<vmem>>, vector<1x128xf32>
    %581 = vector.broadcast %580 : vector<1x128xf32> to vector<16x128xf32>
    %582 = arith.addf %579, %581 : vector<16x128xf32>
    %cst_169 = arith.constant 5.000000e-01 : f32
    %583 = vector.broadcast %cst_169 : f32 to vector<16x128xf32>
    %584 = arith.mulf %583, %582 : vector<16x128xf32>
    %cst_170 = arith.constant 4.471500e-02 : f32
    %585 = vector.broadcast %cst_170 : f32 to vector<16x128xf32>
    %586 = arith.mulf %585, %582 : vector<16x128xf32>
    %587 = arith.mulf %586, %582 : vector<16x128xf32>
    %588 = arith.mulf %587, %582 : vector<16x128xf32>
    %589 = arith.addf %582, %588 : vector<16x128xf32>
    %cst_171 = arith.constant 0.797884583 : f32
    %590 = vector.broadcast %cst_171 : f32 to vector<16x128xf32>
    %591 = arith.mulf %590, %589 : vector<16x128xf32>
    %592 = math.tanh %591 : vector<16x128xf32>
    %cst_172 = arith.constant 1.000000e+00 : f32
    %593 = vector.broadcast %cst_172 : f32 to vector<16x128xf32>
    %594 = arith.addf %593, %592 : vector<16x128xf32>
    %595 = arith.mulf %584, %594 : vector<16x128xf32>
    %c648 = arith.constant 648 : index
    %c0_173 = arith.constant 0 : index
    %596 = vector.load %arg0[%c648, %c0_173] : memref<944x128xf32, #tpu.memory_space<vmem>>, vector<128x32xf32>
    %cst_174 = arith.constant dense<0.000000e+00> : vector<16x32xf32>
    %597 = tpu.matmul %595, %596, %cst_174 {dimension_numbers = #tpu.dot_dimension_numbers<[1], [0], [0], [1], [0, 0, 1, 1], [], []>} : vector<16x128xf32>, vector<128x32xf32>, vector<16x32xf32> -> vector<16x32xf32>
    %c776 = arith.constant 776 : index
    %c0_175 = arith.constant 0 : index
    %598 = vector.load %arg0[%c776, %c0_175] : memref<944x128xf32, #tpu.memory_space<vmem>>, vector<1x32xf32>
    %599 = vector.broadcast %598 : vector<1x32xf32> to vector<16x32xf32>
    %600 = arith.addf %597, %599 : vector<16x32xf32>
    %c784 = arith.constant 784 : index
    %c0_176 = arith.constant 0 : index
    %601 = vector.load %arg0[%c784, %c0_176] : memref<944x128xf32, #tpu.memory_space<vmem>>, vector<1x32xf32>
    %c792 = arith.constant 792 : index
    %c0_177 = arith.constant 0 : index
    %602 = vector.load %arg0[%c792, %c0_177] : memref<944x128xf32, #tpu.memory_space<vmem>>, vector<1x32xf32>
    %cst_178 = arith.constant dense<0.000000e+00> : vector<16xf32>
    %603 = vector.multi_reduction <add>, %600, %cst_178 [1] : vector<16x32xf32> to vector<16xf32>
    %604 = vector.shape_cast %603 : vector<16xf32> to vector<16x1xf32>
    %cst_179 = arith.constant 3.200000e+01 : f32
    %605 = vector.broadcast %cst_179 : f32 to vector<16x1xf32>
    %606 = arith.divf %604, %605 : vector<16x1xf32>
    %607 = vector.broadcast %606 : vector<16x1xf32> to vector<16x32xf32>
    %608 = arith.subf %600, %607 : vector<16x32xf32>
    %609 = arith.mulf %608, %608 : vector<16x32xf32>
    %cst_180 = arith.constant dense<0.000000e+00> : vector<16xf32>
    %610 = vector.multi_reduction <add>, %609, %cst_180 [1] : vector<16x32xf32> to vector<16xf32>
    %611 = vector.shape_cast %610 : vector<16xf32> to vector<16x1xf32>
    %cst_181 = arith.constant 3.200000e+01 : f32
    %612 = vector.broadcast %cst_181 : f32 to vector<16x1xf32>
    %613 = arith.divf %611, %612 : vector<16x1xf32>
    %614 = vector.broadcast %606 : vector<16x1xf32> to vector<16x32xf32>
    %615 = arith.subf %600, %614 : vector<16x32xf32>
    %cst_182 = arith.constant 9.99999997E-7 : f32
    %616 = vector.broadcast %cst_182 : f32 to vector<16x1xf32>
    %617 = arith.addf %613, %616 : vector<16x1xf32>
    %618 = math.rsqrt %617 : vector<16x1xf32>
    %619 = vector.broadcast %618 : vector<16x1xf32> to vector<16x32xf32>
    %620 = arith.mulf %615, %619 : vector<16x32xf32>
    %621 = vector.broadcast %601 : vector<1x32xf32> to vector<16x32xf32>
    %622 = arith.mulf %620, %621 : vector<16x32xf32>
    %623 = vector.broadcast %602 : vector<1x32xf32> to vector<16x32xf32>
    %624 = arith.addf %622, %623 : vector<16x32xf32>
    %625 = arith.addf %577, %624 : vector<16x32xf32>
    %626 = tpu.concatenate %322, %353, %385, %417, %450, %481, %513, %545 in 0 : vector<1x8xf32>, vector<1x8xf32>, vector<1x8xf32>, vector<1x8xf32>, vector<1x8xf32>, vector<1x8xf32>, vector<1x8xf32>, vector<1x8xf32> -> vector<8x8xf32>
    %c208 = arith.constant 208 : index
    %c0_183 = arith.constant 0 : index
    %627 = vector.load %arg0[%c208, %c0_183] : memref<944x128xf32, #tpu.memory_space<vmem>>, vector<1x32xf32>
    %c216 = arith.constant 216 : index
    %c0_184 = arith.constant 0 : index
    %628 = vector.load %arg0[%c216, %c0_184] : memref<944x128xf32, #tpu.memory_space<vmem>>, vector<1x32xf32>
    %cst_185 = arith.constant dense<0.000000e+00> : vector<16xf32>
    %629 = vector.multi_reduction <add>, %625, %cst_185 [1] : vector<16x32xf32> to vector<16xf32>
    %630 = vector.shape_cast %629 : vector<16xf32> to vector<16x1xf32>
    %cst_186 = arith.constant 3.200000e+01 : f32
    %631 = vector.broadcast %cst_186 : f32 to vector<16x1xf32>
    %632 = arith.divf %630, %631 : vector<16x1xf32>
    %633 = vector.broadcast %632 : vector<16x1xf32> to vector<16x32xf32>
    %634 = arith.subf %625, %633 : vector<16x32xf32>
    %635 = arith.mulf %634, %634 : vector<16x32xf32>
    %cst_187 = arith.constant dense<0.000000e+00> : vector<16xf32>
    %636 = vector.multi_reduction <add>, %635, %cst_187 [1] : vector<16x32xf32> to vector<16xf32>
    %637 = vector.shape_cast %636 : vector<16xf32> to vector<16x1xf32>
    %cst_188 = arith.constant 3.200000e+01 : f32
    %638 = vector.broadcast %cst_188 : f32 to vector<16x1xf32>
    %639 = arith.divf %637, %638 : vector<16x1xf32>
    %640 = vector.broadcast %632 : vector<16x1xf32> to vector<16x32xf32>
    %641 = arith.subf %625, %640 : vector<16x32xf32>
    %cst_189 = arith.constant 9.99999997E-7 : f32
    %642 = vector.broadcast %cst_189 : f32 to vector<16x1xf32>
    %643 = arith.addf %639, %642 : vector<16x1xf32>
    %644 = math.rsqrt %643 : vector<16x1xf32>
    %645 = vector.broadcast %644 : vector<16x1xf32> to vector<16x32xf32>
    %646 = arith.mulf %641, %645 : vector<16x32xf32>
    %647 = vector.broadcast %627 : vector<1x32xf32> to vector<16x32xf32>
    %648 = arith.mulf %646, %647 : vector<16x32xf32>
    %649 = vector.broadcast %628 : vector<1x32xf32> to vector<16x32xf32>
    %650 = arith.addf %648, %649 : vector<16x32xf32>
    %651 = vector.extract_strided_slice %650 {offsets = [0, 0], sizes = [1, 32], strides = [1, 1]} : vector<16x32xf32> to vector<1x32xf32>
    %652 = vector.extract_strided_slice %650 {offsets = [8, 0], sizes = [1, 32], strides = [1, 1]} : vector<16x32xf32> to vector<1x32xf32>
    %653 = tpu.concatenate %651, %652 in 0 : vector<1x32xf32>, vector<1x32xf32> -> vector<2x32xf32>
    %c0_190 = arith.constant 0 : index
    %c0_191 = arith.constant 0 : index
    %654 = vector.load %arg2[%c0_190, %c0_191] : memref<12x2xf32, #tpu.memory_space<vmem>>, vector<12x2xf32>
    %c800 = arith.constant 800 : index
    %c0_192 = arith.constant 0 : index
    %655 = vector.load %arg0[%c800, %c0_192] : memref<944x128xf32, #tpu.memory_space<vmem>>, vector<2x64xf32>
    %cst_193 = arith.constant dense<0.000000e+00> : vector<12x64xf32>
    %656 = tpu.matmul %654, %655, %cst_193 {dimension_numbers = #tpu.dot_dimension_numbers<[1], [0], [0], [1], [0, 0, 1, 1], [], []>} : vector<12x2xf32>, vector<2x64xf32>, vector<12x64xf32> -> vector<12x64xf32>
    %c824 = arith.constant 824 : index
    %c0_194 = arith.constant 0 : index
    %657 = vector.load %arg0[%c824, %c0_194] : memref<944x128xf32, #tpu.memory_space<vmem>>, vector<1x64xf32>
    %658 = vector.broadcast %657 : vector<1x64xf32> to vector<12x64xf32>
    %659 = arith.addf %656, %658 : vector<12x64xf32>
    %c808 = arith.constant 808 : index
    %c0_195 = arith.constant 0 : index
    %660 = vector.load %arg0[%c808, %c0_195] : memref<944x128xf32, #tpu.memory_space<vmem>>, vector<16x64xf32>
    %cst_196 = arith.constant 0.000000e+00 : f32
    %661 = vector.broadcast %cst_196 : f32 to vector<2x16xf32>
    %cst_197 = arith.constant 0.000000e+00 : f32
    %662 = vector.broadcast %cst_197 : f32 to vector<2x16xf32>
    %663 = vector.extract_strided_slice %659 {offsets = [0, 0], sizes = [2, 64], strides = [1, 1]} : vector<12x64xf32> to vector<2x64xf32>
    %cst_198 = arith.constant dense<0.000000e+00> : vector<2x64xf32>
    %664 = tpu.matmul %661, %660, %cst_198 {dimension_numbers = #tpu.dot_dimension_numbers<[1], [0], [0], [1], [0, 0, 1, 1], [], []>} : vector<2x16xf32>, vector<16x64xf32>, vector<2x64xf32> -> vector<2x64xf32>
    %665 = arith.addf %663, %664 : vector<2x64xf32>
    %666 = arith.negf %665 : vector<2x64xf32>
    %667 = math.exp %666 : vector<2x64xf32>
    %cst_199 = arith.constant 1.000000e+00 : f32
    %668 = vector.broadcast %cst_199 : f32 to vector<2x64xf32>
    %669 = arith.addf %668, %667 : vector<2x64xf32>
    %670 = arith.divf %668, %669 : vector<2x64xf32>
    %671 = vector.extract_strided_slice %665 {offsets = [0, 32], sizes = [2, 16], strides = [1, 1]} : vector<2x64xf32> to vector<2x16xf32>
    %672 = math.tanh %671 : vector<2x16xf32>
    %673 = vector.extract_strided_slice %670 {offsets = [0, 16], sizes = [2, 16], strides = [1, 1]} : vector<2x64xf32> to vector<2x16xf32>
    %674 = arith.mulf %673, %662 : vector<2x16xf32>
    %675 = vector.extract_strided_slice %670 {offsets = [0, 0], sizes = [2, 16], strides = [1, 1]} : vector<2x64xf32> to vector<2x16xf32>
    %676 = arith.mulf %675, %672 : vector<2x16xf32>
    %677 = arith.addf %674, %676 : vector<2x16xf32>
    %678 = vector.extract_strided_slice %670 {offsets = [0, 48], sizes = [2, 16], strides = [1, 1]} : vector<2x64xf32> to vector<2x16xf32>
    %679 = math.tanh %677 : vector<2x16xf32>
    %680 = arith.mulf %678, %679 : vector<2x16xf32>
    %681 = vector.extract_strided_slice %659 {offsets = [2, 0], sizes = [2, 64], strides = [1, 1]} : vector<12x64xf32> to vector<2x64xf32>
    %cst_200 = arith.constant dense<0.000000e+00> : vector<2x64xf32>
    %682 = tpu.matmul %680, %660, %cst_200 {dimension_numbers = #tpu.dot_dimension_numbers<[1], [0], [0], [1], [0, 0, 1, 1], [], []>} : vector<2x16xf32>, vector<16x64xf32>, vector<2x64xf32> -> vector<2x64xf32>
    %683 = arith.addf %681, %682 : vector<2x64xf32>
    %684 = arith.negf %683 : vector<2x64xf32>
    %685 = math.exp %684 : vector<2x64xf32>
    %cst_201 = arith.constant 1.000000e+00 : f32
    %686 = vector.broadcast %cst_201 : f32 to vector<2x64xf32>
    %687 = arith.addf %686, %685 : vector<2x64xf32>
    %688 = arith.divf %686, %687 : vector<2x64xf32>
    %689 = vector.extract_strided_slice %683 {offsets = [0, 32], sizes = [2, 16], strides = [1, 1]} : vector<2x64xf32> to vector<2x16xf32>
    %690 = math.tanh %689 : vector<2x16xf32>
    %691 = vector.extract_strided_slice %688 {offsets = [0, 16], sizes = [2, 16], strides = [1, 1]} : vector<2x64xf32> to vector<2x16xf32>
    %692 = arith.mulf %691, %677 : vector<2x16xf32>
    %693 = vector.extract_strided_slice %688 {offsets = [0, 0], sizes = [2, 16], strides = [1, 1]} : vector<2x64xf32> to vector<2x16xf32>
    %694 = arith.mulf %693, %690 : vector<2x16xf32>
    %695 = arith.addf %692, %694 : vector<2x16xf32>
    %696 = vector.extract_strided_slice %688 {offsets = [0, 48], sizes = [2, 16], strides = [1, 1]} : vector<2x64xf32> to vector<2x16xf32>
    %697 = math.tanh %695 : vector<2x16xf32>
    %698 = arith.mulf %696, %697 : vector<2x16xf32>
    %699 = vector.extract_strided_slice %659 {offsets = [4, 0], sizes = [2, 64], strides = [1, 1]} : vector<12x64xf32> to vector<2x64xf32>
    %cst_202 = arith.constant dense<0.000000e+00> : vector<2x64xf32>
    %700 = tpu.matmul %698, %660, %cst_202 {dimension_numbers = #tpu.dot_dimension_numbers<[1], [0], [0], [1], [0, 0, 1, 1], [], []>} : vector<2x16xf32>, vector<16x64xf32>, vector<2x64xf32> -> vector<2x64xf32>
    %701 = arith.addf %699, %700 : vector<2x64xf32>
    %702 = arith.negf %701 : vector<2x64xf32>
    %703 = math.exp %702 : vector<2x64xf32>
    %cst_203 = arith.constant 1.000000e+00 : f32
    %704 = vector.broadcast %cst_203 : f32 to vector<2x64xf32>
    %705 = arith.addf %704, %703 : vector<2x64xf32>
    %706 = arith.divf %704, %705 : vector<2x64xf32>
    %707 = vector.extract_strided_slice %701 {offsets = [0, 32], sizes = [2, 16], strides = [1, 1]} : vector<2x64xf32> to vector<2x16xf32>
    %708 = math.tanh %707 : vector<2x16xf32>
    %709 = vector.extract_strided_slice %706 {offsets = [0, 16], sizes = [2, 16], strides = [1, 1]} : vector<2x64xf32> to vector<2x16xf32>
    %710 = arith.mulf %709, %695 : vector<2x16xf32>
    %711 = vector.extract_strided_slice %706 {offsets = [0, 0], sizes = [2, 16], strides = [1, 1]} : vector<2x64xf32> to vector<2x16xf32>
    %712 = arith.mulf %711, %708 : vector<2x16xf32>
    %713 = arith.addf %710, %712 : vector<2x16xf32>
    %714 = vector.extract_strided_slice %706 {offsets = [0, 48], sizes = [2, 16], strides = [1, 1]} : vector<2x64xf32> to vector<2x16xf32>
    %715 = math.tanh %713 : vector<2x16xf32>
    %716 = arith.mulf %714, %715 : vector<2x16xf32>
    %717 = vector.extract_strided_slice %659 {offsets = [6, 0], sizes = [2, 64], strides = [1, 1]} : vector<12x64xf32> to vector<2x64xf32>
    %cst_204 = arith.constant dense<0.000000e+00> : vector<2x64xf32>
    %718 = tpu.matmul %716, %660, %cst_204 {dimension_numbers = #tpu.dot_dimension_numbers<[1], [0], [0], [1], [0, 0, 1, 1], [], []>} : vector<2x16xf32>, vector<16x64xf32>, vector<2x64xf32> -> vector<2x64xf32>
    %719 = arith.addf %717, %718 : vector<2x64xf32>
    %720 = arith.negf %719 : vector<2x64xf32>
    %721 = math.exp %720 : vector<2x64xf32>
    %cst_205 = arith.constant 1.000000e+00 : f32
    %722 = vector.broadcast %cst_205 : f32 to vector<2x64xf32>
    %723 = arith.addf %722, %721 : vector<2x64xf32>
    %724 = arith.divf %722, %723 : vector<2x64xf32>
    %725 = vector.extract_strided_slice %719 {offsets = [0, 32], sizes = [2, 16], strides = [1, 1]} : vector<2x64xf32> to vector<2x16xf32>
    %726 = math.tanh %725 : vector<2x16xf32>
    %727 = vector.extract_strided_slice %724 {offsets = [0, 16], sizes = [2, 16], strides = [1, 1]} : vector<2x64xf32> to vector<2x16xf32>
    %728 = arith.mulf %727, %713 : vector<2x16xf32>
    %729 = vector.extract_strided_slice %724 {offsets = [0, 0], sizes = [2, 16], strides = [1, 1]} : vector<2x64xf32> to vector<2x16xf32>
    %730 = arith.mulf %729, %726 : vector<2x16xf32>
    %731 = arith.addf %728, %730 : vector<2x16xf32>
    %732 = vector.extract_strided_slice %724 {offsets = [0, 48], sizes = [2, 16], strides = [1, 1]} : vector<2x64xf32> to vector<2x16xf32>
    %733 = math.tanh %731 : vector<2x16xf32>
    %734 = arith.mulf %732, %733 : vector<2x16xf32>
    %735 = vector.extract_strided_slice %659 {offsets = [8, 0], sizes = [2, 64], strides = [1, 1]} : vector<12x64xf32> to vector<2x64xf32>
    %cst_206 = arith.constant dense<0.000000e+00> : vector<2x64xf32>
    %736 = tpu.matmul %734, %660, %cst_206 {dimension_numbers = #tpu.dot_dimension_numbers<[1], [0], [0], [1], [0, 0, 1, 1], [], []>} : vector<2x16xf32>, vector<16x64xf32>, vector<2x64xf32> -> vector<2x64xf32>
    %737 = arith.addf %735, %736 : vector<2x64xf32>
    %738 = arith.negf %737 : vector<2x64xf32>
    %739 = math.exp %738 : vector<2x64xf32>
    %cst_207 = arith.constant 1.000000e+00 : f32
    %740 = vector.broadcast %cst_207 : f32 to vector<2x64xf32>
    %741 = arith.addf %740, %739 : vector<2x64xf32>
    %742 = arith.divf %740, %741 : vector<2x64xf32>
    %743 = vector.extract_strided_slice %737 {offsets = [0, 32], sizes = [2, 16], strides = [1, 1]} : vector<2x64xf32> to vector<2x16xf32>
    %744 = math.tanh %743 : vector<2x16xf32>
    %745 = vector.extract_strided_slice %742 {offsets = [0, 16], sizes = [2, 16], strides = [1, 1]} : vector<2x64xf32> to vector<2x16xf32>
    %746 = arith.mulf %745, %731 : vector<2x16xf32>
    %747 = vector.extract_strided_slice %742 {offsets = [0, 0], sizes = [2, 16], strides = [1, 1]} : vector<2x64xf32> to vector<2x16xf32>
    %748 = arith.mulf %747, %744 : vector<2x16xf32>
    %749 = arith.addf %746, %748 : vector<2x16xf32>
    %750 = vector.extract_strided_slice %742 {offsets = [0, 48], sizes = [2, 16], strides = [1, 1]} : vector<2x64xf32> to vector<2x16xf32>
    %751 = math.tanh %749 : vector<2x16xf32>
    %752 = arith.mulf %750, %751 : vector<2x16xf32>
    %753 = vector.extract_strided_slice %659 {offsets = [10, 0], sizes = [2, 64], strides = [1, 1]} : vector<12x64xf32> to vector<2x64xf32>
    %cst_208 = arith.constant dense<0.000000e+00> : vector<2x64xf32>
    %754 = tpu.matmul %752, %660, %cst_208 {dimension_numbers = #tpu.dot_dimension_numbers<[1], [0], [0], [1], [0, 0, 1, 1], [], []>} : vector<2x16xf32>, vector<16x64xf32>, vector<2x64xf32> -> vector<2x64xf32>
    %755 = arith.addf %753, %754 : vector<2x64xf32>
    %756 = arith.negf %755 : vector<2x64xf32>
    %757 = math.exp %756 : vector<2x64xf32>
    %cst_209 = arith.constant 1.000000e+00 : f32
    %758 = vector.broadcast %cst_209 : f32 to vector<2x64xf32>
    %759 = arith.addf %758, %757 : vector<2x64xf32>
    %760 = arith.divf %758, %759 : vector<2x64xf32>
    %761 = vector.extract_strided_slice %755 {offsets = [0, 32], sizes = [2, 16], strides = [1, 1]} : vector<2x64xf32> to vector<2x16xf32>
    %762 = math.tanh %761 : vector<2x16xf32>
    %763 = vector.extract_strided_slice %760 {offsets = [0, 16], sizes = [2, 16], strides = [1, 1]} : vector<2x64xf32> to vector<2x16xf32>
    %764 = arith.mulf %763, %749 : vector<2x16xf32>
    %765 = vector.extract_strided_slice %760 {offsets = [0, 0], sizes = [2, 16], strides = [1, 1]} : vector<2x64xf32> to vector<2x16xf32>
    %766 = arith.mulf %765, %762 : vector<2x16xf32>
    %767 = arith.addf %764, %766 : vector<2x16xf32>
    %768 = vector.extract_strided_slice %760 {offsets = [0, 48], sizes = [2, 16], strides = [1, 1]} : vector<2x64xf32> to vector<2x16xf32>
    %769 = math.tanh %767 : vector<2x16xf32>
    %770 = arith.mulf %768, %769 : vector<2x16xf32>
    %771 = tpu.concatenate %680, %698, %716, %734, %752, %770 in 0 : vector<2x16xf32>, vector<2x16xf32>, vector<2x16xf32>, vector<2x16xf32>, vector<2x16xf32>, vector<2x16xf32> -> vector<12x16xf32>
    %c832 = arith.constant 832 : index
    %c0_210 = arith.constant 0 : index
    %772 = vector.load %arg0[%c832, %c0_210] : memref<944x128xf32, #tpu.memory_space<vmem>>, vector<16x64xf32>
    %cst_211 = arith.constant dense<0.000000e+00> : vector<12x64xf32>
    %773 = tpu.matmul %771, %772, %cst_211 {dimension_numbers = #tpu.dot_dimension_numbers<[1], [0], [0], [1], [0, 0, 1, 1], [], []>} : vector<12x16xf32>, vector<16x64xf32>, vector<12x64xf32> -> vector<12x64xf32>
    %c864 = arith.constant 864 : index
    %c0_212 = arith.constant 0 : index
    %774 = vector.load %arg0[%c864, %c0_212] : memref<944x128xf32, #tpu.memory_space<vmem>>, vector<1x64xf32>
    %775 = vector.broadcast %774 : vector<1x64xf32> to vector<12x64xf32>
    %776 = arith.addf %773, %775 : vector<12x64xf32>
    %c848 = arith.constant 848 : index
    %c0_213 = arith.constant 0 : index
    %777 = vector.load %arg0[%c848, %c0_213] : memref<944x128xf32, #tpu.memory_space<vmem>>, vector<16x64xf32>
    %cst_214 = arith.constant 0.000000e+00 : f32
    %778 = vector.broadcast %cst_214 : f32 to vector<2x16xf32>
    %cst_215 = arith.constant 0.000000e+00 : f32
    %779 = vector.broadcast %cst_215 : f32 to vector<2x16xf32>
    %780 = vector.extract_strided_slice %776 {offsets = [0, 0], sizes = [2, 64], strides = [1, 1]} : vector<12x64xf32> to vector<2x64xf32>
    %cst_216 = arith.constant dense<0.000000e+00> : vector<2x64xf32>
    %781 = tpu.matmul %778, %777, %cst_216 {dimension_numbers = #tpu.dot_dimension_numbers<[1], [0], [0], [1], [0, 0, 1, 1], [], []>} : vector<2x16xf32>, vector<16x64xf32>, vector<2x64xf32> -> vector<2x64xf32>
    %782 = arith.addf %780, %781 : vector<2x64xf32>
    %783 = arith.negf %782 : vector<2x64xf32>
    %784 = math.exp %783 : vector<2x64xf32>
    %cst_217 = arith.constant 1.000000e+00 : f32
    %785 = vector.broadcast %cst_217 : f32 to vector<2x64xf32>
    %786 = arith.addf %785, %784 : vector<2x64xf32>
    %787 = arith.divf %785, %786 : vector<2x64xf32>
    %788 = vector.extract_strided_slice %782 {offsets = [0, 32], sizes = [2, 16], strides = [1, 1]} : vector<2x64xf32> to vector<2x16xf32>
    %789 = math.tanh %788 : vector<2x16xf32>
    %790 = vector.extract_strided_slice %787 {offsets = [0, 16], sizes = [2, 16], strides = [1, 1]} : vector<2x64xf32> to vector<2x16xf32>
    %791 = arith.mulf %790, %779 : vector<2x16xf32>
    %792 = vector.extract_strided_slice %787 {offsets = [0, 0], sizes = [2, 16], strides = [1, 1]} : vector<2x64xf32> to vector<2x16xf32>
    %793 = arith.mulf %792, %789 : vector<2x16xf32>
    %794 = arith.addf %791, %793 : vector<2x16xf32>
    %795 = vector.extract_strided_slice %787 {offsets = [0, 48], sizes = [2, 16], strides = [1, 1]} : vector<2x64xf32> to vector<2x16xf32>
    %796 = math.tanh %794 : vector<2x16xf32>
    %797 = arith.mulf %795, %796 : vector<2x16xf32>
    %798 = vector.extract_strided_slice %776 {offsets = [2, 0], sizes = [2, 64], strides = [1, 1]} : vector<12x64xf32> to vector<2x64xf32>
    %cst_218 = arith.constant dense<0.000000e+00> : vector<2x64xf32>
    %799 = tpu.matmul %797, %777, %cst_218 {dimension_numbers = #tpu.dot_dimension_numbers<[1], [0], [0], [1], [0, 0, 1, 1], [], []>} : vector<2x16xf32>, vector<16x64xf32>, vector<2x64xf32> -> vector<2x64xf32>
    %800 = arith.addf %798, %799 : vector<2x64xf32>
    %801 = arith.negf %800 : vector<2x64xf32>
    %802 = math.exp %801 : vector<2x64xf32>
    %cst_219 = arith.constant 1.000000e+00 : f32
    %803 = vector.broadcast %cst_219 : f32 to vector<2x64xf32>
    %804 = arith.addf %803, %802 : vector<2x64xf32>
    %805 = arith.divf %803, %804 : vector<2x64xf32>
    %806 = vector.extract_strided_slice %800 {offsets = [0, 32], sizes = [2, 16], strides = [1, 1]} : vector<2x64xf32> to vector<2x16xf32>
    %807 = math.tanh %806 : vector<2x16xf32>
    %808 = vector.extract_strided_slice %805 {offsets = [0, 16], sizes = [2, 16], strides = [1, 1]} : vector<2x64xf32> to vector<2x16xf32>
    %809 = arith.mulf %808, %794 : vector<2x16xf32>
    %810 = vector.extract_strided_slice %805 {offsets = [0, 0], sizes = [2, 16], strides = [1, 1]} : vector<2x64xf32> to vector<2x16xf32>
    %811 = arith.mulf %810, %807 : vector<2x16xf32>
    %812 = arith.addf %809, %811 : vector<2x16xf32>
    %813 = vector.extract_strided_slice %805 {offsets = [0, 48], sizes = [2, 16], strides = [1, 1]} : vector<2x64xf32> to vector<2x16xf32>
    %814 = math.tanh %812 : vector<2x16xf32>
    %815 = arith.mulf %813, %814 : vector<2x16xf32>
    %816 = vector.extract_strided_slice %776 {offsets = [4, 0], sizes = [2, 64], strides = [1, 1]} : vector<12x64xf32> to vector<2x64xf32>
    %cst_220 = arith.constant dense<0.000000e+00> : vector<2x64xf32>
    %817 = tpu.matmul %815, %777, %cst_220 {dimension_numbers = #tpu.dot_dimension_numbers<[1], [0], [0], [1], [0, 0, 1, 1], [], []>} : vector<2x16xf32>, vector<16x64xf32>, vector<2x64xf32> -> vector<2x64xf32>
    %818 = arith.addf %816, %817 : vector<2x64xf32>
    %819 = arith.negf %818 : vector<2x64xf32>
    %820 = math.exp %819 : vector<2x64xf32>
    %cst_221 = arith.constant 1.000000e+00 : f32
    %821 = vector.broadcast %cst_221 : f32 to vector<2x64xf32>
    %822 = arith.addf %821, %820 : vector<2x64xf32>
    %823 = arith.divf %821, %822 : vector<2x64xf32>
    %824 = vector.extract_strided_slice %818 {offsets = [0, 32], sizes = [2, 16], strides = [1, 1]} : vector<2x64xf32> to vector<2x16xf32>
    %825 = math.tanh %824 : vector<2x16xf32>
    %826 = vector.extract_strided_slice %823 {offsets = [0, 16], sizes = [2, 16], strides = [1, 1]} : vector<2x64xf32> to vector<2x16xf32>
    %827 = arith.mulf %826, %812 : vector<2x16xf32>
    %828 = vector.extract_strided_slice %823 {offsets = [0, 0], sizes = [2, 16], strides = [1, 1]} : vector<2x64xf32> to vector<2x16xf32>
    %829 = arith.mulf %828, %825 : vector<2x16xf32>
    %830 = arith.addf %827, %829 : vector<2x16xf32>
    %831 = vector.extract_strided_slice %823 {offsets = [0, 48], sizes = [2, 16], strides = [1, 1]} : vector<2x64xf32> to vector<2x16xf32>
    %832 = math.tanh %830 : vector<2x16xf32>
    %833 = arith.mulf %831, %832 : vector<2x16xf32>
    %834 = vector.extract_strided_slice %776 {offsets = [6, 0], sizes = [2, 64], strides = [1, 1]} : vector<12x64xf32> to vector<2x64xf32>
    %cst_222 = arith.constant dense<0.000000e+00> : vector<2x64xf32>
    %835 = tpu.matmul %833, %777, %cst_222 {dimension_numbers = #tpu.dot_dimension_numbers<[1], [0], [0], [1], [0, 0, 1, 1], [], []>} : vector<2x16xf32>, vector<16x64xf32>, vector<2x64xf32> -> vector<2x64xf32>
    %836 = arith.addf %834, %835 : vector<2x64xf32>
    %837 = arith.negf %836 : vector<2x64xf32>
    %838 = math.exp %837 : vector<2x64xf32>
    %cst_223 = arith.constant 1.000000e+00 : f32
    %839 = vector.broadcast %cst_223 : f32 to vector<2x64xf32>
    %840 = arith.addf %839, %838 : vector<2x64xf32>
    %841 = arith.divf %839, %840 : vector<2x64xf32>
    %842 = vector.extract_strided_slice %836 {offsets = [0, 32], sizes = [2, 16], strides = [1, 1]} : vector<2x64xf32> to vector<2x16xf32>
    %843 = math.tanh %842 : vector<2x16xf32>
    %844 = vector.extract_strided_slice %841 {offsets = [0, 16], sizes = [2, 16], strides = [1, 1]} : vector<2x64xf32> to vector<2x16xf32>
    %845 = arith.mulf %844, %830 : vector<2x16xf32>
    %846 = vector.extract_strided_slice %841 {offsets = [0, 0], sizes = [2, 16], strides = [1, 1]} : vector<2x64xf32> to vector<2x16xf32>
    %847 = arith.mulf %846, %843 : vector<2x16xf32>
    %848 = arith.addf %845, %847 : vector<2x16xf32>
    %849 = vector.extract_strided_slice %841 {offsets = [0, 48], sizes = [2, 16], strides = [1, 1]} : vector<2x64xf32> to vector<2x16xf32>
    %850 = math.tanh %848 : vector<2x16xf32>
    %851 = arith.mulf %849, %850 : vector<2x16xf32>
    %852 = vector.extract_strided_slice %776 {offsets = [8, 0], sizes = [2, 64], strides = [1, 1]} : vector<12x64xf32> to vector<2x64xf32>
    %cst_224 = arith.constant dense<0.000000e+00> : vector<2x64xf32>
    %853 = tpu.matmul %851, %777, %cst_224 {dimension_numbers = #tpu.dot_dimension_numbers<[1], [0], [0], [1], [0, 0, 1, 1], [], []>} : vector<2x16xf32>, vector<16x64xf32>, vector<2x64xf32> -> vector<2x64xf32>
    %854 = arith.addf %852, %853 : vector<2x64xf32>
    %855 = arith.negf %854 : vector<2x64xf32>
    %856 = math.exp %855 : vector<2x64xf32>
    %cst_225 = arith.constant 1.000000e+00 : f32
    %857 = vector.broadcast %cst_225 : f32 to vector<2x64xf32>
    %858 = arith.addf %857, %856 : vector<2x64xf32>
    %859 = arith.divf %857, %858 : vector<2x64xf32>
    %860 = vector.extract_strided_slice %854 {offsets = [0, 32], sizes = [2, 16], strides = [1, 1]} : vector<2x64xf32> to vector<2x16xf32>
    %861 = math.tanh %860 : vector<2x16xf32>
    %862 = vector.extract_strided_slice %859 {offsets = [0, 16], sizes = [2, 16], strides = [1, 1]} : vector<2x64xf32> to vector<2x16xf32>
    %863 = arith.mulf %862, %848 : vector<2x16xf32>
    %864 = vector.extract_strided_slice %859 {offsets = [0, 0], sizes = [2, 16], strides = [1, 1]} : vector<2x64xf32> to vector<2x16xf32>
    %865 = arith.mulf %864, %861 : vector<2x16xf32>
    %866 = arith.addf %863, %865 : vector<2x16xf32>
    %867 = vector.extract_strided_slice %859 {offsets = [0, 48], sizes = [2, 16], strides = [1, 1]} : vector<2x64xf32> to vector<2x16xf32>
    %868 = math.tanh %866 : vector<2x16xf32>
    %869 = arith.mulf %867, %868 : vector<2x16xf32>
    %870 = vector.extract_strided_slice %776 {offsets = [10, 0], sizes = [2, 64], strides = [1, 1]} : vector<12x64xf32> to vector<2x64xf32>
    %cst_226 = arith.constant dense<0.000000e+00> : vector<2x64xf32>
    %871 = tpu.matmul %869, %777, %cst_226 {dimension_numbers = #tpu.dot_dimension_numbers<[1], [0], [0], [1], [0, 0, 1, 1], [], []>} : vector<2x16xf32>, vector<16x64xf32>, vector<2x64xf32> -> vector<2x64xf32>
    %872 = arith.addf %870, %871 : vector<2x64xf32>
    %873 = arith.negf %872 : vector<2x64xf32>
    %874 = math.exp %873 : vector<2x64xf32>
    %cst_227 = arith.constant 1.000000e+00 : f32
    %875 = vector.broadcast %cst_227 : f32 to vector<2x64xf32>
    %876 = arith.addf %875, %874 : vector<2x64xf32>
    %877 = arith.divf %875, %876 : vector<2x64xf32>
    %878 = vector.extract_strided_slice %872 {offsets = [0, 32], sizes = [2, 16], strides = [1, 1]} : vector<2x64xf32> to vector<2x16xf32>
    %879 = math.tanh %878 : vector<2x16xf32>
    %880 = vector.extract_strided_slice %877 {offsets = [0, 16], sizes = [2, 16], strides = [1, 1]} : vector<2x64xf32> to vector<2x16xf32>
    %881 = arith.mulf %880, %866 : vector<2x16xf32>
    %882 = vector.extract_strided_slice %877 {offsets = [0, 0], sizes = [2, 16], strides = [1, 1]} : vector<2x64xf32> to vector<2x16xf32>
    %883 = arith.mulf %882, %879 : vector<2x16xf32>
    %884 = arith.addf %881, %883 : vector<2x16xf32>
    %885 = vector.extract_strided_slice %877 {offsets = [0, 48], sizes = [2, 16], strides = [1, 1]} : vector<2x64xf32> to vector<2x16xf32>
    %886 = math.tanh %884 : vector<2x16xf32>
    %887 = arith.mulf %885, %886 : vector<2x16xf32>
    %c872 = arith.constant 872 : index
    %c0_228 = arith.constant 0 : index
    %888 = vector.load %arg0[%c872, %c0_228] : memref<944x128xf32, #tpu.memory_space<vmem>>, vector<64x7xf32>
    %889 = vector.extract_strided_slice %888 {offsets = [0, 0], sizes = [32, 7], strides = [1, 1]} : vector<64x7xf32> to vector<32x7xf32>
    %cst_229 = arith.constant dense<0.000000e+00> : vector<2x7xf32>
    %890 = tpu.matmul %653, %889, %cst_229 {dimension_numbers = #tpu.dot_dimension_numbers<[1], [0], [0], [1], [0, 0, 1, 1], [], []>} : vector<2x32xf32>, vector<32x7xf32>, vector<2x7xf32> -> vector<2x7xf32>
    %891 = vector.extract_strided_slice %888 {offsets = [32, 0], sizes = [16, 7], strides = [1, 1]} : vector<64x7xf32> to vector<16x7xf32>
    %cst_230 = arith.constant dense<0.000000e+00> : vector<2x7xf32>
    %892 = tpu.matmul %770, %891, %cst_230 {dimension_numbers = #tpu.dot_dimension_numbers<[1], [0], [0], [1], [0, 0, 1, 1], [], []>} : vector<2x16xf32>, vector<16x7xf32>, vector<2x7xf32> -> vector<2x7xf32>
    %893 = arith.addf %890, %892 : vector<2x7xf32>
    %894 = vector.extract_strided_slice %888 {offsets = [48, 0], sizes = [16, 7], strides = [1, 1]} : vector<64x7xf32> to vector<16x7xf32>
    %cst_231 = arith.constant dense<0.000000e+00> : vector<2x7xf32>
    %895 = tpu.matmul %887, %894, %cst_231 {dimension_numbers = #tpu.dot_dimension_numbers<[1], [0], [0], [1], [0, 0, 1, 1], [], []>} : vector<2x16xf32>, vector<16x7xf32>, vector<2x7xf32> -> vector<2x7xf32>
    %896 = arith.addf %893, %895 : vector<2x7xf32>
    %c936 = arith.constant 936 : index
    %c0_232 = arith.constant 0 : index
    %897 = vector.load %arg0[%c936, %c0_232] : memref<944x128xf32, #tpu.memory_space<vmem>>, vector<1x7xf32>
    %898 = vector.broadcast %897 : vector<1x7xf32> to vector<2x7xf32>
    %899 = arith.addf %896, %898 : vector<2x7xf32>
    %cst_233 = arith.constant 0.000000e+00 : f32
    %900 = vector.broadcast %cst_233 : f32 to vector<8x128xf32>
    %c0_234 = arith.constant 0 : index
    %c0_235 = arith.constant 0 : index
    %901 = vector.load %arg3[%c0_234, %c0_235] : memref<8x128xf32, #tpu.memory_space<vmem>>, vector<8x128xf32>
    tpu.vector_store %arg3[%c0_234, %c0_235], %900 {strides = array<i32>} : memref<8x128xf32, #tpu.memory_space<vmem>>, vector<8x128xf32>,
    %c0_236 = arith.constant 0 : index
    %c0_237 = arith.constant 0 : index
    %902 = vector.load %arg3[%c0_236, %c0_237] : memref<8x128xf32, #tpu.memory_space<vmem>>, vector<2x7xf32>
    tpu.vector_store %arg3[%c0_236, %c0_237], %899 {strides = array<i32>} : memref<8x128xf32, #tpu.memory_space<vmem>>, vector<2x7xf32>,
    %c0_238 = arith.constant 0 : index
    %c64 = arith.constant 64 : index
    %903 = vector.load %arg3[%c0_238, %c64] : memref<8x128xf32, #tpu.memory_space<vmem>>, vector<8x8xf32>
    tpu.vector_store %arg3[%c0_238, %c64], %626 {strides = array<i32>} : memref<8x128xf32, #tpu.memory_space<vmem>>, vector<8x8xf32>,
    return
  }
}

</mosaic_0001>

<llo_original>
// kernel: forward.1
$region0: #{forward.1}
  #allocation0 [shape = 'u32[]', space=smem, size = 0x4, offset = 0x4, fixed_abs, tag = 'smem constant byte address 0x4 - core index']
  #allocation1 [shape = 'u32[144,128]{1,0:T(1,128)}', space=vmem, size = 0x12000, scoped, tag = 'internal scratch']
  %s0 = inlined_call_operand.vmem [shape: f32[944,128], index: 0, kind: input, shape index: {}]
  %s1 = inlined_call_operand.vmem [shape: f32[16,192], index: 1, kind: input, shape index: {}]
  %s2 = inlined_call_operand.vmem [shape: f32[12,2], index: 2, kind: input, shape index: {}]
  %s3 = inlined_call_operand.vmem [shape: f32[8,128], index: 3, kind: output, shape index: {}]
  %s4 = sld [smem:[#allocation0]]
  $region22: #{forward.1} parent=0
    _
  %s6 = ssub.s32 1, %s4
  %s7 = scalar_select 0, %s6, %s4
  // Predicated region
  $region2: #{forward.1} parent=0 // pred_check
    _
  $region3: #{forward.1} parent=0 // pred_check_branch
    %9 = sbr.rel (0) target = $region5
  $region4: #{forward.1} parent=0 // pred_region
    _
  $region5: #{forward.1} parent=0 // pred_fallthru
    _
  // Predicated region
  $region6: #{forward.1} parent=0 // pred_check
    _
  $region7: #{forward.1} parent=0 // pred_check_branch
    %11 = sbr.rel (0) target = $region9
  $region8: #{forward.1} parent=0 // pred_region
    _
  $region9: #{forward.1} parent=0 // pred_fallthru
    _
  // Predicated region
  $region10: #{forward.1} parent=0 // pred_check
    _
  $region11: #{forward.1} parent=0 // pred_check_branch
    %13 = sbr.rel (0) target = $region13
  $region12: #{forward.1} parent=0 // pred_region
    _
  $region13: #{forward.1} parent=0 // pred_fallthru
    _
  %v14 = vlaneseq
  %v15 = vand.u32 %v14, 127
  %vm16 = vcmp.lt.s32.totalorder %v15, 5
  %v17 = vsel %vm16, 0.0, -1e+09
  %vm18 = vcmp.ge.s32.totalorder %v15, 1
  %vm19 = vmand %vm18, %vm16
  %v20 = vsel %vm19, 1.0, 0.0
  %v21 = vlaneseq
  %v22 = vshrl.u32 %v21, 7
  %vm23 = vcmp.ge.s32.totalorder %v22, 1
  %vm24 = vcmp.lt.s32.totalorder %v22, 5
  %vm25 = vmand %vm23, %vm24
  %v26 = vsel %vm25, 1.0, 0.0
  %v27 = vld [vmem:[%s1] sm:$0xff]
  %v28 = vld [vmem:[%s1 + $0x8] sm:$0xff]
  %v29 = vld [vmem:[%s1 + $0x10] sm:$0xff]
  %v30 = vld [vmem:[%s1 + $0x18] sm:$0xff]
  %v31 = vld [vmem:[%s0] sm:$0xff]
  %v32 = vld [vmem:[%s0 + $0x8] sm:$0xff]
  %v33 = vld [vmem:[%s0 + $0x10] sm:$0xff]
  %v34 = vld [vmem:[%s0 + $0x18] sm:$0xff]
  %v35 = vld [vmem:[%s0 + $0x20] sm:$0xff]
  %v36 = vld [vmem:[%s0 + $0x28] sm:$0xff]
  %v37 = vld [vmem:[%s0 + $0x30] sm:$0xff]
  %v38 = vld [vmem:[%s0 + $0x38] sm:$0xff]
  %v39 = vld [vmem:[%s0 + $0x40] sm:$0xff]
  %v40 = vld [vmem:[%s0 + $0x48] sm:$0xff]
  %v41 = vld [vmem:[%s0 + $0x50] sm:$0xff]
  %v42 = vld [vmem:[%s0 + $0x58] sm:$0xff]
  %v43 = vld [vmem:[%s0 + $0x60] sm:$0xff]
  %v44 = vld [vmem:[%s0 + $0x68] sm:$0xff]
  %v45 = vld [vmem:[%s0 + $0x70] sm:$0xff]
  %v46 = vld [vmem:[%s0 + $0x78] sm:$0xff]
  %v47 = vld [vmem:[%s0 + $0x80] sm:$0xff]
  %v48 = vld [vmem:[%s0 + $0x88] sm:$0xff]
  %v49 = vld [vmem:[%s0 + $0x90] sm:$0xff]
  %v50 = vld [vmem:[%s0 + $0x98] sm:$0xff]
  %v51 = vld [vmem:[%s0 + $0xa0] sm:$0xff]
  %v52 = vld [vmem:[%s0 + $0xa8] sm:$0xff]
  %v53 = vld [vmem:[%s0 + $0xb0] sm:$0xff]
  %v54 = vld [vmem:[%s0 + $0xb8] sm:$0xff]
  %v55 = vld [vmem:[%s0 + $0xc0] sm:$0xff]
  %v56 = vld [vmem:[%s0 + $0xc8] sm:$0xff]
  %vm57 = vcmask 523264
  %v59 = vsel %vm57, %v28, 0
  %v62 = vsel %vm57, %v30, 0
  %64 = vmatprep.subr.mxu0 0.0
  %65 = vmatpush1.msra.mxu0 %v31
  %66 = vmatprep.subr.mxu0 0.0
  %67 = vmatpush1.msra.mxu0 %v32
  %68 = vmatprep.subr.mxu0 0.0
  %69 = vmatpush1.msra.mxu0 %v33
  %70 = vmatprep.subr.mxu0 0.0
  %71 = vmatpush1.msra.mxu0 %v34
  %72 = vmatprep.subr.mxu0 0.0
  %73 = vmatpush1.msra.mxu0 %v35
  %74 = vmatprep.subr.mxu0 0.0
  %75 = vmatpush1.msra.mxu0 %v36
  %76 = vmatprep.subr.mxu0 0.0
  %77 = vmatpush1.msra.mxu0 %v37
  %78 = vmatprep.subr.mxu0 0.0
  %79 = vmatpush1.msra.mxu0 %v38
  %80 = vmatprep.subr.mxu0 0.0
  %81 = vmatpush1.msra.mxu0 %v39
  %82 = vmatprep.subr.mxu0 0.0
  %83 = vmatpush1.msra.mxu0 %v40
  %84 = vmatprep.subr.mxu0 0.0
  %85 = vmatpush1.msra.mxu0 %v41
  %86 = vmatprep.subr.mxu0 0.0
  %87 = vmatpush1.msra.mxu0 %v42
  %88 = vmatprep.subr.mxu0 0.0
  %89 = vmatpush1.msra.mxu0 %v43
  %90 = vmatprep.subr.mxu0 0.0
  %91 = vmatpush1.msra.mxu0 %v44
  %92 = vmatprep.subr.mxu0 0.0
  %93 = vmatpush1.msra.mxu0 %v45
  %94 = vmatprep.subr.mxu0 0.0
  %95 = vmatpush1.msra.mxu0 %v46
  %96 = vmatprep.subr.mxu0 0.0
  %97 = vmatpush1.msra.mxu0 %v47
  %98 = vmatprep.subr.mxu0 0.0
  %99 = vmatpush1.msra.mxu0 %v48
  %100 = vmatprep.subr.mxu0 0.0
  %101 = vmatpush1.msra.mxu0 %v49
  %102 = vmatprep.subr.mxu0 0.0
  %103 = vmatpush1.msra.mxu0 %v50
  %104 = vmatprep.subr.mxu0 0.0
  %105 = vmatpush1.msra.mxu0 %v51
  %106 = vmatprep.subr.mxu0 0.0
  %107 = vmatpush1.msra.mxu0 %v52
  %108 = vmatprep.subr.mxu0 0.0
  %109 = vmatpush1.msra.mxu0 %v53
  %110 = vmatprep.subr.mxu0 0.0
  %111 = vmatpush1.msra.mxu0 %v54
  %112 = vmatprep.subr.mxu0 0.0
  %113 = vmatpush1.msra.mxu0 0.0
  %114 = vmatprep.subr.mxu0 0.0
  %115 = vmatpush1.msra.mxu0 0.0
  %116 = vmatprep.subr.mxu0 0.0
  %117 = vmatpush1.msra.mxu0 0.0
  %118 = vmatprep.subr.mxu0 0.0
  %119 = vmatpush1.msra.mxu0 0.0
  %120 = vmatprep.subr.mxu0 0.0
  %121 = vmatpush1.msra.mxu0 0.0
  %122 = vmatprep.subr.mxu0 0.0
  %123 = vmatpush1.msra.mxu0 0.0
  %124 = vmatprep.subr.mxu0 0.0
  %125 = vmatpush1.msra.mxu0 0.0
  %126 = vmatprep.subr.mxu0 0.0
  %127 = vmatpush1.msra.mxu0 0.0
  %128 = vmatprep.mubr.f32.mxu0 %v59
  %129 = vmatmul.mubr.f32.gmra.mrb[0].mxu0 %v27
  %v130 = vpop.f32.mrb[0].mxu0
  %v131 = vadd.f32 %v55, %v130
  %v132 = vpop.f32.mrb[0].mxu0
  %133 = vmatprep.mubr.f32.mxu0 %v62
  %134 = vmatmul.mubr.f32.gmra.mrb[0].mxu0 %v29
  %v135 = vpop.f32.mrb[0].mxu0
  %v136 = vadd.f32 %v56, %v135
  %v137 = vpop.f32.mrb[0].mxu0
  %138 = vdwg.mxu0
  %v139 = vld [vmem:[%s0 + $0xe0] sm:$0xff]
  %v140 = vld [vmem:[%s0 + $0xe8] sm:$0xff]
  %v141 = vld [vmem:[%s0 + $0xf0] sm:$0xff]
  %v142 = vld [vmem:[%s0 + $0xf8] sm:$0xff]
  %v143 = vld [vmem:[%s0 + $0x100] sm:$0x1]
  %v144 = vld [vmem:[%s0 + $0x108] sm:$0xff]
  %v145 = vld [vmem:[%s0 + $0x110] sm:$0xff]
  %v146 = vld [vmem:[%s0 + $0x118] sm:$0xff]
  %v147 = vld [vmem:[%s0 + $0x120] sm:$0xff]
  %v148 = vld [vmem:[%s0 + $0x128] sm:$0x1]
  %v149 = vlaneseq
  %v150 = vshrl.u32 %v149, 7
  %v151 = vsub.s32 0, %v150
  %v152 = vrot.slane %v143, %v151
  %vm153 = vcmask 261120
  %v155 = vsel %vm153, %v131, 0
  %v158 = vsel %vm153, %v136, 0
  %160 = vmatprep.subr.mxu0 0.0
  %161 = vmatpush1.msra.mxu0 %v139
  %162 = vmatprep.subr.mxu0 0.0
  %163 = vmatpush1.msra.mxu0 %v140
  %164 = vmatprep.subr.mxu0 0.0
  %165 = vmatpush1.msra.mxu0 %v141
  %166 = vmatprep.subr.mxu0 0.0
  %167 = vmatpush1.msra.mxu0 %v142
  %168 = vmatprep.subr.mxu0 0.0
  %169 = vmatpush1.msra.mxu0 0.0
  %170 = vmatprep.subr.mxu0 0.0
  %171 = vmatpush1.msra.mxu0 0.0
  %172 = vmatprep.subr.mxu0 0.0
  %173 = vmatpush1.msra.mxu0 0.0
  %174 = vmatprep.subr.mxu0 0.0
  %175 = vmatpush1.msra.mxu0 0.0
  %176 = vmatprep.subr.mxu0 0.0
  %177 = vmatpush1.msra.mxu0 0.0
  %178 = vmatprep.subr.mxu0 0.0
  %179 = vmatpush1.msra.mxu0 0.0
  %180 = vmatprep.subr.mxu0 0.0
  %181 = vmatpush1.msra.mxu0 0.0
  %182 = vmatprep.subr.mxu0 0.0
  %183 = vmatpush1.msra.mxu0 0.0
  %184 = vmatprep.subr.mxu0 0.0
  %185 = vmatpush1.msra.mxu0 0.0
  %186 = vmatprep.subr.mxu0 0.0
  %187 = vmatpush1.msra.mxu0 0.0
  %188 = vmatprep.subr.mxu0 0.0
  %189 = vmatpush1.msra.mxu0 0.0
  %190 = vmatprep.subr.mxu0 0.0
  %191 = vmatpush1.msra.mxu0 0.0
  %192 = vmatprep.subr.mxu0 0.0
  %193 = vmatpush1.msra.mxu0 0.0
  %194 = vmatprep.subr.mxu0 0.0
  %195 = vmatpush1.msra.mxu0 0.0
  %196 = vmatprep.subr.mxu0 0.0
  %197 = vmatpush1.msra.mxu0 0.0
  %198 = vmatprep.subr.mxu0 0.0
  %199 = vmatpush1.msra.mxu0 0.0
  %200 = vmatprep.subr.mxu0 0.0
  %201 = vmatpush1.msra.mxu0 0.0
  %202 = vmatprep.subr.mxu0 0.0
  %203 = vmatpush1.msra.mxu0 0.0
  %204 = vmatprep.subr.mxu0 0.0
  %205 = vmatpush1.msra.mxu0 0.0
  %206 = vmatprep.subr.mxu0 0.0
  %207 = vmatpush1.msra.mxu0 0.0
  %208 = vmatprep.subr.mxu0 0.0
  %209 = vmatpush1.msra.mxu0 0.0
  %210 = vmatprep.subr.mxu0 0.0
  %211 = vmatpush1.msra.mxu0 0.0
  %212 = vmatprep.subr.mxu0 0.0
  %213 = vmatpush1.msra.mxu0 0.0
  %214 = vmatprep.subr.mxu0 0.0
  %215 = vmatpush1.msra.mxu0 0.0
  %216 = vmatprep.subr.mxu0 0.0
  %217 = vmatpush1.msra.mxu0 0.0
  %218 = vmatprep.subr.mxu0 0.0
  %219 = vmatpush1.msra.mxu0 0.0
  %220 = vmatprep.subr.mxu0 0.0
  %221 = vmatpush1.msra.mxu0 0.0
  %222 = vmatprep.subr.mxu0 0.0
  %223 = vmatpush1.msra.mxu0 0.0
  %224 = vmatprep.mubr.f32.mxu0 0.0
  %225 = vmatmul.mubr.f32.gmra.mrb[0].mxu0 %v155
  %v226 = vpop.f32.mrb[0].mxu0
  %v227 = vadd.f32 %v152, %v226
  %v228 = vpop.f32.mrb[0].mxu0
  %229 = vmatprep.mubr.f32.mxu0 0.0
  %230 = vmatmul.mubr.f32.gmra.mrb[0].mxu0 %v158
  %v231 = vpop.f32.mrb[0].mxu0
  %v232 = vadd.f32 %v152, %v231
  %v233 = vpop.f32.mrb[0].mxu0
  %234 = vdwg.mxu0
  %236 = vrot.lane.b32.xlu0 %v227, 96
  %v237 = vpop.permute.xlu0 %236
  %vm238 = vcmask 64512
  %v239 = vsel %vm238, %v227, 0
  %v241 = vsel %vm238, %v237, 0
  %243 = vmatprep.subr.mxu0 0.0
  %244 = vmatpush1.xpose.msra.mxu0 %v241
  %245 = vmatprep.subr.mxu0 0.0
  %246 = vmatpush1.xpose.msra.mxu0 0.0
  %247 = vmatprep.subr.mxu0 0.0
  %248 = vmatpush1.xpose.msra.mxu0 0.0
  %249 = vmatprep.subr.mxu0 0.0
  %250 = vmatpush1.xpose.msra.mxu0 0.0
  %251 = vmatprep.subr.mxu0 0.0
  %252 = vmatpush1.xpose.msra.mxu0 0.0
  %253 = vmatprep.subr.mxu0 0.0
  %254 = vmatpush1.xpose.msra.mxu0 0.0
  %255 = vmatprep.subr.mxu0 0.0
  %256 = vmatpush1.xpose.msra.mxu0 0.0
  %257 = vmatprep.subr.mxu0 0.0
  %258 = vmatpush1.xpose.msra.mxu0 0.0
  %259 = vmatprep.subr.mxu0 0.0
  %260 = vmatpush1.xpose.msra.mxu0 0.0
  %261 = vmatprep.subr.mxu0 0.0
  %262 = vmatpush1.xpose.msra.mxu0 0.0
  %263 = vmatprep.subr.mxu0 0.0
  %264 = vmatpush1.xpose.msra.mxu0 0.0
  %265 = vmatprep.subr.mxu0 0.0
  %266 = vmatpush1.xpose.msra.mxu0 0.0
  %267 = vmatprep.subr.mxu0 0.0
  %268 = vmatpush1.xpose.msra.mxu0 0.0
  %269 = vmatprep.subr.mxu0 0.0
  %270 = vmatpush1.xpose.msra.mxu0 0.0
  %271 = vmatprep.subr.mxu0 0.0
  %272 = vmatpush1.xpose.msra.mxu0 0.0
  %273 = vmatprep.subr.mxu0 0.0
  %274 = vmatpush1.xpose.msra.mxu0 0.0
  %275 = vmatprep.subr.mxu0 0.0
  %276 = vmatpush1.xpose.msra.mxu0 0.0
  %277 = vmatprep.subr.mxu0 0.0
  %278 = vmatpush1.xpose.msra.mxu0 0.0
  %279 = vmatprep.subr.mxu0 0.0
  %280 = vmatpush1.xpose.msra.mxu0 0.0
  %281 = vmatprep.subr.mxu0 0.0
  %282 = vmatpush1.xpose.msra.mxu0 0.0
  %283 = vmatprep.subr.mxu0 0.0
  %284 = vmatpush1.xpose.msra.mxu0 0.0
  %285 = vmatprep.subr.mxu0 0.0
  %286 = vmatpush1.xpose.msra.mxu0 0.0
  %287 = vmatprep.subr.mxu0 0.0
  %288 = vmatpush1.xpose.msra.mxu0 0.0
  %289 = vmatprep.subr.mxu0 0.0
  %290 = vmatpush1.xpose.msra.mxu0 0.0
  %291 = vmatprep.subr.mxu0 0.0
  %292 = vmatpush1.xpose.msra.mxu0 0.0
  %293 = vmatprep.subr.mxu0 0.0
  %294 = vmatpush1.xpose.msra.mxu0 0.0
  %295 = vmatprep.subr.mxu0 0.0
  %296 = vmatpush1.xpose.msra.mxu0 0.0
  %297 = vmatprep.subr.mxu0 0.0
  %298 = vmatpush1.xpose.msra.mxu0 0.0
  %299 = vmatprep.subr.mxu0 0.0
  %300 = vmatpush1.xpose.msra.mxu0 0.0
  %301 = vmatprep.subr.mxu0 0.0
  %302 = vmatpush1.xpose.msra.mxu0 0.0
  %303 = vmatprep.subr.mxu0 0.0
  %304 = vmatpush1.xpose.msra.mxu0 0.0
  %305 = vmatprep.subr.mxu0 0.0
  %306 = vmatpush1.xpose.msra.mxu0 0.0
  %307 = vmatprep.mubr.f32.mxu0 0.0
  %308 = vmatmul.mubr.f32.gmra.mrb[0].mxu0 %v239
  %v309 = vpop.f32.mrb[0].mxu0
  %v310 = vadd.f32 0.0, %v309
  %v311 = vpop.f32.mrb[0].mxu0
  %312 = vdwg.mxu0
  %v313 = vmul.f32 %v310, 0.35355338
  %v314 = vadd.f32 %v313, %v17
  %v315 = vsel %vm238, %v314, -inf
  %316 = vmax.xlane.f32.xlu0 %v315
  %v317 = vpop.xlane.xlu0 %316
  %v318 = vsub.f32 %v314, %v317
  %v319 = vmul.f32 %v318, 1.442695
  %v320 = vpow.pop %v319
  %v321 = vsel %vm238, %v320, 0.0
  %322 = vadd.xlane.f32.xlu0 %v321
  %v323 = vpop.xlane.xlu0 %322
  %v324 = vrcp.pop %v323
  %v325 = vmul.f32 %v320, %v324
  %326 = vrot.lane.b32.xlu0 %v227, 64
  %v327 = vpop.permute.xlu0 %326
  %v330 = vsel %vm238, %v325, 0
  %332 = vmatprep.subr.mxu0 0.0
  %333 = vmatpush1.msra.mxu0 %v327
  %334 = vmatprep.subr.mxu0 0.0
  %335 = vmatpush1.msra.mxu0 0.0
  %336 = vmatprep.subr.mxu0 0.0
  %337 = vmatpush1.msra.mxu0 0.0
  %338 = vmatprep.subr.mxu0 0.0
  %339 = vmatpush1.msra.mxu0 0.0
  %340 = vmatprep.subr.mxu0 0.0
  %341 = vmatpush1.msra.mxu0 0.0
  %342 = vmatprep.subr.mxu0 0.0
  %343 = vmatpush1.msra.mxu0 0.0
  %344 = vmatprep.subr.mxu0 0.0
  %345 = vmatpush1.msra.mxu0 0.0
  %346 = vmatprep.subr.mxu0 0.0
  %347 = vmatpush1.msra.mxu0 0.0
  %348 = vmatprep.subr.mxu0 0.0
  %349 = vmatpush1.msra.mxu0 0.0
  %350 = vmatprep.subr.mxu0 0.0
  %351 = vmatpush1.msra.mxu0 0.0
  %352 = vmatprep.subr.mxu0 0.0
  %353 = vmatpush1.msra.mxu0 0.0
  %354 = vmatprep.subr.mxu0 0.0
  %355 = vmatpush1.msra.mxu0 0.0
  %356 = vmatprep.subr.mxu0 0.0
  %357 = vmatpush1.msra.mxu0 0.0
  %358 = vmatprep.subr.mxu0 0.0
  %359 = vmatpush1.msra.mxu0 0.0
  %360 = vmatprep.subr.mxu0 0.0
  %361 = vmatpush1.msra.mxu0 0.0
  %362 = vmatprep.subr.mxu0 0.0
  %363 = vmatpush1.msra.mxu0 0.0
  %364 = vmatprep.subr.mxu0 0.0
  %365 = vmatpush1.msra.mxu0 0.0
  %366 = vmatprep.subr.mxu0 0.0
  %367 = vmatpush1.msra.mxu0 0.0
  %368 = vmatprep.subr.mxu0 0.0
  %369 = vmatpush1.msra.mxu0 0.0
  %370 = vmatprep.subr.mxu0 0.0
  %371 = vmatpush1.msra.mxu0 0.0
  %372 = vmatprep.subr.mxu0 0.0
  %373 = vmatpush1.msra.mxu0 0.0
  %374 = vmatprep.subr.mxu0 0.0
  %375 = vmatpush1.msra.mxu0 0.0
  %376 = vmatprep.subr.mxu0 0.0
  %377 = vmatpush1.msra.mxu0 0.0
  %378 = vmatprep.subr.mxu0 0.0
  %379 = vmatpush1.msra.mxu0 0.0
  %380 = vmatprep.subr.mxu0 0.0
  %381 = vmatpush1.msra.mxu0 0.0
  %382 = vmatprep.subr.mxu0 0.0
  %383 = vmatpush1.msra.mxu0 0.0
  %384 = vmatprep.subr.mxu0 0.0
  %385 = vmatpush1.msra.mxu0 0.0
  %386 = vmatprep.subr.mxu0 0.0
  %387 = vmatpush1.msra.mxu0 0.0
  %388 = vmatprep.subr.mxu0 0.0
  %389 = vmatpush1.msra.mxu0 0.0
  %390 = vmatprep.subr.mxu0 0.0
  %391 = vmatpush1.msra.mxu0 0.0
  %392 = vmatprep.subr.mxu0 0.0
  %393 = vmatpush1.msra.mxu0 0.0
  %394 = vmatprep.subr.mxu0 0.0
  %395 = vmatpush1.msra.mxu0 0.0
  %396 = vmatprep.mubr.f32.mxu0 0.0
  %397 = vmatmul.mubr.f32.gmra.mrb[0].mxu0 %v330
  %v398 = vpop.f32.mrb[0].mxu0
  %v399 = vadd.f32 0.0, %v398
  %v400 = vpop.f32.mrb[0].mxu0
  %401 = vdwg.mxu0
  %402 = vrot.lane.b32.xlu0 %v227, 120
  %v403 = vpop.permute.xlu0 %402
  %404 = vrot.lane.b32.xlu0 %v227, 88
  %v405 = vpop.permute.xlu0 %404
  %v406 = vsel %vm238, %v403, 0
  %v408 = vsel %vm238, %v405, 0
  %410 = vmatprep.subr.mxu0 0.0
  %411 = vmatpush1.xpose.msra.mxu0 %v408
  %412 = vmatprep.subr.mxu0 0.0
  %413 = vmatpush1.xpose.msra.mxu0 0.0
  %414 = vmatprep.subr.mxu0 0.0
  %415 = vmatpush1.xpose.msra.mxu0 0.0
  %416 = vmatprep.subr.mxu0 0.0
  %417 = vmatpush1.xpose.msra.mxu0 0.0
  %418 = vmatprep.subr.mxu0 0.0
  %419 = vmatpush1.xpose.msra.mxu0 0.0
  %420 = vmatprep.subr.mxu0 0.0
  %421 = vmatpush1.xpose.msra.mxu0 0.0
  %422 = vmatprep.subr.mxu0 0.0
  %423 = vmatpush1.xpose.msra.mxu0 0.0
  %424 = vmatprep.subr.mxu0 0.0
  %425 = vmatpush1.xpose.msra.mxu0 0.0
  %426 = vmatprep.subr.mxu0 0.0
  %427 = vmatpush1.xpose.msra.mxu0 0.0
  %428 = vmatprep.subr.mxu0 0.0
  %429 = vmatpush1.xpose.msra.mxu0 0.0
  %430 = vmatprep.subr.mxu0 0.0
  %431 = vmatpush1.xpose.msra.mxu0 0.0
  %432 = vmatprep.subr.mxu0 0.0
  %433 = vmatpush1.xpose.msra.mxu0 0.0
  %434 = vmatprep.subr.mxu0 0.0
  %435 = vmatpush1.xpose.msra.mxu0 0.0
  %436 = vmatprep.subr.mxu0 0.0
  %437 = vmatpush1.xpose.msra.mxu0 0.0
  %438 = vmatprep.subr.mxu0 0.0
  %439 = vmatpush1.xpose.msra.mxu0 0.0
  %440 = vmatprep.subr.mxu0 0.0
  %441 = vmatpush1.xpose.msra.mxu0 0.0
  %442 = vmatprep.subr.mxu0 0.0
  %443 = vmatpush1.xpose.msra.mxu0 0.0
  %444 = vmatprep.subr.mxu0 0.0
  %445 = vmatpush1.xpose.msra.mxu0 0.0
  %446 = vmatprep.subr.mxu0 0.0
  %447 = vmatpush1.xpose.msra.mxu0 0.0
  %448 = vmatprep.subr.mxu0 0.0
  %449 = vmatpush1.xpose.msra.mxu0 0.0
  %450 = vmatprep.subr.mxu0 0.0
  %451 = vmatpush1.xpose.msra.mxu0 0.0
  %452 = vmatprep.subr.mxu0 0.0
  %453 = vmatpush1.xpose.msra.mxu0 0.0
  %454 = vmatprep.subr.mxu0 0.0
  %455 = vmatpush1.xpose.msra.mxu0 0.0
  %456 = vmatprep.subr.mxu0 0.0
  %457 = vmatpush1.xpose.msra.mxu0 0.0
  %458 = vmatprep.subr.mxu0 0.0
  %459 = vmatpush1.xpose.msra.mxu0 0.0
  %460 = vmatprep.subr.mxu0 0.0
  %461 = vmatpush1.xpose.msra.mxu0 0.0
  %462 = vmatprep.subr.mxu0 0.0
  %463 = vmatpush1.xpose.msra.mxu0 0.0
  %464 = vmatprep.subr.mxu0 0.0
  %465 = vmatpush1.xpose.msra.mxu0 0.0
  %466 = vmatprep.subr.mxu0 0.0
  %467 = vmatpush1.xpose.msra.mxu0 0.0
  %468 = vmatprep.subr.mxu0 0.0
  %469 = vmatpush1.xpose.msra.mxu0 0.0
  %470 = vmatprep.subr.mxu0 0.0
  %471 = vmatpush1.xpose.msra.mxu0 0.0
  %472 = vmatprep.subr.mxu0 0.0
  %473 = vmatpush1.xpose.msra.mxu0 0.0
  %474 = vmatprep.mubr.f32.mxu0 0.0
  %475 = vmatmul.mubr.f32.gmra.mrb[0].mxu0 %v406
  %v476 = vpop.f32.mrb[0].mxu0
  %v477 = vadd.f32 0.0, %v476
  %v478 = vpop.f32.mrb[0].mxu0
  %479 = vdwg.mxu0
  %v480 = vmul.f32 %v477, 0.35355338
  %v481 = vadd.f32 %v480, %v17
  %v482 = vsel %vm238, %v481, -inf
  %483 = vmax.xlane.f32.xlu0 %v482
  %v484 = vpop.xlane.xlu0 %483
  %v485 = vsub.f32 %v481, %v484
  %v486 = vmul.f32 %v485, 1.442695
  %v487 = vpow.pop %v486
  %v488 = vsel %vm238, %v487, 0.0
  %489 = vadd.xlane.f32.xlu0 %v488
  %v490 = vpop.xlane.xlu0 %489
  %v491 = vrcp.pop %v490
  %v492 = vmul.f32 %v487, %v491
  %493 = vrot.lane.b32.xlu0 %v227, 56
  %v494 = vpop.permute.xlu0 %493
  %v497 = vsel %vm238, %v492, 0
  %499 = vmatprep.subr.mxu0 0.0
  %500 = vmatpush1.msra.mxu0 %v494
  %501 = vmatprep.subr.mxu0 0.0
  %502 = vmatpush1.msra.mxu0 0.0
  %503 = vmatprep.subr.mxu0 0.0
  %504 = vmatpush1.msra.mxu0 0.0
  %505 = vmatprep.subr.mxu0 0.0
  %506 = vmatpush1.msra.mxu0 0.0
  %507 = vmatprep.subr.mxu0 0.0
  %508 = vmatpush1.msra.mxu0 0.0
  %509 = vmatprep.subr.mxu0 0.0
  %510 = vmatpush1.msra.mxu0 0.0
  %511 = vmatprep.subr.mxu0 0.0
  %512 = vmatpush1.msra.mxu0 0.0
  %513 = vmatprep.subr.mxu0 0.0
  %514 = vmatpush1.msra.mxu0 0.0
  %515 = vmatprep.subr.mxu0 0.0
  %516 = vmatpush1.msra.mxu0 0.0
  %517 = vmatprep.subr.mxu0 0.0
  %518 = vmatpush1.msra.mxu0 0.0
  %519 = vmatprep.subr.mxu0 0.0
  %520 = vmatpush1.msra.mxu0 0.0
  %521 = vmatprep.subr.mxu0 0.0
  %522 = vmatpush1.msra.mxu0 0.0
  %523 = vmatprep.subr.mxu0 0.0
  %524 = vmatpush1.msra.mxu0 0.0
  %525 = vmatprep.subr.mxu0 0.0
  %526 = vmatpush1.msra.mxu0 0.0
  %527 = vmatprep.subr.mxu0 0.0
  %528 = vmatpush1.msra.mxu0 0.0
  %529 = vmatprep.subr.mxu0 0.0
  %530 = vmatpush1.msra.mxu0 0.0
  %531 = vmatprep.subr.mxu0 0.0
  %532 = vmatpush1.msra.mxu0 0.0
  %533 = vmatprep.subr.mxu0 0.0
  %534 = vmatpush1.msra.mxu0 0.0
  %535 = vmatprep.subr.mxu0 0.0
  %536 = vmatpush1.msra.mxu0 0.0
  %537 = vmatprep.subr.mxu0 0.0
  %538 = vmatpush1.msra.mxu0 0.0
  %539 = vmatprep.subr.mxu0 0.0
  %540 = vmatpush1.msra.mxu0 0.0
  %541 = vmatprep.subr.mxu0 0.0
  %542 = vmatpush1.msra.mxu0 0.0
  %543 = vmatprep.subr.mxu0 0.0
  %544 = vmatpush1.msra.mxu0 0.0
  %545 = vmatprep.subr.mxu0 0.0
  %546 = vmatpush1.msra.mxu0 0.0
  %547 = vmatprep.subr.mxu0 0.0
  %548 = vmatpush1.msra.mxu0 0.0
  %549 = vmatprep.subr.mxu0 0.0
  %550 = vmatpush1.msra.mxu0 0.0
  %551 = vmatprep.subr.mxu0 0.0
  %552 = vmatpush1.msra.mxu0 0.0
  %553 = vmatprep.subr.mxu0 0.0
  %554 = vmatpush1.msra.mxu0 0.0
  %555 = vmatprep.subr.mxu0 0.0
  %556 = vmatpush1.msra.mxu0 0.0
  %557 = vmatprep.subr.mxu0 0.0
  %558 = vmatpush1.msra.mxu0 0.0
  %559 = vmatprep.subr.mxu0 0.0
  %560 = vmatpush1.msra.mxu0 0.0
  %561 = vmatprep.subr.mxu0 0.0
  %562 = vmatpush1.msra.mxu0 0.0
  %563 = vmatprep.mubr.f32.mxu0 0.0
  %564 = vmatmul.mubr.f32.gmra.mrb[0].mxu0 %v497
  %v565 = vpop.f32.mrb[0].mxu0
  %v566 = vadd.f32 0.0, %v565
  %v567 = vpop.f32.mrb[0].mxu0
  %568 = vdwg.mxu0
  %v570 = vsel %vm238, %v566, 0
  %572 = vmatprep.subr.mxu0 0.0
  %573 = vmatpush1.msra.mxu0 %v145
  %574 = vmatprep.subr.mxu0 0.0
  %575 = vmatpush1.msra.mxu0 0.0
  %576 = vmatprep.subr.mxu0 0.0
  %577 = vmatpush1.msra.mxu0 0.0
  %578 = vmatprep.subr.mxu0 0.0
  %579 = vmatpush1.msra.mxu0 0.0
  %580 = vmatprep.subr.mxu0 0.0
  %581 = vmatpush1.msra.mxu0 0.0
  %582 = vmatprep.subr.mxu0 0.0
  %583 = vmatpush1.msra.mxu0 0.0
  %584 = vmatprep.subr.mxu0 0.0
  %585 = vmatpush1.msra.mxu0 0.0
  %586 = vmatprep.subr.mxu0 0.0
  %587 = vmatpush1.msra.mxu0 0.0
  %588 = vmatprep.subr.mxu0 0.0
  %589 = vmatpush1.msra.mxu0 0.0
  %590 = vmatprep.subr.mxu0 0.0
  %591 = vmatpush1.msra.mxu0 0.0
  %592 = vmatprep.subr.mxu0 0.0
  %593 = vmatpush1.msra.mxu0 0.0
  %594 = vmatprep.subr.mxu0 0.0
  %595 = vmatpush1.msra.mxu0 0.0
  %596 = vmatprep.subr.mxu0 0.0
  %597 = vmatpush1.msra.mxu0 0.0
  %598 = vmatprep.subr.mxu0 0.0
  %599 = vmatpush1.msra.mxu0 0.0
  %600 = vmatprep.subr.mxu0 0.0
  %601 = vmatpush1.msra.mxu0 0.0
  %602 = vmatprep.subr.mxu0 0.0
  %603 = vmatpush1.msra.mxu0 0.0
  %604 = vmatprep.subr.mxu0 0.0
  %605 = vmatpush1.msra.mxu0 0.0
  %606 = vmatprep.subr.mxu0 0.0
  %607 = vmatpush1.msra.mxu0 0.0
  %608 = vmatprep.subr.mxu0 0.0
  %609 = vmatpush1.msra.mxu0 0.0
  %610 = vmatprep.subr.mxu0 0.0
  %611 = vmatpush1.msra.mxu0 0.0
  %612 = vmatprep.subr.mxu0 0.0
  %613 = vmatpush1.msra.mxu0 0.0
  %614 = vmatprep.subr.mxu0 0.0
  %615 = vmatpush1.msra.mxu0 0.0
  %616 = vmatprep.subr.mxu0 0.0
  %617 = vmatpush1.msra.mxu0 0.0
  %618 = vmatprep.subr.mxu0 0.0
  %619 = vmatpush1.msra.mxu0 0.0
  %620 = vmatprep.subr.mxu0 0.0
  %621 = vmatpush1.msra.mxu0 0.0
  %622 = vmatprep.subr.mxu0 0.0
  %623 = vmatpush1.msra.mxu0 0.0
  %624 = vmatprep.subr.mxu0 0.0
  %625 = vmatpush1.msra.mxu0 0.0
  %626 = vmatprep.subr.mxu0 0.0
  %627 = vmatpush1.msra.mxu0 0.0
  %628 = vmatprep.subr.mxu0 0.0
  %629 = vmatpush1.msra.mxu0 0.0
  %630 = vmatprep.subr.mxu0 0.0
  %631 = vmatpush1.msra.mxu0 0.0
  %632 = vmatprep.subr.mxu0 0.0
  %633 = vmatpush1.msra.mxu0 0.0
  %634 = vmatprep.subr.mxu0 0.0
  %635 = vmatpush1.msra.mxu0 0.0
  %636 = vmatprep.mubr.f32.mxu0 0.0
  %637 = vmatmul.mubr.f32.gmra.mrb[0].mxu0 %v570
  %v638 = vpop.f32.mrb[0].mxu0
  %v639 = vadd.f32 0.0, %v638
  %v640 = vpop.f32.mrb[0].mxu0
  %641 = vdwg.mxu0
  %v643 = vsel %vm238, %v399, 0
  %645 = vmatprep.subr.mxu0 0.0
  %646 = vmatpush1.msra.mxu0 %v144
  %647 = vmatprep.subr.mxu0 0.0
  %648 = vmatpush1.msra.mxu0 0.0
  %649 = vmatprep.subr.mxu0 0.0
  %650 = vmatpush1.msra.mxu0 0.0
  %651 = vmatprep.subr.mxu0 0.0
  %652 = vmatpush1.msra.mxu0 0.0
  %653 = vmatprep.subr.mxu0 0.0
  %654 = vmatpush1.msra.mxu0 0.0
  %655 = vmatprep.subr.mxu0 0.0
  %656 = vmatpush1.msra.mxu0 0.0
  %657 = vmatprep.subr.mxu0 0.0
  %658 = vmatpush1.msra.mxu0 0.0
  %659 = vmatprep.subr.mxu0 0.0
  %660 = vmatpush1.msra.mxu0 0.0
  %661 = vmatprep.subr.mxu0 0.0
  %662 = vmatpush1.msra.mxu0 0.0
  %663 = vmatprep.subr.mxu0 0.0
  %664 = vmatpush1.msra.mxu0 0.0
  %665 = vmatprep.subr.mxu0 0.0
  %666 = vmatpush1.msra.mxu0 0.0
  %667 = vmatprep.subr.mxu0 0.0
  %668 = vmatpush1.msra.mxu0 0.0
  %669 = vmatprep.subr.mxu0 0.0
  %670 = vmatpush1.msra.mxu0 0.0
  %671 = vmatprep.subr.mxu0 0.0
  %672 = vmatpush1.msra.mxu0 0.0
  %673 = vmatprep.subr.mxu0 0.0
  %674 = vmatpush1.msra.mxu0 0.0
  %675 = vmatprep.subr.mxu0 0.0
  %676 = vmatpush1.msra.mxu0 0.0
  %677 = vmatprep.subr.mxu0 0.0
  %678 = vmatpush1.msra.mxu0 0.0
  %679 = vmatprep.subr.mxu0 0.0
  %680 = vmatpush1.msra.mxu0 0.0
  %681 = vmatprep.subr.mxu0 0.0
  %682 = vmatpush1.msra.mxu0 0.0
  %683 = vmatprep.subr.mxu0 0.0
  %684 = vmatpush1.msra.mxu0 0.0
  %685 = vmatprep.subr.mxu0 0.0
  %686 = vmatpush1.msra.mxu0 0.0
  %687 = vmatprep.subr.mxu0 0.0
  %688 = vmatpush1.msra.mxu0 0.0
  %689 = vmatprep.subr.mxu0 0.0
  %690 = vmatpush1.msra.mxu0 0.0
  %691 = vmatprep.subr.mxu0 0.0
  %692 = vmatpush1.msra.mxu0 0.0
  %693 = vmatprep.subr.mxu0 0.0
  %694 = vmatpush1.msra.mxu0 0.0
  %695 = vmatprep.subr.mxu0 0.0
  %696 = vmatpush1.msra.mxu0 0.0
  %697 = vmatprep.subr.mxu0 0.0
  %698 = vmatpush1.msra.mxu0 0.0
  %699 = vmatprep.subr.mxu0 0.0
  %700 = vmatpush1.msra.mxu0 0.0
  %701 = vmatprep.subr.mxu0 0.0
  %702 = vmatpush1.msra.mxu0 0.0
  %703 = vmatprep.subr.mxu0 0.0
  %704 = vmatpush1.msra.mxu0 0.0
  %705 = vmatprep.subr.mxu0 0.0
  %706 = vmatpush1.msra.mxu0 0.0
  %707 = vmatprep.subr.mxu0 0.0
  %708 = vmatpush1.msra.mxu0 0.0
  %709 = vmatprep.mubr.f32.mxu0 0.0
  %710 = vmatmul.mubr.f32.gmra.mrb[0].mxu0 %v643
  %v711 = vpop.f32.mrb[0].mxu0
  %v712 = vadd.f32 %v639, %v711
  %v713 = vpop.f32.mrb[0].mxu0
  %714 = vdwg.mxu0
  %715 = vrot.lane.b32.xlu0 %v227, 112
  %v716 = vpop.permute.xlu0 %715
  %717 = vrot.lane.b32.xlu0 %v227, 80
  %v718 = vpop.permute.xlu0 %717
  %v719 = vsel %vm238, %v716, 0
  %v721 = vsel %vm238, %v718, 0
  %723 = vmatprep.subr.mxu0 0.0
  %724 = vmatpush1.xpose.msra.mxu0 %v721
  %725 = vmatprep.subr.mxu0 0.0
  %726 = vmatpush1.xpose.msra.mxu0 0.0
  %727 = vmatprep.subr.mxu0 0.0
  %728 = vmatpush1.xpose.msra.mxu0 0.0
  %729 = vmatprep.subr.mxu0 0.0
  %730 = vmatpush1.xpose.msra.mxu0 0.0
  %731 = vmatprep.subr.mxu0 0.0
  %732 = vmatpush1.xpose.msra.mxu0 0.0
  %733 = vmatprep.subr.mxu0 0.0
  %734 = vmatpush1.xpose.msra.mxu0 0.0
  %735 = vmatprep.subr.mxu0 0.0
  %736 = vmatpush1.xpose.msra.mxu0 0.0
  %737 = vmatprep.subr.mxu0 0.0
  %738 = vmatpush1.xpose.msra.mxu0 0.0
  %739 = vmatprep.subr.mxu0 0.0
  %740 = vmatpush1.xpose.msra.mxu0 0.0
  %741 = vmatprep.subr.mxu0 0.0
  %742 = vmatpush1.xpose.msra.mxu0 0.0
  %743 = vmatprep.subr.mxu0 0.0
  %744 = vmatpush1.xpose.msra.mxu0 0.0
  %745 = vmatprep.subr.mxu0 0.0
  %746 = vmatpush1.xpose.msra.mxu0 0.0
  %747 = vmatprep.subr.mxu0 0.0
  %748 = vmatpush1.xpose.msra.mxu0 0.0
  %749 = vmatprep.subr.mxu0 0.0
  %750 = vmatpush1.xpose.msra.mxu0 0.0
  %751 = vmatprep.subr.mxu0 0.0
  %752 = vmatpush1.xpose.msra.mxu0 0.0
  %753 = vmatprep.subr.mxu0 0.0
  %754 = vmatpush1.xpose.msra.mxu0 0.0
  %755 = vmatprep.subr.mxu0 0.0
  %756 = vmatpush1.xpose.msra.mxu0 0.0
  %757 = vmatprep.subr.mxu0 0.0
  %758 = vmatpush1.xpose.msra.mxu0 0.0
  %759 = vmatprep.subr.mxu0 0.0
  %760 = vmatpush1.xpose.msra.mxu0 0.0
  %761 = vmatprep.subr.mxu0 0.0
  %762 = vmatpush1.xpose.msra.mxu0 0.0
  %763 = vmatprep.subr.mxu0 0.0
  %764 = vmatpush1.xpose.msra.mxu0 0.0
  %765 = vmatprep.subr.mxu0 0.0
  %766 = vmatpush1.xpose.msra.mxu0 0.0
  %767 = vmatprep.subr.mxu0 0.0
  %768 = vmatpush1.xpose.msra.mxu0 0.0
  %769 = vmatprep.subr.mxu0 0.0
  %770 = vmatpush1.xpose.msra.mxu0 0.0
  %771 = vmatprep.subr.mxu0 0.0
  %772 = vmatpush1.xpose.msra.mxu0 0.0
  %773 = vmatprep.subr.mxu0 0.0
  %774 = vmatpush1.xpose.msra.mxu0 0.0
  %775 = vmatprep.subr.mxu0 0.0
  %776 = vmatpush1.xpose.msra.mxu0 0.0
  %777 = vmatprep.subr.mxu0 0.0
  %778 = vmatpush1.xpose.msra.mxu0 0.0
  %779 = vmatprep.subr.mxu0 0.0
  %780 = vmatpush1.xpose.msra.mxu0 0.0
  %781 = vmatprep.subr.mxu0 0.0
  %782 = vmatpush1.xpose.msra.mxu0 0.0
  %783 = vmatprep.subr.mxu0 0.0
  %784 = vmatpush1.xpose.msra.mxu0 0.0
  %785 = vmatprep.subr.mxu0 0.0
  %786 = vmatpush1.xpose.msra.mxu0 0.0
  %787 = vmatprep.mubr.f32.mxu0 0.0
  %788 = vmatmul.mubr.f32.gmra.mrb[0].mxu0 %v719
  %v789 = vpop.f32.mrb[0].mxu0
  %v790 = vadd.f32 0.0, %v789
  %v791 = vpop.f32.mrb[0].mxu0
  %792 = vdwg.mxu0
  %v793 = vmul.f32 %v790, 0.35355338
  %v794 = vadd.f32 %v793, %v17
  %v795 = vsel %vm238, %v794, -inf
  %796 = vmax.xlane.f32.xlu0 %v795
  %v797 = vpop.xlane.xlu0 %796
  %v798 = vsub.f32 %v794, %v797
  %v799 = vmul.f32 %v798, 1.442695
  %v800 = vpow.pop %v799
  %v801 = vsel %vm238, %v800, 0.0
  %802 = vadd.xlane.f32.xlu0 %v801
  %v803 = vpop.xlane.xlu0 %802
  %v804 = vrcp.pop %v803
  %v805 = vmul.f32 %v800, %v804
  %806 = vrot.lane.b32.xlu0 %v227, 48
  %v807 = vpop.permute.xlu0 %806
  %v810 = vsel %vm238, %v805, 0
  %812 = vmatprep.subr.mxu0 0.0
  %813 = vmatpush1.msra.mxu0 %v807
  %814 = vmatprep.subr.mxu0 0.0
  %815 = vmatpush1.msra.mxu0 0.0
  %816 = vmatprep.subr.mxu0 0.0
  %817 = vmatpush1.msra.mxu0 0.0
  %818 = vmatprep.subr.mxu0 0.0
  %819 = vmatpush1.msra.mxu0 0.0
  %820 = vmatprep.subr.mxu0 0.0
  %821 = vmatpush1.msra.mxu0 0.0
  %822 = vmatprep.subr.mxu0 0.0
  %823 = vmatpush1.msra.mxu0 0.0
  %824 = vmatprep.subr.mxu0 0.0
  %825 = vmatpush1.msra.mxu0 0.0
  %826 = vmatprep.subr.mxu0 0.0
  %827 = vmatpush1.msra.mxu0 0.0
  %828 = vmatprep.subr.mxu0 0.0
  %829 = vmatpush1.msra.mxu0 0.0
  %830 = vmatprep.subr.mxu0 0.0
  %831 = vmatpush1.msra.mxu0 0.0
  %832 = vmatprep.subr.mxu0 0.0
  %833 = vmatpush1.msra.mxu0 0.0
  %834 = vmatprep.subr.mxu0 0.0
  %835 = vmatpush1.msra.mxu0 0.0
  %836 = vmatprep.subr.mxu0 0.0
  %837 = vmatpush1.msra.mxu0 0.0
  %838 = vmatprep.subr.mxu0 0.0
  %839 = vmatpush1.msra.mxu0 0.0
  %840 = vmatprep.subr.mxu0 0.0
  %841 = vmatpush1.msra.mxu0 0.0
  %842 = vmatprep.subr.mxu0 0.0
  %843 = vmatpush1.msra.mxu0 0.0
  %844 = vmatprep.subr.mxu0 0.0
  %845 = vmatpush1.msra.mxu0 0.0
  %846 = vmatprep.subr.mxu0 0.0
  %847 = vmatpush1.msra.mxu0 0.0
  %848 = vmatprep.subr.mxu0 0.0
  %849 = vmatpush1.msra.mxu0 0.0
  %850 = vmatprep.subr.mxu0 0.0
  %851 = vmatpush1.msra.mxu0 0.0
  %852 = vmatprep.subr.mxu0 0.0
  %853 = vmatpush1.msra.mxu0 0.0
  %854 = vmatprep.subr.mxu0 0.0
  %855 = vmatpush1.msra.mxu0 0.0
  %856 = vmatprep.subr.mxu0 0.0
  %857 = vmatpush1.msra.mxu0 0.0
  %858 = vmatprep.subr.mxu0 0.0
  %859 = vmatpush1.msra.mxu0 0.0
  %860 = vmatprep.subr.mxu0 0.0
  %861 = vmatpush1.msra.mxu0 0.0
  %862 = vmatprep.subr.mxu0 0.0
  %863 = vmatpush1.msra.mxu0 0.0
  %864 = vmatprep.subr.mxu0 0.0
  %865 = vmatpush1.msra.mxu0 0.0
  %866 = vmatprep.subr.mxu0 0.0
  %867 = vmatpush1.msra.mxu0 0.0
  %868 = vmatprep.subr.mxu0 0.0
  %869 = vmatpush1.msra.mxu0 0.0
  %870 = vmatprep.subr.mxu0 0.0
  %871 = vmatpush1.msra.mxu0 0.0
  %872 = vmatprep.subr.mxu0 0.0
  %873 = vmatpush1.msra.mxu0 0.0
  %874 = vmatprep.subr.mxu0 0.0
  %875 = vmatpush1.msra.mxu0 0.0
  %876 = vmatprep.mubr.f32.mxu0 0.0
  %877 = vmatmul.mubr.f32.gmra.mrb[0].mxu0 %v810
  %v878 = vpop.f32.mrb[0].mxu0
  %v879 = vadd.f32 0.0, %v878
  %v880 = vpop.f32.mrb[0].mxu0
  %881 = vdwg.mxu0
  %v883 = vsel %vm238, %v879, 0
  %885 = vmatprep.subr.mxu0 0.0
  %886 = vmatpush1.msra.mxu0 %v146
  %887 = vmatprep.subr.mxu0 0.0
  %888 = vmatpush1.msra.mxu0 0.0
  %889 = vmatprep.subr.mxu0 0.0
  %890 = vmatpush1.msra.mxu0 0.0
  %891 = vmatprep.subr.mxu0 0.0
  %892 = vmatpush1.msra.mxu0 0.0
  %893 = vmatprep.subr.mxu0 0.0
  %894 = vmatpush1.msra.mxu0 0.0
  %895 = vmatprep.subr.mxu0 0.0
  %896 = vmatpush1.msra.mxu0 0.0
  %897 = vmatprep.subr.mxu0 0.0
  %898 = vmatpush1.msra.mxu0 0.0
  %899 = vmatprep.subr.mxu0 0.0
  %900 = vmatpush1.msra.mxu0 0.0
  %901 = vmatprep.subr.mxu0 0.0
  %902 = vmatpush1.msra.mxu0 0.0
  %903 = vmatprep.subr.mxu0 0.0
  %904 = vmatpush1.msra.mxu0 0.0
  %905 = vmatprep.subr.mxu0 0.0
  %906 = vmatpush1.msra.mxu0 0.0
  %907 = vmatprep.subr.mxu0 0.0
  %908 = vmatpush1.msra.mxu0 0.0
  %909 = vmatprep.subr.mxu0 0.0
  %910 = vmatpush1.msra.mxu0 0.0
  %911 = vmatprep.subr.mxu0 0.0
  %912 = vmatpush1.msra.mxu0 0.0
  %913 = vmatprep.subr.mxu0 0.0
  %914 = vmatpush1.msra.mxu0 0.0
  %915 = vmatprep.subr.mxu0 0.0
  %916 = vmatpush1.msra.mxu0 0.0
  %917 = vmatprep.subr.mxu0 0.0
  %918 = vmatpush1.msra.mxu0 0.0
  %919 = vmatprep.subr.mxu0 0.0
  %920 = vmatpush1.msra.mxu0 0.0
  %921 = vmatprep.subr.mxu0 0.0
  %922 = vmatpush1.msra.mxu0 0.0
  %923 = vmatprep.subr.mxu0 0.0
  %924 = vmatpush1.msra.mxu0 0.0
  %925 = vmatprep.subr.mxu0 0.0
  %926 = vmatpush1.msra.mxu0 0.0
  %927 = vmatprep.subr.mxu0 0.0
  %928 = vmatpush1.msra.mxu0 0.0
  %929 = vmatprep.subr.mxu0 0.0
  %930 = vmatpush1.msra.mxu0 0.0
  %931 = vmatprep.subr.mxu0 0.0
  %932 = vmatpush1.msra.mxu0 0.0
  %933 = vmatprep.subr.mxu0 0.0
  %934 = vmatpush1.msra.mxu0 0.0
  %935 = vmatprep.subr.mxu0 0.0
  %936 = vmatpush1.msra.mxu0 0.0
  %937 = vmatprep.subr.mxu0 0.0
  %938 = vmatpush1.msra.mxu0 0.0
  %939 = vmatprep.subr.mxu0 0.0
  %940 = vmatpush1.msra.mxu0 0.0
  %941 = vmatprep.subr.mxu0 0.0
  %942 = vmatpush1.msra.mxu0 0.0
  %943 = vmatprep.subr.mxu0 0.0
  %944 = vmatpush1.msra.mxu0 0.0
  %945 = vmatprep.subr.mxu0 0.0
  %946 = vmatpush1.msra.mxu0 0.0
  %947 = vmatprep.subr.mxu0 0.0
  %948 = vmatpush1.msra.mxu0 0.0
  %949 = vmatprep.mubr.f32.mxu0 0.0
  %950 = vmatmul.mubr.f32.gmra.mrb[0].mxu0 %v883
  %v951 = vpop.f32.mrb[0].mxu0
  %v952 = vadd.f32 0.0, %v951
  %v953 = vpop.f32.mrb[0].mxu0
  %954 = vdwg.mxu0
  %v955 = vadd.f32 %v712, %v952
  %956 = vrot.lane.b32.xlu0 %v227, 104
  %v957 = vpop.permute.xlu0 %956
  %958 = vrot.lane.b32.xlu0 %v227, 72
  %v959 = vpop.permute.xlu0 %958
  %v960 = vsel %vm238, %v957, 0
  %v962 = vsel %vm238, %v959, 0
  %964 = vmatprep.subr.mxu0 0.0
  %965 = vmatpush1.xpose.msra.mxu0 %v962
  %966 = vmatprep.subr.mxu0 0.0
  %967 = vmatpush1.xpose.msra.mxu0 0.0
  %968 = vmatprep.subr.mxu0 0.0
  %969 = vmatpush1.xpose.msra.mxu0 0.0
  %970 = vmatprep.subr.mxu0 0.0
  %971 = vmatpush1.xpose.msra.mxu0 0.0
  %972 = vmatprep.subr.mxu0 0.0
  %973 = vmatpush1.xpose.msra.mxu0 0.0
  %974 = vmatprep.subr.mxu0 0.0
  %975 = vmatpush1.xpose.msra.mxu0 0.0
  %976 = vmatprep.subr.mxu0 0.0
  %977 = vmatpush1.xpose.msra.mxu0 0.0
  %978 = vmatprep.subr.mxu0 0.0
  %979 = vmatpush1.xpose.msra.mxu0 0.0
  %980 = vmatprep.subr.mxu0 0.0
  %981 = vmatpush1.xpose.msra.mxu0 0.0
  %982 = vmatprep.subr.mxu0 0.0
  %983 = vmatpush1.xpose.msra.mxu0 0.0
  %984 = vmatprep.subr.mxu0 0.0
  %985 = vmatpush1.xpose.msra.mxu0 0.0
  %986 = vmatprep.subr.mxu0 0.0
  %987 = vmatpush1.xpose.msra.mxu0 0.0
  %988 = vmatprep.subr.mxu0 0.0
  %989 = vmatpush1.xpose.msra.mxu0 0.0
  %990 = vmatprep.subr.mxu0 0.0
  %991 = vmatpush1.xpose.msra.mxu0 0.0
  %992 = vmatprep.subr.mxu0 0.0
  %993 = vmatpush1.xpose.msra.mxu0 0.0
  %994 = vmatprep.subr.mxu0 0.0
  %995 = vmatpush1.xpose.msra.mxu0 0.0
  %996 = vmatprep.subr.mxu0 0.0
  %997 = vmatpush1.xpose.msra.mxu0 0.0
  %998 = vmatprep.subr.mxu0 0.0
  %999 = vmatpush1.xpose.msra.mxu0 0.0
  %1000 = vmatprep.subr.mxu0 0.0
  %1001 = vmatpush1.xpose.msra.mxu0 0.0
  %1002 = vmatprep.subr.mxu0 0.0
  %1003 = vmatpush1.xpose.msra.mxu0 0.0
  %1004 = vmatprep.subr.mxu0 0.0
  %1005 = vmatpush1.xpose.msra.mxu0 0.0
  %1006 = vmatprep.subr.mxu0 0.0
  %1007 = vmatpush1.xpose.msra.mxu0 0.0
  %1008 = vmatprep.subr.mxu0 0.0
  %1009 = vmatpush1.xpose.msra.mxu0 0.0
  %1010 = vmatprep.subr.mxu0 0.0
  %1011 = vmatpush1.xpose.msra.mxu0 0.0
  %1012 = vmatprep.subr.mxu0 0.0
  %1013 = vmatpush1.xpose.msra.mxu0 0.0
  %1014 = vmatprep.subr.mxu0 0.0
  %1015 = vmatpush1.xpose.msra.mxu0 0.0
  %1016 = vmatprep.subr.mxu0 0.0
  %1017 = vmatpush1.xpose.msra.mxu0 0.0
  %1018 = vmatprep.subr.mxu0 0.0
  %1019 = vmatpush1.xpose.msra.mxu0 0.0
  %1020 = vmatprep.subr.mxu0 0.0
  %1021 = vmatpush1.xpose.msra.mxu0 0.0
  %1022 = vmatprep.subr.mxu0 0.0
  %1023 = vmatpush1.xpose.msra.mxu0 0.0
  %1024 = vmatprep.subr.mxu0 0.0
  %1025 = vmatpush1.xpose.msra.mxu0 0.0
  %1026 = vmatprep.subr.mxu0 0.0
  %1027 = vmatpush1.xpose.msra.mxu0 0.0
  %1028 = vmatprep.mubr.f32.mxu0 0.0
  %1029 = vmatmul.mubr.f32.gmra.mrb[0].mxu0 %v960
  %v1030 = vpop.f32.mrb[0].mxu0
  %v1031 = vadd.f32 0.0, %v1030
  %v1032 = vpop.f32.mrb[0].mxu0
  %1033 = vdwg.mxu0
  %v1034 = vmul.f32 %v1031, 0.35355338
  %v1035 = vadd.f32 %v1034, %v17
  %v1036 = vsel %vm238, %v1035, -inf
  %1037 = vmax.xlane.f32.xlu0 %v1036
  %v1038 = vpop.xlane.xlu0 %1037
  %v1039 = vsub.f32 %v1035, %v1038
  %v1040 = vmul.f32 %v1039, 1.442695
  %v1041 = vpow.pop %v1040
  %v1042 = vsel %vm238, %v1041, 0.0
  %1043 = vadd.xlane.f32.xlu0 %v1042
  %v1044 = vpop.xlane.xlu0 %1043
  %v1045 = vrcp.pop %v1044
  %v1046 = vmul.f32 %v1041, %v1045
  %1047 = vrot.lane.b32.xlu0 %v227, 40
  %v1048 = vpop.permute.xlu0 %1047
  %v1051 = vsel %vm238, %v1046, 0
  %1053 = vmatprep.subr.mxu0 0.0
  %1054 = vmatpush1.msra.mxu0 %v1048
  %1055 = vmatprep.subr.mxu0 0.0
  %1056 = vmatpush1.msra.mxu0 0.0
  %1057 = vmatprep.subr.mxu0 0.0
  %1058 = vmatpush1.msra.mxu0 0.0
  %1059 = vmatprep.subr.mxu0 0.0
  %1060 = vmatpush1.msra.mxu0 0.0
  %1061 = vmatprep.subr.mxu0 0.0
  %1062 = vmatpush1.msra.mxu0 0.0
  %1063 = vmatprep.subr.mxu0 0.0
  %1064 = vmatpush1.msra.mxu0 0.0
  %1065 = vmatprep.subr.mxu0 0.0
  %1066 = vmatpush1.msra.mxu0 0.0
  %1067 = vmatprep.subr.mxu0 0.0
  %1068 = vmatpush1.msra.mxu0 0.0
  %1069 = vmatprep.subr.mxu0 0.0
  %1070 = vmatpush1.msra.mxu0 0.0
  %1071 = vmatprep.subr.mxu0 0.0
  %1072 = vmatpush1.msra.mxu0 0.0
  %1073 = vmatprep.subr.mxu0 0.0
  %1074 = vmatpush1.msra.mxu0 0.0
  %1075 = vmatprep.subr.mxu0 0.0
  %1076 = vmatpush1.msra.mxu0 0.0
  %1077 = vmatprep.subr.mxu0 0.0
  %1078 = vmatpush1.msra.mxu0 0.0
  %1079 = vmatprep.subr.mxu0 0.0
  %1080 = vmatpush1.msra.mxu0 0.0
  %1081 = vmatprep.subr.mxu0 0.0
  %1082 = vmatpush1.msra.mxu0 0.0
  %1083 = vmatprep.subr.mxu0 0.0
  %1084 = vmatpush1.msra.mxu0 0.0
  %1085 = vmatprep.subr.mxu0 0.0
  %1086 = vmatpush1.msra.mxu0 0.0
  %1087 = vmatprep.subr.mxu0 0.0
  %1088 = vmatpush1.msra.mxu0 0.0
  %1089 = vmatprep.subr.mxu0 0.0
  %1090 = vmatpush1.msra.mxu0 0.0
  %1091 = vmatprep.subr.mxu0 0.0
  %1092 = vmatpush1.msra.mxu0 0.0
  %1093 = vmatprep.subr.mxu0 0.0
  %1094 = vmatpush1.msra.mxu0 0.0
  %1095 = vmatprep.subr.mxu0 0.0
  %1096 = vmatpush1.msra.mxu0 0.0
  %1097 = vmatprep.subr.mxu0 0.0
  %1098 = vmatpush1.msra.mxu0 0.0
  %1099 = vmatprep.subr.mxu0 0.0
  %1100 = vmatpush1.msra.mxu0 0.0
  %1101 = vmatprep.subr.mxu0 0.0
  %1102 = vmatpush1.msra.mxu0 0.0
  %1103 = vmatprep.subr.mxu0 0.0
  %1104 = vmatpush1.msra.mxu0 0.0
  %1105 = vmatprep.subr.mxu0 0.0
  %1106 = vmatpush1.msra.mxu0 0.0
  %1107 = vmatprep.subr.mxu0 0.0
  %1108 = vmatpush1.msra.mxu0 0.0
  %1109 = vmatprep.subr.mxu0 0.0
  %1110 = vmatpush1.msra.mxu0 0.0
  %1111 = vmatprep.subr.mxu0 0.0
  %1112 = vmatpush1.msra.mxu0 0.0
  %1113 = vmatprep.subr.mxu0 0.0
  %1114 = vmatpush1.msra.mxu0 0.0
  %1115 = vmatprep.subr.mxu0 0.0
  %1116 = vmatpush1.msra.mxu0 0.0
  %1117 = vmatprep.mubr.f32.mxu0 0.0
  %1118 = vmatmul.mubr.f32.gmra.mrb[0].mxu0 %v1051
  %v1119 = vpop.f32.mrb[0].mxu0
  %v1120 = vadd.f32 0.0, %v1119
  %v1121 = vpop.f32.mrb[0].mxu0
  %1122 = vdwg.mxu0
  %v1124 = vsel %vm238, %v1120, 0
  %1126 = vmatprep.subr.mxu0 0.0
  %1127 = vmatpush1.msra.mxu0 %v147
  %1128 = vmatprep.subr.mxu0 0.0
  %1129 = vmatpush1.msra.mxu0 0.0
  %1130 = vmatprep.subr.mxu0 0.0
  %1131 = vmatpush1.msra.mxu0 0.0
  %1132 = vmatprep.subr.mxu0 0.0
  %1133 = vmatpush1.msra.mxu0 0.0
  %1134 = vmatprep.subr.mxu0 0.0
  %1135 = vmatpush1.msra.mxu0 0.0
  %1136 = vmatprep.subr.mxu0 0.0
  %1137 = vmatpush1.msra.mxu0 0.0
  %1138 = vmatprep.subr.mxu0 0.0
  %1139 = vmatpush1.msra.mxu0 0.0
  %1140 = vmatprep.subr.mxu0 0.0
  %1141 = vmatpush1.msra.mxu0 0.0
  %1142 = vmatprep.subr.mxu0 0.0
  %1143 = vmatpush1.msra.mxu0 0.0
  %1144 = vmatprep.subr.mxu0 0.0
  %1145 = vmatpush1.msra.mxu0 0.0
  %1146 = vmatprep.subr.mxu0 0.0
  %1147 = vmatpush1.msra.mxu0 0.0
  %1148 = vmatprep.subr.mxu0 0.0
  %1149 = vmatpush1.msra.mxu0 0.0
  %1150 = vmatprep.subr.mxu0 0.0
  %1151 = vmatpush1.msra.mxu0 0.0
  %1152 = vmatprep.subr.mxu0 0.0
  %1153 = vmatpush1.msra.mxu0 0.0
  %1154 = vmatprep.subr.mxu0 0.0
  %1155 = vmatpush1.msra.mxu0 0.0
  %1156 = vmatprep.subr.mxu0 0.0
  %1157 = vmatpush1.msra.mxu0 0.0
  %1158 = vmatprep.subr.mxu0 0.0
  %1159 = vmatpush1.msra.mxu0 0.0
  %1160 = vmatprep.subr.mxu0 0.0
  %1161 = vmatpush1.msra.mxu0 0.0
  %1162 = vmatprep.subr.mxu0 0.0
  %1163 = vmatpush1.msra.mxu0 0.0
  %1164 = vmatprep.subr.mxu0 0.0
  %1165 = vmatpush1.msra.mxu0 0.0
  %1166 = vmatprep.subr.mxu0 0.0
  %1167 = vmatpush1.msra.mxu0 0.0
  %1168 = vmatprep.subr.mxu0 0.0
  %1169 = vmatpush1.msra.mxu0 0.0
  %1170 = vmatprep.subr.mxu0 0.0
  %1171 = vmatpush1.msra.mxu0 0.0
  %1172 = vmatprep.subr.mxu0 0.0
  %1173 = vmatpush1.msra.mxu0 0.0
  %1174 = vmatprep.subr.mxu0 0.0
  %1175 = vmatpush1.msra.mxu0 0.0
  %1176 = vmatprep.subr.mxu0 0.0
  %1177 = vmatpush1.msra.mxu0 0.0
  %1178 = vmatprep.subr.mxu0 0.0
  %1179 = vmatpush1.msra.mxu0 0.0
  %1180 = vmatprep.subr.mxu0 0.0
  %1181 = vmatpush1.msra.mxu0 0.0
  %1182 = vmatprep.subr.mxu0 0.0
  %1183 = vmatpush1.msra.mxu0 0.0
  %1184 = vmatprep.subr.mxu0 0.0
  %1185 = vmatpush1.msra.mxu0 0.0
  %1186 = vmatprep.subr.mxu0 0.0
  %1187 = vmatpush1.msra.mxu0 0.0
  %1188 = vmatprep.subr.mxu0 0.0
  %1189 = vmatpush1.msra.mxu0 0.0
  %1190 = vmatprep.mubr.f32.mxu0 0.0
  %1191 = vmatmul.mubr.f32.gmra.mrb[0].mxu0 %v1124
  %v1192 = vpop.f32.mrb[0].mxu0
  %v1193 = vadd.f32 0.0, %v1192
  %v1194 = vpop.f32.mrb[0].mxu0
  %1195 = vdwg.mxu0
  %v1196 = vadd.f32 %v955, %v1193
  %1198 = vrot.lane.b32.xlu0 %v232, 96
  %v1199 = vpop.permute.xlu0 %1198
  %v1200 = vsel %vm238, %v232, 0
  %v1202 = vsel %vm238, %v1199, 0
  %1204 = vmatprep.subr.mxu0 0.0
  %1205 = vmatpush1.xpose.msra.mxu0 %v1202
  %1206 = vmatprep.subr.mxu0 0.0
  %1207 = vmatpush1.xpose.msra.mxu0 0.0
  %1208 = vmatprep.subr.mxu0 0.0
  %1209 = vmatpush1.xpose.msra.mxu0 0.0
  %1210 = vmatprep.subr.mxu0 0.0
  %1211 = vmatpush1.xpose.msra.mxu0 0.0
  %1212 = vmatprep.subr.mxu0 0.0
  %1213 = vmatpush1.xpose.msra.mxu0 0.0
  %1214 = vmatprep.subr.mxu0 0.0
  %1215 = vmatpush1.xpose.msra.mxu0 0.0
  %1216 = vmatprep.subr.mxu0 0.0
  %1217 = vmatpush1.xpose.msra.mxu0 0.0
  %1218 = vmatprep.subr.mxu0 0.0
  %1219 = vmatpush1.xpose.msra.mxu0 0.0
  %1220 = vmatprep.subr.mxu0 0.0
  %1221 = vmatpush1.xpose.msra.mxu0 0.0
  %1222 = vmatprep.subr.mxu0 0.0
  %1223 = vmatpush1.xpose.msra.mxu0 0.0
  %1224 = vmatprep.subr.mxu0 0.0
  %1225 = vmatpush1.xpose.msra.mxu0 0.0
  %1226 = vmatprep.subr.mxu0 0.0
  %1227 = vmatpush1.xpose.msra.mxu0 0.0
  %1228 = vmatprep.subr.mxu0 0.0
  %1229 = vmatpush1.xpose.msra.mxu0 0.0
  %1230 = vmatprep.subr.mxu0 0.0
  %1231 = vmatpush1.xpose.msra.mxu0 0.0
  %1232 = vmatprep.subr.mxu0 0.0
  %1233 = vmatpush1.xpose.msra.mxu0 0.0
  %1234 = vmatprep.subr.mxu0 0.0
  %1235 = vmatpush1.xpose.msra.mxu0 0.0
  %1236 = vmatprep.subr.mxu0 0.0
  %1237 = vmatpush1.xpose.msra.mxu0 0.0
  %1238 = vmatprep.subr.mxu0 0.0
  %1239 = vmatpush1.xpose.msra.mxu0 0.0
  %1240 = vmatprep.subr.mxu0 0.0
  %1241 = vmatpush1.xpose.msra.mxu0 0.0
  %1242 = vmatprep.subr.mxu0 0.0
  %1243 = vmatpush1.xpose.msra.mxu0 0.0
  %1244 = vmatprep.subr.mxu0 0.0
  %1245 = vmatpush1.xpose.msra.mxu0 0.0
  %1246 = vmatprep.subr.mxu0 0.0
  %1247 = vmatpush1.xpose.msra.mxu0 0.0
  %1248 = vmatprep.subr.mxu0 0.0
  %1249 = vmatpush1.xpose.msra.mxu0 0.0
  %1250 = vmatprep.subr.mxu0 0.0
  %1251 = vmatpush1.xpose.msra.mxu0 0.0
  %1252 = vmatprep.subr.mxu0 0.0
  %1253 = vmatpush1.xpose.msra.mxu0 0.0
  %1254 = vmatprep.subr.mxu0 0.0
  %1255 = vmatpush1.xpose.msra.mxu0 0.0
  %1256 = vmatprep.subr.mxu0 0.0
  %1257 = vmatpush1.xpose.msra.mxu0 0.0
  %1258 = vmatprep.subr.mxu0 0.0
  %1259 = vmatpush1.xpose.msra.mxu0 0.0
  %1260 = vmatprep.subr.mxu0 0.0
  %1261 = vmatpush1.xpose.msra.mxu0 0.0
  %1262 = vmatprep.subr.mxu0 0.0
  %1263 = vmatpush1.xpose.msra.mxu0 0.0
  %1264 = vmatprep.subr.mxu0 0.0
  %1265 = vmatpush1.xpose.msra.mxu0 0.0
  %1266 = vmatprep.subr.mxu0 0.0
  %1267 = vmatpush1.xpose.msra.mxu0 0.0
  %1268 = vmatprep.mubr.f32.mxu0 0.0
  %1269 = vmatmul.mubr.f32.gmra.mrb[0].mxu0 %v1200
  %v1270 = vpop.f32.mrb[0].mxu0
  %v1271 = vadd.f32 0.0, %v1270
  %v1272 = vpop.f32.mrb[0].mxu0
  %1273 = vdwg.mxu0
  %v1274 = vmul.f32 %v1271, 0.35355338
  %v1275 = vadd.f32 %v1274, %v17
  %v1276 = vsel %vm238, %v1275, -inf
  %1277 = vmax.xlane.f32.xlu0 %v1276
  %v1278 = vpop.xlane.xlu0 %1277
  %v1279 = vsub.f32 %v1275, %v1278
  %v1280 = vmul.f32 %v1279, 1.442695
  %v1281 = vpow.pop %v1280
  %v1282 = vsel %vm238, %v1281, 0.0
  %1283 = vadd.xlane.f32.xlu0 %v1282
  %v1284 = vpop.xlane.xlu0 %1283
  %v1285 = vrcp.pop %v1284
  %v1286 = vmul.f32 %v1281, %v1285
  %1287 = vrot.lane.b32.xlu0 %v232, 64
  %v1288 = vpop.permute.xlu0 %1287
  %v1291 = vsel %vm238, %v1286, 0
  %1293 = vmatprep.subr.mxu0 0.0
  %1294 = vmatpush1.msra.mxu0 %v1288
  %1295 = vmatprep.subr.mxu0 0.0
  %1296 = vmatpush1.msra.mxu0 0.0
  %1297 = vmatprep.subr.mxu0 0.0
  %1298 = vmatpush1.msra.mxu0 0.0
  %1299 = vmatprep.subr.mxu0 0.0
  %1300 = vmatpush1.msra.mxu0 0.0
  %1301 = vmatprep.subr.mxu0 0.0
  %1302 = vmatpush1.msra.mxu0 0.0
  %1303 = vmatprep.subr.mxu0 0.0
  %1304 = vmatpush1.msra.mxu0 0.0
  %1305 = vmatprep.subr.mxu0 0.0
  %1306 = vmatpush1.msra.mxu0 0.0
  %1307 = vmatprep.subr.mxu0 0.0
  %1308 = vmatpush1.msra.mxu0 0.0
  %1309 = vmatprep.subr.mxu0 0.0
  %1310 = vmatpush1.msra.mxu0 0.0
  %1311 = vmatprep.subr.mxu0 0.0
  %1312 = vmatpush1.msra.mxu0 0.0
  %1313 = vmatprep.subr.mxu0 0.0
  %1314 = vmatpush1.msra.mxu0 0.0
  %1315 = vmatprep.subr.mxu0 0.0
  %1316 = vmatpush1.msra.mxu0 0.0
  %1317 = vmatprep.subr.mxu0 0.0
  %1318 = vmatpush1.msra.mxu0 0.0
  %1319 = vmatprep.subr.mxu0 0.0
  %1320 = vmatpush1.msra.mxu0 0.0
  %1321 = vmatprep.subr.mxu0 0.0
  %1322 = vmatpush1.msra.mxu0 0.0
  %1323 = vmatprep.subr.mxu0 0.0
  %1324 = vmatpush1.msra.mxu0 0.0
  %1325 = vmatprep.subr.mxu0 0.0
  %1326 = vmatpush1.msra.mxu0 0.0
  %1327 = vmatprep.subr.mxu0 0.0
  %1328 = vmatpush1.msra.mxu0 0.0
  %1329 = vmatprep.subr.mxu0 0.0
  %1330 = vmatpush1.msra.mxu0 0.0
  %1331 = vmatprep.subr.mxu0 0.0
  %1332 = vmatpush1.msra.mxu0 0.0
  %1333 = vmatprep.subr.mxu0 0.0
  %1334 = vmatpush1.msra.mxu0 0.0
  %1335 = vmatprep.subr.mxu0 0.0
  %1336 = vmatpush1.msra.mxu0 0.0
  %1337 = vmatprep.subr.mxu0 0.0
  %1338 = vmatpush1.msra.mxu0 0.0
  %1339 = vmatprep.subr.mxu0 0.0
  %1340 = vmatpush1.msra.mxu0 0.0
  %1341 = vmatprep.subr.mxu0 0.0
  %1342 = vmatpush1.msra.mxu0 0.0
  %1343 = vmatprep.subr.mxu0 0.0
  %1344 = vmatpush1.msra.mxu0 0.0
  %1345 = vmatprep.subr.mxu0 0.0
  %1346 = vmatpush1.msra.mxu0 0.0
  %1347 = vmatprep.subr.mxu0 0.0
  %1348 = vmatpush1.msra.mxu0 0.0
  %1349 = vmatprep.subr.mxu0 0.0
  %1350 = vmatpush1.msra.mxu0 0.0
  %1351 = vmatprep.subr.mxu0 0.0
  %1352 = vmatpush1.msra.mxu0 0.0
  %1353 = vmatprep.subr.mxu0 0.0
  %1354 = vmatpush1.msra.mxu0 0.0
  %1355 = vmatprep.subr.mxu0 0.0
  %1356 = vmatpush1.msra.mxu0 0.0
  %1357 = vmatprep.mubr.f32.mxu0 0.0
  %1358 = vmatmul.mubr.f32.gmra.mrb[0].mxu0 %v1291
  %v1359 = vpop.f32.mrb[0].mxu0
  %v1360 = vadd.f32 0.0, %v1359
  %v1361 = vpop.f32.mrb[0].mxu0
  %1362 = vdwg.mxu0
  %1363 = vrot.lane.b32.xlu0 %v232, 120
  %v1364 = vpop.permute.xlu0 %1363
  %1365 = vrot.lane.b32.xlu0 %v232, 88
  %v1366 = vpop.permute.xlu0 %1365
  %v1367 = vsel %vm238, %v1364, 0
  %v1369 = vsel %vm238, %v1366, 0
  %1371 = vmatprep.subr.mxu0 0.0
  %1372 = vmatpush1.xpose.msra.mxu0 %v1369
  %1373 = vmatprep.subr.mxu0 0.0
  %1374 = vmatpush1.xpose.msra.mxu0 0.0
  %1375 = vmatprep.subr.mxu0 0.0
  %1376 = vmatpush1.xpose.msra.mxu0 0.0
  %1377 = vmatprep.subr.mxu0 0.0
  %1378 = vmatpush1.xpose.msra.mxu0 0.0
  %1379 = vmatprep.subr.mxu0 0.0
  %1380 = vmatpush1.xpose.msra.mxu0 0.0
  %1381 = vmatprep.subr.mxu0 0.0
  %1382 = vmatpush1.xpose.msra.mxu0 0.0
  %1383 = vmatprep.subr.mxu0 0.0
  %1384 = vmatpush1.xpose.msra.mxu0 0.0
  %1385 = vmatprep.subr.mxu0 0.0
  %1386 = vmatpush1.xpose.msra.mxu0 0.0
  %1387 = vmatprep.subr.mxu0 0.0
  %1388 = vmatpush1.xpose.msra.mxu0 0.0
  %1389 = vmatprep.subr.mxu0 0.0
  %1390 = vmatpush1.xpose.msra.mxu0 0.0
  %1391 = vmatprep.subr.mxu0 0.0
  %1392 = vmatpush1.xpose.msra.mxu0 0.0
  %1393 = vmatprep.subr.mxu0 0.0
  %1394 = vmatpush1.xpose.msra.mxu0 0.0
  %1395 = vmatprep.subr.mxu0 0.0
  %1396 = vmatpush1.xpose.msra.mxu0 0.0
  %1397 = vmatprep.subr.mxu0 0.0
  %1398 = vmatpush1.xpose.msra.mxu0 0.0
  %1399 = vmatprep.subr.mxu0 0.0
  %1400 = vmatpush1.xpose.msra.mxu0 0.0
  %1401 = vmatprep.subr.mxu0 0.0
  %1402 = vmatpush1.xpose.msra.mxu0 0.0
  %1403 = vmatprep.subr.mxu0 0.0
  %1404 = vmatpush1.xpose.msra.mxu0 0.0
  %1405 = vmatprep.subr.mxu0 0.0
  %1406 = vmatpush1.xpose.msra.mxu0 0.0
  %1407 = vmatprep.subr.mxu0 0.0
  %1408 = vmatpush1.xpose.msra.mxu0 0.0
  %1409 = vmatprep.subr.mxu0 0.0
  %1410 = vmatpush1.xpose.msra.mxu0 0.0
  %1411 = vmatprep.subr.mxu0 0.0
  %1412 = vmatpush1.xpose.msra.mxu0 0.0
  %1413 = vmatprep.subr.mxu0 0.0
  %1414 = vmatpush1.xpose.msra.mxu0 0.0
  %1415 = vmatprep.subr.mxu0 0.0
  %1416 = vmatpush1.xpose.msra.mxu0 0.0
  %1417 = vmatprep.subr.mxu0 0.0
  %1418 = vmatpush1.xpose.msra.mxu0 0.0
  %1419 = vmatprep.subr.mxu0 0.0
  %1420 = vmatpush1.xpose.msra.mxu0 0.0
  %1421 = vmatprep.subr.mxu0 0.0
  %1422 = vmatpush1.xpose.msra.mxu0 0.0
  %1423 = vmatprep.subr.mxu0 0.0
  %1424 = vmatpush1.xpose.msra.mxu0 0.0
  %1425 = vmatprep.subr.mxu0 0.0
  %1426 = vmatpush1.xpose.msra.mxu0 0.0
  %1427 = vmatprep.subr.mxu0 0.0
  %1428 = vmatpush1.xpose.msra.mxu0 0.0
  %1429 = vmatprep.subr.mxu0 0.0
  %1430 = vmatpush1.xpose.msra.mxu0 0.0
  %1431 = vmatprep.subr.mxu0 0.0
  %1432 = vmatpush1.xpose.msra.mxu0 0.0
  %1433 = vmatprep.subr.mxu0 0.0
  %1434 = vmatpush1.xpose.msra.mxu0 0.0
  %1435 = vmatprep.mubr.f32.mxu0 0.0
  %1436 = vmatmul.mubr.f32.gmra.mrb[0].mxu0 %v1367
  %v1437 = vpop.f32.mrb[0].mxu0
  %v1438 = vadd.f32 0.0, %v1437
  %v1439 = vpop.f32.mrb[0].mxu0
  %1440 = vdwg.mxu0
  %v1441 = vmul.f32 %v1438, 0.35355338
  %v1442 = vadd.f32 %v1441, %v17
  %v1443 = vsel %vm238, %v1442, -inf
  %1444 = vmax.xlane.f32.xlu0 %v1443
  %v1445 = vpop.xlane.xlu0 %1444
  %v1446 = vsub.f32 %v1442, %v1445
  %v1447 = vmul.f32 %v1446, 1.442695
  %v1448 = vpow.pop %v1447
  %v1449 = vsel %vm238, %v1448, 0.0
  %1450 = vadd.xlane.f32.xlu0 %v1449
  %v1451 = vpop.xlane.xlu0 %1450
  %v1452 = vrcp.pop %v1451
  %v1453 = vmul.f32 %v1448, %v1452
  %1454 = vrot.lane.b32.xlu0 %v232, 56
  %v1455 = vpop.permute.xlu0 %1454
  %v1458 = vsel %vm238, %v1453, 0
  %1460 = vmatprep.subr.mxu0 0.0
  %1461 = vmatpush1.msra.mxu0 %v1455
  %1462 = vmatprep.subr.mxu0 0.0
  %1463 = vmatpush1.msra.mxu0 0.0
  %1464 = vmatprep.subr.mxu0 0.0
  %1465 = vmatpush1.msra.mxu0 0.0
  %1466 = vmatprep.subr.mxu0 0.0
  %1467 = vmatpush1.msra.mxu0 0.0
  %1468 = vmatprep.subr.mxu0 0.0
  %1469 = vmatpush1.msra.mxu0 0.0
  %1470 = vmatprep.subr.mxu0 0.0
  %1471 = vmatpush1.msra.mxu0 0.0
  %1472 = vmatprep.subr.mxu0 0.0
  %1473 = vmatpush1.msra.mxu0 0.0
  %1474 = vmatprep.subr.mxu0 0.0
  %1475 = vmatpush1.msra.mxu0 0.0
  %1476 = vmatprep.subr.mxu0 0.0
  %1477 = vmatpush1.msra.mxu0 0.0
  %1478 = vmatprep.subr.mxu0 0.0
  %1479 = vmatpush1.msra.mxu0 0.0
  %1480 = vmatprep.subr.mxu0 0.0
  %1481 = vmatpush1.msra.mxu0 0.0
  %1482 = vmatprep.subr.mxu0 0.0
  %1483 = vmatpush1.msra.mxu0 0.0
  %1484 = vmatprep.subr.mxu0 0.0
  %1485 = vmatpush1.msra.mxu0 0.0
  %1486 = vmatprep.subr.mxu0 0.0
  %1487 = vmatpush1.msra.mxu0 0.0
  %1488 = vmatprep.subr.mxu0 0.0
  %1489 = vmatpush1.msra.mxu0 0.0
  %1490 = vmatprep.subr.mxu0 0.0
  %1491 = vmatpush1.msra.mxu0 0.0
  %1492 = vmatprep.subr.mxu0 0.0
  %1493 = vmatpush1.msra.mxu0 0.0
  %1494 = vmatprep.subr.mxu0 0.0
  %1495 = vmatpush1.msra.mxu0 0.0
  %1496 = vmatprep.subr.mxu0 0.0
  %1497 = vmatpush1.msra.mxu0 0.0
  %1498 = vmatprep.subr.mxu0 0.0
  %1499 = vmatpush1.msra.mxu0 0.0
  %1500 = vmatprep.subr.mxu0 0.0
  %1501 = vmatpush1.msra.mxu0 0.0
  %1502 = vmatprep.subr.mxu0 0.0
  %1503 = vmatpush1.msra.mxu0 0.0
  %1504 = vmatprep.subr.mxu0 0.0
  %1505 = vmatpush1.msra.mxu0 0.0
  %1506 = vmatprep.subr.mxu0 0.0
  %1507 = vmatpush1.msra.mxu0 0.0
  %1508 = vmatprep.subr.mxu0 0.0
  %1509 = vmatpush1.msra.mxu0 0.0
  %1510 = vmatprep.subr.mxu0 0.0
  %1511 = vmatpush1.msra.mxu0 0.0
  %1512 = vmatprep.subr.mxu0 0.0
  %1513 = vmatpush1.msra.mxu0 0.0
  %1514 = vmatprep.subr.mxu0 0.0
  %1515 = vmatpush1.msra.mxu0 0.0
  %1516 = vmatprep.subr.mxu0 0.0
  %1517 = vmatpush1.msra.mxu0 0.0
  %1518 = vmatprep.subr.mxu0 0.0
  %1519 = vmatpush1.msra.mxu0 0.0
  %1520 = vmatprep.subr.mxu0 0.0
  %1521 = vmatpush1.msra.mxu0 0.0
  %1522 = vmatprep.subr.mxu0 0.0
  %1523 = vmatpush1.msra.mxu0 0.0
  %1524 = vmatprep.mubr.f32.mxu0 0.0
  %1525 = vmatmul.mubr.f32.gmra.mrb[0].mxu0 %v1458
  %v1526 = vpop.f32.mrb[0].mxu0
  %v1527 = vadd.f32 0.0, %v1526
  %v1528 = vpop.f32.mrb[0].mxu0
  %1529 = vdwg.mxu0
  %v1531 = vsel %vm238, %v1527, 0
  %1533 = vmatprep.subr.mxu0 0.0
  %1534 = vmatpush1.msra.mxu0 %v145
  %1535 = vmatprep.subr.mxu0 0.0
  %1536 = vmatpush1.msra.mxu0 0.0
  %1537 = vmatprep.subr.mxu0 0.0
  %1538 = vmatpush1.msra.mxu0 0.0
  %1539 = vmatprep.subr.mxu0 0.0
  %1540 = vmatpush1.msra.mxu0 0.0
  %1541 = vmatprep.subr.mxu0 0.0
  %1542 = vmatpush1.msra.mxu0 0.0
  %1543 = vmatprep.subr.mxu0 0.0
  %1544 = vmatpush1.msra.mxu0 0.0
  %1545 = vmatprep.subr.mxu0 0.0
  %1546 = vmatpush1.msra.mxu0 0.0
  %1547 = vmatprep.subr.mxu0 0.0
  %1548 = vmatpush1.msra.mxu0 0.0
  %1549 = vmatprep.subr.mxu0 0.0
  %1550 = vmatpush1.msra.mxu0 0.0
  %1551 = vmatprep.subr.mxu0 0.0
  %1552 = vmatpush1.msra.mxu0 0.0
  %1553 = vmatprep.subr.mxu0 0.0
  %1554 = vmatpush1.msra.mxu0 0.0
  %1555 = vmatprep.subr.mxu0 0.0
  %1556 = vmatpush1.msra.mxu0 0.0
  %1557 = vmatprep.subr.mxu0 0.0
  %1558 = vmatpush1.msra.mxu0 0.0
  %1559 = vmatprep.subr.mxu0 0.0
  %1560 = vmatpush1.msra.mxu0 0.0
  %1561 = vmatprep.subr.mxu0 0.0
  %1562 = vmatpush1.msra.mxu0 0.0
  %1563 = vmatprep.subr.mxu0 0.0
  %1564 = vmatpush1.msra.mxu0 0.0
  %1565 = vmatprep.subr.mxu0 0.0
  %1566 = vmatpush1.msra.mxu0 0.0
  %1567 = vmatprep.subr.mxu0 0.0
  %1568 = vmatpush1.msra.mxu0 0.0
  %1569 = vmatprep.subr.mxu0 0.0
  %1570 = vmatpush1.msra.mxu0 0.0
  %1571 = vmatprep.subr.mxu0 0.0
  %1572 = vmatpush1.msra.mxu0 0.0
  %1573 = vmatprep.subr.mxu0 0.0
  %1574 = vmatpush1.msra.mxu0 0.0
  %1575 = vmatprep.subr.mxu0 0.0
  %1576 = vmatpush1.msra.mxu0 0.0
  %1577 = vmatprep.subr.mxu0 0.0
  %1578 = vmatpush1.msra.mxu0 0.0
  %1579 = vmatprep.subr.mxu0 0.0
  %1580 = vmatpush1.msra.mxu0 0.0
  %1581 = vmatprep.subr.mxu0 0.0
  %1582 = vmatpush1.msra.mxu0 0.0
  %1583 = vmatprep.subr.mxu0 0.0
  %1584 = vmatpush1.msra.mxu0 0.0
  %1585 = vmatprep.subr.mxu0 0.0
  %1586 = vmatpush1.msra.mxu0 0.0
  %1587 = vmatprep.subr.mxu0 0.0
  %1588 = vmatpush1.msra.mxu0 0.0
  %1589 = vmatprep.subr.mxu0 0.0
  %1590 = vmatpush1.msra.mxu0 0.0
  %1591 = vmatprep.subr.mxu0 0.0
  %1592 = vmatpush1.msra.mxu0 0.0
  %1593 = vmatprep.subr.mxu0 0.0
  %1594 = vmatpush1.msra.mxu0 0.0
  %1595 = vmatprep.subr.mxu0 0.0
  %1596 = vmatpush1.msra.mxu0 0.0
  %1597 = vmatprep.mubr.f32.mxu0 0.0
  %1598 = vmatmul.mubr.f32.gmra.mrb[0].mxu0 %v1531
  %v1599 = vpop.f32.mrb[0].mxu0
  %v1600 = vadd.f32 0.0, %v1599
  %v1601 = vpop.f32.mrb[0].mxu0
  %1602 = vdwg.mxu0
  %v1604 = vsel %vm238, %v1360, 0
  %1606 = vmatprep.subr.mxu0 0.0
  %1607 = vmatpush1.msra.mxu0 %v144
  %1608 = vmatprep.subr.mxu0 0.0
  %1609 = vmatpush1.msra.mxu0 0.0
  %1610 = vmatprep.subr.mxu0 0.0
  %1611 = vmatpush1.msra.mxu0 0.0
  %1612 = vmatprep.subr.mxu0 0.0
  %1613 = vmatpush1.msra.mxu0 0.0
  %1614 = vmatprep.subr.mxu0 0.0
  %1615 = vmatpush1.msra.mxu0 0.0
  %1616 = vmatprep.subr.mxu0 0.0
  %1617 = vmatpush1.msra.mxu0 0.0
  %1618 = vmatprep.subr.mxu0 0.0
  %1619 = vmatpush1.msra.mxu0 0.0
  %1620 = vmatprep.subr.mxu0 0.0
  %1621 = vmatpush1.msra.mxu0 0.0
  %1622 = vmatprep.subr.mxu0 0.0
  %1623 = vmatpush1.msra.mxu0 0.0
  %1624 = vmatprep.subr.mxu0 0.0
  %1625 = vmatpush1.msra.mxu0 0.0
  %1626 = vmatprep.subr.mxu0 0.0
  %1627 = vmatpush1.msra.mxu0 0.0
  %1628 = vmatprep.subr.mxu0 0.0
  %1629 = vmatpush1.msra.mxu0 0.0
  %1630 = vmatprep.subr.mxu0 0.0
  %1631 = vmatpush1.msra.mxu0 0.0
  %1632 = vmatprep.subr.mxu0 0.0
  %1633 = vmatpush1.msra.mxu0 0.0
  %1634 = vmatprep.subr.mxu0 0.0
  %1635 = vmatpush1.msra.mxu0 0.0
  %1636 = vmatprep.subr.mxu0 0.0
  %1637 = vmatpush1.msra.mxu0 0.0
  %1638 = vmatprep.subr.mxu0 0.0
  %1639 = vmatpush1.msra.mxu0 0.0
  %1640 = vmatprep.subr.mxu0 0.0
  %1641 = vmatpush1.msra.mxu0 0.0
  %1642 = vmatprep.subr.mxu0 0.0
  %1643 = vmatpush1.msra.mxu0 0.0
  %1644 = vmatprep.subr.mxu0 0.0
  %1645 = vmatpush1.msra.mxu0 0.0
  %1646 = vmatprep.subr.mxu0 0.0
  %1647 = vmatpush1.msra.mxu0 0.0
  %1648 = vmatprep.subr.mxu0 0.0
  %1649 = vmatpush1.msra.mxu0 0.0
  %1650 = vmatprep.subr.mxu0 0.0
  %1651 = vmatpush1.msra.mxu0 0.0
  %1652 = vmatprep.subr.mxu0 0.0
  %1653 = vmatpush1.msra.mxu0 0.0
  %1654 = vmatprep.subr.mxu0 0.0
  %1655 = vmatpush1.msra.mxu0 0.0
  %1656 = vmatprep.subr.mxu0 0.0
  %1657 = vmatpush1.msra.mxu0 0.0
  %1658 = vmatprep.subr.mxu0 0.0
  %1659 = vmatpush1.msra.mxu0 0.0
  %1660 = vmatprep.subr.mxu0 0.0
  %1661 = vmatpush1.msra.mxu0 0.0
  %1662 = vmatprep.subr.mxu0 0.0
  %1663 = vmatpush1.msra.mxu0 0.0
  %1664 = vmatprep.subr.mxu0 0.0
  %1665 = vmatpush1.msra.mxu0 0.0
  %1666 = vmatprep.subr.mxu0 0.0
  %1667 = vmatpush1.msra.mxu0 0.0
  %1668 = vmatprep.subr.mxu0 0.0
  %1669 = vmatpush1.msra.mxu0 0.0
  %1670 = vmatprep.mubr.f32.mxu0 0.0
  %1671 = vmatmul.mubr.f32.gmra.mrb[0].mxu0 %v1604
  %v1672 = vpop.f32.mrb[0].mxu0
  %v1673 = vadd.f32 %v1600, %v1672
  %v1674 = vpop.f32.mrb[0].mxu0
  %1675 = vdwg.mxu0
  %1676 = vrot.lane.b32.xlu0 %v232, 112
  %v1677 = vpop.permute.xlu0 %1676
  %1678 = vrot.lane.b32.xlu0 %v232, 80
  %v1679 = vpop.permute.xlu0 %1678
  %v1680 = vsel %vm238, %v1677, 0
  %v1682 = vsel %vm238, %v1679, 0
  %1684 = vmatprep.subr.mxu0 0.0
  %1685 = vmatpush1.xpose.msra.mxu0 %v1682
  %1686 = vmatprep.subr.mxu0 0.0
  %1687 = vmatpush1.xpose.msra.mxu0 0.0
  %1688 = vmatprep.subr.mxu0 0.0
  %1689 = vmatpush1.xpose.msra.mxu0 0.0
  %1690 = vmatprep.subr.mxu0 0.0
  %1691 = vmatpush1.xpose.msra.mxu0 0.0
  %1692 = vmatprep.subr.mxu0 0.0
  %1693 = vmatpush1.xpose.msra.mxu0 0.0
  %1694 = vmatprep.subr.mxu0 0.0
  %1695 = vmatpush1.xpose.msra.mxu0 0.0
  %1696 = vmatprep.subr.mxu0 0.0
  %1697 = vmatpush1.xpose.msra.mxu0 0.0
  %1698 = vmatprep.subr.mxu0 0.0
  %1699 = vmatpush1.xpose.msra.mxu0 0.0
  %1700 = vmatprep.subr.mxu0 0.0
  %1701 = vmatpush1.xpose.msra.mxu0 0.0
  %1702 = vmatprep.subr.mxu0 0.0
  %1703 = vmatpush1.xpose.msra.mxu0 0.0
  %1704 = vmatprep.subr.mxu0 0.0
  %1705 = vmatpush1.xpose.msra.mxu0 0.0
  %1706 = vmatprep.subr.mxu0 0.0
  %1707 = vmatpush1.xpose.msra.mxu0 0.0
  %1708 = vmatprep.subr.mxu0 0.0
  %1709 = vmatpush1.xpose.msra.mxu0 0.0
  %1710 = vmatprep.subr.mxu0 0.0
  %1711 = vmatpush1.xpose.msra.mxu0 0.0
  %1712 = vmatprep.subr.mxu0 0.0
  %1713 = vmatpush1.xpose.msra.mxu0 0.0
  %1714 = vmatprep.subr.mxu0 0.0
  %1715 = vmatpush1.xpose.msra.mxu0 0.0
  %1716 = vmatprep.subr.mxu0 0.0
  %1717 = vmatpush1.xpose.msra.mxu0 0.0
  %1718 = vmatprep.subr.mxu0 0.0
  %1719 = vmatpush1.xpose.msra.mxu0 0.0
  %1720 = vmatprep.subr.mxu0 0.0
  %1721 = vmatpush1.xpose.msra.mxu0 0.0
  %1722 = vmatprep.subr.mxu0 0.0
  %1723 = vmatpush1.xpose.msra.mxu0 0.0
  %1724 = vmatprep.subr.mxu0 0.0
  %1725 = vmatpush1.xpose.msra.mxu0 0.0
  %1726 = vmatprep.subr.mxu0 0.0
  %1727 = vmatpush1.xpose.msra.mxu0 0.0
  %1728 = vmatprep.subr.mxu0 0.0
  %1729 = vmatpush1.xpose.msra.mxu0 0.0
  %1730 = vmatprep.subr.mxu0 0.0
  %1731 = vmatpush1.xpose.msra.mxu0 0.0
  %1732 = vmatprep.subr.mxu0 0.0
  %1733 = vmatpush1.xpose.msra.mxu0 0.0
  %1734 = vmatprep.subr.mxu0 0.0
  %1735 = vmatpush1.xpose.msra.mxu0 0.0
  %1736 = vmatprep.subr.mxu0 0.0
  %1737 = vmatpush1.xpose.msra.mxu0 0.0
  %1738 = vmatprep.subr.mxu0 0.0
  %1739 = vmatpush1.xpose.msra.mxu0 0.0
  %1740 = vmatprep.subr.mxu0 0.0
  %1741 = vmatpush1.xpose.msra.mxu0 0.0
  %1742 = vmatprep.subr.mxu0 0.0
  %1743 = vmatpush1.xpose.msra.mxu0 0.0
  %1744 = vmatprep.subr.mxu0 0.0
  %1745 = vmatpush1.xpose.msra.mxu0 0.0
  %1746 = vmatprep.subr.mxu0 0.0
  %1747 = vmatpush1.xpose.msra.mxu0 0.0
  %1748 = vmatprep.mubr.f32.mxu0 0.0
  %1749 = vmatmul.mubr.f32.gmra.mrb[0].mxu0 %v1680
  %v1750 = vpop.f32.mrb[0].mxu0
  %v1751 = vadd.f32 0.0, %v1750
  %v1752 = vpop.f32.mrb[0].mxu0
  %1753 = vdwg.mxu0
  %v1754 = vmul.f32 %v1751, 0.35355338
  %v1755 = vadd.f32 %v1754, %v17
  %v1756 = vsel %vm238, %v1755, -inf
  %1757 = vmax.xlane.f32.xlu0 %v1756
  %v1758 = vpop.xlane.xlu0 %1757
  %v1759 = vsub.f32 %v1755, %v1758
  %v1760 = vmul.f32 %v1759, 1.442695
  %v1761 = vpow.pop %v1760
  %v1762 = vsel %vm238, %v1761, 0.0
  %1763 = vadd.xlane.f32.xlu0 %v1762
  %v1764 = vpop.xlane.xlu0 %1763
  %v1765 = vrcp.pop %v1764
  %v1766 = vmul.f32 %v1761, %v1765
  %1767 = vrot.lane.b32.xlu0 %v232, 48
  %v1768 = vpop.permute.xlu0 %1767
  %v1771 = vsel %vm238, %v1766, 0
  %1773 = vmatprep.subr.mxu0 0.0
  %1774 = vmatpush1.msra.mxu0 %v1768
  %1775 = vmatprep.subr.mxu0 0.0
  %1776 = vmatpush1.msra.mxu0 0.0
  %1777 = vmatprep.subr.mxu0 0.0
  %1778 = vmatpush1.msra.mxu0 0.0
  %1779 = vmatprep.subr.mxu0 0.0
  %1780 = vmatpush1.msra.mxu0 0.0
  %1781 = vmatprep.subr.mxu0 0.0
  %1782 = vmatpush1.msra.mxu0 0.0
  %1783 = vmatprep.subr.mxu0 0.0
  %1784 = vmatpush1.msra.mxu0 0.0
  %1785 = vmatprep.subr.mxu0 0.0
  %1786 = vmatpush1.msra.mxu0 0.0
  %1787 = vmatprep.subr.mxu0 0.0
  %1788 = vmatpush1.msra.mxu0 0.0
  %1789 = vmatprep.subr.mxu0 0.0
  %1790 = vmatpush1.msra.mxu0 0.0
  %1791 = vmatprep.subr.mxu0 0.0
  %1792 = vmatpush1.msra.mxu0 0.0
  %1793 = vmatprep.subr.mxu0 0.0
  %1794 = vmatpush1.msra.mxu0 0.0
  %1795 = vmatprep.subr.mxu0 0.0
  %1796 = vmatpush1.msra.mxu0 0.0
  %1797 = vmatprep.subr.mxu0 0.0
  %1798 = vmatpush1.msra.mxu0 0.0
  %1799 = vmatprep.subr.mxu0 0.0
  %1800 = vmatpush1.msra.mxu0 0.0
  %1801 = vmatprep.subr.mxu0 0.0
  %1802 = vmatpush1.msra.mxu0 0.0
  %1803 = vmatprep.subr.mxu0 0.0
  %1804 = vmatpush1.msra.mxu0 0.0
  %1805 = vmatprep.subr.mxu0 0.0
  %1806 = vmatpush1.msra.mxu0 0.0
  %1807 = vmatprep.subr.mxu0 0.0
  %1808 = vmatpush1.msra.mxu0 0.0
  %1809 = vmatprep.subr.mxu0 0.0
  %1810 = vmatpush1.msra.mxu0 0.0
  %1811 = vmatprep.subr.mxu0 0.0
  %1812 = vmatpush1.msra.mxu0 0.0
  %1813 = vmatprep.subr.mxu0 0.0
  %1814 = vmatpush1.msra.mxu0 0.0
  %1815 = vmatprep.subr.mxu0 0.0
  %1816 = vmatpush1.msra.mxu0 0.0
  %1817 = vmatprep.subr.mxu0 0.0
  %1818 = vmatpush1.msra.mxu0 0.0
  %1819 = vmatprep.subr.mxu0 0.0
  %1820 = vmatpush1.msra.mxu0 0.0
  %1821 = vmatprep.subr.mxu0 0.0
  %1822 = vmatpush1.msra.mxu0 0.0
  %1823 = vmatprep.subr.mxu0 0.0
  %1824 = vmatpush1.msra.mxu0 0.0
  %1825 = vmatprep.subr.mxu0 0.0
  %1826 = vmatpush1.msra.mxu0 0.0
  %1827 = vmatprep.subr.mxu0 0.0
  %1828 = vmatpush1.msra.mxu0 0.0
  %1829 = vmatprep.subr.mxu0 0.0
  %1830 = vmatpush1.msra.mxu0 0.0
  %1831 = vmatprep.subr.mxu0 0.0
  %1832 = vmatpush1.msra.mxu0 0.0
  %1833 = vmatprep.subr.mxu0 0.0
  %1834 = vmatpush1.msra.mxu0 0.0
  %1835 = vmatprep.subr.mxu0 0.0
  %1836 = vmatpush1.msra.mxu0 0.0
  %1837 = vmatprep.mubr.f32.mxu0 0.0
  %1838 = vmatmul.mubr.f32.gmra.mrb[0].mxu0 %v1771
  %v1839 = vpop.f32.mrb[0].mxu0
  %v1840 = vadd.f32 0.0, %v1839
  %v1841 = vpop.f32.mrb[0].mxu0
  %1842 = vdwg.mxu0
  %v1844 = vsel %vm238, %v1840, 0
  %1846 = vmatprep.subr.mxu0 0.0
  %1847 = vmatpush1.msra.mxu0 %v146
  %1848 = vmatprep.subr.mxu0 0.0
  %1849 = vmatpush1.msra.mxu0 0.0
  %1850 = vmatprep.subr.mxu0 0.0
  %1851 = vmatpush1.msra.mxu0 0.0
  %1852 = vmatprep.subr.mxu0 0.0
  %1853 = vmatpush1.msra.mxu0 0.0
  %1854 = vmatprep.subr.mxu0 0.0
  %1855 = vmatpush1.msra.mxu0 0.0
  %1856 = vmatprep.subr.mxu0 0.0
  %1857 = vmatpush1.msra.mxu0 0.0
  %1858 = vmatprep.subr.mxu0 0.0
  %1859 = vmatpush1.msra.mxu0 0.0
  %1860 = vmatprep.subr.mxu0 0.0
  %1861 = vmatpush1.msra.mxu0 0.0
  %1862 = vmatprep.subr.mxu0 0.0
  %1863 = vmatpush1.msra.mxu0 0.0
  %1864 = vmatprep.subr.mxu0 0.0
  %1865 = vmatpush1.msra.mxu0 0.0
  %1866 = vmatprep.subr.mxu0 0.0
  %1867 = vmatpush1.msra.mxu0 0.0
  %1868 = vmatprep.subr.mxu0 0.0
  %1869 = vmatpush1.msra.mxu0 0.0
  %1870 = vmatprep.subr.mxu0 0.0
  %1871 = vmatpush1.msra.mxu0 0.0
  %1872 = vmatprep.subr.mxu0 0.0
  %1873 = vmatpush1.msra.mxu0 0.0
  %1874 = vmatprep.subr.mxu0 0.0
  %1875 = vmatpush1.msra.mxu0 0.0
  %1876 = vmatprep.subr.mxu0 0.0
  %1877 = vmatpush1.msra.mxu0 0.0
  %1878 = vmatprep.subr.mxu0 0.0
  %1879 = vmatpush1.msra.mxu0 0.0
  %1880 = vmatprep.subr.mxu0 0.0
  %1881 = vmatpush1.msra.mxu0 0.0
  %1882 = vmatprep.subr.mxu0 0.0
  %1883 = vmatpush1.msra.mxu0 0.0
  %1884 = vmatprep.subr.mxu0 0.0
  %1885 = vmatpush1.msra.mxu0 0.0
  %1886 = vmatprep.subr.mxu0 0.0
  %1887 = vmatpush1.msra.mxu0 0.0
  %1888 = vmatprep.subr.mxu0 0.0
  %1889 = vmatpush1.msra.mxu0 0.0
  %1890 = vmatprep.subr.mxu0 0.0
  %1891 = vmatpush1.msra.mxu0 0.0
  %1892 = vmatprep.subr.mxu0 0.0
  %1893 = vmatpush1.msra.mxu0 0.0
  %1894 = vmatprep.subr.mxu0 0.0
  %1895 = vmatpush1.msra.mxu0 0.0
  %1896 = vmatprep.subr.mxu0 0.0
  %1897 = vmatpush1.msra.mxu0 0.0
  %1898 = vmatprep.subr.mxu0 0.0
  %1899 = vmatpush1.msra.mxu0 0.0
  %1900 = vmatprep.subr.mxu0 0.0
  %1901 = vmatpush1.msra.mxu0 0.0
  %1902 = vmatprep.subr.mxu0 0.0
  %1903 = vmatpush1.msra.mxu0 0.0
  %1904 = vmatprep.subr.mxu0 0.0
  %1905 = vmatpush1.msra.mxu0 0.0
  %1906 = vmatprep.subr.mxu0 0.0
  %1907 = vmatpush1.msra.mxu0 0.0
  %1908 = vmatprep.subr.mxu0 0.0
  %1909 = vmatpush1.msra.mxu0 0.0
  %1910 = vmatprep.mubr.f32.mxu0 0.0
  %1911 = vmatmul.mubr.f32.gmra.mrb[0].mxu0 %v1844
  %v1912 = vpop.f32.mrb[0].mxu0
  %v1913 = vadd.f32 0.0, %v1912
  %v1914 = vpop.f32.mrb[0].mxu0
  %1915 = vdwg.mxu0
  %v1916 = vadd.f32 %v1673, %v1913
  %1917 = vrot.lane.b32.xlu0 %v232, 104
  %v1918 = vpop.permute.xlu0 %1917
  %1919 = vrot.lane.b32.xlu0 %v232, 72
  %v1920 = vpop.permute.xlu0 %1919
  %v1921 = vsel %vm238, %v1918, 0
  %v1923 = vsel %vm238, %v1920, 0
  %1925 = vmatprep.subr.mxu0 0.0
  %1926 = vmatpush1.xpose.msra.mxu0 %v1923
  %1927 = vmatprep.subr.mxu0 0.0
  %1928 = vmatpush1.xpose.msra.mxu0 0.0
  %1929 = vmatprep.subr.mxu0 0.0
  %1930 = vmatpush1.xpose.msra.mxu0 0.0
  %1931 = vmatprep.subr.mxu0 0.0
  %1932 = vmatpush1.xpose.msra.mxu0 0.0
  %1933 = vmatprep.subr.mxu0 0.0
  %1934 = vmatpush1.xpose.msra.mxu0 0.0
  %1935 = vmatprep.subr.mxu0 0.0
  %1936 = vmatpush1.xpose.msra.mxu0 0.0
  %1937 = vmatprep.subr.mxu0 0.0
  %1938 = vmatpush1.xpose.msra.mxu0 0.0
  %1939 = vmatprep.subr.mxu0 0.0
  %1940 = vmatpush1.xpose.msra.mxu0 0.0
  %1941 = vmatprep.subr.mxu0 0.0
  %1942 = vmatpush1.xpose.msra.mxu0 0.0
  %1943 = vmatprep.subr.mxu0 0.0
  %1944 = vmatpush1.xpose.msra.mxu0 0.0
  %1945 = vmatprep.subr.mxu0 0.0
  %1946 = vmatpush1.xpose.msra.mxu0 0.0
  %1947 = vmatprep.subr.mxu0 0.0
  %1948 = vmatpush1.xpose.msra.mxu0 0.0
  %1949 = vmatprep.subr.mxu0 0.0
  %1950 = vmatpush1.xpose.msra.mxu0 0.0
  %1951 = vmatprep.subr.mxu0 0.0
  %1952 = vmatpush1.xpose.msra.mxu0 0.0
  %1953 = vmatprep.subr.mxu0 0.0
  %1954 = vmatpush1.xpose.msra.mxu0 0.0
  %1955 = vmatprep.subr.mxu0 0.0
  %1956 = vmatpush1.xpose.msra.mxu0 0.0
  %1957 = vmatprep.subr.mxu0 0.0
  %1958 = vmatpush1.xpose.msra.mxu0 0.0
  %1959 = vmatprep.subr.mxu0 0.0
  %1960 = vmatpush1.xpose.msra.mxu0 0.0
  %1961 = vmatprep.subr.mxu0 0.0
  %1962 = vmatpush1.xpose.msra.mxu0 0.0
  %1963 = vmatprep.subr.mxu0 0.0
  %1964 = vmatpush1.xpose.msra.mxu0 0.0
  %1965 = vmatprep.subr.mxu0 0.0
  %1966 = vmatpush1.xpose.msra.mxu0 0.0
  %1967 = vmatprep.subr.mxu0 0.0
  %1968 = vmatpush1.xpose.msra.mxu0 0.0
  %1969 = vmatprep.subr.mxu0 0.0
  %1970 = vmatpush1.xpose.msra.mxu0 0.0
  %1971 = vmatprep.subr.mxu0 0.0
  %1972 = vmatpush1.xpose.msra.mxu0 0.0
  %1973 = vmatprep.subr.mxu0 0.0
  %1974 = vmatpush1.xpose.msra.mxu0 0.0
  %1975 = vmatprep.subr.mxu0 0.0
  %1976 = vmatpush1.xpose.msra.mxu0 0.0
  %1977 = vmatprep.subr.mxu0 0.0
  %1978 = vmatpush1.xpose.msra.mxu0 0.0
  %1979 = vmatprep.subr.mxu0 0.0
  %1980 = vmatpush1.xpose.msra.mxu0 0.0
  %1981 = vmatprep.subr.mxu0 0.0
  %1982 = vmatpush1.xpose.msra.mxu0 0.0
  %1983 = vmatprep.subr.mxu0 0.0
  %1984 = vmatpush1.xpose.msra.mxu0 0.0
  %1985 = vmatprep.subr.mxu0 0.0
  %1986 = vmatpush1.xpose.msra.mxu0 0.0
  %1987 = vmatprep.subr.mxu0 0.0
  %1988 = vmatpush1.xpose.msra.mxu0 0.0
  %1989 = vmatprep.mubr.f32.mxu0 0.0
  %1990 = vmatmul.mubr.f32.gmra.mrb[0].mxu0 %v1921
  %v1991 = vpop.f32.mrb[0].mxu0
  %v1992 = vadd.f32 0.0, %v1991
  %v1993 = vpop.f32.mrb[0].mxu0
  %1994 = vdwg.mxu0
  %v1995 = vmul.f32 %v1992, 0.35355338
  %v1996 = vadd.f32 %v1995, %v17
  %v1997 = vsel %vm238, %v1996, -inf
  %1998 = vmax.xlane.f32.xlu0 %v1997
  %v1999 = vpop.xlane.xlu0 %1998
  %v2000 = vsub.f32 %v1996, %v1999
  %v2001 = vmul.f32 %v2000, 1.442695
  %v2002 = vpow.pop %v2001
  %v2003 = vsel %vm238, %v2002, 0.0
  %2004 = vadd.xlane.f32.xlu0 %v2003
  %v2005 = vpop.xlane.xlu0 %2004
  %v2006 = vrcp.pop %v2005
  %v2007 = vmul.f32 %v2002, %v2006
  %2008 = vrot.lane.b32.xlu0 %v232, 40
  %v2009 = vpop.permute.xlu0 %2008
  %v2012 = vsel %vm238, %v2007, 0
  %2014 = vmatprep.subr.mxu0 0.0
  %2015 = vmatpush1.msra.mxu0 %v2009
  %2016 = vmatprep.subr.mxu0 0.0
  %2017 = vmatpush1.msra.mxu0 0.0
  %2018 = vmatprep.subr.mxu0 0.0
  %2019 = vmatpush1.msra.mxu0 0.0
  %2020 = vmatprep.subr.mxu0 0.0
  %2021 = vmatpush1.msra.mxu0 0.0
  %2022 = vmatprep.subr.mxu0 0.0
  %2023 = vmatpush1.msra.mxu0 0.0
  %2024 = vmatprep.subr.mxu0 0.0
  %2025 = vmatpush1.msra.mxu0 0.0
  %2026 = vmatprep.subr.mxu0 0.0
  %2027 = vmatpush1.msra.mxu0 0.0
  %2028 = vmatprep.subr.mxu0 0.0
  %2029 = vmatpush1.msra.mxu0 0.0
  %2030 = vmatprep.subr.mxu0 0.0
  %2031 = vmatpush1.msra.mxu0 0.0
  %2032 = vmatprep.subr.mxu0 0.0
  %2033 = vmatpush1.msra.mxu0 0.0
  %2034 = vmatprep.subr.mxu0 0.0
  %2035 = vmatpush1.msra.mxu0 0.0
  %2036 = vmatprep.subr.mxu0 0.0
  %2037 = vmatpush1.msra.mxu0 0.0
  %2038 = vmatprep.subr.mxu0 0.0
  %2039 = vmatpush1.msra.mxu0 0.0
  %2040 = vmatprep.subr.mxu0 0.0
  %2041 = vmatpush1.msra.mxu0 0.0
  %2042 = vmatprep.subr.mxu0 0.0
  %2043 = vmatpush1.msra.mxu0 0.0
  %2044 = vmatprep.subr.mxu0 0.0
  %2045 = vmatpush1.msra.mxu0 0.0
  %2046 = vmatprep.subr.mxu0 0.0
  %2047 = vmatpush1.msra.mxu0 0.0
  %2048 = vmatprep.subr.mxu0 0.0
  %2049 = vmatpush1.msra.mxu0 0.0
  %2050 = vmatprep.subr.mxu0 0.0
  %2051 = vmatpush1.msra.mxu0 0.0
  %2052 = vmatprep.subr.mxu0 0.0
  %2053 = vmatpush1.msra.mxu0 0.0
  %2054 = vmatprep.subr.mxu0 0.0
  %2055 = vmatpush1.msra.mxu0 0.0
  %2056 = vmatprep.subr.mxu0 0.0
  %2057 = vmatpush1.msra.mxu0 0.0
  %2058 = vmatprep.subr.mxu0 0.0
  %2059 = vmatpush1.msra.mxu0 0.0
  %2060 = vmatprep.subr.mxu0 0.0
  %2061 = vmatpush1.msra.mxu0 0.0
  %2062 = vmatprep.subr.mxu0 0.0
  %2063 = vmatpush1.msra.mxu0 0.0
  %2064 = vmatprep.subr.mxu0 0.0
  %2065 = vmatpush1.msra.mxu0 0.0
  %2066 = vmatprep.subr.mxu0 0.0
  %2067 = vmatpush1.msra.mxu0 0.0
  %2068 = vmatprep.subr.mxu0 0.0
  %2069 = vmatpush1.msra.mxu0 0.0
  %2070 = vmatprep.subr.mxu0 0.0
  %2071 = vmatpush1.msra.mxu0 0.0
  %2072 = vmatprep.subr.mxu0 0.0
  %2073 = vmatpush1.msra.mxu0 0.0
  %2074 = vmatprep.subr.mxu0 0.0
  %2075 = vmatpush1.msra.mxu0 0.0
  %2076 = vmatprep.subr.mxu0 0.0
  %2077 = vmatpush1.msra.mxu0 0.0
  %2078 = vmatprep.mubr.f32.mxu0 0.0
  %2079 = vmatmul.mubr.f32.gmra.mrb[0].mxu0 %v2012
  %v2080 = vpop.f32.mrb[0].mxu0
  %v2081 = vadd.f32 0.0, %v2080
  %v2082 = vpop.f32.mrb[0].mxu0
  %2083 = vdwg.mxu0
  %v2085 = vsel %vm238, %v2081, 0
  %2087 = vmatprep.subr.mxu0 0.0
  %2088 = vmatpush1.msra.mxu0 %v147
  %2089 = vmatprep.subr.mxu0 0.0
  %2090 = vmatpush1.msra.mxu0 0.0
  %2091 = vmatprep.subr.mxu0 0.0
  %2092 = vmatpush1.msra.mxu0 0.0
  %2093 = vmatprep.subr.mxu0 0.0
  %2094 = vmatpush1.msra.mxu0 0.0
  %2095 = vmatprep.subr.mxu0 0.0
  %2096 = vmatpush1.msra.mxu0 0.0
  %2097 = vmatprep.subr.mxu0 0.0
  %2098 = vmatpush1.msra.mxu0 0.0
  %2099 = vmatprep.subr.mxu0 0.0
  %2100 = vmatpush1.msra.mxu0 0.0
  %2101 = vmatprep.subr.mxu0 0.0
  %2102 = vmatpush1.msra.mxu0 0.0
  %2103 = vmatprep.subr.mxu0 0.0
  %2104 = vmatpush1.msra.mxu0 0.0
  %2105 = vmatprep.subr.mxu0 0.0
  %2106 = vmatpush1.msra.mxu0 0.0
  %2107 = vmatprep.subr.mxu0 0.0
  %2108 = vmatpush1.msra.mxu0 0.0
  %2109 = vmatprep.subr.mxu0 0.0
  %2110 = vmatpush1.msra.mxu0 0.0
  %2111 = vmatprep.subr.mxu0 0.0
  %2112 = vmatpush1.msra.mxu0 0.0
  %2113 = vmatprep.subr.mxu0 0.0
  %2114 = vmatpush1.msra.mxu0 0.0
  %2115 = vmatprep.subr.mxu0 0.0
  %2116 = vmatpush1.msra.mxu0 0.0
  %2117 = vmatprep.subr.mxu0 0.0
  %2118 = vmatpush1.msra.mxu0 0.0
  %2119 = vmatprep.subr.mxu0 0.0
  %2120 = vmatpush1.msra.mxu0 0.0
  %2121 = vmatprep.subr.mxu0 0.0
  %2122 = vmatpush1.msra.mxu0 0.0
  %2123 = vmatprep.subr.mxu0 0.0
  %2124 = vmatpush1.msra.mxu0 0.0
  %2125 = vmatprep.subr.mxu0 0.0
  %2126 = vmatpush1.msra.mxu0 0.0
  %2127 = vmatprep.subr.mxu0 0.0
  %2128 = vmatpush1.msra.mxu0 0.0
  %2129 = vmatprep.subr.mxu0 0.0
  %2130 = vmatpush1.msra.mxu0 0.0
  %2131 = vmatprep.subr.mxu0 0.0
  %2132 = vmatpush1.msra.mxu0 0.0
  %2133 = vmatprep.subr.mxu0 0.0
  %2134 = vmatpush1.msra.mxu0 0.0
  %2135 = vmatprep.subr.mxu0 0.0
  %2136 = vmatpush1.msra.mxu0 0.0
  %2137 = vmatprep.subr.mxu0 0.0
  %2138 = vmatpush1.msra.mxu0 0.0
  %2139 = vmatprep.subr.mxu0 0.0
  %2140 = vmatpush1.msra.mxu0 0.0
  %2141 = vmatprep.subr.mxu0 0.0
  %2142 = vmatpush1.msra.mxu0 0.0
  %2143 = vmatprep.subr.mxu0 0.0
  %2144 = vmatpush1.msra.mxu0 0.0
  %2145 = vmatprep.subr.mxu0 0.0
  %2146 = vmatpush1.msra.mxu0 0.0
  %2147 = vmatprep.subr.mxu0 0.0
  %2148 = vmatpush1.msra.mxu0 0.0
  %2149 = vmatprep.subr.mxu0 0.0
  %2150 = vmatpush1.msra.mxu0 0.0
  %2151 = vmatprep.mubr.f32.mxu0 0.0
  %2152 = vmatmul.mubr.f32.gmra.mrb[0].mxu0 %v2085
  %v2153 = vpop.f32.mrb[0].mxu0
  %v2154 = vadd.f32 0.0, %v2153
  %v2155 = vpop.f32.mrb[0].mxu0
  %2156 = vdwg.mxu0
  %v2157 = vadd.f32 %v1916, %v2154
  %v2158 = vlaneseq
  %v2159 = vshrl.u32 %v2158, 7
  %v2160 = vsub.s32 0, %v2159
  %v2161 = vrot.slane %v148, %v2160
  %v2162 = vadd.f32 %v1196, %v2161
  %v2163 = vadd.f32 %v2157, %v2161
  %v2164 = vld [vmem:[%s0 + $0x130] sm:$0x1]
  %v2165 = vld [vmem:[%s0 + $0x138] sm:$0x1]
  %v2166 = vsel %vm153, %v2162, 0.0
  %2167 = vadd.xlane.f32.xlu0 %v2166
  %v2168 = vpop.xlane.xlu0 %2167
  %v2169 = vsel %vm153, %v2163, 0.0
  %2170 = vadd.xlane.f32.xlu0 %v2169
  %v2171 = vpop.xlane.xlu0 %2170
  %v2172 = vrcp.pop 32.0
  %v2173 = vmul.f32 %v2168, %v2172
  %v2174 = vmul.f32 %v2171, %v2172
  %v2175 = vsub.f32 %v2162, %v2173
  %v2176 = vsub.f32 %v2163, %v2174
  %v2177 = vmul.f32 %v2175, %v2175
  %v2178 = vmul.f32 %v2176, %v2176
  %v2179 = vsel %vm153, %v2177, 0.0
  %2180 = vadd.xlane.f32.xlu0 %v2179
  %v2181 = vpop.xlane.xlu0 %2180
  %v2182 = vsel %vm153, %v2178, 0.0
  %2183 = vadd.xlane.f32.xlu0 %v2182
  %v2184 = vpop.xlane.xlu0 %2183
  %v2185 = vmul.f32 %v2181, %v2172
  %v2186 = vmul.f32 %v2184, %v2172
  %v2187 = vadd.f32 %v2185, 1e-06
  %v2188 = vadd.f32 %v2186, 1e-06
  %v2189 = vrsqrt.pop %v2187
  %v2190 = vrsqrt.pop %v2188
  %v2191 = vmul.f32 %v2175, %v2189
  %v2192 = vmul.f32 %v2176, %v2190
  %v2193 = vlaneseq
  %v2194 = vshrl.u32 %v2193, 7
  %v2195 = vsub.s32 0, %v2194
  %v2196 = vrot.slane %v2164, %v2195
  %v2197 = vmul.f32 %v2191, %v2196
  %v2198 = vmul.f32 %v2192, %v2196
  %v2199 = vlaneseq
  %v2200 = vshrl.u32 %v2199, 7
  %v2201 = vsub.s32 0, %v2200
  %v2202 = vrot.slane %v2165, %v2201
  %v2203 = vadd.f32 %v2197, %v2202
  %v2204 = vadd.f32 %v2198, %v2202
  %v2205 = vadd.f32 %v2162, %v2203
  %v2206 = vadd.f32 %v2163, %v2204
  %v2207 = vld [vmem:[%s0 + $0x140] sm:$0xff]
  %v2208 = vld [vmem:[%s0 + $0x148] sm:$0xff]
  %v2209 = vld [vmem:[%s0 + $0x150] sm:$0xff]
  %v2210 = vld [vmem:[%s0 + $0x158] sm:$0xff]
  %v2211 = vld [vmem:[%s0 + $0x160] sm:$0x1]
  %v2212 = vlaneseq
  %v2213 = vshrl.u32 %v2212, 7
  %v2214 = vsub.s32 0, %v2213
  %v2215 = vrot.slane %v2211, %v2214
  %v2217 = vsel %vm153, %v2205, 0
  %v2220 = vsel %vm153, %v2206, 0
  %2222 = vmatprep.subr.mxu0 0.0
  %2223 = vmatpush1.msra.mxu0 %v2207
  %2224 = vmatprep.subr.mxu0 0.0
  %2225 = vmatpush1.msra.mxu0 %v2208
  %2226 = vmatprep.subr.mxu0 0.0
  %2227 = vmatpush1.msra.mxu0 %v2209
  %2228 = vmatprep.subr.mxu0 0.0
  %2229 = vmatpush1.msra.mxu0 %v2210
  %2230 = vmatprep.subr.mxu0 0.0
  %2231 = vmatpush1.msra.mxu0 0.0
  %2232 = vmatprep.subr.mxu0 0.0
  %2233 = vmatpush1.msra.mxu0 0.0
  %2234 = vmatprep.subr.mxu0 0.0
  %2235 = vmatpush1.msra.mxu0 0.0
  %2236 = vmatprep.subr.mxu0 0.0
  %2237 = vmatpush1.msra.mxu0 0.0
  %2238 = vmatprep.subr.mxu0 0.0
  %2239 = vmatpush1.msra.mxu0 0.0
  %2240 = vmatprep.subr.mxu0 0.0
  %2241 = vmatpush1.msra.mxu0 0.0
  %2242 = vmatprep.subr.mxu0 0.0
  %2243 = vmatpush1.msra.mxu0 0.0
  %2244 = vmatprep.subr.mxu0 0.0
  %2245 = vmatpush1.msra.mxu0 0.0
  %2246 = vmatprep.subr.mxu0 0.0
  %2247 = vmatpush1.msra.mxu0 0.0
  %2248 = vmatprep.subr.mxu0 0.0
  %2249 = vmatpush1.msra.mxu0 0.0
  %2250 = vmatprep.subr.mxu0 0.0
  %2251 = vmatpush1.msra.mxu0 0.0
  %2252 = vmatprep.subr.mxu0 0.0
  %2253 = vmatpush1.msra.mxu0 0.0
  %2254 = vmatprep.subr.mxu0 0.0
  %2255 = vmatpush1.msra.mxu0 0.0
  %2256 = vmatprep.subr.mxu0 0.0
  %2257 = vmatpush1.msra.mxu0 0.0
  %2258 = vmatprep.subr.mxu0 0.0
  %2259 = vmatpush1.msra.mxu0 0.0
  %2260 = vmatprep.subr.mxu0 0.0
  %2261 = vmatpush1.msra.mxu0 0.0
  %2262 = vmatprep.subr.mxu0 0.0
  %2263 = vmatpush1.msra.mxu0 0.0
  %2264 = vmatprep.subr.mxu0 0.0
  %2265 = vmatpush1.msra.mxu0 0.0
  %2266 = vmatprep.subr.mxu0 0.0
  %2267 = vmatpush1.msra.mxu0 0.0
  %2268 = vmatprep.subr.mxu0 0.0
  %2269 = vmatpush1.msra.mxu0 0.0
  %2270 = vmatprep.subr.mxu0 0.0
  %2271 = vmatpush1.msra.mxu0 0.0
  %2272 = vmatprep.subr.mxu0 0.0
  %2273 = vmatpush1.msra.mxu0 0.0
  %2274 = vmatprep.subr.mxu0 0.0
  %2275 = vmatpush1.msra.mxu0 0.0
  %2276 = vmatprep.subr.mxu0 0.0
  %2277 = vmatpush1.msra.mxu0 0.0
  %2278 = vmatprep.subr.mxu0 0.0
  %2279 = vmatpush1.msra.mxu0 0.0
  %2280 = vmatprep.subr.mxu0 0.0
  %2281 = vmatpush1.msra.mxu0 0.0
  %2282 = vmatprep.subr.mxu0 0.0
  %2283 = vmatpush1.msra.mxu0 0.0
  %2284 = vmatprep.subr.mxu0 0.0
  %2285 = vmatpush1.msra.mxu0 0.0
  %2286 = vmatprep.mubr.f32.mxu0 0.0
  %2287 = vmatmul.mubr.f32.gmra.mrb[0].mxu0 %v2217
  %v2288 = vpop.f32.mrb[0].mxu0
  %v2289 = vadd.f32 %v2215, %v2288
  %v2290 = vpop.f32.mrb[0].mxu0
  %2291 = vmatprep.mubr.f32.mxu0 0.0
  %2292 = vmatmul.mubr.f32.gmra.mrb[0].mxu0 %v2220
  %v2293 = vpop.f32.mrb[0].mxu0
  %v2294 = vadd.f32 %v2215, %v2293
  %v2295 = vpop.f32.mrb[0].mxu0
  %2296 = vdwg.mxu0
  %v2297 = vmul.f32 %v2289, 0.5
  %v2298 = vmul.f32 %v2294, 0.5
  %v2299 = vmul.f32 %v2289, 0.044715
  %v2300 = vmul.f32 %v2294, 0.044715
  %v2301 = vmul.f32 %v2299, %v2289
  %v2302 = vmul.f32 %v2300, %v2294
  %v2303 = vmul.f32 %v2301, %v2289
  %v2304 = vmul.f32 %v2302, %v2294
  %v2305 = vadd.f32 %v2289, %v2303
  %v2306 = vadd.f32 %v2294, %v2304
  %v2307 = vmul.f32 %v2305, 0.7978846
  %v2308 = vmul.f32 %v2306, 0.7978846
  %v2309 = vtanh.pop %v2307
  %v2310 = vtanh.pop %v2308
  %v2311 = vadd.f32 %v2309, 1.0
  %v2312 = vadd.f32 %v2310, 1.0
  %v2313 = vmul.f32 %v2297, %v2311
  %v2314 = vmul.f32 %v2298, %v2312
  %v2315 = vld [vmem:[%s0 + $0x168] sm:$0xff]
  %v2316 = vld [vmem:[%s0 + $0x170] sm:$0xff]
  %v2317 = vld [vmem:[%s0 + $0x178] sm:$0xff]
  %v2318 = vld [vmem:[%s0 + $0x180] sm:$0xff]
  %v2319 = vld [vmem:[%s0 + $0x188] sm:$0xff]
  %v2320 = vld [vmem:[%s0 + $0x190] sm:$0xff]
  %v2321 = vld [vmem:[%s0 + $0x198] sm:$0xff]
  %v2322 = vld [vmem:[%s0 + $0x1a0] sm:$0xff]
  %v2323 = vld [vmem:[%s0 + $0x1a8] sm:$0xff]
  %v2324 = vld [vmem:[%s0 + $0x1b0] sm:$0xff]
  %v2325 = vld [vmem:[%s0 + $0x1b8] sm:$0xff]
  %v2326 = vld [vmem:[%s0 + $0x1c0] sm:$0xff]
  %v2327 = vld [vmem:[%s0 + $0x1c8] sm:$0xff]
  %v2328 = vld [vmem:[%s0 + $0x1d0] sm:$0xff]
  %v2329 = vld [vmem:[%s0 + $0x1d8] sm:$0xff]
  %v2330 = vld [vmem:[%s0 + $0x1e0] sm:$0xff]
  %v2331 = vld [vmem:[%s0 + $0x1e8] sm:$0x1]
  %v2332 = vlaneseq
  %v2333 = vshrl.u32 %v2332, 7
  %v2334 = vsub.s32 0, %v2333
  %v2335 = vrot.slane %v2331, %v2334
  %2336 = vmatprep.subr.mxu0 0.0
  %2337 = vmatpush1.msra.mxu0 %v2315
  %2338 = vmatprep.subr.mxu0 0.0
  %2339 = vmatpush1.msra.mxu0 %v2316
  %2340 = vmatprep.subr.mxu0 0.0
  %2341 = vmatpush1.msra.mxu0 %v2317
  %2342 = vmatprep.subr.mxu0 0.0
  %2343 = vmatpush1.msra.mxu0 %v2318
  %2344 = vmatprep.subr.mxu0 0.0
  %2345 = vmatpush1.msra.mxu0 %v2319
  %2346 = vmatprep.subr.mxu0 0.0
  %2347 = vmatpush1.msra.mxu0 %v2320
  %2348 = vmatprep.subr.mxu0 0.0
  %2349 = vmatpush1.msra.mxu0 %v2321
  %2350 = vmatprep.subr.mxu0 0.0
  %2351 = vmatpush1.msra.mxu0 %v2322
  %2352 = vmatprep.subr.mxu0 0.0
  %2353 = vmatpush1.msra.mxu0 %v2323
  %2354 = vmatprep.subr.mxu0 0.0
  %2355 = vmatpush1.msra.mxu0 %v2324
  %2356 = vmatprep.subr.mxu0 0.0
  %2357 = vmatpush1.msra.mxu0 %v2325
  %2358 = vmatprep.subr.mxu0 0.0
  %2359 = vmatpush1.msra.mxu0 %v2326
  %2360 = vmatprep.subr.mxu0 0.0
  %2361 = vmatpush1.msra.mxu0 %v2327
  %2362 = vmatprep.subr.mxu0 0.0
  %2363 = vmatpush1.msra.mxu0 %v2328
  %2364 = vmatprep.subr.mxu0 0.0
  %2365 = vmatpush1.msra.mxu0 %v2329
  %2366 = vmatprep.subr.mxu0 0.0
  %2367 = vmatpush1.msra.mxu0 %v2330
  %2368 = vmatprep.subr.mxu0 0.0
  %2369 = vmatpush1.msra.mxu0 0.0
  %2370 = vmatprep.subr.mxu0 0.0
  %2371 = vmatpush1.msra.mxu0 0.0
  %2372 = vmatprep.subr.mxu0 0.0
  %2373 = vmatpush1.msra.mxu0 0.0
  %2374 = vmatprep.subr.mxu0 0.0
  %2375 = vmatpush1.msra.mxu0 0.0
  %2376 = vmatprep.subr.mxu0 0.0
  %2377 = vmatpush1.msra.mxu0 0.0
  %2378 = vmatprep.subr.mxu0 0.0
  %2379 = vmatpush1.msra.mxu0 0.0
  %2380 = vmatprep.subr.mxu0 0.0
  %2381 = vmatpush1.msra.mxu0 0.0
  %2382 = vmatprep.subr.mxu0 0.0
  %2383 = vmatpush1.msra.mxu0 0.0
  %2384 = vmatprep.subr.mxu0 0.0
  %2385 = vmatpush1.msra.mxu0 0.0
  %2386 = vmatprep.subr.mxu0 0.0
  %2387 = vmatpush1.msra.mxu0 0.0
  %2388 = vmatprep.subr.mxu0 0.0
  %2389 = vmatpush1.msra.mxu0 0.0
  %2390 = vmatprep.subr.mxu0 0.0
  %2391 = vmatpush1.msra.mxu0 0.0
  %2392 = vmatprep.subr.mxu0 0.0
  %2393 = vmatpush1.msra.mxu0 0.0
  %2394 = vmatprep.subr.mxu0 0.0
  %2395 = vmatpush1.msra.mxu0 0.0
  %2396 = vmatprep.subr.mxu0 0.0
  %2397 = vmatpush1.msra.mxu0 0.0
  %2398 = vmatprep.subr.mxu0 0.0
  %2399 = vmatpush1.msra.mxu0 0.0
  %2400 = vmatprep.mubr.f32.mxu0 0.0
  %2401 = vmatmul.mubr.f32.gmra.mrb[0].mxu0 %v2313
  %v2402 = vpop.f32.mrb[0].mxu0
  %v2403 = vadd.f32 %v2335, %v2402
  %v2404 = vpop.f32.mrb[0].mxu0
  %2405 = vmatprep.mubr.f32.mxu0 0.0
  %2406 = vmatmul.mubr.f32.gmra.mrb[0].mxu0 %v2314
  %v2407 = vpop.f32.mrb[0].mxu0
  %v2408 = vadd.f32 %v2335, %v2407
  %v2409 = vpop.f32.mrb[0].mxu0
  %2410 = vdwg.mxu0
  %v2411 = vld [vmem:[%s0 + $0x1f0] sm:$0x1]
  %v2412 = vld [vmem:[%s0 + $0x1f8] sm:$0x1]
  %v2413 = vsel %vm153, %v2403, 0.0
  %2414 = vadd.xlane.f32.xlu0 %v2413
  %v2415 = vpop.xlane.xlu0 %2414
  %v2416 = vsel %vm153, %v2408, 0.0
  %2417 = vadd.xlane.f32.xlu0 %v2416
  %v2418 = vpop.xlane.xlu0 %2417
  %v2419 = vmul.f32 %v2415, %v2172
  %v2420 = vmul.f32 %v2418, %v2172
  %v2421 = vsub.f32 %v2403, %v2419
  %v2422 = vsub.f32 %v2408, %v2420
  %v2423 = vmul.f32 %v2421, %v2421
  %v2424 = vmul.f32 %v2422, %v2422
  %v2425 = vsel %vm153, %v2423, 0.0
  %2426 = vadd.xlane.f32.xlu0 %v2425
  %v2427 = vpop.xlane.xlu0 %2426
  %v2428 = vsel %vm153, %v2424, 0.0
  %2429 = vadd.xlane.f32.xlu0 %v2428
  %v2430 = vpop.xlane.xlu0 %2429
  %v2431 = vmul.f32 %v2427, %v2172
  %v2432 = vmul.f32 %v2430, %v2172
  %v2433 = vadd.f32 %v2431, 1e-06
  %v2434 = vadd.f32 %v2432, 1e-06
  %v2435 = vrsqrt.pop %v2433
  %v2436 = vrsqrt.pop %v2434
  %v2437 = vmul.f32 %v2421, %v2435
  %v2438 = vmul.f32 %v2422, %v2436
  %v2439 = vlaneseq
  %v2440 = vshrl.u32 %v2439, 7
  %v2441 = vsub.s32 0, %v2440
  %v2442 = vrot.slane %v2411, %v2441
  %v2443 = vmul.f32 %v2437, %v2442
  %v2444 = vmul.f32 %v2438, %v2442
  %v2445 = vlaneseq
  %v2446 = vshrl.u32 %v2445, 7
  %v2447 = vsub.s32 0, %v2446
  %v2448 = vrot.slane %v2412, %v2447
  %v2449 = vadd.f32 %v2443, %v2448
  %v2450 = vadd.f32 %v2444, %v2448
  %v2451 = vadd.f32 %v2205, %v2449
  %v2452 = vadd.f32 %v2206, %v2450
  %v2453 = vld [vmem:[%s0 + $0x200] sm:$0xff]
  %v2454 = vld [vmem:[%s0 + $0x208] sm:$0xff]
  %v2455 = vld [vmem:[%s0 + $0x210] sm:$0xff]
  %v2456 = vld [vmem:[%s0 + $0x218] sm:$0xff]
  %v2457 = vld [vmem:[%s0 + $0x220] sm:$0x1]
  %v2458 = vld [vmem:[%s0 + $0x228] sm:$0xff]
  %v2459 = vld [vmem:[%s0 + $0x230] sm:$0xff]
  %v2460 = vld [vmem:[%s0 + $0x238] sm:$0xff]
  %v2461 = vld [vmem:[%s0 + $0x240] sm:$0xff]
  %v2462 = vld [vmem:[%s0 + $0x248] sm:$0x1]
  %v2463 = vlaneseq
  %v2464 = vshrl.u32 %v2463, 7
  %v2465 = vsub.s32 0, %v2464
  %v2466 = vrot.slane %v2457, %v2465
  %v2468 = vsel %vm153, %v2451, 0
  %v2471 = vsel %vm153, %v2452, 0
  %2473 = vmatprep.subr.mxu0 0.0
  %2474 = vmatpush1.msra.mxu0 %v2453
  %2475 = vmatprep.subr.mxu0 0.0
  %2476 = vmatpush1.msra.mxu0 %v2454
  %2477 = vmatprep.subr.mxu0 0.0
  %2478 = vmatpush1.msra.mxu0 %v2455
  %2479 = vmatprep.subr.mxu0 0.0
  %2480 = vmatpush1.msra.mxu0 %v2456
  %2481 = vmatprep.subr.mxu0 0.0
  %2482 = vmatpush1.msra.mxu0 0.0
  %2483 = vmatprep.subr.mxu0 0.0
  %2484 = vmatpush1.msra.mxu0 0.0
  %2485 = vmatprep.subr.mxu0 0.0
  %2486 = vmatpush1.msra.mxu0 0.0
  %2487 = vmatprep.subr.mxu0 0.0
  %2488 = vmatpush1.msra.mxu0 0.0
  %2489 = vmatprep.subr.mxu0 0.0
  %2490 = vmatpush1.msra.mxu0 0.0
  %2491 = vmatprep.subr.mxu0 0.0
  %2492 = vmatpush1.msra.mxu0 0.0
  %2493 = vmatprep.subr.mxu0 0.0
  %2494 = vmatpush1.msra.mxu0 0.0
  %2495 = vmatprep.subr.mxu0 0.0
  %2496 = vmatpush1.msra.mxu0 0.0
  %2497 = vmatprep.subr.mxu0 0.0
  %2498 = vmatpush1.msra.mxu0 0.0
  %2499 = vmatprep.subr.mxu0 0.0
  %2500 = vmatpush1.msra.mxu0 0.0
  %2501 = vmatprep.subr.mxu0 0.0
  %2502 = vmatpush1.msra.mxu0 0.0
  %2503 = vmatprep.subr.mxu0 0.0
  %2504 = vmatpush1.msra.mxu0 0.0
  %2505 = vmatprep.subr.mxu0 0.0
  %2506 = vmatpush1.msra.mxu0 0.0
  %2507 = vmatprep.subr.mxu0 0.0
  %2508 = vmatpush1.msra.mxu0 0.0
  %2509 = vmatprep.subr.mxu0 0.0
  %2510 = vmatpush1.msra.mxu0 0.0
  %2511 = vmatprep.subr.mxu0 0.0
  %2512 = vmatpush1.msra.mxu0 0.0
  %2513 = vmatprep.subr.mxu0 0.0
  %2514 = vmatpush1.msra.mxu0 0.0
  %2515 = vmatprep.subr.mxu0 0.0
  %2516 = vmatpush1.msra.mxu0 0.0
  %2517 = vmatprep.subr.mxu0 0.0
  %2518 = vmatpush1.msra.mxu0 0.0
  %2519 = vmatprep.subr.mxu0 0.0
  %2520 = vmatpush1.msra.mxu0 0.0
  %2521 = vmatprep.subr.mxu0 0.0
  %2522 = vmatpush1.msra.mxu0 0.0
  %2523 = vmatprep.subr.mxu0 0.0
  %2524 = vmatpush1.msra.mxu0 0.0
  %2525 = vmatprep.subr.mxu0 0.0
  %2526 = vmatpush1.msra.mxu0 0.0
  %2527 = vmatprep.subr.mxu0 0.0
  %2528 = vmatpush1.msra.mxu0 0.0
  %2529 = vmatprep.subr.mxu0 0.0
  %2530 = vmatpush1.msra.mxu0 0.0
  %2531 = vmatprep.subr.mxu0 0.0
  %2532 = vmatpush1.msra.mxu0 0.0
  %2533 = vmatprep.subr.mxu0 0.0
  %2534 = vmatpush1.msra.mxu0 0.0
  %2535 = vmatprep.subr.mxu0 0.0
  %2536 = vmatpush1.msra.mxu0 0.0
  %2537 = vmatprep.mubr.f32.mxu0 0.0
  %2538 = vmatmul.mubr.f32.gmra.mrb[0].mxu0 %v2468
  %v2539 = vpop.f32.mrb[0].mxu0
  %v2540 = vadd.f32 %v2466, %v2539
  %v2541 = vpop.f32.mrb[0].mxu0
  %2542 = vmatprep.mubr.f32.mxu0 0.0
  %2543 = vmatmul.mubr.f32.gmra.mrb[0].mxu0 %v2471
  %v2544 = vpop.f32.mrb[0].mxu0
  %v2545 = vadd.f32 %v2466, %v2544
  %v2546 = vpop.f32.mrb[0].mxu0
  %2547 = vdwg.mxu0
  %2549 = vrot.lane.b32.xlu0 %v2540, 96
  %v2550 = vpop.permute.xlu0 %2549
  %v2551 = vsel %vm238, %v2540, 0
  %v2553 = vsel %vm238, %v2550, 0
  %2555 = vmatprep.subr.mxu0 0.0
  %2556 = vmatpush1.xpose.msra.mxu0 %v2553
  %2557 = vmatprep.subr.mxu0 0.0
  %2558 = vmatpush1.xpose.msra.mxu0 0.0
  %2559 = vmatprep.subr.mxu0 0.0
  %2560 = vmatpush1.xpose.msra.mxu0 0.0
  %2561 = vmatprep.subr.mxu0 0.0
  %2562 = vmatpush1.xpose.msra.mxu0 0.0
  %2563 = vmatprep.subr.mxu0 0.0
  %2564 = vmatpush1.xpose.msra.mxu0 0.0
  %2565 = vmatprep.subr.mxu0 0.0
  %2566 = vmatpush1.xpose.msra.mxu0 0.0
  %2567 = vmatprep.subr.mxu0 0.0
  %2568 = vmatpush1.xpose.msra.mxu0 0.0
  %2569 = vmatprep.subr.mxu0 0.0
  %2570 = vmatpush1.xpose.msra.mxu0 0.0
  %2571 = vmatprep.subr.mxu0 0.0
  %2572 = vmatpush1.xpose.msra.mxu0 0.0
  %2573 = vmatprep.subr.mxu0 0.0
  %2574 = vmatpush1.xpose.msra.mxu0 0.0
  %2575 = vmatprep.subr.mxu0 0.0
  %2576 = vmatpush1.xpose.msra.mxu0 0.0
  %2577 = vmatprep.subr.mxu0 0.0
  %2578 = vmatpush1.xpose.msra.mxu0 0.0
  %2579 = vmatprep.subr.mxu0 0.0
  %2580 = vmatpush1.xpose.msra.mxu0 0.0
  %2581 = vmatprep.subr.mxu0 0.0
  %2582 = vmatpush1.xpose.msra.mxu0 0.0
  %2583 = vmatprep.subr.mxu0 0.0
  %2584 = vmatpush1.xpose.msra.mxu0 0.0
  %2585 = vmatprep.subr.mxu0 0.0
  %2586 = vmatpush1.xpose.msra.mxu0 0.0
  %2587 = vmatprep.subr.mxu0 0.0
  %2588 = vmatpush1.xpose.msra.mxu0 0.0
  %2589 = vmatprep.subr.mxu0 0.0
  %2590 = vmatpush1.xpose.msra.mxu0 0.0
  %2591 = vmatprep.subr.mxu0 0.0
  %2592 = vmatpush1.xpose.msra.mxu0 0.0
  %2593 = vmatprep.subr.mxu0 0.0
  %2594 = vmatpush1.xpose.msra.mxu0 0.0
  %2595 = vmatprep.subr.mxu0 0.0
  %2596 = vmatpush1.xpose.msra.mxu0 0.0
  %2597 = vmatprep.subr.mxu0 0.0
  %2598 = vmatpush1.xpose.msra.mxu0 0.0
  %2599 = vmatprep.subr.mxu0 0.0
  %2600 = vmatpush1.xpose.msra.mxu0 0.0
  %2601 = vmatprep.subr.mxu0 0.0
  %2602 = vmatpush1.xpose.msra.mxu0 0.0
  %2603 = vmatprep.subr.mxu0 0.0
  %2604 = vmatpush1.xpose.msra.mxu0 0.0
  %2605 = vmatprep.subr.mxu0 0.0
  %2606 = vmatpush1.xpose.msra.mxu0 0.0
  %2607 = vmatprep.subr.mxu0 0.0
  %2608 = vmatpush1.xpose.msra.mxu0 0.0
  %2609 = vmatprep.subr.mxu0 0.0
  %2610 = vmatpush1.xpose.msra.mxu0 0.0
  %2611 = vmatprep.subr.mxu0 0.0
  %2612 = vmatpush1.xpose.msra.mxu0 0.0
  %2613 = vmatprep.subr.mxu0 0.0
  %2614 = vmatpush1.xpose.msra.mxu0 0.0
  %2615 = vmatprep.subr.mxu0 0.0
  %2616 = vmatpush1.xpose.msra.mxu0 0.0
  %2617 = vmatprep.subr.mxu0 0.0
  %2618 = vmatpush1.xpose.msra.mxu0 0.0
  %2619 = vmatprep.mubr.f32.mxu0 0.0
  %2620 = vmatmul.mubr.f32.gmra.mrb[0].mxu0 %v2551
  %v2621 = vpop.f32.mrb[0].mxu0
  %v2622 = vadd.f32 0.0, %v2621
  %v2623 = vpop.f32.mrb[0].mxu0
  %2624 = vdwg.mxu0
  %v2625 = vmul.f32 %v2622, 0.35355338
  %v2626 = vadd.f32 %v2625, %v17
  %v2627 = vsel %vm238, %v2626, -inf
  %2628 = vmax.xlane.f32.xlu0 %v2627
  %v2629 = vpop.xlane.xlu0 %2628
  %v2630 = vsub.f32 %v2626, %v2629
  %v2631 = vmul.f32 %v2630, 1.442695
  %v2632 = vpow.pop %v2631
  %v2633 = vsel %vm238, %v2632, 0.0
  %2634 = vadd.xlane.f32.xlu0 %v2633
  %v2635 = vpop.xlane.xlu0 %2634
  %v2636 = vrcp.pop %v2635
  %v2637 = vmul.f32 %v2632, %v2636
  %v2638 = vmul.f32 %v2637, %v20
  %v2639 = vsel %vm238, %v2638, 0.0
  %2640 = vadd.xlane.f32.xlu0 %v2639
  %v2641 = vpop.xlane.xlu0 %2640
  %v2642 = vrcp.pop %v2641
  %v2643 = vmul.f32 %v26, %v2642
  %v2644 = vmul.f32 %v2638, %v2643
  %v2645 = vsel %vm238, %v2644, 0.0
  %v2646 = vrot.slane %v2645, 4
  %v2647 = vadd.f32 %v2645, %v2646
  %v2648 = vrot.slane %v2647, 2
  %v2649 = vadd.f32 %v2647, %v2648
  %v2650 = vrot.slane %v2649, 1
  %v2651 = vadd.f32 %v2649, %v2650
  %2652 = vrot.lane.b32.xlu0 %v2540, 64
  %v2653 = vpop.permute.xlu0 %2652
  %v2656 = vsel %vm238, %v2637, 0
  %2658 = vmatprep.subr.mxu0 0.0
  %2659 = vmatpush1.msra.mxu0 %v2653
  %2660 = vmatprep.subr.mxu0 0.0
  %2661 = vmatpush1.msra.mxu0 0.0
  %2662 = vmatprep.subr.mxu0 0.0
  %2663 = vmatpush1.msra.mxu0 0.0
  %2664 = vmatprep.subr.mxu0 0.0
  %2665 = vmatpush1.msra.mxu0 0.0
  %2666 = vmatprep.subr.mxu0 0.0
  %2667 = vmatpush1.msra.mxu0 0.0
  %2668 = vmatprep.subr.mxu0 0.0
  %2669 = vmatpush1.msra.mxu0 0.0
  %2670 = vmatprep.subr.mxu0 0.0
  %2671 = vmatpush1.msra.mxu0 0.0
  %2672 = vmatprep.subr.mxu0 0.0
  %2673 = vmatpush1.msra.mxu0 0.0
  %2674 = vmatprep.subr.mxu0 0.0
  %2675 = vmatpush1.msra.mxu0 0.0
  %2676 = vmatprep.subr.mxu0 0.0
  %2677 = vmatpush1.msra.mxu0 0.0
  %2678 = vmatprep.subr.mxu0 0.0
  %2679 = vmatpush1.msra.mxu0 0.0
  %2680 = vmatprep.subr.mxu0 0.0
  %2681 = vmatpush1.msra.mxu0 0.0
  %2682 = vmatprep.subr.mxu0 0.0
  %2683 = vmatpush1.msra.mxu0 0.0
  %2684 = vmatprep.subr.mxu0 0.0
  %2685 = vmatpush1.msra.mxu0 0.0
  %2686 = vmatprep.subr.mxu0 0.0
  %2687 = vmatpush1.msra.mxu0 0.0
  %2688 = vmatprep.subr.mxu0 0.0
  %2689 = vmatpush1.msra.mxu0 0.0
  %2690 = vmatprep.subr.mxu0 0.0
  %2691 = vmatpush1.msra.mxu0 0.0
  %2692 = vmatprep.subr.mxu0 0.0
  %2693 = vmatpush1.msra.mxu0 0.0
  %2694 = vmatprep.subr.mxu0 0.0
  %2695 = vmatpush1.msra.mxu0 0.0
  %2696 = vmatprep.subr.mxu0 0.0
  %2697 = vmatpush1.msra.mxu0 0.0
  %2698 = vmatprep.subr.mxu0 0.0
  %2699 = vmatpush1.msra.mxu0 0.0
  %2700 = vmatprep.subr.mxu0 0.0
  %2701 = vmatpush1.msra.mxu0 0.0
  %2702 = vmatprep.subr.mxu0 0.0
  %2703 = vmatpush1.msra.mxu0 0.0
  %2704 = vmatprep.subr.mxu0 0.0
  %2705 = vmatpush1.msra.mxu0 0.0
  %2706 = vmatprep.subr.mxu0 0.0
  %2707 = vmatpush1.msra.mxu0 0.0
  %2708 = vmatprep.subr.mxu0 0.0
  %2709 = vmatpush1.msra.mxu0 0.0
  %2710 = vmatprep.subr.mxu0 0.0
  %2711 = vmatpush1.msra.mxu0 0.0
  %2712 = vmatprep.subr.mxu0 0.0
  %2713 = vmatpush1.msra.mxu0 0.0
  %2714 = vmatprep.subr.mxu0 0.0
  %2715 = vmatpush1.msra.mxu0 0.0
  %2716 = vmatprep.subr.mxu0 0.0
  %2717 = vmatpush1.msra.mxu0 0.0
  %2718 = vmatprep.subr.mxu0 0.0
  %2719 = vmatpush1.msra.mxu0 0.0
  %2720 = vmatprep.subr.mxu0 0.0
  %2721 = vmatpush1.msra.mxu0 0.0
  %2722 = vmatprep.mubr.f32.mxu0 0.0
  %2723 = vmatmul.mubr.f32.gmra.mrb[0].mxu0 %v2656
  %v2724 = vpop.f32.mrb[0].mxu0
  %v2725 = vadd.f32 0.0, %v2724
  %v2726 = vpop.f32.mrb[0].mxu0
  %2727 = vdwg.mxu0
  %2728 = vrot.lane.b32.xlu0 %v2540, 120
  %v2729 = vpop.permute.xlu0 %2728
  %2730 = vrot.lane.b32.xlu0 %v2540, 88
  %v2731 = vpop.permute.xlu0 %2730
  %v2732 = vsel %vm238, %v2729, 0
  %v2734 = vsel %vm238, %v2731, 0
  %2736 = vmatprep.subr.mxu0 0.0
  %2737 = vmatpush1.xpose.msra.mxu0 %v2734
  %2738 = vmatprep.subr.mxu0 0.0
  %2739 = vmatpush1.xpose.msra.mxu0 0.0
  %2740 = vmatprep.subr.mxu0 0.0
  %2741 = vmatpush1.xpose.msra.mxu0 0.0
  %2742 = vmatprep.subr.mxu0 0.0
  %2743 = vmatpush1.xpose.msra.mxu0 0.0
  %2744 = vmatprep.subr.mxu0 0.0
  %2745 = vmatpush1.xpose.msra.mxu0 0.0
  %2746 = vmatprep.subr.mxu0 0.0
  %2747 = vmatpush1.xpose.msra.mxu0 0.0
  %2748 = vmatprep.subr.mxu0 0.0
  %2749 = vmatpush1.xpose.msra.mxu0 0.0
  %2750 = vmatprep.subr.mxu0 0.0
  %2751 = vmatpush1.xpose.msra.mxu0 0.0
  %2752 = vmatprep.subr.mxu0 0.0
  %2753 = vmatpush1.xpose.msra.mxu0 0.0
  %2754 = vmatprep.subr.mxu0 0.0
  %2755 = vmatpush1.xpose.msra.mxu0 0.0
  %2756 = vmatprep.subr.mxu0 0.0
  %2757 = vmatpush1.xpose.msra.mxu0 0.0
  %2758 = vmatprep.subr.mxu0 0.0
  %2759 = vmatpush1.xpose.msra.mxu0 0.0
  %2760 = vmatprep.subr.mxu0 0.0
  %2761 = vmatpush1.xpose.msra.mxu0 0.0
  %2762 = vmatprep.subr.mxu0 0.0
  %2763 = vmatpush1.xpose.msra.mxu0 0.0
  %2764 = vmatprep.subr.mxu0 0.0
  %2765 = vmatpush1.xpose.msra.mxu0 0.0
  %2766 = vmatprep.subr.mxu0 0.0
  %2767 = vmatpush1.xpose.msra.mxu0 0.0
  %2768 = vmatprep.subr.mxu0 0.0
  %2769 = vmatpush1.xpose.msra.mxu0 0.0
  %2770 = vmatprep.subr.mxu0 0.0
  %2771 = vmatpush1.xpose.msra.mxu0 0.0
  %2772 = vmatprep.subr.mxu0 0.0
  %2773 = vmatpush1.xpose.msra.mxu0 0.0
  %2774 = vmatprep.subr.mxu0 0.0
  %2775 = vmatpush1.xpose.msra.mxu0 0.0
  %2776 = vmatprep.subr.mxu0 0.0
  %2777 = vmatpush1.xpose.msra.mxu0 0.0
  %2778 = vmatprep.subr.mxu0 0.0
  %2779 = vmatpush1.xpose.msra.mxu0 0.0
  %2780 = vmatprep.subr.mxu0 0.0
  %2781 = vmatpush1.xpose.msra.mxu0 0.0
  %2782 = vmatprep.subr.mxu0 0.0
  %2783 = vmatpush1.xpose.msra.mxu0 0.0
  %2784 = vmatprep.subr.mxu0 0.0
  %2785 = vmatpush1.xpose.msra.mxu0 0.0
  %2786 = vmatprep.subr.mxu0 0.0
  %2787 = vmatpush1.xpose.msra.mxu0 0.0
  %2788 = vmatprep.subr.mxu0 0.0
  %2789 = vmatpush1.xpose.msra.mxu0 0.0
  %2790 = vmatprep.subr.mxu0 0.0
  %2791 = vmatpush1.xpose.msra.mxu0 0.0
  %2792 = vmatprep.subr.mxu0 0.0
  %2793 = vmatpush1.xpose.msra.mxu0 0.0
  %2794 = vmatprep.subr.mxu0 0.0
  %2795 = vmatpush1.xpose.msra.mxu0 0.0
  %2796 = vmatprep.subr.mxu0 0.0
  %2797 = vmatpush1.xpose.msra.mxu0 0.0
  %2798 = vmatprep.subr.mxu0 0.0
  %2799 = vmatpush1.xpose.msra.mxu0 0.0
  %2800 = vmatprep.mubr.f32.mxu0 0.0
  %2801 = vmatmul.mubr.f32.gmra.mrb[0].mxu0 %v2732
  %v2802 = vpop.f32.mrb[0].mxu0
  %v2803 = vadd.f32 0.0, %v2802
  %v2804 = vpop.f32.mrb[0].mxu0
  %2805 = vdwg.mxu0
  %v2806 = vmul.f32 %v2803, 0.35355338
  %v2807 = vadd.f32 %v2806, %v17
  %v2808 = vsel %vm238, %v2807, -inf
  %2809 = vmax.xlane.f32.xlu0 %v2808
  %v2810 = vpop.xlane.xlu0 %2809
  %v2811 = vsub.f32 %v2807, %v2810
  %v2812 = vmul.f32 %v2811, 1.442695
  %v2813 = vpow.pop %v2812
  %v2814 = vsel %vm238, %v2813, 0.0
  %2815 = vadd.xlane.f32.xlu0 %v2814
  %v2816 = vpop.xlane.xlu0 %2815
  %v2817 = vrcp.pop %v2816
  %v2818 = vmul.f32 %v2813, %v2817
  %v2819 = vmul.f32 %v2818, %v20
  %v2820 = vsel %vm238, %v2819, 0.0
  %2821 = vadd.xlane.f32.xlu0 %v2820
  %v2822 = vpop.xlane.xlu0 %2821
  %v2823 = vrcp.pop %v2822
  %v2824 = vmul.f32 %v26, %v2823
  %v2825 = vmul.f32 %v2819, %v2824
  %v2826 = vsel %vm238, %v2825, 0.0
  %v2827 = vrot.slane %v2826, 4
  %v2828 = vadd.f32 %v2826, %v2827
  %v2829 = vrot.slane %v2828, 2
  %v2830 = vadd.f32 %v2828, %v2829
  %v2831 = vrot.slane %v2830, 1
  %v2832 = vadd.f32 %v2830, %v2831
  %2833 = vrot.lane.b32.xlu0 %v2540, 56
  %v2834 = vpop.permute.xlu0 %2833
  %v2837 = vsel %vm238, %v2818, 0
  %2839 = vmatprep.subr.mxu0 0.0
  %2840 = vmatpush1.msra.mxu0 %v2834
  %2841 = vmatprep.subr.mxu0 0.0
  %2842 = vmatpush1.msra.mxu0 0.0
  %2843 = vmatprep.subr.mxu0 0.0
  %2844 = vmatpush1.msra.mxu0 0.0
  %2845 = vmatprep.subr.mxu0 0.0
  %2846 = vmatpush1.msra.mxu0 0.0
  %2847 = vmatprep.subr.mxu0 0.0
  %2848 = vmatpush1.msra.mxu0 0.0
  %2849 = vmatprep.subr.mxu0 0.0
  %2850 = vmatpush1.msra.mxu0 0.0
  %2851 = vmatprep.subr.mxu0 0.0
  %2852 = vmatpush1.msra.mxu0 0.0
  %2853 = vmatprep.subr.mxu0 0.0
  %2854 = vmatpush1.msra.mxu0 0.0
  %2855 = vmatprep.subr.mxu0 0.0
  %2856 = vmatpush1.msra.mxu0 0.0
  %2857 = vmatprep.subr.mxu0 0.0
  %2858 = vmatpush1.msra.mxu0 0.0
  %2859 = vmatprep.subr.mxu0 0.0
  %2860 = vmatpush1.msra.mxu0 0.0
  %2861 = vmatprep.subr.mxu0 0.0
  %2862 = vmatpush1.msra.mxu0 0.0
  %2863 = vmatprep.subr.mxu0 0.0
  %2864 = vmatpush1.msra.mxu0 0.0
  %2865 = vmatprep.subr.mxu0 0.0
  %2866 = vmatpush1.msra.mxu0 0.0
  %2867 = vmatprep.subr.mxu0 0.0
  %2868 = vmatpush1.msra.mxu0 0.0
  %2869 = vmatprep.subr.mxu0 0.0
  %2870 = vmatpush1.msra.mxu0 0.0
  %2871 = vmatprep.subr.mxu0 0.0
  %2872 = vmatpush1.msra.mxu0 0.0
  %2873 = vmatprep.subr.mxu0 0.0
  %2874 = vmatpush1.msra.mxu0 0.0
  %2875 = vmatprep.subr.mxu0 0.0
  %2876 = vmatpush1.msra.mxu0 0.0
  %2877 = vmatprep.subr.mxu0 0.0
  %2878 = vmatpush1.msra.mxu0 0.0
  %2879 = vmatprep.subr.mxu0 0.0
  %2880 = vmatpush1.msra.mxu0 0.0
  %2881 = vmatprep.subr.mxu0 0.0
  %2882 = vmatpush1.msra.mxu0 0.0
  %2883 = vmatprep.subr.mxu0 0.0
  %2884 = vmatpush1.msra.mxu0 0.0
  %2885 = vmatprep.subr.mxu0 0.0
  %2886 = vmatpush1.msra.mxu0 0.0
  %2887 = vmatprep.subr.mxu0 0.0
  %2888 = vmatpush1.msra.mxu0 0.0
  %2889 = vmatprep.subr.mxu0 0.0
  %2890 = vmatpush1.msra.mxu0 0.0
  %2891 = vmatprep.subr.mxu0 0.0
  %2892 = vmatpush1.msra.mxu0 0.0
  %2893 = vmatprep.subr.mxu0 0.0
  %2894 = vmatpush1.msra.mxu0 0.0
  %2895 = vmatprep.subr.mxu0 0.0
  %2896 = vmatpush1.msra.mxu0 0.0
  %2897 = vmatprep.subr.mxu0 0.0
  %2898 = vmatpush1.msra.mxu0 0.0
  %2899 = vmatprep.subr.mxu0 0.0
  %2900 = vmatpush1.msra.mxu0 0.0
  %2901 = vmatprep.subr.mxu0 0.0
  %2902 = vmatpush1.msra.mxu0 0.0
  %2903 = vmatprep.mubr.f32.mxu0 0.0
  %2904 = vmatmul.mubr.f32.gmra.mrb[0].mxu0 %v2837
  %v2905 = vpop.f32.mrb[0].mxu0
  %v2906 = vadd.f32 0.0, %v2905
  %v2907 = vpop.f32.mrb[0].mxu0
  %2908 = vdwg.mxu0
  %v2910 = vsel %vm238, %v2906, 0
  %2912 = vmatprep.subr.mxu0 0.0
  %2913 = vmatpush1.msra.mxu0 %v2459
  %2914 = vmatprep.subr.mxu0 0.0
  %2915 = vmatpush1.msra.mxu0 0.0
  %2916 = vmatprep.subr.mxu0 0.0
  %2917 = vmatpush1.msra.mxu0 0.0
  %2918 = vmatprep.subr.mxu0 0.0
  %2919 = vmatpush1.msra.mxu0 0.0
  %2920 = vmatprep.subr.mxu0 0.0
  %2921 = vmatpush1.msra.mxu0 0.0
  %2922 = vmatprep.subr.mxu0 0.0
  %2923 = vmatpush1.msra.mxu0 0.0
  %2924 = vmatprep.subr.mxu0 0.0
  %2925 = vmatpush1.msra.mxu0 0.0
  %2926 = vmatprep.subr.mxu0 0.0
  %2927 = vmatpush1.msra.mxu0 0.0
  %2928 = vmatprep.subr.mxu0 0.0
  %2929 = vmatpush1.msra.mxu0 0.0
  %2930 = vmatprep.subr.mxu0 0.0
  %2931 = vmatpush1.msra.mxu0 0.0
  %2932 = vmatprep.subr.mxu0 0.0
  %2933 = vmatpush1.msra.mxu0 0.0
  %2934 = vmatprep.subr.mxu0 0.0
  %2935 = vmatpush1.msra.mxu0 0.0
  %2936 = vmatprep.subr.mxu0 0.0
  %2937 = vmatpush1.msra.mxu0 0.0
  %2938 = vmatprep.subr.mxu0 0.0
  %2939 = vmatpush1.msra.mxu0 0.0
  %2940 = vmatprep.subr.mxu0 0.0
  %2941 = vmatpush1.msra.mxu0 0.0
  %2942 = vmatprep.subr.mxu0 0.0
  %2943 = vmatpush1.msra.mxu0 0.0
  %2944 = vmatprep.subr.mxu0 0.0
  %2945 = vmatpush1.msra.mxu0 0.0
  %2946 = vmatprep.subr.mxu0 0.0
  %2947 = vmatpush1.msra.mxu0 0.0
  %2948 = vmatprep.subr.mxu0 0.0
  %2949 = vmatpush1.msra.mxu0 0.0
  %2950 = vmatprep.subr.mxu0 0.0
  %2951 = vmatpush1.msra.mxu0 0.0
  %2952 = vmatprep.subr.mxu0 0.0
  %2953 = vmatpush1.msra.mxu0 0.0
  %2954 = vmatprep.subr.mxu0 0.0
  %2955 = vmatpush1.msra.mxu0 0.0
  %2956 = vmatprep.subr.mxu0 0.0
  %2957 = vmatpush1.msra.mxu0 0.0
  %2958 = vmatprep.subr.mxu0 0.0
  %2959 = vmatpush1.msra.mxu0 0.0
  %2960 = vmatprep.subr.mxu0 0.0
  %2961 = vmatpush1.msra.mxu0 0.0
  %2962 = vmatprep.subr.mxu0 0.0
  %2963 = vmatpush1.msra.mxu0 0.0
  %2964 = vmatprep.subr.mxu0 0.0
  %2965 = vmatpush1.msra.mxu0 0.0
  %2966 = vmatprep.subr.mxu0 0.0
  %2967 = vmatpush1.msra.mxu0 0.0
  %2968 = vmatprep.subr.mxu0 0.0
  %2969 = vmatpush1.msra.mxu0 0.0
  %2970 = vmatprep.subr.mxu0 0.0
  %2971 = vmatpush1.msra.mxu0 0.0
  %2972 = vmatprep.subr.mxu0 0.0
  %2973 = vmatpush1.msra.mxu0 0.0
  %2974 = vmatprep.subr.mxu0 0.0
  %2975 = vmatpush1.msra.mxu0 0.0
  %2976 = vmatprep.mubr.f32.mxu0 0.0
  %2977 = vmatmul.mubr.f32.gmra.mrb[0].mxu0 %v2910
  %v2978 = vpop.f32.mrb[0].mxu0
  %v2979 = vadd.f32 0.0, %v2978
  %v2980 = vpop.f32.mrb[0].mxu0
  %2981 = vdwg.mxu0
  %v2983 = vsel %vm238, %v2725, 0
  %2985 = vmatprep.subr.mxu0 0.0
  %2986 = vmatpush1.msra.mxu0 %v2458
  %2987 = vmatprep.subr.mxu0 0.0
  %2988 = vmatpush1.msra.mxu0 0.0
  %2989 = vmatprep.subr.mxu0 0.0
  %2990 = vmatpush1.msra.mxu0 0.0
  %2991 = vmatprep.subr.mxu0 0.0
  %2992 = vmatpush1.msra.mxu0 0.0
  %2993 = vmatprep.subr.mxu0 0.0
  %2994 = vmatpush1.msra.mxu0 0.0
  %2995 = vmatprep.subr.mxu0 0.0
  %2996 = vmatpush1.msra.mxu0 0.0
  %2997 = vmatprep.subr.mxu0 0.0
  %2998 = vmatpush1.msra.mxu0 0.0
  %2999 = vmatprep.subr.mxu0 0.0
  %3000 = vmatpush1.msra.mxu0 0.0
  %3001 = vmatprep.subr.mxu0 0.0
  %3002 = vmatpush1.msra.mxu0 0.0
  %3003 = vmatprep.subr.mxu0 0.0
  %3004 = vmatpush1.msra.mxu0 0.0
  %3005 = vmatprep.subr.mxu0 0.0
  %3006 = vmatpush1.msra.mxu0 0.0
  %3007 = vmatprep.subr.mxu0 0.0
  %3008 = vmatpush1.msra.mxu0 0.0
  %3009 = vmatprep.subr.mxu0 0.0
  %3010 = vmatpush1.msra.mxu0 0.0
  %3011 = vmatprep.subr.mxu0 0.0
  %3012 = vmatpush1.msra.mxu0 0.0
  %3013 = vmatprep.subr.mxu0 0.0
  %3014 = vmatpush1.msra.mxu0 0.0
  %3015 = vmatprep.subr.mxu0 0.0
  %3016 = vmatpush1.msra.mxu0 0.0
  %3017 = vmatprep.subr.mxu0 0.0
  %3018 = vmatpush1.msra.mxu0 0.0
  %3019 = vmatprep.subr.mxu0 0.0
  %3020 = vmatpush1.msra.mxu0 0.0
  %3021 = vmatprep.subr.mxu0 0.0
  %3022 = vmatpush1.msra.mxu0 0.0
  %3023 = vmatprep.subr.mxu0 0.0
  %3024 = vmatpush1.msra.mxu0 0.0
  %3025 = vmatprep.subr.mxu0 0.0
  %3026 = vmatpush1.msra.mxu0 0.0
  %3027 = vmatprep.subr.mxu0 0.0
  %3028 = vmatpush1.msra.mxu0 0.0
  %3029 = vmatprep.subr.mxu0 0.0
  %3030 = vmatpush1.msra.mxu0 0.0
  %3031 = vmatprep.subr.mxu0 0.0
  %3032 = vmatpush1.msra.mxu0 0.0
  %3033 = vmatprep.subr.mxu0 0.0
  %3034 = vmatpush1.msra.mxu0 0.0
  %3035 = vmatprep.subr.mxu0 0.0
  %3036 = vmatpush1.msra.mxu0 0.0
  %3037 = vmatprep.subr.mxu0 0.0
  %3038 = vmatpush1.msra.mxu0 0.0
  %3039 = vmatprep.subr.mxu0 0.0
  %3040 = vmatpush1.msra.mxu0 0.0
  %3041 = vmatprep.subr.mxu0 0.0
  %3042 = vmatpush1.msra.mxu0 0.0
  %3043 = vmatprep.subr.mxu0 0.0
  %3044 = vmatpush1.msra.mxu0 0.0
  %3045 = vmatprep.subr.mxu0 0.0
  %3046 = vmatpush1.msra.mxu0 0.0
  %3047 = vmatprep.subr.mxu0 0.0
  %3048 = vmatpush1.msra.mxu0 0.0
  %3049 = vmatprep.mubr.f32.mxu0 0.0
  %3050 = vmatmul.mubr.f32.gmra.mrb[0].mxu0 %v2983
  %v3051 = vpop.f32.mrb[0].mxu0
  %v3052 = vadd.f32 %v2979, %v3051
  %v3053 = vpop.f32.mrb[0].mxu0
  %3054 = vdwg.mxu0
  %3055 = vrot.lane.b32.xlu0 %v2540, 112
  %v3056 = vpop.permute.xlu0 %3055
  %3057 = vrot.lane.b32.xlu0 %v2540, 80
  %v3058 = vpop.permute.xlu0 %3057
  %v3059 = vsel %vm238, %v3056, 0
  %v3061 = vsel %vm238, %v3058, 0
  %3063 = vmatprep.subr.mxu0 0.0
  %3064 = vmatpush1.xpose.msra.mxu0 %v3061
  %3065 = vmatprep.subr.mxu0 0.0
  %3066 = vmatpush1.xpose.msra.mxu0 0.0
  %3067 = vmatprep.subr.mxu0 0.0
  %3068 = vmatpush1.xpose.msra.mxu0 0.0
  %3069 = vmatprep.subr.mxu0 0.0
  %3070 = vmatpush1.xpose.msra.mxu0 0.0
  %3071 = vmatprep.subr.mxu0 0.0
  %3072 = vmatpush1.xpose.msra.mxu0 0.0
  %3073 = vmatprep.subr.mxu0 0.0
  %3074 = vmatpush1.xpose.msra.mxu0 0.0
  %3075 = vmatprep.subr.mxu0 0.0
  %3076 = vmatpush1.xpose.msra.mxu0 0.0
  %3077 = vmatprep.subr.mxu0 0.0
  %3078 = vmatpush1.xpose.msra.mxu0 0.0
  %3079 = vmatprep.subr.mxu0 0.0
  %3080 = vmatpush1.xpose.msra.mxu0 0.0
  %3081 = vmatprep.subr.mxu0 0.0
  %3082 = vmatpush1.xpose.msra.mxu0 0.0
  %3083 = vmatprep.subr.mxu0 0.0
  %3084 = vmatpush1.xpose.msra.mxu0 0.0
  %3085 = vmatprep.subr.mxu0 0.0
  %3086 = vmatpush1.xpose.msra.mxu0 0.0
  %3087 = vmatprep.subr.mxu0 0.0
  %3088 = vmatpush1.xpose.msra.mxu0 0.0
  %3089 = vmatprep.subr.mxu0 0.0
  %3090 = vmatpush1.xpose.msra.mxu0 0.0
  %3091 = vmatprep.subr.mxu0 0.0
  %3092 = vmatpush1.xpose.msra.mxu0 0.0
  %3093 = vmatprep.subr.mxu0 0.0
  %3094 = vmatpush1.xpose.msra.mxu0 0.0
  %3095 = vmatprep.subr.mxu0 0.0
  %3096 = vmatpush1.xpose.msra.mxu0 0.0
  %3097 = vmatprep.subr.mxu0 0.0
  %3098 = vmatpush1.xpose.msra.mxu0 0.0
  %3099 = vmatprep.subr.mxu0 0.0
  %3100 = vmatpush1.xpose.msra.mxu0 0.0
  %3101 = vmatprep.subr.mxu0 0.0
  %3102 = vmatpush1.xpose.msra.mxu0 0.0
  %3103 = vmatprep.subr.mxu0 0.0
  %3104 = vmatpush1.xpose.msra.mxu0 0.0
  %3105 = vmatprep.subr.mxu0 0.0
  %3106 = vmatpush1.xpose.msra.mxu0 0.0
  %3107 = vmatprep.subr.mxu0 0.0
  %3108 = vmatpush1.xpose.msra.mxu0 0.0
  %3109 = vmatprep.subr.mxu0 0.0
  %3110 = vmatpush1.xpose.msra.mxu0 0.0
  %3111 = vmatprep.subr.mxu0 0.0
  %3112 = vmatpush1.xpose.msra.mxu0 0.0
  %3113 = vmatprep.subr.mxu0 0.0
  %3114 = vmatpush1.xpose.msra.mxu0 0.0
  %3115 = vmatprep.subr.mxu0 0.0
  %3116 = vmatpush1.xpose.msra.mxu0 0.0
  %3117 = vmatprep.subr.mxu0 0.0
  %3118 = vmatpush1.xpose.msra.mxu0 0.0
  %3119 = vmatprep.subr.mxu0 0.0
  %3120 = vmatpush1.xpose.msra.mxu0 0.0
  %3121 = vmatprep.subr.mxu0 0.0
  %3122 = vmatpush1.xpose.msra.mxu0 0.0
  %3123 = vmatprep.subr.mxu0 0.0
  %3124 = vmatpush1.xpose.msra.mxu0 0.0
  %3125 = vmatprep.subr.mxu0 0.0
  %3126 = vmatpush1.xpose.msra.mxu0 0.0
  %3127 = vmatprep.mubr.f32.mxu0 0.0
  %3128 = vmatmul.mubr.f32.gmra.mrb[0].mxu0 %v3059
  %v3129 = vpop.f32.mrb[0].mxu0
  %v3130 = vadd.f32 0.0, %v3129
  %v3131 = vpop.f32.mrb[0].mxu0
  %3132 = vdwg.mxu0
  %v3133 = vmul.f32 %v3130, 0.35355338
  %v3134 = vadd.f32 %v3133, %v17
  %v3135 = vsel %vm238, %v3134, -inf
  %3136 = vmax.xlane.f32.xlu0 %v3135
  %v3137 = vpop.xlane.xlu0 %3136
  %v3138 = vsub.f32 %v3134, %v3137
  %v3139 = vmul.f32 %v3138, 1.442695
  %v3140 = vpow.pop %v3139
  %v3141 = vsel %vm238, %v3140, 0.0
  %3142 = vadd.xlane.f32.xlu0 %v3141
  %v3143 = vpop.xlane.xlu0 %3142
  %v3144 = vrcp.pop %v3143
  %v3145 = vmul.f32 %v3140, %v3144
  %v3146 = vmul.f32 %v3145, %v20
  %v3147 = vsel %vm238, %v3146, 0.0
  %3148 = vadd.xlane.f32.xlu0 %v3147
  %v3149 = vpop.xlane.xlu0 %3148
  %v3150 = vrcp.pop %v3149
  %v3151 = vmul.f32 %v26, %v3150
  %v3152 = vmul.f32 %v3146, %v3151
  %v3153 = vsel %vm238, %v3152, 0.0
  %v3154 = vrot.slane %v3153, 4
  %v3155 = vadd.f32 %v3153, %v3154
  %v3156 = vrot.slane %v3155, 2
  %v3157 = vadd.f32 %v3155, %v3156
  %v3158 = vrot.slane %v3157, 1
  %v3159 = vadd.f32 %v3157, %v3158
  %3160 = vrot.lane.b32.xlu0 %v2540, 48
  %v3161 = vpop.permute.xlu0 %3160
  %v3164 = vsel %vm238, %v3145, 0
  %3166 = vmatprep.subr.mxu0 0.0
  %3167 = vmatpush1.msra.mxu0 %v3161
  %3168 = vmatprep.subr.mxu0 0.0
  %3169 = vmatpush1.msra.mxu0 0.0
  %3170 = vmatprep.subr.mxu0 0.0
  %3171 = vmatpush1.msra.mxu0 0.0
  %3172 = vmatprep.subr.mxu0 0.0
  %3173 = vmatpush1.msra.mxu0 0.0
  %3174 = vmatprep.subr.mxu0 0.0
  %3175 = vmatpush1.msra.mxu0 0.0
  %3176 = vmatprep.subr.mxu0 0.0
  %3177 = vmatpush1.msra.mxu0 0.0
  %3178 = vmatprep.subr.mxu0 0.0
  %3179 = vmatpush1.msra.mxu0 0.0
  %3180 = vmatprep.subr.mxu0 0.0
  %3181 = vmatpush1.msra.mxu0 0.0
  %3182 = vmatprep.subr.mxu0 0.0
  %3183 = vmatpush1.msra.mxu0 0.0
  %3184 = vmatprep.subr.mxu0 0.0
  %3185 = vmatpush1.msra.mxu0 0.0
  %3186 = vmatprep.subr.mxu0 0.0
  %3187 = vmatpush1.msra.mxu0 0.0
  %3188 = vmatprep.subr.mxu0 0.0
  %3189 = vmatpush1.msra.mxu0 0.0
  %3190 = vmatprep.subr.mxu0 0.0
  %3191 = vmatpush1.msra.mxu0 0.0
  %3192 = vmatprep.subr.mxu0 0.0
  %3193 = vmatpush1.msra.mxu0 0.0
  %3194 = vmatprep.subr.mxu0 0.0
  %3195 = vmatpush1.msra.mxu0 0.0
  %3196 = vmatprep.subr.mxu0 0.0
  %3197 = vmatpush1.msra.mxu0 0.0
  %3198 = vmatprep.subr.mxu0 0.0
  %3199 = vmatpush1.msra.mxu0 0.0
  %3200 = vmatprep.subr.mxu0 0.0
  %3201 = vmatpush1.msra.mxu0 0.0
  %3202 = vmatprep.subr.mxu0 0.0
  %3203 = vmatpush1.msra.mxu0 0.0
  %3204 = vmatprep.subr.mxu0 0.0
  %3205 = vmatpush1.msra.mxu0 0.0
  %3206 = vmatprep.subr.mxu0 0.0
  %3207 = vmatpush1.msra.mxu0 0.0
  %3208 = vmatprep.subr.mxu0 0.0
  %3209 = vmatpush1.msra.mxu0 0.0
  %3210 = vmatprep.subr.mxu0 0.0
  %3211 = vmatpush1.msra.mxu0 0.0
  %3212 = vmatprep.subr.mxu0 0.0
  %3213 = vmatpush1.msra.mxu0 0.0
  %3214 = vmatprep.subr.mxu0 0.0
  %3215 = vmatpush1.msra.mxu0 0.0
  %3216 = vmatprep.subr.mxu0 0.0
  %3217 = vmatpush1.msra.mxu0 0.0
  %3218 = vmatprep.subr.mxu0 0.0
  %3219 = vmatpush1.msra.mxu0 0.0
  %3220 = vmatprep.subr.mxu0 0.0
  %3221 = vmatpush1.msra.mxu0 0.0
  %3222 = vmatprep.subr.mxu0 0.0
  %3223 = vmatpush1.msra.mxu0 0.0
  %3224 = vmatprep.subr.mxu0 0.0
  %3225 = vmatpush1.msra.mxu0 0.0
  %3226 = vmatprep.subr.mxu0 0.0
  %3227 = vmatpush1.msra.mxu0 0.0
  %3228 = vmatprep.subr.mxu0 0.0
  %3229 = vmatpush1.msra.mxu0 0.0
  %3230 = vmatprep.mubr.f32.mxu0 0.0
  %3231 = vmatmul.mubr.f32.gmra.mrb[0].mxu0 %v3164
  %v3232 = vpop.f32.mrb[0].mxu0
  %v3233 = vadd.f32 0.0, %v3232
  %v3234 = vpop.f32.mrb[0].mxu0
  %3235 = vdwg.mxu0
  %v3237 = vsel %vm238, %v3233, 0
  %3239 = vmatprep.subr.mxu0 0.0
  %3240 = vmatpush1.msra.mxu0 %v2460
  %3241 = vmatprep.subr.mxu0 0.0
  %3242 = vmatpush1.msra.mxu0 0.0
  %3243 = vmatprep.subr.mxu0 0.0
  %3244 = vmatpush1.msra.mxu0 0.0
  %3245 = vmatprep.subr.mxu0 0.0
  %3246 = vmatpush1.msra.mxu0 0.0
  %3247 = vmatprep.subr.mxu0 0.0
  %3248 = vmatpush1.msra.mxu0 0.0
  %3249 = vmatprep.subr.mxu0 0.0
  %3250 = vmatpush1.msra.mxu0 0.0
  %3251 = vmatprep.subr.mxu0 0.0
  %3252 = vmatpush1.msra.mxu0 0.0
  %3253 = vmatprep.subr.mxu0 0.0
  %3254 = vmatpush1.msra.mxu0 0.0
  %3255 = vmatprep.subr.mxu0 0.0
  %3256 = vmatpush1.msra.mxu0 0.0
  %3257 = vmatprep.subr.mxu0 0.0
  %3258 = vmatpush1.msra.mxu0 0.0
  %3259 = vmatprep.subr.mxu0 0.0
  %3260 = vmatpush1.msra.mxu0 0.0
  %3261 = vmatprep.subr.mxu0 0.0
  %3262 = vmatpush1.msra.mxu0 0.0
  %3263 = vmatprep.subr.mxu0 0.0
  %3264 = vmatpush1.msra.mxu0 0.0
  %3265 = vmatprep.subr.mxu0 0.0
  %3266 = vmatpush1.msra.mxu0 0.0
  %3267 = vmatprep.subr.mxu0 0.0
  %3268 = vmatpush1.msra.mxu0 0.0
  %3269 = vmatprep.subr.mxu0 0.0
  %3270 = vmatpush1.msra.mxu0 0.0
  %3271 = vmatprep.subr.mxu0 0.0
  %3272 = vmatpush1.msra.mxu0 0.0
  %3273 = vmatprep.subr.mxu0 0.0
  %3274 = vmatpush1.msra.mxu0 0.0
  %3275 = vmatprep.subr.mxu0 0.0
  %3276 = vmatpush1.msra.mxu0 0.0
  %3277 = vmatprep.subr.mxu0 0.0
  %3278 = vmatpush1.msra.mxu0 0.0
  %3279 = vmatprep.subr.mxu0 0.0
  %3280 = vmatpush1.msra.mxu0 0.0
  %3281 = vmatprep.subr.mxu0 0.0
  %3282 = vmatpush1.msra.mxu0 0.0
  %3283 = vmatprep.subr.mxu0 0.0
  %3284 = vmatpush1.msra.mxu0 0.0
  %3285 = vmatprep.subr.mxu0 0.0
  %3286 = vmatpush1.msra.mxu0 0.0
  %3287 = vmatprep.subr.mxu0 0.0
  %3288 = vmatpush1.msra.mxu0 0.0
  %3289 = vmatprep.subr.mxu0 0.0
  %3290 = vmatpush1.msra.mxu0 0.0
  %3291 = vmatprep.subr.mxu0 0.0
  %3292 = vmatpush1.msra.mxu0 0.0
  %3293 = vmatprep.subr.mxu0 0.0
  %3294 = vmatpush1.msra.mxu0 0.0
  %3295 = vmatprep.subr.mxu0 0.0
  %3296 = vmatpush1.msra.mxu0 0.0
  %3297 = vmatprep.subr.mxu0 0.0
  %3298 = vmatpush1.msra.mxu0 0.0
  %3299 = vmatprep.subr.mxu0 0.0
  %3300 = vmatpush1.msra.mxu0 0.0
  %3301 = vmatprep.subr.mxu0 0.0
  %3302 = vmatpush1.msra.mxu0 0.0
  %3303 = vmatprep.mubr.f32.mxu0 0.0
  %3304 = vmatmul.mubr.f32.gmra.mrb[0].mxu0 %v3237
  %v3305 = vpop.f32.mrb[0].mxu0
  %v3306 = vadd.f32 0.0, %v3305
  %v3307 = vpop.f32.mrb[0].mxu0
  %3308 = vdwg.mxu0
  %v3309 = vadd.f32 %v3052, %v3306
  %3310 = vrot.lane.b32.xlu0 %v2540, 104
  %v3311 = vpop.permute.xlu0 %3310
  %3312 = vrot.lane.b32.xlu0 %v2540, 72
  %v3313 = vpop.permute.xlu0 %3312
  %v3314 = vsel %vm238, %v3311, 0
  %v3316 = vsel %vm238, %v3313, 0
  %3318 = vmatprep.subr.mxu0 0.0
  %3319 = vmatpush1.xpose.msra.mxu0 %v3316
  %3320 = vmatprep.subr.mxu0 0.0
  %3321 = vmatpush1.xpose.msra.mxu0 0.0
  %3322 = vmatprep.subr.mxu0 0.0
  %3323 = vmatpush1.xpose.msra.mxu0 0.0
  %3324 = vmatprep.subr.mxu0 0.0
  %3325 = vmatpush1.xpose.msra.mxu0 0.0
  %3326 = vmatprep.subr.mxu0 0.0
  %3327 = vmatpush1.xpose.msra.mxu0 0.0
  %3328 = vmatprep.subr.mxu0 0.0
  %3329 = vmatpush1.xpose.msra.mxu0 0.0
  %3330 = vmatprep.subr.mxu0 0.0
  %3331 = vmatpush1.xpose.msra.mxu0 0.0
  %3332 = vmatprep.subr.mxu0 0.0
  %3333 = vmatpush1.xpose.msra.mxu0 0.0
  %3334 = vmatprep.subr.mxu0 0.0
  %3335 = vmatpush1.xpose.msra.mxu0 0.0
  %3336 = vmatprep.subr.mxu0 0.0
  %3337 = vmatpush1.xpose.msra.mxu0 0.0
  %3338 = vmatprep.subr.mxu0 0.0
  %3339 = vmatpush1.xpose.msra.mxu0 0.0
  %3340 = vmatprep.subr.mxu0 0.0
  %3341 = vmatpush1.xpose.msra.mxu0 0.0
  %3342 = vmatprep.subr.mxu0 0.0
  %3343 = vmatpush1.xpose.msra.mxu0 0.0
  %3344 = vmatprep.subr.mxu0 0.0
  %3345 = vmatpush1.xpose.msra.mxu0 0.0
  %3346 = vmatprep.subr.mxu0 0.0
  %3347 = vmatpush1.xpose.msra.mxu0 0.0
  %3348 = vmatprep.subr.mxu0 0.0
  %3349 = vmatpush1.xpose.msra.mxu0 0.0
  %3350 = vmatprep.subr.mxu0 0.0
  %3351 = vmatpush1.xpose.msra.mxu0 0.0
  %3352 = vmatprep.subr.mxu0 0.0
  %3353 = vmatpush1.xpose.msra.mxu0 0.0
  %3354 = vmatprep.subr.mxu0 0.0
  %3355 = vmatpush1.xpose.msra.mxu0 0.0
  %3356 = vmatprep.subr.mxu0 0.0
  %3357 = vmatpush1.xpose.msra.mxu0 0.0
  %3358 = vmatprep.subr.mxu0 0.0
  %3359 = vmatpush1.xpose.msra.mxu0 0.0
  %3360 = vmatprep.subr.mxu0 0.0
  %3361 = vmatpush1.xpose.msra.mxu0 0.0
  %3362 = vmatprep.subr.mxu0 0.0
  %3363 = vmatpush1.xpose.msra.mxu0 0.0
  %3364 = vmatprep.subr.mxu0 0.0
  %3365 = vmatpush1.xpose.msra.mxu0 0.0
  %3366 = vmatprep.subr.mxu0 0.0
  %3367 = vmatpush1.xpose.msra.mxu0 0.0
  %3368 = vmatprep.subr.mxu0 0.0
  %3369 = vmatpush1.xpose.msra.mxu0 0.0
  %3370 = vmatprep.subr.mxu0 0.0
  %3371 = vmatpush1.xpose.msra.mxu0 0.0
  %3372 = vmatprep.subr.mxu0 0.0
  %3373 = vmatpush1.xpose.msra.mxu0 0.0
  %3374 = vmatprep.subr.mxu0 0.0
  %3375 = vmatpush1.xpose.msra.mxu0 0.0
  %3376 = vmatprep.subr.mxu0 0.0
  %3377 = vmatpush1.xpose.msra.mxu0 0.0
  %3378 = vmatprep.subr.mxu0 0.0
  %3379 = vmatpush1.xpose.msra.mxu0 0.0
  %3380 = vmatprep.subr.mxu0 0.0
  %3381 = vmatpush1.xpose.msra.mxu0 0.0
  %3382 = vmatprep.mubr.f32.mxu0 0.0
  %3383 = vmatmul.mubr.f32.gmra.mrb[0].mxu0 %v3314
  %v3384 = vpop.f32.mrb[0].mxu0
  %v3385 = vadd.f32 0.0, %v3384
  %v3386 = vpop.f32.mrb[0].mxu0
  %3387 = vdwg.mxu0
  %v3388 = vmul.f32 %v3385, 0.35355338
  %v3389 = vadd.f32 %v3388, %v17
  %v3390 = vsel %vm238, %v3389, -inf
  %3391 = vmax.xlane.f32.xlu0 %v3390
  %v3392 = vpop.xlane.xlu0 %3391
  %v3393 = vsub.f32 %v3389, %v3392
  %v3394 = vmul.f32 %v3393, 1.442695
  %v3395 = vpow.pop %v3394
  %v3396 = vsel %vm238, %v3395, 0.0
  %3397 = vadd.xlane.f32.xlu0 %v3396
  %v3398 = vpop.xlane.xlu0 %3397
  %v3399 = vrcp.pop %v3398
  %v3400 = vmul.f32 %v3395, %v3399
  %v3401 = vmul.f32 %v3400, %v20
  %v3402 = vsel %vm238, %v3401, 0.0
  %3403 = vadd.xlane.f32.xlu0 %v3402
  %v3404 = vpop.xlane.xlu0 %3403
  %v3405 = vrcp.pop %v3404
  %v3406 = vmul.f32 %v26, %v3405
  %v3407 = vmul.f32 %v3401, %v3406
  %v3408 = vsel %vm238, %v3407, 0.0
  %v3409 = vrot.slane %v3408, 4
  %v3410 = vadd.f32 %v3408, %v3409
  %v3411 = vrot.slane %v3410, 2
  %v3412 = vadd.f32 %v3410, %v3411
  %v3413 = vrot.slane %v3412, 1
  %v3414 = vadd.f32 %v3412, %v3413
  %3415 = vrot.lane.b32.xlu0 %v2540, 40
  %v3416 = vpop.permute.xlu0 %3415
  %v3419 = vsel %vm238, %v3400, 0
  %3421 = vmatprep.subr.mxu0 0.0
  %3422 = vmatpush1.msra.mxu0 %v3416
  %3423 = vmatprep.subr.mxu0 0.0
  %3424 = vmatpush1.msra.mxu0 0.0
  %3425 = vmatprep.subr.mxu0 0.0
  %3426 = vmatpush1.msra.mxu0 0.0
  %3427 = vmatprep.subr.mxu0 0.0
  %3428 = vmatpush1.msra.mxu0 0.0
  %3429 = vmatprep.subr.mxu0 0.0
  %3430 = vmatpush1.msra.mxu0 0.0
  %3431 = vmatprep.subr.mxu0 0.0
  %3432 = vmatpush1.msra.mxu0 0.0
  %3433 = vmatprep.subr.mxu0 0.0
  %3434 = vmatpush1.msra.mxu0 0.0
  %3435 = vmatprep.subr.mxu0 0.0
  %3436 = vmatpush1.msra.mxu0 0.0
  %3437 = vmatprep.subr.mxu0 0.0
  %3438 = vmatpush1.msra.mxu0 0.0
  %3439 = vmatprep.subr.mxu0 0.0
  %3440 = vmatpush1.msra.mxu0 0.0
  %3441 = vmatprep.subr.mxu0 0.0
  %3442 = vmatpush1.msra.mxu0 0.0
  %3443 = vmatprep.subr.mxu0 0.0
  %3444 = vmatpush1.msra.mxu0 0.0
  %3445 = vmatprep.subr.mxu0 0.0
  %3446 = vmatpush1.msra.mxu0 0.0
  %3447 = vmatprep.subr.mxu0 0.0
  %3448 = vmatpush1.msra.mxu0 0.0
  %3449 = vmatprep.subr.mxu0 0.0
  %3450 = vmatpush1.msra.mxu0 0.0
  %3451 = vmatprep.subr.mxu0 0.0
  %3452 = vmatpush1.msra.mxu0 0.0
  %3453 = vmatprep.subr.mxu0 0.0
  %3454 = vmatpush1.msra.mxu0 0.0
  %3455 = vmatprep.subr.mxu0 0.0
  %3456 = vmatpush1.msra.mxu0 0.0
  %3457 = vmatprep.subr.mxu0 0.0
  %3458 = vmatpush1.msra.mxu0 0.0
  %3459 = vmatprep.subr.mxu0 0.0
  %3460 = vmatpush1.msra.mxu0 0.0
  %3461 = vmatprep.subr.mxu0 0.0
  %3462 = vmatpush1.msra.mxu0 0.0
  %3463 = vmatprep.subr.mxu0 0.0
  %3464 = vmatpush1.msra.mxu0 0.0
  %3465 = vmatprep.subr.mxu0 0.0
  %3466 = vmatpush1.msra.mxu0 0.0
  %3467 = vmatprep.subr.mxu0 0.0
  %3468 = vmatpush1.msra.mxu0 0.0
  %3469 = vmatprep.subr.mxu0 0.0
  %3470 = vmatpush1.msra.mxu0 0.0
  %3471 = vmatprep.subr.mxu0 0.0
  %3472 = vmatpush1.msra.mxu0 0.0
  %3473 = vmatprep.subr.mxu0 0.0
  %3474 = vmatpush1.msra.mxu0 0.0
  %3475 = vmatprep.subr.mxu0 0.0
  %3476 = vmatpush1.msra.mxu0 0.0
  %3477 = vmatprep.subr.mxu0 0.0
  %3478 = vmatpush1.msra.mxu0 0.0
  %3479 = vmatprep.subr.mxu0 0.0
  %3480 = vmatpush1.msra.mxu0 0.0
  %3481 = vmatprep.subr.mxu0 0.0
  %3482 = vmatpush1.msra.mxu0 0.0
  %3483 = vmatprep.subr.mxu0 0.0
  %3484 = vmatpush1.msra.mxu0 0.0
  %3485 = vmatprep.mubr.f32.mxu0 0.0
  %3486 = vmatmul.mubr.f32.gmra.mrb[0].mxu0 %v3419
  %v3487 = vpop.f32.mrb[0].mxu0
  %v3488 = vadd.f32 0.0, %v3487
  %v3489 = vpop.f32.mrb[0].mxu0
  %3490 = vdwg.mxu0
  %v3492 = vsel %vm238, %v3488, 0
  %3494 = vmatprep.subr.mxu0 0.0
  %3495 = vmatpush1.msra.mxu0 %v2461
  %3496 = vmatprep.subr.mxu0 0.0
  %3497 = vmatpush1.msra.mxu0 0.0
  %3498 = vmatprep.subr.mxu0 0.0
  %3499 = vmatpush1.msra.mxu0 0.0
  %3500 = vmatprep.subr.mxu0 0.0
  %3501 = vmatpush1.msra.mxu0 0.0
  %3502 = vmatprep.subr.mxu0 0.0
  %3503 = vmatpush1.msra.mxu0 0.0
  %3504 = vmatprep.subr.mxu0 0.0
  %3505 = vmatpush1.msra.mxu0 0.0
  %3506 = vmatprep.subr.mxu0 0.0
  %3507 = vmatpush1.msra.mxu0 0.0
  %3508 = vmatprep.subr.mxu0 0.0
  %3509 = vmatpush1.msra.mxu0 0.0
  %3510 = vmatprep.subr.mxu0 0.0
  %3511 = vmatpush1.msra.mxu0 0.0
  %3512 = vmatprep.subr.mxu0 0.0
  %3513 = vmatpush1.msra.mxu0 0.0
  %3514 = vmatprep.subr.mxu0 0.0
  %3515 = vmatpush1.msra.mxu0 0.0
  %3516 = vmatprep.subr.mxu0 0.0
  %3517 = vmatpush1.msra.mxu0 0.0
  %3518 = vmatprep.subr.mxu0 0.0
  %3519 = vmatpush1.msra.mxu0 0.0
  %3520 = vmatprep.subr.mxu0 0.0
  %3521 = vmatpush1.msra.mxu0 0.0
  %3522 = vmatprep.subr.mxu0 0.0
  %3523 = vmatpush1.msra.mxu0 0.0
  %3524 = vmatprep.subr.mxu0 0.0
  %3525 = vmatpush1.msra.mxu0 0.0
  %3526 = vmatprep.subr.mxu0 0.0
  %3527 = vmatpush1.msra.mxu0 0.0
  %3528 = vmatprep.subr.mxu0 0.0
  %3529 = vmatpush1.msra.mxu0 0.0
  %3530 = vmatprep.subr.mxu0 0.0
  %3531 = vmatpush1.msra.mxu0 0.0
  %3532 = vmatprep.subr.mxu0 0.0
  %3533 = vmatpush1.msra.mxu0 0.0
  %3534 = vmatprep.subr.mxu0 0.0
  %3535 = vmatpush1.msra.mxu0 0.0
  %3536 = vmatprep.subr.mxu0 0.0
  %3537 = vmatpush1.msra.mxu0 0.0
  %3538 = vmatprep.subr.mxu0 0.0
  %3539 = vmatpush1.msra.mxu0 0.0
  %3540 = vmatprep.subr.mxu0 0.0
  %3541 = vmatpush1.msra.mxu0 0.0
  %3542 = vmatprep.subr.mxu0 0.0
  %3543 = vmatpush1.msra.mxu0 0.0
  %3544 = vmatprep.subr.mxu0 0.0
  %3545 = vmatpush1.msra.mxu0 0.0
  %3546 = vmatprep.subr.mxu0 0.0
  %3547 = vmatpush1.msra.mxu0 0.0
  %3548 = vmatprep.subr.mxu0 0.0
  %3549 = vmatpush1.msra.mxu0 0.0
  %3550 = vmatprep.subr.mxu0 0.0
  %3551 = vmatpush1.msra.mxu0 0.0
  %3552 = vmatprep.subr.mxu0 0.0
  %3553 = vmatpush1.msra.mxu0 0.0
  %3554 = vmatprep.subr.mxu0 0.0
  %3555 = vmatpush1.msra.mxu0 0.0
  %3556 = vmatprep.subr.mxu0 0.0
  %3557 = vmatpush1.msra.mxu0 0.0
  %3558 = vmatprep.mubr.f32.mxu0 0.0
  %3559 = vmatmul.mubr.f32.gmra.mrb[0].mxu0 %v3492
  %v3560 = vpop.f32.mrb[0].mxu0
  %v3561 = vadd.f32 0.0, %v3560
  %v3562 = vpop.f32.mrb[0].mxu0
  %3563 = vdwg.mxu0
  %v3564 = vadd.f32 %v3309, %v3561
  %3566 = vrot.lane.b32.xlu0 %v2545, 96
  %v3567 = vpop.permute.xlu0 %3566
  %v3568 = vsel %vm238, %v2545, 0
  %v3570 = vsel %vm238, %v3567, 0
  %3572 = vmatprep.subr.mxu0 0.0
  %3573 = vmatpush1.xpose.msra.mxu0 %v3570
  %3574 = vmatprep.subr.mxu0 0.0
  %3575 = vmatpush1.xpose.msra.mxu0 0.0
  %3576 = vmatprep.subr.mxu0 0.0
  %3577 = vmatpush1.xpose.msra.mxu0 0.0
  %3578 = vmatprep.subr.mxu0 0.0
  %3579 = vmatpush1.xpose.msra.mxu0 0.0
  %3580 = vmatprep.subr.mxu0 0.0
  %3581 = vmatpush1.xpose.msra.mxu0 0.0
  %3582 = vmatprep.subr.mxu0 0.0
  %3583 = vmatpush1.xpose.msra.mxu0 0.0
  %3584 = vmatprep.subr.mxu0 0.0
  %3585 = vmatpush1.xpose.msra.mxu0 0.0
  %3586 = vmatprep.subr.mxu0 0.0
  %3587 = vmatpush1.xpose.msra.mxu0 0.0
  %3588 = vmatprep.subr.mxu0 0.0
  %3589 = vmatpush1.xpose.msra.mxu0 0.0
  %3590 = vmatprep.subr.mxu0 0.0
  %3591 = vmatpush1.xpose.msra.mxu0 0.0
  %3592 = vmatprep.subr.mxu0 0.0
  %3593 = vmatpush1.xpose.msra.mxu0 0.0
  %3594 = vmatprep.subr.mxu0 0.0
  %3595 = vmatpush1.xpose.msra.mxu0 0.0
  %3596 = vmatprep.subr.mxu0 0.0
  %3597 = vmatpush1.xpose.msra.mxu0 0.0
  %3598 = vmatprep.subr.mxu0 0.0
  %3599 = vmatpush1.xpose.msra.mxu0 0.0
  %3600 = vmatprep.subr.mxu0 0.0
  %3601 = vmatpush1.xpose.msra.mxu0 0.0
  %3602 = vmatprep.subr.mxu0 0.0
  %3603 = vmatpush1.xpose.msra.mxu0 0.0
  %3604 = vmatprep.subr.mxu0 0.0
  %3605 = vmatpush1.xpose.msra.mxu0 0.0
  %3606 = vmatprep.subr.mxu0 0.0
  %3607 = vmatpush1.xpose.msra.mxu0 0.0
  %3608 = vmatprep.subr.mxu0 0.0
  %3609 = vmatpush1.xpose.msra.mxu0 0.0
  %3610 = vmatprep.subr.mxu0 0.0
  %3611 = vmatpush1.xpose.msra.mxu0 0.0
  %3612 = vmatprep.subr.mxu0 0.0
  %3613 = vmatpush1.xpose.msra.mxu0 0.0
  %3614 = vmatprep.subr.mxu0 0.0
  %3615 = vmatpush1.xpose.msra.mxu0 0.0
  %3616 = vmatprep.subr.mxu0 0.0
  %3617 = vmatpush1.xpose.msra.mxu0 0.0
  %3618 = vmatprep.subr.mxu0 0.0
  %3619 = vmatpush1.xpose.msra.mxu0 0.0
  %3620 = vmatprep.subr.mxu0 0.0
  %3621 = vmatpush1.xpose.msra.mxu0 0.0
  %3622 = vmatprep.subr.mxu0 0.0
  %3623 = vmatpush1.xpose.msra.mxu0 0.0
  %3624 = vmatprep.subr.mxu0 0.0
  %3625 = vmatpush1.xpose.msra.mxu0 0.0
  %3626 = vmatprep.subr.mxu0 0.0
  %3627 = vmatpush1.xpose.msra.mxu0 0.0
  %3628 = vmatprep.subr.mxu0 0.0
  %3629 = vmatpush1.xpose.msra.mxu0 0.0
  %3630 = vmatprep.subr.mxu0 0.0
  %3631 = vmatpush1.xpose.msra.mxu0 0.0
  %3632 = vmatprep.subr.mxu0 0.0
  %3633 = vmatpush1.xpose.msra.mxu0 0.0
  %3634 = vmatprep.subr.mxu0 0.0
  %3635 = vmatpush1.xpose.msra.mxu0 0.0
  %3636 = vmatprep.mubr.f32.mxu0 0.0
  %3637 = vmatmul.mubr.f32.gmra.mrb[0].mxu0 %v3568
  %v3638 = vpop.f32.mrb[0].mxu0
  %v3639 = vadd.f32 0.0, %v3638
  %v3640 = vpop.f32.mrb[0].mxu0
  %3641 = vdwg.mxu0
  %v3642 = vmul.f32 %v3639, 0.35355338
  %v3643 = vadd.f32 %v3642, %v17
  %v3644 = vsel %vm238, %v3643, -inf
  %3645 = vmax.xlane.f32.xlu0 %v3644
  %v3646 = vpop.xlane.xlu0 %3645
  %v3647 = vsub.f32 %v3643, %v3646
  %v3648 = vmul.f32 %v3647, 1.442695
  %v3649 = vpow.pop %v3648
  %v3650 = vsel %vm238, %v3649, 0.0
  %3651 = vadd.xlane.f32.xlu0 %v3650
  %v3652 = vpop.xlane.xlu0 %3651
  %v3653 = vrcp.pop %v3652
  %v3654 = vmul.f32 %v3649, %v3653
  %v3655 = vmul.f32 %v3654, %v20
  %v3656 = vsel %vm238, %v3655, 0.0
  %3657 = vadd.xlane.f32.xlu0 %v3656
  %v3658 = vpop.xlane.xlu0 %3657
  %v3659 = vrcp.pop %v3658
  %v3660 = vmul.f32 %v26, %v3659
  %v3661 = vmul.f32 %v3655, %v3660
  %v3662 = vsel %vm238, %v3661, 0.0
  %v3663 = vrot.slane %v3662, 4
  %v3664 = vadd.f32 %v3662, %v3663
  %v3665 = vrot.slane %v3664, 2
  %v3666 = vadd.f32 %v3664, %v3665
  %v3667 = vrot.slane %v3666, 1
  %v3668 = vadd.f32 %v3666, %v3667
  %3669 = vrot.lane.b32.xlu0 %v2545, 64
  %v3670 = vpop.permute.xlu0 %3669
  %v3673 = vsel %vm238, %v3654, 0
  %3675 = vmatprep.subr.mxu0 0.0
  %3676 = vmatpush1.msra.mxu0 %v3670
  %3677 = vmatprep.subr.mxu0 0.0
  %3678 = vmatpush1.msra.mxu0 0.0
  %3679 = vmatprep.subr.mxu0 0.0
  %3680 = vmatpush1.msra.mxu0 0.0
  %3681 = vmatprep.subr.mxu0 0.0
  %3682 = vmatpush1.msra.mxu0 0.0
  %3683 = vmatprep.subr.mxu0 0.0
  %3684 = vmatpush1.msra.mxu0 0.0
  %3685 = vmatprep.subr.mxu0 0.0
  %3686 = vmatpush1.msra.mxu0 0.0
  %3687 = vmatprep.subr.mxu0 0.0
  %3688 = vmatpush1.msra.mxu0 0.0
  %3689 = vmatprep.subr.mxu0 0.0
  %3690 = vmatpush1.msra.mxu0 0.0
  %3691 = vmatprep.subr.mxu0 0.0
  %3692 = vmatpush1.msra.mxu0 0.0
  %3693 = vmatprep.subr.mxu0 0.0
  %3694 = vmatpush1.msra.mxu0 0.0
  %3695 = vmatprep.subr.mxu0 0.0
  %3696 = vmatpush1.msra.mxu0 0.0
  %3697 = vmatprep.subr.mxu0 0.0
  %3698 = vmatpush1.msra.mxu0 0.0
  %3699 = vmatprep.subr.mxu0 0.0
  %3700 = vmatpush1.msra.mxu0 0.0
  %3701 = vmatprep.subr.mxu0 0.0
  %3702 = vmatpush1.msra.mxu0 0.0
  %3703 = vmatprep.subr.mxu0 0.0
  %3704 = vmatpush1.msra.mxu0 0.0
  %3705 = vmatprep.subr.mxu0 0.0
  %3706 = vmatpush1.msra.mxu0 0.0
  %3707 = vmatprep.subr.mxu0 0.0
  %3708 = vmatpush1.msra.mxu0 0.0
  %3709 = vmatprep.subr.mxu0 0.0
  %3710 = vmatpush1.msra.mxu0 0.0
  %3711 = vmatprep.subr.mxu0 0.0
  %3712 = vmatpush1.msra.mxu0 0.0
  %3713 = vmatprep.subr.mxu0 0.0
  %3714 = vmatpush1.msra.mxu0 0.0
  %3715 = vmatprep.subr.mxu0 0.0
  %3716 = vmatpush1.msra.mxu0 0.0
  %3717 = vmatprep.subr.mxu0 0.0
  %3718 = vmatpush1.msra.mxu0 0.0
  %3719 = vmatprep.subr.mxu0 0.0
  %3720 = vmatpush1.msra.mxu0 0.0
  %3721 = vmatprep.subr.mxu0 0.0
  %3722 = vmatpush1.msra.mxu0 0.0
  %3723 = vmatprep.subr.mxu0 0.0
  %3724 = vmatpush1.msra.mxu0 0.0
  %3725 = vmatprep.subr.mxu0 0.0
  %3726 = vmatpush1.msra.mxu0 0.0
  %3727 = vmatprep.subr.mxu0 0.0
  %3728 = vmatpush1.msra.mxu0 0.0
  %3729 = vmatprep.subr.mxu0 0.0
  %3730 = vmatpush1.msra.mxu0 0.0
  %3731 = vmatprep.subr.mxu0 0.0
  %3732 = vmatpush1.msra.mxu0 0.0
  %3733 = vmatprep.subr.mxu0 0.0
  %3734 = vmatpush1.msra.mxu0 0.0
  %3735 = vmatprep.subr.mxu0 0.0
  %3736 = vmatpush1.msra.mxu0 0.0
  %3737 = vmatprep.subr.mxu0 0.0
  %3738 = vmatpush1.msra.mxu0 0.0
  %3739 = vmatprep.mubr.f32.mxu0 0.0
  %3740 = vmatmul.mubr.f32.gmra.mrb[0].mxu0 %v3673
  %v3741 = vpop.f32.mrb[0].mxu0
  %v3742 = vadd.f32 0.0, %v3741
  %v3743 = vpop.f32.mrb[0].mxu0
  %3744 = vdwg.mxu0
  %3745 = vrot.lane.b32.xlu0 %v2545, 120
  %v3746 = vpop.permute.xlu0 %3745
  %3747 = vrot.lane.b32.xlu0 %v2545, 88
  %v3748 = vpop.permute.xlu0 %3747
  %v3749 = vsel %vm238, %v3746, 0
  %v3751 = vsel %vm238, %v3748, 0
  %3753 = vmatprep.subr.mxu0 0.0
  %3754 = vmatpush1.xpose.msra.mxu0 %v3751
  %3755 = vmatprep.subr.mxu0 0.0
  %3756 = vmatpush1.xpose.msra.mxu0 0.0
  %3757 = vmatprep.subr.mxu0 0.0
  %3758 = vmatpush1.xpose.msra.mxu0 0.0
  %3759 = vmatprep.subr.mxu0 0.0
  %3760 = vmatpush1.xpose.msra.mxu0 0.0
  %3761 = vmatprep.subr.mxu0 0.0
  %3762 = vmatpush1.xpose.msra.mxu0 0.0
  %3763 = vmatprep.subr.mxu0 0.0
  %3764 = vmatpush1.xpose.msra.mxu0 0.0
  %3765 = vmatprep.subr.mxu0 0.0
  %3766 = vmatpush1.xpose.msra.mxu0 0.0
  %3767 = vmatprep.subr.mxu0 0.0
  %3768 = vmatpush1.xpose.msra.mxu0 0.0
  %3769 = vmatprep.subr.mxu0 0.0
  %3770 = vmatpush1.xpose.msra.mxu0 0.0
  %3771 = vmatprep.subr.mxu0 0.0
  %3772 = vmatpush1.xpose.msra.mxu0 0.0
  %3773 = vmatprep.subr.mxu0 0.0
  %3774 = vmatpush1.xpose.msra.mxu0 0.0
  %3775 = vmatprep.subr.mxu0 0.0
  %3776 = vmatpush1.xpose.msra.mxu0 0.0
  %3777 = vmatprep.subr.mxu0 0.0
  %3778 = vmatpush1.xpose.msra.mxu0 0.0
  %3779 = vmatprep.subr.mxu0 0.0
  %3780 = vmatpush1.xpose.msra.mxu0 0.0
  %3781 = vmatprep.subr.mxu0 0.0
  %3782 = vmatpush1.xpose.msra.mxu0 0.0
  %3783 = vmatprep.subr.mxu0 0.0
  %3784 = vmatpush1.xpose.msra.mxu0 0.0
  %3785 = vmatprep.subr.mxu0 0.0
  %3786 = vmatpush1.xpose.msra.mxu0 0.0
  %3787 = vmatprep.subr.mxu0 0.0
  %3788 = vmatpush1.xpose.msra.mxu0 0.0
  %3789 = vmatprep.subr.mxu0 0.0
  %3790 = vmatpush1.xpose.msra.mxu0 0.0
  %3791 = vmatprep.subr.mxu0 0.0
  %3792 = vmatpush1.xpose.msra.mxu0 0.0
  %3793 = vmatprep.subr.mxu0 0.0
  %3794 = vmatpush1.xpose.msra.mxu0 0.0
  %3795 = vmatprep.subr.mxu0 0.0
  %3796 = vmatpush1.xpose.msra.mxu0 0.0
  %3797 = vmatprep.subr.mxu0 0.0
  %3798 = vmatpush1.xpose.msra.mxu0 0.0
  %3799 = vmatprep.subr.mxu0 0.0
  %3800 = vmatpush1.xpose.msra.mxu0 0.0
  %3801 = vmatprep.subr.mxu0 0.0
  %3802 = vmatpush1.xpose.msra.mxu0 0.0
  %3803 = vmatprep.subr.mxu0 0.0
  %3804 = vmatpush1.xpose.msra.mxu0 0.0
  %3805 = vmatprep.subr.mxu0 0.0
  %3806 = vmatpush1.xpose.msra.mxu0 0.0
  %3807 = vmatprep.subr.mxu0 0.0
  %3808 = vmatpush1.xpose.msra.mxu0 0.0
  %3809 = vmatprep.subr.mxu0 0.0
  %3810 = vmatpush1.xpose.msra.mxu0 0.0
  %3811 = vmatprep.subr.mxu0 0.0
  %3812 = vmatpush1.xpose.msra.mxu0 0.0
  %3813 = vmatprep.subr.mxu0 0.0
  %3814 = vmatpush1.xpose.msra.mxu0 0.0
  %3815 = vmatprep.subr.mxu0 0.0
  %3816 = vmatpush1.xpose.msra.mxu0 0.0
  %3817 = vmatprep.mubr.f32.mxu0 0.0
  %3818 = vmatmul.mubr.f32.gmra.mrb[0].mxu0 %v3749
  %v3819 = vpop.f32.mrb[0].mxu0
  %v3820 = vadd.f32 0.0, %v3819
  %v3821 = vpop.f32.mrb[0].mxu0
  %3822 = vdwg.mxu0
  %v3823 = vmul.f32 %v3820, 0.35355338
  %v3824 = vadd.f32 %v3823, %v17
  %v3825 = vsel %vm238, %v3824, -inf
  %3826 = vmax.xlane.f32.xlu0 %v3825
  %v3827 = vpop.xlane.xlu0 %3826
  %v3828 = vsub.f32 %v3824, %v3827
  %v3829 = vmul.f32 %v3828, 1.442695
  %v3830 = vpow.pop %v3829
  %v3831 = vsel %vm238, %v3830, 0.0
  %3832 = vadd.xlane.f32.xlu0 %v3831
  %v3833 = vpop.xlane.xlu0 %3832
  %v3834 = vrcp.pop %v3833
  %v3835 = vmul.f32 %v3830, %v3834
  %v3836 = vmul.f32 %v3835, %v20
  %v3837 = vsel %vm238, %v3836, 0.0
  %3838 = vadd.xlane.f32.xlu0 %v3837
  %v3839 = vpop.xlane.xlu0 %3838
  %v3840 = vrcp.pop %v3839
  %v3841 = vmul.f32 %v26, %v3840
  %v3842 = vmul.f32 %v3836, %v3841
  %v3843 = vsel %vm238, %v3842, 0.0
  %v3844 = vrot.slane %v3843, 4
  %v3845 = vadd.f32 %v3843, %v3844
  %v3846 = vrot.slane %v3845, 2
  %v3847 = vadd.f32 %v3845, %v3846
  %v3848 = vrot.slane %v3847, 1
  %v3849 = vadd.f32 %v3847, %v3848
  %3850 = vrot.lane.b32.xlu0 %v2545, 56
  %v3851 = vpop.permute.xlu0 %3850
  %v3854 = vsel %vm238, %v3835, 0
  %3856 = vmatprep.subr.mxu0 0.0
  %3857 = vmatpush1.msra.mxu0 %v3851
  %3858 = vmatprep.subr.mxu0 0.0
  %3859 = vmatpush1.msra.mxu0 0.0
  %3860 = vmatprep.subr.mxu0 0.0
  %3861 = vmatpush1.msra.mxu0 0.0
  %3862 = vmatprep.subr.mxu0 0.0
  %3863 = vmatpush1.msra.mxu0 0.0
  %3864 = vmatprep.subr.mxu0 0.0
  %3865 = vmatpush1.msra.mxu0 0.0
  %3866 = vmatprep.subr.mxu0 0.0
  %3867 = vmatpush1.msra.mxu0 0.0
  %3868 = vmatprep.subr.mxu0 0.0
  %3869 = vmatpush1.msra.mxu0 0.0
  %3870 = vmatprep.subr.mxu0 0.0
  %3871 = vmatpush1.msra.mxu0 0.0
  %3872 = vmatprep.subr.mxu0 0.0
  %3873 = vmatpush1.msra.mxu0 0.0
  %3874 = vmatprep.subr.mxu0 0.0
  %3875 = vmatpush1.msra.mxu0 0.0
  %3876 = vmatprep.subr.mxu0 0.0
  %3877 = vmatpush1.msra.mxu0 0.0
  %3878 = vmatprep.subr.mxu0 0.0
  %3879 = vmatpush1.msra.mxu0 0.0
  %3880 = vmatprep.subr.mxu0 0.0
  %3881 = vmatpush1.msra.mxu0 0.0
  %3882 = vmatprep.subr.mxu0 0.0
  %3883 = vmatpush1.msra.mxu0 0.0
  %3884 = vmatprep.subr.mxu0 0.0
  %3885 = vmatpush1.msra.mxu0 0.0
  %3886 = vmatprep.subr.mxu0 0.0
  %3887 = vmatpush1.msra.mxu0 0.0
  %3888 = vmatprep.subr.mxu0 0.0
  %3889 = vmatpush1.msra.mxu0 0.0
  %3890 = vmatprep.subr.mxu0 0.0
  %3891 = vmatpush1.msra.mxu0 0.0
  %3892 = vmatprep.subr.mxu0 0.0
  %3893 = vmatpush1.msra.mxu0 0.0
  %3894 = vmatprep.subr.mxu0 0.0
  %3895 = vmatpush1.msra.mxu0 0.0
  %3896 = vmatprep.subr.mxu0 0.0
  %3897 = vmatpush1.msra.mxu0 0.0
  %3898 = vmatprep.subr.mxu0 0.0
  %3899 = vmatpush1.msra.mxu0 0.0
  %3900 = vmatprep.subr.mxu0 0.0
  %3901 = vmatpush1.msra.mxu0 0.0
  %3902 = vmatprep.subr.mxu0 0.0
  %3903 = vmatpush1.msra.mxu0 0.0
  %3904 = vmatprep.subr.mxu0 0.0
  %3905 = vmatpush1.msra.mxu0 0.0
  %3906 = vmatprep.subr.mxu0 0.0
  %3907 = vmatpush1.msra.mxu0 0.0
  %3908 = vmatprep.subr.mxu0 0.0
  %3909 = vmatpush1.msra.mxu0 0.0
  %3910 = vmatprep.subr.mxu0 0.0
  %3911 = vmatpush1.msra.mxu0 0.0
  %3912 = vmatprep.subr.mxu0 0.0
  %3913 = vmatpush1.msra.mxu0 0.0
  %3914 = vmatprep.subr.mxu0 0.0
  %3915 = vmatpush1.msra.mxu0 0.0
  %3916 = vmatprep.subr.mxu0 0.0
  %3917 = vmatpush1.msra.mxu0 0.0
  %3918 = vmatprep.subr.mxu0 0.0
  %3919 = vmatpush1.msra.mxu0 0.0
  %3920 = vmatprep.mubr.f32.mxu0 0.0
  %3921 = vmatmul.mubr.f32.gmra.mrb[0].mxu0 %v3854
  %v3922 = vpop.f32.mrb[0].mxu0
  %v3923 = vadd.f32 0.0, %v3922
  %v3924 = vpop.f32.mrb[0].mxu0
  %3925 = vdwg.mxu0
  %v3927 = vsel %vm238, %v3923, 0
  %3929 = vmatprep.subr.mxu0 0.0
  %3930 = vmatpush1.msra.mxu0 %v2459
  %3931 = vmatprep.subr.mxu0 0.0
  %3932 = vmatpush1.msra.mxu0 0.0
  %3933 = vmatprep.subr.mxu0 0.0
  %3934 = vmatpush1.msra.mxu0 0.0
  %3935 = vmatprep.subr.mxu0 0.0
  %3936 = vmatpush1.msra.mxu0 0.0
  %3937 = vmatprep.subr.mxu0 0.0
  %3938 = vmatpush1.msra.mxu0 0.0
  %3939 = vmatprep.subr.mxu0 0.0
  %3940 = vmatpush1.msra.mxu0 0.0
  %3941 = vmatprep.subr.mxu0 0.0
  %3942 = vmatpush1.msra.mxu0 0.0
  %3943 = vmatprep.subr.mxu0 0.0
  %3944 = vmatpush1.msra.mxu0 0.0
  %3945 = vmatprep.subr.mxu0 0.0
  %3946 = vmatpush1.msra.mxu0 0.0
  %3947 = vmatprep.subr.mxu0 0.0
  %3948 = vmatpush1.msra.mxu0 0.0
  %3949 = vmatprep.subr.mxu0 0.0
  %3950 = vmatpush1.msra.mxu0 0.0
  %3951 = vmatprep.subr.mxu0 0.0
  %3952 = vmatpush1.msra.mxu0 0.0
  %3953 = vmatprep.subr.mxu0 0.0
  %3954 = vmatpush1.msra.mxu0 0.0
  %3955 = vmatprep.subr.mxu0 0.0
  %3956 = vmatpush1.msra.mxu0 0.0
  %3957 = vmatprep.subr.mxu0 0.0
  %3958 = vmatpush1.msra.mxu0 0.0
  %3959 = vmatprep.subr.mxu0 0.0
  %3960 = vmatpush1.msra.mxu0 0.0
  %3961 = vmatprep.subr.mxu0 0.0
  %3962 = vmatpush1.msra.mxu0 0.0
  %3963 = vmatprep.subr.mxu0 0.0
  %3964 = vmatpush1.msra.mxu0 0.0
  %3965 = vmatprep.subr.mxu0 0.0
  %3966 = vmatpush1.msra.mxu0 0.0
  %3967 = vmatprep.subr.mxu0 0.0
  %3968 = vmatpush1.msra.mxu0 0.0
  %3969 = vmatprep.subr.mxu0 0.0
  %3970 = vmatpush1.msra.mxu0 0.0
  %3971 = vmatprep.subr.mxu0 0.0
  %3972 = vmatpush1.msra.mxu0 0.0
  %3973 = vmatprep.subr.mxu0 0.0
  %3974 = vmatpush1.msra.mxu0 0.0
  %3975 = vmatprep.subr.mxu0 0.0
  %3976 = vmatpush1.msra.mxu0 0.0
  %3977 = vmatprep.subr.mxu0 0.0
  %3978 = vmatpush1.msra.mxu0 0.0
  %3979 = vmatprep.subr.mxu0 0.0
  %3980 = vmatpush1.msra.mxu0 0.0
  %3981 = vmatprep.subr.mxu0 0.0
  %3982 = vmatpush1.msra.mxu0 0.0
  %3983 = vmatprep.subr.mxu0 0.0
  %3984 = vmatpush1.msra.mxu0 0.0
  %3985 = vmatprep.subr.mxu0 0.0
  %3986 = vmatpush1.msra.mxu0 0.0
  %3987 = vmatprep.subr.mxu0 0.0
  %3988 = vmatpush1.msra.mxu0 0.0
  %3989 = vmatprep.subr.mxu0 0.0
  %3990 = vmatpush1.msra.mxu0 0.0
  %3991 = vmatprep.subr.mxu0 0.0
  %3992 = vmatpush1.msra.mxu0 0.0
  %3993 = vmatprep.mubr.f32.mxu0 0.0
  %3994 = vmatmul.mubr.f32.gmra.mrb[0].mxu0 %v3927
  %v3995 = vpop.f32.mrb[0].mxu0
  %v3996 = vadd.f32 0.0, %v3995
  %v3997 = vpop.f32.mrb[0].mxu0
  %3998 = vdwg.mxu0
  %v4000 = vsel %vm238, %v3742, 0
  %4002 = vmatprep.subr.mxu0 0.0
  %4003 = vmatpush1.msra.mxu0 %v2458
  %4004 = vmatprep.subr.mxu0 0.0
  %4005 = vmatpush1.msra.mxu0 0.0
  %4006 = vmatprep.subr.mxu0 0.0
  %4007 = vmatpush1.msra.mxu0 0.0
  %4008 = vmatprep.subr.mxu0 0.0
  %4009 = vmatpush1.msra.mxu0 0.0
  %4010 = vmatprep.subr.mxu0 0.0
  %4011 = vmatpush1.msra.mxu0 0.0
  %4012 = vmatprep.subr.mxu0 0.0
  %4013 = vmatpush1.msra.mxu0 0.0
  %4014 = vmatprep.subr.mxu0 0.0
  %4015 = vmatpush1.msra.mxu0 0.0
  %4016 = vmatprep.subr.mxu0 0.0
  %4017 = vmatpush1.msra.mxu0 0.0
  %4018 = vmatprep.subr.mxu0 0.0
  %4019 = vmatpush1.msra.mxu0 0.0
  %4020 = vmatprep.subr.mxu0 0.0
  %4021 = vmatpush1.msra.mxu0 0.0
  %4022 = vmatprep.subr.mxu0 0.0
  %4023 = vmatpush1.msra.mxu0 0.0
  %4024 = vmatprep.subr.mxu0 0.0
  %4025 = vmatpush1.msra.mxu0 0.0
  %4026 = vmatprep.subr.mxu0 0.0
  %4027 = vmatpush1.msra.mxu0 0.0
  %4028 = vmatprep.subr.mxu0 0.0
  %4029 = vmatpush1.msra.mxu0 0.0
  %4030 = vmatprep.subr.mxu0 0.0
  %4031 = vmatpush1.msra.mxu0 0.0
  %4032 = vmatprep.subr.mxu0 0.0
  %4033 = vmatpush1.msra.mxu0 0.0
  %4034 = vmatprep.subr.mxu0 0.0
  %4035 = vmatpush1.msra.mxu0 0.0
  %4036 = vmatprep.subr.mxu0 0.0
  %4037 = vmatpush1.msra.mxu0 0.0
  %4038 = vmatprep.subr.mxu0 0.0
  %4039 = vmatpush1.msra.mxu0 0.0
  %4040 = vmatprep.subr.mxu0 0.0
  %4041 = vmatpush1.msra.mxu0 0.0
  %4042 = vmatprep.subr.mxu0 0.0
  %4043 = vmatpush1.msra.mxu0 0.0
  %4044 = vmatprep.subr.mxu0 0.0
  %4045 = vmatpush1.msra.mxu0 0.0
  %4046 = vmatprep.subr.mxu0 0.0
  %4047 = vmatpush1.msra.mxu0 0.0
  %4048 = vmatprep.subr.mxu0 0.0
  %4049 = vmatpush1.msra.mxu0 0.0
  %4050 = vmatprep.subr.mxu0 0.0
  %4051 = vmatpush1.msra.mxu0 0.0
  %4052 = vmatprep.subr.mxu0 0.0
  %4053 = vmatpush1.msra.mxu0 0.0
  %4054 = vmatprep.subr.mxu0 0.0
  %4055 = vmatpush1.msra.mxu0 0.0
  %4056 = vmatprep.subr.mxu0 0.0
  %4057 = vmatpush1.msra.mxu0 0.0
  %4058 = vmatprep.subr.mxu0 0.0
  %4059 = vmatpush1.msra.mxu0 0.0
  %4060 = vmatprep.subr.mxu0 0.0
  %4061 = vmatpush1.msra.mxu0 0.0
  %4062 = vmatprep.subr.mxu0 0.0
  %4063 = vmatpush1.msra.mxu0 0.0
  %4064 = vmatprep.subr.mxu0 0.0
  %4065 = vmatpush1.msra.mxu0 0.0
  %4066 = vmatprep.mubr.f32.mxu0 0.0
  %4067 = vmatmul.mubr.f32.gmra.mrb[0].mxu0 %v4000
  %v4068 = vpop.f32.mrb[0].mxu0
  %v4069 = vadd.f32 %v3996, %v4068
  %v4070 = vpop.f32.mrb[0].mxu0
  %4071 = vdwg.mxu0
  %4072 = vrot.lane.b32.xlu0 %v2545, 112
  %v4073 = vpop.permute.xlu0 %4072
  %4074 = vrot.lane.b32.xlu0 %v2545, 80
  %v4075 = vpop.permute.xlu0 %4074
  %v4076 = vsel %vm238, %v4073, 0
  %v4078 = vsel %vm238, %v4075, 0
  %4080 = vmatprep.subr.mxu0 0.0
  %4081 = vmatpush1.xpose.msra.mxu0 %v4078
  %4082 = vmatprep.subr.mxu0 0.0
  %4083 = vmatpush1.xpose.msra.mxu0 0.0
  %4084 = vmatprep.subr.mxu0 0.0
  %4085 = vmatpush1.xpose.msra.mxu0 0.0
  %4086 = vmatprep.subr.mxu0 0.0
  %4087 = vmatpush1.xpose.msra.mxu0 0.0
  %4088 = vmatprep.subr.mxu0 0.0
  %4089 = vmatpush1.xpose.msra.mxu0 0.0
  %4090 = vmatprep.subr.mxu0 0.0
  %4091 = vmatpush1.xpose.msra.mxu0 0.0
  %4092 = vmatprep.subr.mxu0 0.0
  %4093 = vmatpush1.xpose.msra.mxu0 0.0
  %4094 = vmatprep.subr.mxu0 0.0
  %4095 = vmatpush1.xpose.msra.mxu0 0.0
  %4096 = vmatprep.subr.mxu0 0.0
  %4097 = vmatpush1.xpose.msra.mxu0 0.0
  %4098 = vmatprep.subr.mxu0 0.0
  %4099 = vmatpush1.xpose.msra.mxu0 0.0
  %4100 = vmatprep.subr.mxu0 0.0
  %4101 = vmatpush1.xpose.msra.mxu0 0.0
  %4102 = vmatprep.subr.mxu0 0.0
  %4103 = vmatpush1.xpose.msra.mxu0 0.0
  %4104 = vmatprep.subr.mxu0 0.0
  %4105 = vmatpush1.xpose.msra.mxu0 0.0
  %4106 = vmatprep.subr.mxu0 0.0
  %4107 = vmatpush1.xpose.msra.mxu0 0.0
  %4108 = vmatprep.subr.mxu0 0.0
  %4109 = vmatpush1.xpose.msra.mxu0 0.0
  %4110 = vmatprep.subr.mxu0 0.0
  %4111 = vmatpush1.xpose.msra.mxu0 0.0
  %4112 = vmatprep.subr.mxu0 0.0
  %4113 = vmatpush1.xpose.msra.mxu0 0.0
  %4114 = vmatprep.subr.mxu0 0.0
  %4115 = vmatpush1.xpose.msra.mxu0 0.0
  %4116 = vmatprep.subr.mxu0 0.0
  %4117 = vmatpush1.xpose.msra.mxu0 0.0
  %4118 = vmatprep.subr.mxu0 0.0
  %4119 = vmatpush1.xpose.msra.mxu0 0.0
  %4120 = vmatprep.subr.mxu0 0.0
  %4121 = vmatpush1.xpose.msra.mxu0 0.0
  %4122 = vmatprep.subr.mxu0 0.0
  %4123 = vmatpush1.xpose.msra.mxu0 0.0
  %4124 = vmatprep.subr.mxu0 0.0
  %4125 = vmatpush1.xpose.msra.mxu0 0.0
  %4126 = vmatprep.subr.mxu0 0.0
  %4127 = vmatpush1.xpose.msra.mxu0 0.0
  %4128 = vmatprep.subr.mxu0 0.0
  %4129 = vmatpush1.xpose.msra.mxu0 0.0
  %4130 = vmatprep.subr.mxu0 0.0
  %4131 = vmatpush1.xpose.msra.mxu0 0.0
  %4132 = vmatprep.subr.mxu0 0.0
  %4133 = vmatpush1.xpose.msra.mxu0 0.0
  %4134 = vmatprep.subr.mxu0 0.0
  %4135 = vmatpush1.xpose.msra.mxu0 0.0
  %4136 = vmatprep.subr.mxu0 0.0
  %4137 = vmatpush1.xpose.msra.mxu0 0.0
  %4138 = vmatprep.subr.mxu0 0.0
  %4139 = vmatpush1.xpose.msra.mxu0 0.0
  %4140 = vmatprep.subr.mxu0 0.0
  %4141 = vmatpush1.xpose.msra.mxu0 0.0
  %4142 = vmatprep.subr.mxu0 0.0
  %4143 = vmatpush1.xpose.msra.mxu0 0.0
  %4144 = vmatprep.mubr.f32.mxu0 0.0
  %4145 = vmatmul.mubr.f32.gmra.mrb[0].mxu0 %v4076
  %v4146 = vpop.f32.mrb[0].mxu0
  %v4147 = vadd.f32 0.0, %v4146
  %v4148 = vpop.f32.mrb[0].mxu0
  %4149 = vdwg.mxu0
  %v4150 = vmul.f32 %v4147, 0.35355338
  %v4151 = vadd.f32 %v4150, %v17
  %v4152 = vsel %vm238, %v4151, -inf
  %4153 = vmax.xlane.f32.xlu0 %v4152
  %v4154 = vpop.xlane.xlu0 %4153
  %v4155 = vsub.f32 %v4151, %v4154
  %v4156 = vmul.f32 %v4155, 1.442695
  %v4157 = vpow.pop %v4156
  %v4158 = vsel %vm238, %v4157, 0.0
  %4159 = vadd.xlane.f32.xlu0 %v4158
  %v4160 = vpop.xlane.xlu0 %4159
  %v4161 = vrcp.pop %v4160
  %v4162 = vmul.f32 %v4157, %v4161
  %v4163 = vmul.f32 %v4162, %v20
  %v4164 = vsel %vm238, %v4163, 0.0
  %4165 = vadd.xlane.f32.xlu0 %v4164
  %v4166 = vpop.xlane.xlu0 %4165
  %v4167 = vrcp.pop %v4166
  %v4168 = vmul.f32 %v26, %v4167
  %v4169 = vmul.f32 %v4163, %v4168
  %v4170 = vsel %vm238, %v4169, 0.0
  %v4171 = vrot.slane %v4170, 4
  %v4172 = vadd.f32 %v4170, %v4171
  %v4173 = vrot.slane %v4172, 2
  %v4174 = vadd.f32 %v4172, %v4173
  %v4175 = vrot.slane %v4174, 1
  %v4176 = vadd.f32 %v4174, %v4175
  %4177 = vrot.lane.b32.xlu0 %v2545, 48
  %v4178 = vpop.permute.xlu0 %4177
  %v4181 = vsel %vm238, %v4162, 0
  %4183 = vmatprep.subr.mxu0 0.0
  %4184 = vmatpush1.msra.mxu0 %v4178
  %4185 = vmatprep.subr.mxu0 0.0
  %4186 = vmatpush1.msra.mxu0 0.0
  %4187 = vmatprep.subr.mxu0 0.0
  %4188 = vmatpush1.msra.mxu0 0.0
  %4189 = vmatprep.subr.mxu0 0.0
  %4190 = vmatpush1.msra.mxu0 0.0
  %4191 = vmatprep.subr.mxu0 0.0
  %4192 = vmatpush1.msra.mxu0 0.0
  %4193 = vmatprep.subr.mxu0 0.0
  %4194 = vmatpush1.msra.mxu0 0.0
  %4195 = vmatprep.subr.mxu0 0.0
  %4196 = vmatpush1.msra.mxu0 0.0
  %4197 = vmatprep.subr.mxu0 0.0
  %4198 = vmatpush1.msra.mxu0 0.0
  %4199 = vmatprep.subr.mxu0 0.0
  %4200 = vmatpush1.msra.mxu0 0.0
  %4201 = vmatprep.subr.mxu0 0.0
  %4202 = vmatpush1.msra.mxu0 0.0
  %4203 = vmatprep.subr.mxu0 0.0
  %4204 = vmatpush1.msra.mxu0 0.0
  %4205 = vmatprep.subr.mxu0 0.0
  %4206 = vmatpush1.msra.mxu0 0.0
  %4207 = vmatprep.subr.mxu0 0.0
  %4208 = vmatpush1.msra.mxu0 0.0
  %4209 = vmatprep.subr.mxu0 0.0
  %4210 = vmatpush1.msra.mxu0 0.0
  %4211 = vmatprep.subr.mxu0 0.0
  %4212 = vmatpush1.msra.mxu0 0.0
  %4213 = vmatprep.subr.mxu0 0.0
  %4214 = vmatpush1.msra.mxu0 0.0
  %4215 = vmatprep.subr.mxu0 0.0
  %4216 = vmatpush1.msra.mxu0 0.0
  %4217 = vmatprep.subr.mxu0 0.0
  %4218 = vmatpush1.msra.mxu0 0.0
  %4219 = vmatprep.subr.mxu0 0.0
  %4220 = vmatpush1.msra.mxu0 0.0
  %4221 = vmatprep.subr.mxu0 0.0
  %4222 = vmatpush1.msra.mxu0 0.0
  %4223 = vmatprep.subr.mxu0 0.0
  %4224 = vmatpush1.msra.mxu0 0.0
  %4225 = vmatprep.subr.mxu0 0.0
  %4226 = vmatpush1.msra.mxu0 0.0
  %4227 = vmatprep.subr.mxu0 0.0
  %4228 = vmatpush1.msra.mxu0 0.0
  %4229 = vmatprep.subr.mxu0 0.0
  %4230 = vmatpush1.msra.mxu0 0.0
  %4231 = vmatprep.subr.mxu0 0.0
  %4232 = vmatpush1.msra.mxu0 0.0
  %4233 = vmatprep.subr.mxu0 0.0
  %4234 = vmatpush1.msra.mxu0 0.0
  %4235 = vmatprep.subr.mxu0 0.0
  %4236 = vmatpush1.msra.mxu0 0.0
  %4237 = vmatprep.subr.mxu0 0.0
  %4238 = vmatpush1.msra.mxu0 0.0
  %4239 = vmatprep.subr.mxu0 0.0
  %4240 = vmatpush1.msra.mxu0 0.0
  %4241 = vmatprep.subr.mxu0 0.0
  %4242 = vmatpush1.msra.mxu0 0.0
  %4243 = vmatprep.subr.mxu0 0.0
  %4244 = vmatpush1.msra.mxu0 0.0
  %4245 = vmatprep.subr.mxu0 0.0
  %4246 = vmatpush1.msra.mxu0 0.0
  %4247 = vmatprep.mubr.f32.mxu0 0.0
  %4248 = vmatmul.mubr.f32.gmra.mrb[0].mxu0 %v4181
  %v4249 = vpop.f32.mrb[0].mxu0
  %v4250 = vadd.f32 0.0, %v4249
  %v4251 = vpop.f32.mrb[0].mxu0
  %4252 = vdwg.mxu0
  %v4254 = vsel %vm238, %v4250, 0
  %4256 = vmatprep.subr.mxu0 0.0
  %4257 = vmatpush1.msra.mxu0 %v2460
  %4258 = vmatprep.subr.mxu0 0.0
  %4259 = vmatpush1.msra.mxu0 0.0
  %4260 = vmatprep.subr.mxu0 0.0
  %4261 = vmatpush1.msra.mxu0 0.0
  %4262 = vmatprep.subr.mxu0 0.0
  %4263 = vmatpush1.msra.mxu0 0.0
  %4264 = vmatprep.subr.mxu0 0.0
  %4265 = vmatpush1.msra.mxu0 0.0
  %4266 = vmatprep.subr.mxu0 0.0
  %4267 = vmatpush1.msra.mxu0 0.0
  %4268 = vmatprep.subr.mxu0 0.0
  %4269 = vmatpush1.msra.mxu0 0.0
  %4270 = vmatprep.subr.mxu0 0.0
  %4271 = vmatpush1.msra.mxu0 0.0
  %4272 = vmatprep.subr.mxu0 0.0
  %4273 = vmatpush1.msra.mxu0 0.0
  %4274 = vmatprep.subr.mxu0 0.0
  %4275 = vmatpush1.msra.mxu0 0.0
  %4276 = vmatprep.subr.mxu0 0.0
  %4277 = vmatpush1.msra.mxu0 0.0
  %4278 = vmatprep.subr.mxu0 0.0
  %4279 = vmatpush1.msra.mxu0 0.0
  %4280 = vmatprep.subr.mxu0 0.0
  %4281 = vmatpush1.msra.mxu0 0.0
  %4282 = vmatprep.subr.mxu0 0.0
  %4283 = vmatpush1.msra.mxu0 0.0
  %4284 = vmatprep.subr.mxu0 0.0
  %4285 = vmatpush1.msra.mxu0 0.0
  %4286 = vmatprep.subr.mxu0 0.0
  %4287 = vmatpush1.msra.mxu0 0.0
  %4288 = vmatprep.subr.mxu0 0.0
  %4289 = vmatpush1.msra.mxu0 0.0
  %4290 = vmatprep.subr.mxu0 0.0
  %4291 = vmatpush1.msra.mxu0 0.0
  %4292 = vmatprep.subr.mxu0 0.0
  %4293 = vmatpush1.msra.mxu0 0.0
  %4294 = vmatprep.subr.mxu0 0.0
  %4295 = vmatpush1.msra.mxu0 0.0
  %4296 = vmatprep.subr.mxu0 0.0
  %4297 = vmatpush1.msra.mxu0 0.0
  %4298 = vmatprep.subr.mxu0 0.0
  %4299 = vmatpush1.msra.mxu0 0.0
  %4300 = vmatprep.subr.mxu0 0.0
  %4301 = vmatpush1.msra.mxu0 0.0
  %4302 = vmatprep.subr.mxu0 0.0
  %4303 = vmatpush1.msra.mxu0 0.0
  %4304 = vmatprep.subr.mxu0 0.0
  %4305 = vmatpush1.msra.mxu0 0.0
  %4306 = vmatprep.subr.mxu0 0.0
  %4307 = vmatpush1.msra.mxu0 0.0
  %4308 = vmatprep.subr.mxu0 0.0
  %4309 = vmatpush1.msra.mxu0 0.0
  %4310 = vmatprep.subr.mxu0 0.0
  %4311 = vmatpush1.msra.mxu0 0.0
  %4312 = vmatprep.subr.mxu0 0.0
  %4313 = vmatpush1.msra.mxu0 0.0
  %4314 = vmatprep.subr.mxu0 0.0
  %4315 = vmatpush1.msra.mxu0 0.0
  %4316 = vmatprep.subr.mxu0 0.0
  %4317 = vmatpush1.msra.mxu0 0.0
  %4318 = vmatprep.subr.mxu0 0.0
  %4319 = vmatpush1.msra.mxu0 0.0
  %4320 = vmatprep.mubr.f32.mxu0 0.0
  %4321 = vmatmul.mubr.f32.gmra.mrb[0].mxu0 %v4254
  %v4322 = vpop.f32.mrb[0].mxu0
  %v4323 = vadd.f32 0.0, %v4322
  %v4324 = vpop.f32.mrb[0].mxu0
  %4325 = vdwg.mxu0
  %v4326 = vadd.f32 %v4069, %v4323
  %4327 = vrot.lane.b32.xlu0 %v2545, 104
  %v4328 = vpop.permute.xlu0 %4327
  %4329 = vrot.lane.b32.xlu0 %v2545, 72
  %v4330 = vpop.permute.xlu0 %4329
  %v4331 = vsel %vm238, %v4328, 0
  %v4333 = vsel %vm238, %v4330, 0
  %4335 = vmatprep.subr.mxu0 0.0
  %4336 = vmatpush1.xpose.msra.mxu0 %v4333
  %4337 = vmatprep.subr.mxu0 0.0
  %4338 = vmatpush1.xpose.msra.mxu0 0.0
  %4339 = vmatprep.subr.mxu0 0.0
  %4340 = vmatpush1.xpose.msra.mxu0 0.0
  %4341 = vmatprep.subr.mxu0 0.0
  %4342 = vmatpush1.xpose.msra.mxu0 0.0
  %4343 = vmatprep.subr.mxu0 0.0
  %4344 = vmatpush1.xpose.msra.mxu0 0.0
  %4345 = vmatprep.subr.mxu0 0.0
  %4346 = vmatpush1.xpose.msra.mxu0 0.0
  %4347 = vmatprep.subr.mxu0 0.0
  %4348 = vmatpush1.xpose.msra.mxu0 0.0
  %4349 = vmatprep.subr.mxu0 0.0
  %4350 = vmatpush1.xpose.msra.mxu0 0.0
  %4351 = vmatprep.subr.mxu0 0.0
  %4352 = vmatpush1.xpose.msra.mxu0 0.0
  %4353 = vmatprep.subr.mxu0 0.0
  %4354 = vmatpush1.xpose.msra.mxu0 0.0
  %4355 = vmatprep.subr.mxu0 0.0
  %4356 = vmatpush1.xpose.msra.mxu0 0.0
  %4357 = vmatprep.subr.mxu0 0.0
  %4358 = vmatpush1.xpose.msra.mxu0 0.0
  %4359 = vmatprep.subr.mxu0 0.0
  %4360 = vmatpush1.xpose.msra.mxu0 0.0
  %4361 = vmatprep.subr.mxu0 0.0
  %4362 = vmatpush1.xpose.msra.mxu0 0.0
  %4363 = vmatprep.subr.mxu0 0.0
  %4364 = vmatpush1.xpose.msra.mxu0 0.0
  %4365 = vmatprep.subr.mxu0 0.0
  %4366 = vmatpush1.xpose.msra.mxu0 0.0
  %4367 = vmatprep.subr.mxu0 0.0
  %4368 = vmatpush1.xpose.msra.mxu0 0.0
  %4369 = vmatprep.subr.mxu0 0.0
  %4370 = vmatpush1.xpose.msra.mxu0 0.0
  %4371 = vmatprep.subr.mxu0 0.0
  %4372 = vmatpush1.xpose.msra.mxu0 0.0
  %4373 = vmatprep.subr.mxu0 0.0
  %4374 = vmatpush1.xpose.msra.mxu0 0.0
  %4375 = vmatprep.subr.mxu0 0.0
  %4376 = vmatpush1.xpose.msra.mxu0 0.0
  %4377 = vmatprep.subr.mxu0 0.0
  %4378 = vmatpush1.xpose.msra.mxu0 0.0
  %4379 = vmatprep.subr.mxu0 0.0
  %4380 = vmatpush1.xpose.msra.mxu0 0.0
  %4381 = vmatprep.subr.mxu0 0.0
  %4382 = vmatpush1.xpose.msra.mxu0 0.0
  %4383 = vmatprep.subr.mxu0 0.0
  %4384 = vmatpush1.xpose.msra.mxu0 0.0
  %4385 = vmatprep.subr.mxu0 0.0
  %4386 = vmatpush1.xpose.msra.mxu0 0.0
  %4387 = vmatprep.subr.mxu0 0.0
  %4388 = vmatpush1.xpose.msra.mxu0 0.0
  %4389 = vmatprep.subr.mxu0 0.0
  %4390 = vmatpush1.xpose.msra.mxu0 0.0
  %4391 = vmatprep.subr.mxu0 0.0
  %4392 = vmatpush1.xpose.msra.mxu0 0.0
  %4393 = vmatprep.subr.mxu0 0.0
  %4394 = vmatpush1.xpose.msra.mxu0 0.0
  %4395 = vmatprep.subr.mxu0 0.0
  %4396 = vmatpush1.xpose.msra.mxu0 0.0
  %4397 = vmatprep.subr.mxu0 0.0
  %4398 = vmatpush1.xpose.msra.mxu0 0.0
  %4399 = vmatprep.mubr.f32.mxu0 0.0
  %4400 = vmatmul.mubr.f32.gmra.mrb[0].mxu0 %v4331
  %v4401 = vpop.f32.mrb[0].mxu0
  %v4402 = vadd.f32 0.0, %v4401
  %v4403 = vpop.f32.mrb[0].mxu0
  %4404 = vdwg.mxu0
  %v4405 = vmul.f32 %v4402, 0.35355338
  %v4406 = vadd.f32 %v4405, %v17
  %v4407 = vsel %vm238, %v4406, -inf
  %4408 = vmax.xlane.f32.xlu0 %v4407
  %v4409 = vpop.xlane.xlu0 %4408
  %v4410 = vsub.f32 %v4406, %v4409
  %v4411 = vmul.f32 %v4410, 1.442695
  %v4412 = vpow.pop %v4411
  %v4413 = vsel %vm238, %v4412, 0.0
  %4414 = vadd.xlane.f32.xlu0 %v4413
  %v4415 = vpop.xlane.xlu0 %4414
  %v4416 = vrcp.pop %v4415
  %v4417 = vmul.f32 %v4412, %v4416
  %v4418 = vmul.f32 %v4417, %v20
  %v4419 = vsel %vm238, %v4418, 0.0
  %4420 = vadd.xlane.f32.xlu0 %v4419
  %v4421 = vpop.xlane.xlu0 %4420
  %v4422 = vrcp.pop %v4421
  %v4423 = vmul.f32 %v26, %v4422
  %v4424 = vmul.f32 %v4418, %v4423
  %v4425 = vsel %vm238, %v4424, 0.0
  %v4426 = vrot.slane %v4425, 4
  %v4427 = vadd.f32 %v4425, %v4426
  %v4428 = vrot.slane %v4427, 2
  %v4429 = vadd.f32 %v4427, %v4428
  %v4430 = vrot.slane %v4429, 1
  %v4431 = vadd.f32 %v4429, %v4430
  %4432 = vrot.lane.b32.xlu0 %v2545, 40
  %v4433 = vpop.permute.xlu0 %4432
  %v4436 = vsel %vm238, %v4417, 0
  %4438 = vmatprep.subr.mxu0 0.0
  %4439 = vmatpush1.msra.mxu0 %v4433
  %4440 = vmatprep.subr.mxu0 0.0
  %4441 = vmatpush1.msra.mxu0 0.0
  %4442 = vmatprep.subr.mxu0 0.0
  %4443 = vmatpush1.msra.mxu0 0.0
  %4444 = vmatprep.subr.mxu0 0.0
  %4445 = vmatpush1.msra.mxu0 0.0
  %4446 = vmatprep.subr.mxu0 0.0
  %4447 = vmatpush1.msra.mxu0 0.0
  %4448 = vmatprep.subr.mxu0 0.0
  %4449 = vmatpush1.msra.mxu0 0.0
  %4450 = vmatprep.subr.mxu0 0.0
  %4451 = vmatpush1.msra.mxu0 0.0
  %4452 = vmatprep.subr.mxu0 0.0
  %4453 = vmatpush1.msra.mxu0 0.0
  %4454 = vmatprep.subr.mxu0 0.0
  %4455 = vmatpush1.msra.mxu0 0.0
  %4456 = vmatprep.subr.mxu0 0.0
  %4457 = vmatpush1.msra.mxu0 0.0
  %4458 = vmatprep.subr.mxu0 0.0
  %4459 = vmatpush1.msra.mxu0 0.0
  %4460 = vmatprep.subr.mxu0 0.0
  %4461 = vmatpush1.msra.mxu0 0.0
  %4462 = vmatprep.subr.mxu0 0.0
  %4463 = vmatpush1.msra.mxu0 0.0
  %4464 = vmatprep.subr.mxu0 0.0
  %4465 = vmatpush1.msra.mxu0 0.0
  %4466 = vmatprep.subr.mxu0 0.0
  %4467 = vmatpush1.msra.mxu0 0.0
  %4468 = vmatprep.subr.mxu0 0.0
  %4469 = vmatpush1.msra.mxu0 0.0
  %4470 = vmatprep.subr.mxu0 0.0
  %4471 = vmatpush1.msra.mxu0 0.0
  %4472 = vmatprep.subr.mxu0 0.0
  %4473 = vmatpush1.msra.mxu0 0.0
  %4474 = vmatprep.subr.mxu0 0.0
  %4475 = vmatpush1.msra.mxu0 0.0
  %4476 = vmatprep.subr.mxu0 0.0
  %4477 = vmatpush1.msra.mxu0 0.0
  %4478 = vmatprep.subr.mxu0 0.0
  %4479 = vmatpush1.msra.mxu0 0.0
  %4480 = vmatprep.subr.mxu0 0.0
  %4481 = vmatpush1.msra.mxu0 0.0
  %4482 = vmatprep.subr.mxu0 0.0
  %4483 = vmatpush1.msra.mxu0 0.0
  %4484 = vmatprep.subr.mxu0 0.0
  %4485 = vmatpush1.msra.mxu0 0.0
  %4486 = vmatprep.subr.mxu0 0.0
  %4487 = vmatpush1.msra.mxu0 0.0
  %4488 = vmatprep.subr.mxu0 0.0
  %4489 = vmatpush1.msra.mxu0 0.0
  %4490 = vmatprep.subr.mxu0 0.0
  %4491 = vmatpush1.msra.mxu0 0.0
  %4492 = vmatprep.subr.mxu0 0.0
  %4493 = vmatpush1.msra.mxu0 0.0
  %4494 = vmatprep.subr.mxu0 0.0
  %4495 = vmatpush1.msra.mxu0 0.0
  %4496 = vmatprep.subr.mxu0 0.0
  %4497 = vmatpush1.msra.mxu0 0.0
  %4498 = vmatprep.subr.mxu0 0.0
  %4499 = vmatpush1.msra.mxu0 0.0
  %4500 = vmatprep.subr.mxu0 0.0
  %4501 = vmatpush1.msra.mxu0 0.0
  %4502 = vmatprep.mubr.f32.mxu0 0.0
  %4503 = vmatmul.mubr.f32.gmra.mrb[0].mxu0 %v4436
  %v4504 = vpop.f32.mrb[0].mxu0
  %v4505 = vadd.f32 0.0, %v4504
  %v4506 = vpop.f32.mrb[0].mxu0
  %4507 = vdwg.mxu0
  %v4509 = vsel %vm238, %v4505, 0
  %4511 = vmatprep.subr.mxu0 0.0
  %4512 = vmatpush1.msra.mxu0 %v2461
  %4513 = vmatprep.subr.mxu0 0.0
  %4514 = vmatpush1.msra.mxu0 0.0
  %4515 = vmatprep.subr.mxu0 0.0
  %4516 = vmatpush1.msra.mxu0 0.0
  %4517 = vmatprep.subr.mxu0 0.0
  %4518 = vmatpush1.msra.mxu0 0.0
  %4519 = vmatprep.subr.mxu0 0.0
  %4520 = vmatpush1.msra.mxu0 0.0
  %4521 = vmatprep.subr.mxu0 0.0
  %4522 = vmatpush1.msra.mxu0 0.0
  %4523 = vmatprep.subr.mxu0 0.0
  %4524 = vmatpush1.msra.mxu0 0.0
  %4525 = vmatprep.subr.mxu0 0.0
  %4526 = vmatpush1.msra.mxu0 0.0
  %4527 = vmatprep.subr.mxu0 0.0
  %4528 = vmatpush1.msra.mxu0 0.0
  %4529 = vmatprep.subr.mxu0 0.0
  %4530 = vmatpush1.msra.mxu0 0.0
  %4531 = vmatprep.subr.mxu0 0.0
  %4532 = vmatpush1.msra.mxu0 0.0
  %4533 = vmatprep.subr.mxu0 0.0
  %4534 = vmatpush1.msra.mxu0 0.0
  %4535 = vmatprep.subr.mxu0 0.0
  %4536 = vmatpush1.msra.mxu0 0.0
  %4537 = vmatprep.subr.mxu0 0.0
  %4538 = vmatpush1.msra.mxu0 0.0
  %4539 = vmatprep.subr.mxu0 0.0
  %4540 = vmatpush1.msra.mxu0 0.0
  %4541 = vmatprep.subr.mxu0 0.0
  %4542 = vmatpush1.msra.mxu0 0.0
  %4543 = vmatprep.subr.mxu0 0.0
  %4544 = vmatpush1.msra.mxu0 0.0
  %4545 = vmatprep.subr.mxu0 0.0
  %4546 = vmatpush1.msra.mxu0 0.0
  %4547 = vmatprep.subr.mxu0 0.0
  %4548 = vmatpush1.msra.mxu0 0.0
  %4549 = vmatprep.subr.mxu0 0.0
  %4550 = vmatpush1.msra.mxu0 0.0
  %4551 = vmatprep.subr.mxu0 0.0
  %4552 = vmatpush1.msra.mxu0 0.0
  %4553 = vmatprep.subr.mxu0 0.0
  %4554 = vmatpush1.msra.mxu0 0.0
  %4555 = vmatprep.subr.mxu0 0.0
  %4556 = vmatpush1.msra.mxu0 0.0
  %4557 = vmatprep.subr.mxu0 0.0
  %4558 = vmatpush1.msra.mxu0 0.0
  %4559 = vmatprep.subr.mxu0 0.0
  %4560 = vmatpush1.msra.mxu0 0.0
  %4561 = vmatprep.subr.mxu0 0.0
  %4562 = vmatpush1.msra.mxu0 0.0
  %4563 = vmatprep.subr.mxu0 0.0
  %4564 = vmatpush1.msra.mxu0 0.0
  %4565 = vmatprep.subr.mxu0 0.0
  %4566 = vmatpush1.msra.mxu0 0.0
  %4567 = vmatprep.subr.mxu0 0.0
  %4568 = vmatpush1.msra.mxu0 0.0
  %4569 = vmatprep.subr.mxu0 0.0
  %4570 = vmatpush1.msra.mxu0 0.0
  %4571 = vmatprep.subr.mxu0 0.0
  %4572 = vmatpush1.msra.mxu0 0.0
  %4573 = vmatprep.subr.mxu0 0.0
  %4574 = vmatpush1.msra.mxu0 0.0
  %4575 = vmatprep.mubr.f32.mxu0 0.0
  %4576 = vmatmul.mubr.f32.gmra.mrb[0].mxu0 %v4509
  %v4577 = vpop.f32.mrb[0].mxu0
  %v4578 = vadd.f32 0.0, %v4577
  %v4579 = vpop.f32.mrb[0].mxu0
  %4580 = vdwg.mxu0
  %v4581 = vadd.f32 %v4326, %v4578
  %v4582 = vlaneseq
  %v4583 = vshrl.u32 %v4582, 7
  %v4584 = vsub.s32 0, %v4583
  %v4585 = vrot.slane %v2462, %v4584
  %v4586 = vadd.f32 %v3564, %v4585
  %v4587 = vadd.f32 %v4581, %v4585
  %v4588 = vld [vmem:[%s0 + $0x250] sm:$0x1]
  %v4589 = vld [vmem:[%s0 + $0x258] sm:$0x1]
  %v4590 = vsel %vm153, %v4586, 0.0
  %4591 = vadd.xlane.f32.xlu0 %v4590
  %v4592 = vpop.xlane.xlu0 %4591
  %v4593 = vsel %vm153, %v4587, 0.0
  %4594 = vadd.xlane.f32.xlu0 %v4593
  %v4595 = vpop.xlane.xlu0 %4594
  %v4596 = vmul.f32 %v4592, %v2172
  %v4597 = vmul.f32 %v4595, %v2172
  %v4598 = vsub.f32 %v4586, %v4596
  %v4599 = vsub.f32 %v4587, %v4597
  %v4600 = vmul.f32 %v4598, %v4598
  %v4601 = vmul.f32 %v4599, %v4599
  %v4602 = vsel %vm153, %v4600, 0.0
  %4603 = vadd.xlane.f32.xlu0 %v4602
  %v4604 = vpop.xlane.xlu0 %4603
  %v4605 = vsel %vm153, %v4601, 0.0
  %4606 = vadd.xlane.f32.xlu0 %v4605
  %v4607 = vpop.xlane.xlu0 %4606
  %v4608 = vmul.f32 %v4604, %v2172
  %v4609 = vmul.f32 %v4607, %v2172
  %v4610 = vadd.f32 %v4608, 1e-06
  %v4611 = vadd.f32 %v4609, 1e-06
  %v4612 = vrsqrt.pop %v4610
  %v4613 = vrsqrt.pop %v4611
  %v4614 = vmul.f32 %v4598, %v4612
  %v4615 = vmul.f32 %v4599, %v4613
  %v4616 = vlaneseq
  %v4617 = vshrl.u32 %v4616, 7
  %v4618 = vsub.s32 0, %v4617
  %v4619 = vrot.slane %v4588, %v4618
  %v4620 = vmul.f32 %v4614, %v4619
  %v4621 = vmul.f32 %v4615, %v4619
  %v4622 = vlaneseq
  %v4623 = vshrl.u32 %v4622, 7
  %v4624 = vsub.s32 0, %v4623
  %v4625 = vrot.slane %v4589, %v4624
  %v4626 = vadd.f32 %v4620, %v4625
  %v4627 = vadd.f32 %v4621, %v4625
  %v4628 = vadd.f32 %v4586, %v4626
  %v4629 = vadd.f32 %v4587, %v4627
  %v4630 = vld [vmem:[%s0 + $0x260] sm:$0xff]
  %v4631 = vld [vmem:[%s0 + $0x268] sm:$0xff]
  %v4632 = vld [vmem:[%s0 + $0x270] sm:$0xff]
  %v4633 = vld [vmem:[%s0 + $0x278] sm:$0xff]
  %v4634 = vld [vmem:[%s0 + $0x280] sm:$0x1]
  %v4635 = vlaneseq
  %v4636 = vshrl.u32 %v4635, 7
  %v4637 = vsub.s32 0, %v4636
  %v4638 = vrot.slane %v4634, %v4637
  %v4640 = vsel %vm153, %v4628, 0
  %v4643 = vsel %vm153, %v4629, 0
  %4645 = vmatprep.subr.mxu0 0.0
  %4646 = vmatpush1.msra.mxu0 %v4630
  %4647 = vmatprep.subr.mxu0 0.0
  %4648 = vmatpush1.msra.mxu0 %v4631
  %4649 = vmatprep.subr.mxu0 0.0
  %4650 = vmatpush1.msra.mxu0 %v4632
  %4651 = vmatprep.subr.mxu0 0.0
  %4652 = vmatpush1.msra.mxu0 %v4633
  %4653 = vmatprep.subr.mxu0 0.0
  %4654 = vmatpush1.msra.mxu0 0.0
  %4655 = vmatprep.subr.mxu0 0.0
  %4656 = vmatpush1.msra.mxu0 0.0
  %4657 = vmatprep.subr.mxu0 0.0
  %4658 = vmatpush1.msra.mxu0 0.0
  %4659 = vmatprep.subr.mxu0 0.0
  %4660 = vmatpush1.msra.mxu0 0.0
  %4661 = vmatprep.subr.mxu0 0.0
  %4662 = vmatpush1.msra.mxu0 0.0
  %4663 = vmatprep.subr.mxu0 0.0
  %4664 = vmatpush1.msra.mxu0 0.0
  %4665 = vmatprep.subr.mxu0 0.0
  %4666 = vmatpush1.msra.mxu0 0.0
  %4667 = vmatprep.subr.mxu0 0.0
  %4668 = vmatpush1.msra.mxu0 0.0
  %4669 = vmatprep.subr.mxu0 0.0
  %4670 = vmatpush1.msra.mxu0 0.0
  %4671 = vmatprep.subr.mxu0 0.0
  %4672 = vmatpush1.msra.mxu0 0.0
  %4673 = vmatprep.subr.mxu0 0.0
  %4674 = vmatpush1.msra.mxu0 0.0
  %4675 = vmatprep.subr.mxu0 0.0
  %4676 = vmatpush1.msra.mxu0 0.0
  %4677 = vmatprep.subr.mxu0 0.0
  %4678 = vmatpush1.msra.mxu0 0.0
  %4679 = vmatprep.subr.mxu0 0.0
  %4680 = vmatpush1.msra.mxu0 0.0
  %4681 = vmatprep.subr.mxu0 0.0
  %4682 = vmatpush1.msra.mxu0 0.0
  %4683 = vmatprep.subr.mxu0 0.0
  %4684 = vmatpush1.msra.mxu0 0.0
  %4685 = vmatprep.subr.mxu0 0.0
  %4686 = vmatpush1.msra.mxu0 0.0
  %4687 = vmatprep.subr.mxu0 0.0
  %4688 = vmatpush1.msra.mxu0 0.0
  %4689 = vmatprep.subr.mxu0 0.0
  %4690 = vmatpush1.msra.mxu0 0.0
  %4691 = vmatprep.subr.mxu0 0.0
  %4692 = vmatpush1.msra.mxu0 0.0
  %4693 = vmatprep.subr.mxu0 0.0
  %4694 = vmatpush1.msra.mxu0 0.0
  %4695 = vmatprep.subr.mxu0 0.0
  %4696 = vmatpush1.msra.mxu0 0.0
  %4697 = vmatprep.subr.mxu0 0.0
  %4698 = vmatpush1.msra.mxu0 0.0
  %4699 = vmatprep.subr.mxu0 0.0
  %4700 = vmatpush1.msra.mxu0 0.0
  %4701 = vmatprep.subr.mxu0 0.0
  %4702 = vmatpush1.msra.mxu0 0.0
  %4703 = vmatprep.subr.mxu0 0.0
  %4704 = vmatpush1.msra.mxu0 0.0
  %4705 = vmatprep.subr.mxu0 0.0
  %4706 = vmatpush1.msra.mxu0 0.0
  %4707 = vmatprep.subr.mxu0 0.0
  %4708 = vmatpush1.msra.mxu0 0.0
  %4709 = vmatprep.mubr.f32.mxu0 0.0
  %4710 = vmatmul.mubr.f32.gmra.mrb[0].mxu0 %v4640
  %v4711 = vpop.f32.mrb[0].mxu0
  %v4712 = vadd.f32 %v4638, %v4711
  %v4713 = vpop.f32.mrb[0].mxu0
  %4714 = vmatprep.mubr.f32.mxu0 0.0
  %4715 = vmatmul.mubr.f32.gmra.mrb[0].mxu0 %v4643
  %v4716 = vpop.f32.mrb[0].mxu0
  %v4717 = vadd.f32 %v4638, %v4716
  %v4718 = vpop.f32.mrb[0].mxu0
  %4719 = vdwg.mxu0
  %v4720 = vmul.f32 %v4712, 0.5
  %v4721 = vmul.f32 %v4717, 0.5
  %v4722 = vmul.f32 %v4712, 0.044715
  %v4723 = vmul.f32 %v4717, 0.044715
  %v4724 = vmul.f32 %v4722, %v4712
  %v4725 = vmul.f32 %v4723, %v4717
  %v4726 = vmul.f32 %v4724, %v4712
  %v4727 = vmul.f32 %v4725, %v4717
  %v4728 = vadd.f32 %v4712, %v4726
  %v4729 = vadd.f32 %v4717, %v4727
  %v4730 = vmul.f32 %v4728, 0.7978846
  %v4731 = vmul.f32 %v4729, 0.7978846
  %v4732 = vtanh.pop %v4730
  %v4733 = vtanh.pop %v4731
  %v4734 = vadd.f32 %v4732, 1.0
  %v4735 = vadd.f32 %v4733, 1.0
  %v4736 = vmul.f32 %v4720, %v4734
  %v4737 = vmul.f32 %v4721, %v4735
  %v4738 = vld [vmem:[%s0 + $0x288] sm:$0xff]
  %v4739 = vld [vmem:[%s0 + $0x290] sm:$0xff]
  %v4740 = vld [vmem:[%s0 + $0x298] sm:$0xff]
  %v4741 = vld [vmem:[%s0 + $0x2a0] sm:$0xff]
  %v4742 = vld [vmem:[%s0 + $0x2a8] sm:$0xff]
  %v4743 = vld [vmem:[%s0 + $0x2b0] sm:$0xff]
  %v4744 = vld [vmem:[%s0 + $0x2b8] sm:$0xff]
  %v4745 = vld [vmem:[%s0 + $0x2c0] sm:$0xff]
  %v4746 = vld [vmem:[%s0 + $0x2c8] sm:$0xff]
  %v4747 = vld [vmem:[%s0 + $0x2d0] sm:$0xff]
  %v4748 = vld [vmem:[%s0 + $0x2d8] sm:$0xff]
  %v4749 = vld [vmem:[%s0 + $0x2e0] sm:$0xff]
  %v4750 = vld [vmem:[%s0 + $0x2e8] sm:$0xff]
  %v4751 = vld [vmem:[%s0 + $0x2f0] sm:$0xff]
  %v4752 = vld [vmem:[%s0 + $0x2f8] sm:$0xff]
  %v4753 = vld [vmem:[%s0 + $0x300] sm:$0xff]
  %v4754 = vld [vmem:[%s0 + $0x308] sm:$0x1]
  %v4755 = vlaneseq
  %v4756 = vshrl.u32 %v4755, 7
  %v4757 = vsub.s32 0, %v4756
  %v4758 = vrot.slane %v4754, %v4757
  %4759 = vmatprep.subr.mxu0 0.0
  %4760 = vmatpush1.msra.mxu0 %v4738
  %4761 = vmatprep.subr.mxu0 0.0
  %4762 = vmatpush1.msra.mxu0 %v4739
  %4763 = vmatprep.subr.mxu0 0.0
  %4764 = vmatpush1.msra.mxu0 %v4740
  %4765 = vmatprep.subr.mxu0 0.0
  %4766 = vmatpush1.msra.mxu0 %v4741
  %4767 = vmatprep.subr.mxu0 0.0
  %4768 = vmatpush1.msra.mxu0 %v4742
  %4769 = vmatprep.subr.mxu0 0.0
  %4770 = vmatpush1.msra.mxu0 %v4743
  %4771 = vmatprep.subr.mxu0 0.0
  %4772 = vmatpush1.msra.mxu0 %v4744
  %4773 = vmatprep.subr.mxu0 0.0
  %4774 = vmatpush1.msra.mxu0 %v4745
  %4775 = vmatprep.subr.mxu0 0.0
  %4776 = vmatpush1.msra.mxu0 %v4746
  %4777 = vmatprep.subr.mxu0 0.0
  %4778 = vmatpush1.msra.mxu0 %v4747
  %4779 = vmatprep.subr.mxu0 0.0
  %4780 = vmatpush1.msra.mxu0 %v4748
  %4781 = vmatprep.subr.mxu0 0.0
  %4782 = vmatpush1.msra.mxu0 %v4749
  %4783 = vmatprep.subr.mxu0 0.0
  %4784 = vmatpush1.msra.mxu0 %v4750
  %4785 = vmatprep.subr.mxu0 0.0
  %4786 = vmatpush1.msra.mxu0 %v4751
  %4787 = vmatprep.subr.mxu0 0.0
  %4788 = vmatpush1.msra.mxu0 %v4752
  %4789 = vmatprep.subr.mxu0 0.0
  %4790 = vmatpush1.msra.mxu0 %v4753
  %4791 = vmatprep.subr.mxu0 0.0
  %4792 = vmatpush1.msra.mxu0 0.0
  %4793 = vmatprep.subr.mxu0 0.0
  %4794 = vmatpush1.msra.mxu0 0.0
  %4795 = vmatprep.subr.mxu0 0.0
  %4796 = vmatpush1.msra.mxu0 0.0
  %4797 = vmatprep.subr.mxu0 0.0
  %4798 = vmatpush1.msra.mxu0 0.0
  %4799 = vmatprep.subr.mxu0 0.0
  %4800 = vmatpush1.msra.mxu0 0.0
  %4801 = vmatprep.subr.mxu0 0.0
  %4802 = vmatpush1.msra.mxu0 0.0
  %4803 = vmatprep.subr.mxu0 0.0
  %4804 = vmatpush1.msra.mxu0 0.0
  %4805 = vmatprep.subr.mxu0 0.0
  %4806 = vmatpush1.msra.mxu0 0.0
  %4807 = vmatprep.subr.mxu0 0.0
  %4808 = vmatpush1.msra.mxu0 0.0
  %4809 = vmatprep.subr.mxu0 0.0
  %4810 = vmatpush1.msra.mxu0 0.0
  %4811 = vmatprep.subr.mxu0 0.0
  %4812 = vmatpush1.msra.mxu0 0.0
  %4813 = vmatprep.subr.mxu0 0.0
  %4814 = vmatpush1.msra.mxu0 0.0
  %4815 = vmatprep.subr.mxu0 0.0
  %4816 = vmatpush1.msra.mxu0 0.0
  %4817 = vmatprep.subr.mxu0 0.0
  %4818 = vmatpush1.msra.mxu0 0.0
  %4819 = vmatprep.subr.mxu0 0.0
  %4820 = vmatpush1.msra.mxu0 0.0
  %4821 = vmatprep.subr.mxu0 0.0
  %4822 = vmatpush1.msra.mxu0 0.0
  %4823 = vmatprep.mubr.f32.mxu0 0.0
  %4824 = vmatmul.mubr.f32.gmra.mrb[0].mxu0 %v4736
  %v4825 = vpop.f32.mrb[0].mxu0
  %v4826 = vadd.f32 %v4758, %v4825
  %v4827 = vpop.f32.mrb[0].mxu0
  %4828 = vmatprep.mubr.f32.mxu0 0.0
  %4829 = vmatmul.mubr.f32.gmra.mrb[0].mxu0 %v4737
  %v4830 = vpop.f32.mrb[0].mxu0
  %v4831 = vadd.f32 %v4758, %v4830
  %v4832 = vpop.f32.mrb[0].mxu0
  %4833 = vdwg.mxu0
  %v4834 = vld [vmem:[%s0 + $0x310] sm:$0x1]
  %v4835 = vld [vmem:[%s0 + $0x318] sm:$0x1]
  %v4836 = vsel %vm153, %v4826, 0.0
  %4837 = vadd.xlane.f32.xlu0 %v4836
  %v4838 = vpop.xlane.xlu0 %4837
  %v4839 = vsel %vm153, %v4831, 0.0
  %4840 = vadd.xlane.f32.xlu0 %v4839
  %v4841 = vpop.xlane.xlu0 %4840
  %v4842 = vmul.f32 %v4838, %v2172
  %v4843 = vmul.f32 %v4841, %v2172
  %v4844 = vsub.f32 %v4826, %v4842
  %v4845 = vsub.f32 %v4831, %v4843
  %v4846 = vmul.f32 %v4844, %v4844
  %v4847 = vmul.f32 %v4845, %v4845
  %v4848 = vsel %vm153, %v4846, 0.0
  %4849 = vadd.xlane.f32.xlu0 %v4848
  %v4850 = vpop.xlane.xlu0 %4849
  %v4851 = vsel %vm153, %v4847, 0.0
  %4852 = vadd.xlane.f32.xlu0 %v4851
  %v4853 = vpop.xlane.xlu0 %4852
  %v4854 = vmul.f32 %v4850, %v2172
  %v4855 = vmul.f32 %v4853, %v2172
  %v4856 = vadd.f32 %v4854, 1e-06
  %v4857 = vadd.f32 %v4855, 1e-06
  %v4858 = vrsqrt.pop %v4856
  %v4859 = vrsqrt.pop %v4857
  %v4860 = vmul.f32 %v4844, %v4858
  %v4861 = vmul.f32 %v4845, %v4859
  %v4862 = vlaneseq
  %v4863 = vshrl.u32 %v4862, 7
  %v4864 = vsub.s32 0, %v4863
  %v4865 = vrot.slane %v4834, %v4864
  %v4866 = vmul.f32 %v4860, %v4865
  %v4867 = vmul.f32 %v4861, %v4865
  %v4868 = vlaneseq
  %v4869 = vshrl.u32 %v4868, 7
  %v4870 = vsub.s32 0, %v4869
  %v4871 = vrot.slane %v4835, %v4870
  %v4872 = vadd.f32 %v4866, %v4871
  %v4873 = vadd.f32 %v4867, %v4871
  %v4874 = vadd.f32 %v4628, %v4872
  %v4875 = vadd.f32 %v4629, %v4873
  %vm4876 = vcmask 1040384
  %v4877 = vsel %vm4876, %v2651, %v2832
  %vm4878 = vcmask 1041408
  %v4879 = vsel %vm4878, %v4877, %v3159
  %vm4880 = vcmask 1042432
  %v4881 = vsel %vm4880, %v4879, %v3414
  %vm4882 = vcmask 1043456
  %v4883 = vsel %vm4882, %v4881, %v3668
  %vm4884 = vcmask 1044480
  %v4885 = vsel %vm4884, %v4883, %v3849
  %vm4886 = vcmask 1045504
  %v4887 = vsel %vm4886, %v4885, %v4176
  %vm4888 = vcmask 1046528
  %v4889 = vsel %vm4888, %v4887, %v4431
  %v4890 = vld [vmem:[%s0 + $0xd0] sm:$0x1]
  %v4891 = vld [vmem:[%s0 + $0xd8] sm:$0x1]
  %v4892 = vsel %vm153, %v4874, 0.0
  %4893 = vadd.xlane.f32.xlu0 %v4892
  %v4894 = vpop.xlane.xlu0 %4893
  %v4895 = vsel %vm153, %v4875, 0.0
  %4896 = vadd.xlane.f32.xlu0 %v4895
  %v4897 = vpop.xlane.xlu0 %4896
  %v4898 = vmul.f32 %v4894, %v2172
  %v4899 = vmul.f32 %v4897, %v2172
  %v4900 = vsub.f32 %v4874, %v4898
  %v4901 = vsub.f32 %v4875, %v4899
  %v4902 = vmul.f32 %v4900, %v4900
  %v4903 = vmul.f32 %v4901, %v4901
  %v4904 = vsel %vm153, %v4902, 0.0
  %4905 = vadd.xlane.f32.xlu0 %v4904
  %v4906 = vpop.xlane.xlu0 %4905
  %v4907 = vsel %vm153, %v4903, 0.0
  %4908 = vadd.xlane.f32.xlu0 %v4907
  %v4909 = vpop.xlane.xlu0 %4908
  %v4910 = vmul.f32 %v4906, %v2172
  %v4911 = vmul.f32 %v4909, %v2172
  %v4912 = vadd.f32 %v4910, 1e-06
  %v4913 = vadd.f32 %v4911, 1e-06
  %v4914 = vrsqrt.pop %v4912
  %v4915 = vrsqrt.pop %v4913
  %v4916 = vmul.f32 %v4900, %v4914
  %v4917 = vmul.f32 %v4901, %v4915
  %v4918 = vlaneseq
  %v4919 = vshrl.u32 %v4918, 7
  %v4920 = vsub.s32 0, %v4919
  %v4921 = vrot.slane %v4890, %v4920
  %v4922 = vmul.f32 %v4916, %v4921
  %v4923 = vmul.f32 %v4917, %v4921
  %v4924 = vlaneseq
  %v4925 = vshrl.u32 %v4924, 7
  %v4926 = vsub.s32 0, %v4925
  %v4927 = vrot.slane %v4891, %v4926
  %v4928 = vadd.f32 %v4922, %v4927
  %v4929 = vadd.f32 %v4923, %v4927
  %v4931 = vrot.slane %v4929, 7
  %v4933 = vsel %vm4876, %v4928, %v4931
  %v4934 = vld [vmem:[%s2] sm:$0xff]
  %v4935 = vld [vmem:[%s2 + $0x8] sm:$0xf]
  %v4936 = vld [vmem:[%s0 + $0x320] sm:$0x3]
  %v4937 = vld [vmem:[%s0 + $0x338] sm:$0x1]
  %v4938 = vlaneseq
  %v4939 = vshrl.u32 %v4938, 7
  %v4940 = vsub.s32 0, %v4939
  %v4941 = vrot.slane %v4937, %v4940
  %vm4942 = vcmask 15360
  %v4944 = vsel %vm4942, %v4934, 0
  %v4947 = vsel %vm4942, %v4935, 0
  %v4950 = vsel %vm4878, %v4936, 0
  %4952 = vmatprep.subr.mxu0 0.0
  %4953 = vmatpush1.msra.mxu0 %v4950
  %4954 = vmatprep.subr.mxu0 0.0
  %4955 = vmatpush1.msra.mxu0 0.0
  %4956 = vmatprep.subr.mxu0 0.0
  %4957 = vmatpush1.msra.mxu0 0.0
  %4958 = vmatprep.subr.mxu0 0.0
  %4959 = vmatpush1.msra.mxu0 0.0
  %4960 = vmatprep.subr.mxu0 0.0
  %4961 = vmatpush1.msra.mxu0 0.0
  %4962 = vmatprep.subr.mxu0 0.0
  %4963 = vmatpush1.msra.mxu0 0.0
  %4964 = vmatprep.subr.mxu0 0.0
  %4965 = vmatpush1.msra.mxu0 0.0
  %4966 = vmatprep.subr.mxu0 0.0
  %4967 = vmatpush1.msra.mxu0 0.0
  %4968 = vmatprep.subr.mxu0 0.0
  %4969 = vmatpush1.msra.mxu0 0.0
  %4970 = vmatprep.subr.mxu0 0.0
  %4971 = vmatpush1.msra.mxu0 0.0
  %4972 = vmatprep.subr.mxu0 0.0
  %4973 = vmatpush1.msra.mxu0 0.0
  %4974 = vmatprep.subr.mxu0 0.0
  %4975 = vmatpush1.msra.mxu0 0.0
  %4976 = vmatprep.subr.mxu0 0.0
  %4977 = vmatpush1.msra.mxu0 0.0
  %4978 = vmatprep.subr.mxu0 0.0
  %4979 = vmatpush1.msra.mxu0 0.0
  %4980 = vmatprep.subr.mxu0 0.0
  %4981 = vmatpush1.msra.mxu0 0.0
  %4982 = vmatprep.subr.mxu0 0.0
  %4983 = vmatpush1.msra.mxu0 0.0
  %4984 = vmatprep.subr.mxu0 0.0
  %4985 = vmatpush1.msra.mxu0 0.0
  %4986 = vmatprep.subr.mxu0 0.0
  %4987 = vmatpush1.msra.mxu0 0.0
  %4988 = vmatprep.subr.mxu0 0.0
  %4989 = vmatpush1.msra.mxu0 0.0
  %4990 = vmatprep.subr.mxu0 0.0
  %4991 = vmatpush1.msra.mxu0 0.0
  %4992 = vmatprep.subr.mxu0 0.0
  %4993 = vmatpush1.msra.mxu0 0.0
  %4994 = vmatprep.subr.mxu0 0.0
  %4995 = vmatpush1.msra.mxu0 0.0
  %4996 = vmatprep.subr.mxu0 0.0
  %4997 = vmatpush1.msra.mxu0 0.0
  %4998 = vmatprep.subr.mxu0 0.0
  %4999 = vmatpush1.msra.mxu0 0.0
  %5000 = vmatprep.subr.mxu0 0.0
  %5001 = vmatpush1.msra.mxu0 0.0
  %5002 = vmatprep.subr.mxu0 0.0
  %5003 = vmatpush1.msra.mxu0 0.0
  %5004 = vmatprep.subr.mxu0 0.0
  %5005 = vmatpush1.msra.mxu0 0.0
  %5006 = vmatprep.subr.mxu0 0.0
  %5007 = vmatpush1.msra.mxu0 0.0
  %5008 = vmatprep.subr.mxu0 0.0
  %5009 = vmatpush1.msra.mxu0 0.0
  %5010 = vmatprep.subr.mxu0 0.0
  %5011 = vmatpush1.msra.mxu0 0.0
  %5012 = vmatprep.subr.mxu0 0.0
  %5013 = vmatpush1.msra.mxu0 0.0
  %5014 = vmatprep.subr.mxu0 0.0
  %5015 = vmatpush1.msra.mxu0 0.0
  %5016 = vmatprep.mubr.f32.mxu0 0.0
  %5017 = vmatmul.mubr.f32.gmra.mrb[0].mxu0 %v4944
  %v5018 = vpop.f32.mrb[0].mxu0
  %v5019 = vadd.f32 %v4941, %v5018
  %v5020 = vpop.f32.mrb[0].mxu0
  %5021 = vmatprep.mubr.f32.mxu0 0.0
  %5022 = vmatmul.mubr.f32.gmra.mrb[0].mxu0 %v4947
  %v5023 = vpop.f32.mrb[0].mxu0
  %v5024 = vadd.f32 %v4941, %v5023
  %v5025 = vpop.f32.mrb[0].mxu0
  %5026 = vdwg.mxu0
  %v5027 = vld [vmem:[%s0 + $0x328] sm:$0xff]
  %v5028 = vld [vmem:[%s0 + $0x330] sm:$0xff]
  %vm5029 = vcmask 130048
  %v5031 = vsel %vm5029, 0.0, 0
  %5033 = vmatprep.subr.mxu0 0.0
  %5034 = vmatpush1.msra.mxu0 %v5027
  %5035 = vmatprep.subr.mxu0 0.0
  %5036 = vmatpush1.msra.mxu0 %v5028
  %5037 = vmatprep.subr.mxu0 0.0
  %5038 = vmatpush1.msra.mxu0 0.0
  %5039 = vmatprep.subr.mxu0 0.0
  %5040 = vmatpush1.msra.mxu0 0.0
  %5041 = vmatprep.subr.mxu0 0.0
  %5042 = vmatpush1.msra.mxu0 0.0
  %5043 = vmatprep.subr.mxu0 0.0
  %5044 = vmatpush1.msra.mxu0 0.0
  %5045 = vmatprep.subr.mxu0 0.0
  %5046 = vmatpush1.msra.mxu0 0.0
  %5047 = vmatprep.subr.mxu0 0.0
  %5048 = vmatpush1.msra.mxu0 0.0
  %5049 = vmatprep.subr.mxu0 0.0
  %5050 = vmatpush1.msra.mxu0 0.0
  %5051 = vmatprep.subr.mxu0 0.0
  %5052 = vmatpush1.msra.mxu0 0.0
  %5053 = vmatprep.subr.mxu0 0.0
  %5054 = vmatpush1.msra.mxu0 0.0
  %5055 = vmatprep.subr.mxu0 0.0
  %5056 = vmatpush1.msra.mxu0 0.0
  %5057 = vmatprep.subr.mxu0 0.0
  %5058 = vmatpush1.msra.mxu0 0.0
  %5059 = vmatprep.subr.mxu0 0.0
  %5060 = vmatpush1.msra.mxu0 0.0
  %5061 = vmatprep.subr.mxu0 0.0
  %5062 = vmatpush1.msra.mxu0 0.0
  %5063 = vmatprep.subr.mxu0 0.0
  %5064 = vmatpush1.msra.mxu0 0.0
  %5065 = vmatprep.subr.mxu0 0.0
  %5066 = vmatpush1.msra.mxu0 0.0
  %5067 = vmatprep.subr.mxu0 0.0
  %5068 = vmatpush1.msra.mxu0 0.0
  %5069 = vmatprep.subr.mxu0 0.0
  %5070 = vmatpush1.msra.mxu0 0.0
  %5071 = vmatprep.subr.mxu0 0.0
  %5072 = vmatpush1.msra.mxu0 0.0
  %5073 = vmatprep.subr.mxu0 0.0
  %5074 = vmatpush1.msra.mxu0 0.0
  %5075 = vmatprep.subr.mxu0 0.0
  %5076 = vmatpush1.msra.mxu0 0.0
  %5077 = vmatprep.subr.mxu0 0.0
  %5078 = vmatpush1.msra.mxu0 0.0
  %5079 = vmatprep.subr.mxu0 0.0
  %5080 = vmatpush1.msra.mxu0 0.0
  %5081 = vmatprep.subr.mxu0 0.0
  %5082 = vmatpush1.msra.mxu0 0.0
  %5083 = vmatprep.subr.mxu0 0.0
  %5084 = vmatpush1.msra.mxu0 0.0
  %5085 = vmatprep.subr.mxu0 0.0
  %5086 = vmatpush1.msra.mxu0 0.0
  %5087 = vmatprep.subr.mxu0 0.0
  %5088 = vmatpush1.msra.mxu0 0.0
  %5089 = vmatprep.subr.mxu0 0.0
  %5090 = vmatpush1.msra.mxu0 0.0
  %5091 = vmatprep.subr.mxu0 0.0
  %5092 = vmatpush1.msra.mxu0 0.0
  %5093 = vmatprep.subr.mxu0 0.0
  %5094 = vmatpush1.msra.mxu0 0.0
  %5095 = vmatprep.subr.mxu0 0.0
  %5096 = vmatpush1.msra.mxu0 0.0
  %5097 = vmatprep.mubr.f32.mxu0 0.0
  %5098 = vmatmul.mubr.f32.gmra.mrb[0].mxu0 %v5031
  %v5099 = vpop.f32.mrb[0].mxu0
  %v5100 = vadd.f32 0.0, %v5099
  %v5101 = vpop.f32.mrb[0].mxu0
  %5102 = vdwg.mxu0
  %v5103 = vadd.f32 %v5019, %v5100
  %v5104 = vxor.u32 %v5103, 2147483648
  %v5105 = vmul.f32 %v5104, 1.442695
  %v5106 = vpow.pop %v5105
  %v5107 = vadd.f32 %v5106, 1.0
  %v5108 = vrcp.pop %v5107
  %v5109 = vmul.f32 1.0, %v5108
  %v5110 = vtanh.pop %v5103
  %v5111 = vmul.f32 %v5109, 0.0
  %5113 = vrot.lane.b32.xlu0 %v5110, 96
  %v5114 = vpop.permute.xlu0 %5113
  %v5116 = vmul.f32 %v5109, %v5114
  %5118 = vrot.lane.b32.xlu0 %v5116, 16
  %v5119 = vpop.permute.xlu0 %5118
  %v5121 = vadd.f32 %v5111, %v5119
  %v5122 = vtanh.pop %v5121
  %5124 = vrot.lane.b32.xlu0 %v5122, 32
  %v5125 = vpop.permute.xlu0 %5124
  %v5127 = vmul.f32 %v5109, %v5125
  %5129 = vrot.lane.b32.xlu0 %v5127, 80
  %v5130 = vpop.permute.xlu0 %5129
  %v5131 = vsel %vm5029, %v5130, 0
  %5133 = vmatprep.subr.mxu0 0.0
  %5134 = vmatpush1.msra.mxu0 %v5027
  %5135 = vmatprep.subr.mxu0 0.0
  %5136 = vmatpush1.msra.mxu0 %v5028
  %5137 = vmatprep.subr.mxu0 0.0
  %5138 = vmatpush1.msra.mxu0 0.0
  %5139 = vmatprep.subr.mxu0 0.0
  %5140 = vmatpush1.msra.mxu0 0.0
  %5141 = vmatprep.subr.mxu0 0.0
  %5142 = vmatpush1.msra.mxu0 0.0
  %5143 = vmatprep.subr.mxu0 0.0
  %5144 = vmatpush1.msra.mxu0 0.0
  %5145 = vmatprep.subr.mxu0 0.0
  %5146 = vmatpush1.msra.mxu0 0.0
  %5147 = vmatprep.subr.mxu0 0.0
  %5148 = vmatpush1.msra.mxu0 0.0
  %5149 = vmatprep.subr.mxu0 0.0
  %5150 = vmatpush1.msra.mxu0 0.0
  %5151 = vmatprep.subr.mxu0 0.0
  %5152 = vmatpush1.msra.mxu0 0.0
  %5153 = vmatprep.subr.mxu0 0.0
  %5154 = vmatpush1.msra.mxu0 0.0
  %5155 = vmatprep.subr.mxu0 0.0
  %5156 = vmatpush1.msra.mxu0 0.0
  %5157 = vmatprep.subr.mxu0 0.0
  %5158 = vmatpush1.msra.mxu0 0.0
  %5159 = vmatprep.subr.mxu0 0.0
  %5160 = vmatpush1.msra.mxu0 0.0
  %5161 = vmatprep.subr.mxu0 0.0
  %5162 = vmatpush1.msra.mxu0 0.0
  %5163 = vmatprep.subr.mxu0 0.0
  %5164 = vmatpush1.msra.mxu0 0.0
  %5165 = vmatprep.subr.mxu0 0.0
  %5166 = vmatpush1.msra.mxu0 0.0
  %5167 = vmatprep.subr.mxu0 0.0
  %5168 = vmatpush1.msra.mxu0 0.0
  %5169 = vmatprep.subr.mxu0 0.0
  %5170 = vmatpush1.msra.mxu0 0.0
  %5171 = vmatprep.subr.mxu0 0.0
  %5172 = vmatpush1.msra.mxu0 0.0
  %5173 = vmatprep.subr.mxu0 0.0
  %5174 = vmatpush1.msra.mxu0 0.0
  %5175 = vmatprep.subr.mxu0 0.0
  %5176 = vmatpush1.msra.mxu0 0.0
  %5177 = vmatprep.subr.mxu0 0.0
  %5178 = vmatpush1.msra.mxu0 0.0
  %5179 = vmatprep.subr.mxu0 0.0
  %5180 = vmatpush1.msra.mxu0 0.0
  %5181 = vmatprep.subr.mxu0 0.0
  %5182 = vmatpush1.msra.mxu0 0.0
  %5183 = vmatprep.subr.mxu0 0.0
  %5184 = vmatpush1.msra.mxu0 0.0
  %5185 = vmatprep.subr.mxu0 0.0
  %5186 = vmatpush1.msra.mxu0 0.0
  %5187 = vmatprep.subr.mxu0 0.0
  %5188 = vmatpush1.msra.mxu0 0.0
  %5189 = vmatprep.subr.mxu0 0.0
  %5190 = vmatpush1.msra.mxu0 0.0
  %5191 = vmatprep.subr.mxu0 0.0
  %5192 = vmatpush1.msra.mxu0 0.0
  %5193 = vmatprep.subr.mxu0 0.0
  %5194 = vmatpush1.msra.mxu0 0.0
  %5195 = vmatprep.subr.mxu0 0.0
  %5196 = vmatpush1.msra.mxu0 0.0
  %5197 = vmatprep.mubr.f32.mxu0 0.0
  %5198 = vmatmul.mubr.f32.gmra.mrb[0].mxu0 %v5131
  %v5199 = vpop.f32.mrb[0].mxu0
  %v5200 = vadd.f32 0.0, %v5199
  %v5201 = vpop.f32.mrb[0].mxu0
  %5202 = vdwg.mxu0
  %v5204 = vrot.slane %v5200, 6
  %v5206 = vadd.f32 %v5019, %v5204
  %v5207 = vxor.u32 %v5206, 2147483648
  %v5208 = vmul.f32 %v5207, 1.442695
  %v5209 = vpow.pop %v5208
  %v5210 = vadd.f32 %v5209, 1.0
  %v5211 = vrcp.pop %v5210
  %v5212 = vmul.f32 1.0, %v5211
  %v5213 = vtanh.pop %v5206
  %v5215 = vrot.slane %v5121, 6
  %v5217 = vmul.f32 %v5212, %v5215
  %5219 = vrot.lane.b32.xlu0 %v5213, 96
  %v5220 = vpop.permute.xlu0 %5219
  %v5222 = vmul.f32 %v5212, %v5220
  %5224 = vrot.lane.b32.xlu0 %v5222, 16
  %v5225 = vpop.permute.xlu0 %5224
  %v5227 = vadd.f32 %v5217, %v5225
  %v5228 = vtanh.pop %v5227
  %5230 = vrot.lane.b32.xlu0 %v5228, 32
  %v5231 = vpop.permute.xlu0 %5230
  %v5233 = vmul.f32 %v5212, %v5231
  %v5235 = vrot.slane %v5233, 2
  %5236 = vrot.lane.b32.xlu0 %v5235, 80
  %v5237 = vpop.permute.xlu0 %5236
  %v5238 = vsel %vm5029, %v5237, 0
  %5240 = vmatprep.subr.mxu0 0.0
  %5241 = vmatpush1.msra.mxu0 %v5027
  %5242 = vmatprep.subr.mxu0 0.0
  %5243 = vmatpush1.msra.mxu0 %v5028
  %5244 = vmatprep.subr.mxu0 0.0
  %5245 = vmatpush1.msra.mxu0 0.0
  %5246 = vmatprep.subr.mxu0 0.0
  %5247 = vmatpush1.msra.mxu0 0.0
  %5248 = vmatprep.subr.mxu0 0.0
  %5249 = vmatpush1.msra.mxu0 0.0
  %5250 = vmatprep.subr.mxu0 0.0
  %5251 = vmatpush1.msra.mxu0 0.0
  %5252 = vmatprep.subr.mxu0 0.0
  %5253 = vmatpush1.msra.mxu0 0.0
  %5254 = vmatprep.subr.mxu0 0.0
  %5255 = vmatpush1.msra.mxu0 0.0
  %5256 = vmatprep.subr.mxu0 0.0
  %5257 = vmatpush1.msra.mxu0 0.0
  %5258 = vmatprep.subr.mxu0 0.0
  %5259 = vmatpush1.msra.mxu0 0.0
  %5260 = vmatprep.subr.mxu0 0.0
  %5261 = vmatpush1.msra.mxu0 0.0
  %5262 = vmatprep.subr.mxu0 0.0
  %5263 = vmatpush1.msra.mxu0 0.0
  %5264 = vmatprep.subr.mxu0 0.0
  %5265 = vmatpush1.msra.mxu0 0.0
  %5266 = vmatprep.subr.mxu0 0.0
  %5267 = vmatpush1.msra.mxu0 0.0
  %5268 = vmatprep.subr.mxu0 0.0
  %5269 = vmatpush1.msra.mxu0 0.0
  %5270 = vmatprep.subr.mxu0 0.0
  %5271 = vmatpush1.msra.mxu0 0.0
  %5272 = vmatprep.subr.mxu0 0.0
  %5273 = vmatpush1.msra.mxu0 0.0
  %5274 = vmatprep.subr.mxu0 0.0
  %5275 = vmatpush1.msra.mxu0 0.0
  %5276 = vmatprep.subr.mxu0 0.0
  %5277 = vmatpush1.msra.mxu0 0.0
  %5278 = vmatprep.subr.mxu0 0.0
  %5279 = vmatpush1.msra.mxu0 0.0
  %5280 = vmatprep.subr.mxu0 0.0
  %5281 = vmatpush1.msra.mxu0 0.0
  %5282 = vmatprep.subr.mxu0 0.0
  %5283 = vmatpush1.msra.mxu0 0.0
  %5284 = vmatprep.subr.mxu0 0.0
  %5285 = vmatpush1.msra.mxu0 0.0
  %5286 = vmatprep.subr.mxu0 0.0
  %5287 = vmatpush1.msra.mxu0 0.0
  %5288 = vmatprep.subr.mxu0 0.0
  %5289 = vmatpush1.msra.mxu0 0.0
  %5290 = vmatprep.subr.mxu0 0.0
  %5291 = vmatpush1.msra.mxu0 0.0
  %5292 = vmatprep.subr.mxu0 0.0
  %5293 = vmatpush1.msra.mxu0 0.0
  %5294 = vmatprep.subr.mxu0 0.0
  %5295 = vmatpush1.msra.mxu0 0.0
  %5296 = vmatprep.subr.mxu0 0.0
  %5297 = vmatpush1.msra.mxu0 0.0
  %5298 = vmatprep.subr.mxu0 0.0
  %5299 = vmatpush1.msra.mxu0 0.0
  %5300 = vmatprep.subr.mxu0 0.0
  %5301 = vmatpush1.msra.mxu0 0.0
  %5302 = vmatprep.subr.mxu0 0.0
  %5303 = vmatpush1.msra.mxu0 0.0
  %5304 = vmatprep.mubr.f32.mxu0 0.0
  %5305 = vmatmul.mubr.f32.gmra.mrb[0].mxu0 %v5238
  %v5306 = vpop.f32.mrb[0].mxu0
  %v5307 = vadd.f32 0.0, %v5306
  %v5308 = vpop.f32.mrb[0].mxu0
  %5309 = vdwg.mxu0
  %v5311 = vrot.slane %v5307, 4
  %v5313 = vadd.f32 %v5019, %v5311
  %v5314 = vxor.u32 %v5313, 2147483648
  %v5315 = vmul.f32 %v5314, 1.442695
  %v5316 = vpow.pop %v5315
  %v5317 = vadd.f32 %v5316, 1.0
  %v5318 = vrcp.pop %v5317
  %v5319 = vmul.f32 1.0, %v5318
  %v5320 = vtanh.pop %v5313
  %v5322 = vrot.slane %v5227, 6
  %v5324 = vmul.f32 %v5319, %v5322
  %5326 = vrot.lane.b32.xlu0 %v5320, 96
  %v5327 = vpop.permute.xlu0 %5326
  %v5329 = vmul.f32 %v5319, %v5327
  %5331 = vrot.lane.b32.xlu0 %v5329, 16
  %v5332 = vpop.permute.xlu0 %5331
  %v5334 = vadd.f32 %v5324, %v5332
  %v5335 = vtanh.pop %v5334
  %5337 = vrot.lane.b32.xlu0 %v5335, 32
  %v5338 = vpop.permute.xlu0 %5337
  %v5340 = vmul.f32 %v5319, %v5338
  %v5342 = vrot.slane %v5340, 4
  %5343 = vrot.lane.b32.xlu0 %v5342, 80
  %v5344 = vpop.permute.xlu0 %5343
  %v5345 = vsel %vm5029, %v5344, 0
  %5347 = vmatprep.subr.mxu0 0.0
  %5348 = vmatpush1.msra.mxu0 %v5027
  %5349 = vmatprep.subr.mxu0 0.0
  %5350 = vmatpush1.msra.mxu0 %v5028
  %5351 = vmatprep.subr.mxu0 0.0
  %5352 = vmatpush1.msra.mxu0 0.0
  %5353 = vmatprep.subr.mxu0 0.0
  %5354 = vmatpush1.msra.mxu0 0.0
  %5355 = vmatprep.subr.mxu0 0.0
  %5356 = vmatpush1.msra.mxu0 0.0
  %5357 = vmatprep.subr.mxu0 0.0
  %5358 = vmatpush1.msra.mxu0 0.0
  %5359 = vmatprep.subr.mxu0 0.0
  %5360 = vmatpush1.msra.mxu0 0.0
  %5361 = vmatprep.subr.mxu0 0.0
  %5362 = vmatpush1.msra.mxu0 0.0
  %5363 = vmatprep.subr.mxu0 0.0
  %5364 = vmatpush1.msra.mxu0 0.0
  %5365 = vmatprep.subr.mxu0 0.0
  %5366 = vmatpush1.msra.mxu0 0.0
  %5367 = vmatprep.subr.mxu0 0.0
  %5368 = vmatpush1.msra.mxu0 0.0
  %5369 = vmatprep.subr.mxu0 0.0
  %5370 = vmatpush1.msra.mxu0 0.0
  %5371 = vmatprep.subr.mxu0 0.0
  %5372 = vmatpush1.msra.mxu0 0.0
  %5373 = vmatprep.subr.mxu0 0.0
  %5374 = vmatpush1.msra.mxu0 0.0
  %5375 = vmatprep.subr.mxu0 0.0
  %5376 = vmatpush1.msra.mxu0 0.0
  %5377 = vmatprep.subr.mxu0 0.0
  %5378 = vmatpush1.msra.mxu0 0.0
  %5379 = vmatprep.subr.mxu0 0.0
  %5380 = vmatpush1.msra.mxu0 0.0
  %5381 = vmatprep.subr.mxu0 0.0
  %5382 = vmatpush1.msra.mxu0 0.0
  %5383 = vmatprep.subr.mxu0 0.0
  %5384 = vmatpush1.msra.mxu0 0.0
  %5385 = vmatprep.subr.mxu0 0.0
  %5386 = vmatpush1.msra.mxu0 0.0
  %5387 = vmatprep.subr.mxu0 0.0
  %5388 = vmatpush1.msra.mxu0 0.0
  %5389 = vmatprep.subr.mxu0 0.0
  %5390 = vmatpush1.msra.mxu0 0.0
  %5391 = vmatprep.subr.mxu0 0.0
  %5392 = vmatpush1.msra.mxu0 0.0
  %5393 = vmatprep.subr.mxu0 0.0
  %5394 = vmatpush1.msra.mxu0 0.0
  %5395 = vmatprep.subr.mxu0 0.0
  %5396 = vmatpush1.msra.mxu0 0.0
  %5397 = vmatprep.subr.mxu0 0.0
  %5398 = vmatpush1.msra.mxu0 0.0
  %5399 = vmatprep.subr.mxu0 0.0
  %5400 = vmatpush1.msra.mxu0 0.0
  %5401 = vmatprep.subr.mxu0 0.0
  %5402 = vmatpush1.msra.mxu0 0.0
  %5403 = vmatprep.subr.mxu0 0.0
  %5404 = vmatpush1.msra.mxu0 0.0
  %5405 = vmatprep.subr.mxu0 0.0
  %5406 = vmatpush1.msra.mxu0 0.0
  %5407 = vmatprep.subr.mxu0 0.0
  %5408 = vmatpush1.msra.mxu0 0.0
  %5409 = vmatprep.subr.mxu0 0.0
  %5410 = vmatpush1.msra.mxu0 0.0
  %5411 = vmatprep.mubr.f32.mxu0 0.0
  %5412 = vmatmul.mubr.f32.gmra.mrb[0].mxu0 %v5345
  %v5413 = vpop.f32.mrb[0].mxu0
  %v5414 = vadd.f32 0.0, %v5413
  %v5415 = vpop.f32.mrb[0].mxu0
  %5416 = vdwg.mxu0
  %v5418 = vrot.slane %v5414, 2
  %v5420 = vadd.f32 %v5019, %v5418
  %v5421 = vxor.u32 %v5420, 2147483648
  %v5422 = vmul.f32 %v5421, 1.442695
  %v5423 = vpow.pop %v5422
  %v5424 = vadd.f32 %v5423, 1.0
  %v5425 = vrcp.pop %v5424
  %v5426 = vmul.f32 1.0, %v5425
  %v5427 = vtanh.pop %v5420
  %v5429 = vrot.slane %v5334, 6
  %v5431 = vmul.f32 %v5426, %v5429
  %5433 = vrot.lane.b32.xlu0 %v5427, 96
  %v5434 = vpop.permute.xlu0 %5433
  %v5436 = vmul.f32 %v5426, %v5434
  %5438 = vrot.lane.b32.xlu0 %v5436, 16
  %v5439 = vpop.permute.xlu0 %5438
  %v5441 = vadd.f32 %v5431, %v5439
  %v5442 = vtanh.pop %v5441
  %5444 = vrot.lane.b32.xlu0 %v5442, 32
  %v5445 = vpop.permute.xlu0 %5444
  %v5447 = vmul.f32 %v5426, %v5445
  %v5449 = vrot.slane %v5447, 6
  %5450 = vrot.lane.b32.xlu0 %v5449, 80
  %v5451 = vpop.permute.xlu0 %5450
  %v5452 = vsel %vm5029, %v5451, 0
  %5454 = vmatprep.subr.mxu0 0.0
  %5455 = vmatpush1.msra.mxu0 %v5027
  %5456 = vmatprep.subr.mxu0 0.0
  %5457 = vmatpush1.msra.mxu0 %v5028
  %5458 = vmatprep.subr.mxu0 0.0
  %5459 = vmatpush1.msra.mxu0 0.0
  %5460 = vmatprep.subr.mxu0 0.0
  %5461 = vmatpush1.msra.mxu0 0.0
  %5462 = vmatprep.subr.mxu0 0.0
  %5463 = vmatpush1.msra.mxu0 0.0
  %5464 = vmatprep.subr.mxu0 0.0
  %5465 = vmatpush1.msra.mxu0 0.0
  %5466 = vmatprep.subr.mxu0 0.0
  %5467 = vmatpush1.msra.mxu0 0.0
  %5468 = vmatprep.subr.mxu0 0.0
  %5469 = vmatpush1.msra.mxu0 0.0
  %5470 = vmatprep.subr.mxu0 0.0
  %5471 = vmatpush1.msra.mxu0 0.0
  %5472 = vmatprep.subr.mxu0 0.0
  %5473 = vmatpush1.msra.mxu0 0.0
  %5474 = vmatprep.subr.mxu0 0.0
  %5475 = vmatpush1.msra.mxu0 0.0
  %5476 = vmatprep.subr.mxu0 0.0
  %5477 = vmatpush1.msra.mxu0 0.0
  %5478 = vmatprep.subr.mxu0 0.0
  %5479 = vmatpush1.msra.mxu0 0.0
  %5480 = vmatprep.subr.mxu0 0.0
  %5481 = vmatpush1.msra.mxu0 0.0
  %5482 = vmatprep.subr.mxu0 0.0
  %5483 = vmatpush1.msra.mxu0 0.0
  %5484 = vmatprep.subr.mxu0 0.0
  %5485 = vmatpush1.msra.mxu0 0.0
  %5486 = vmatprep.subr.mxu0 0.0
  %5487 = vmatpush1.msra.mxu0 0.0
  %5488 = vmatprep.subr.mxu0 0.0
  %5489 = vmatpush1.msra.mxu0 0.0
  %5490 = vmatprep.subr.mxu0 0.0
  %5491 = vmatpush1.msra.mxu0 0.0
  %5492 = vmatprep.subr.mxu0 0.0
  %5493 = vmatpush1.msra.mxu0 0.0
  %5494 = vmatprep.subr.mxu0 0.0
  %5495 = vmatpush1.msra.mxu0 0.0
  %5496 = vmatprep.subr.mxu0 0.0
  %5497 = vmatpush1.msra.mxu0 0.0
  %5498 = vmatprep.subr.mxu0 0.0
  %5499 = vmatpush1.msra.mxu0 0.0
  %5500 = vmatprep.subr.mxu0 0.0
  %5501 = vmatpush1.msra.mxu0 0.0
  %5502 = vmatprep.subr.mxu0 0.0
  %5503 = vmatpush1.msra.mxu0 0.0
  %5504 = vmatprep.subr.mxu0 0.0
  %5505 = vmatpush1.msra.mxu0 0.0
  %5506 = vmatprep.subr.mxu0 0.0
  %5507 = vmatpush1.msra.mxu0 0.0
  %5508 = vmatprep.subr.mxu0 0.0
  %5509 = vmatpush1.msra.mxu0 0.0
  %5510 = vmatprep.subr.mxu0 0.0
  %5511 = vmatpush1.msra.mxu0 0.0
  %5512 = vmatprep.subr.mxu0 0.0
  %5513 = vmatpush1.msra.mxu0 0.0
  %5514 = vmatprep.subr.mxu0 0.0
  %5515 = vmatpush1.msra.mxu0 0.0
  %5516 = vmatprep.subr.mxu0 0.0
  %5517 = vmatpush1.msra.mxu0 0.0
  %5518 = vmatprep.mubr.f32.mxu0 0.0
  %5519 = vmatmul.mubr.f32.gmra.mrb[0].mxu0 %v5452
  %v5520 = vpop.f32.mrb[0].mxu0
  %v5521 = vadd.f32 0.0, %v5520
  %v5522 = vpop.f32.mrb[0].mxu0
  %5523 = vdwg.mxu0
  %v5524 = vadd.f32 %v5024, %v5521
  %v5525 = vxor.u32 %v5524, 2147483648
  %v5526 = vmul.f32 %v5525, 1.442695
  %v5527 = vpow.pop %v5526
  %v5528 = vadd.f32 %v5527, 1.0
  %v5529 = vrcp.pop %v5528
  %v5530 = vmul.f32 1.0, %v5529
  %v5531 = vtanh.pop %v5524
  %v5533 = vrot.slane %v5441, 6
  %v5535 = vmul.f32 %v5530, %v5533
  %5537 = vrot.lane.b32.xlu0 %v5531, 96
  %v5538 = vpop.permute.xlu0 %5537
  %v5540 = vmul.f32 %v5530, %v5538
  %5542 = vrot.lane.b32.xlu0 %v5540, 16
  %v5543 = vpop.permute.xlu0 %5542
  %v5545 = vadd.f32 %v5535, %v5543
  %v5546 = vtanh.pop %v5545
  %5548 = vrot.lane.b32.xlu0 %v5546, 32
  %v5549 = vpop.permute.xlu0 %5548
  %v5551 = vmul.f32 %v5530, %v5549
  %5553 = vrot.lane.b32.xlu0 %v5551, 80
  %v5554 = vpop.permute.xlu0 %5553
  %v5555 = vsel %vm5029, %v5554, 0
  %5557 = vmatprep.subr.mxu0 0.0
  %5558 = vmatpush1.msra.mxu0 %v5027
  %5559 = vmatprep.subr.mxu0 0.0
  %5560 = vmatpush1.msra.mxu0 %v5028
  %5561 = vmatprep.subr.mxu0 0.0
  %5562 = vmatpush1.msra.mxu0 0.0
  %5563 = vmatprep.subr.mxu0 0.0
  %5564 = vmatpush1.msra.mxu0 0.0
  %5565 = vmatprep.subr.mxu0 0.0
  %5566 = vmatpush1.msra.mxu0 0.0
  %5567 = vmatprep.subr.mxu0 0.0
  %5568 = vmatpush1.msra.mxu0 0.0
  %5569 = vmatprep.subr.mxu0 0.0
  %5570 = vmatpush1.msra.mxu0 0.0
  %5571 = vmatprep.subr.mxu0 0.0
  %5572 = vmatpush1.msra.mxu0 0.0
  %5573 = vmatprep.subr.mxu0 0.0
  %5574 = vmatpush1.msra.mxu0 0.0
  %5575 = vmatprep.subr.mxu0 0.0
  %5576 = vmatpush1.msra.mxu0 0.0
  %5577 = vmatprep.subr.mxu0 0.0
  %5578 = vmatpush1.msra.mxu0 0.0
  %5579 = vmatprep.subr.mxu0 0.0
  %5580 = vmatpush1.msra.mxu0 0.0
  %5581 = vmatprep.subr.mxu0 0.0
  %5582 = vmatpush1.msra.mxu0 0.0
  %5583 = vmatprep.subr.mxu0 0.0
  %5584 = vmatpush1.msra.mxu0 0.0
  %5585 = vmatprep.subr.mxu0 0.0
  %5586 = vmatpush1.msra.mxu0 0.0
  %5587 = vmatprep.subr.mxu0 0.0
  %5588 = vmatpush1.msra.mxu0 0.0
  %5589 = vmatprep.subr.mxu0 0.0
  %5590 = vmatpush1.msra.mxu0 0.0
  %5591 = vmatprep.subr.mxu0 0.0
  %5592 = vmatpush1.msra.mxu0 0.0
  %5593 = vmatprep.subr.mxu0 0.0
  %5594 = vmatpush1.msra.mxu0 0.0
  %5595 = vmatprep.subr.mxu0 0.0
  %5596 = vmatpush1.msra.mxu0 0.0
  %5597 = vmatprep.subr.mxu0 0.0
  %5598 = vmatpush1.msra.mxu0 0.0
  %5599 = vmatprep.subr.mxu0 0.0
  %5600 = vmatpush1.msra.mxu0 0.0
  %5601 = vmatprep.subr.mxu0 0.0
  %5602 = vmatpush1.msra.mxu0 0.0
  %5603 = vmatprep.subr.mxu0 0.0
  %5604 = vmatpush1.msra.mxu0 0.0
  %5605 = vmatprep.subr.mxu0 0.0
  %5606 = vmatpush1.msra.mxu0 0.0
  %5607 = vmatprep.subr.mxu0 0.0
  %5608 = vmatpush1.msra.mxu0 0.0
  %5609 = vmatprep.subr.mxu0 0.0
  %5610 = vmatpush1.msra.mxu0 0.0
  %5611 = vmatprep.subr.mxu0 0.0
  %5612 = vmatpush1.msra.mxu0 0.0
  %5613 = vmatprep.subr.mxu0 0.0
  %5614 = vmatpush1.msra.mxu0 0.0
  %5615 = vmatprep.subr.mxu0 0.0
  %5616 = vmatpush1.msra.mxu0 0.0
  %5617 = vmatprep.subr.mxu0 0.0
  %5618 = vmatpush1.msra.mxu0 0.0
  %5619 = vmatprep.subr.mxu0 0.0
  %5620 = vmatpush1.msra.mxu0 0.0
  %5621 = vmatprep.mubr.f32.mxu0 0.0
  %5622 = vmatmul.mubr.f32.gmra.mrb[0].mxu0 %v5555
  %v5623 = vpop.f32.mrb[0].mxu0
  %v5624 = vadd.f32 0.0, %v5623
  %v5625 = vpop.f32.mrb[0].mxu0
  %5626 = vdwg.mxu0
  %v5628 = vrot.slane %v5624, 6
  %v5630 = vadd.f32 %v5024, %v5628
  %v5631 = vxor.u32 %v5630, 2147483648
  %v5632 = vmul.f32 %v5631, 1.442695
  %v5633 = vpow.pop %v5632
  %v5634 = vadd.f32 %v5633, 1.0
  %v5635 = vrcp.pop %v5634
  %v5636 = vmul.f32 1.0, %v5635
  %v5637 = vtanh.pop %v5630
  %v5639 = vrot.slane %v5545, 6
  %v5641 = vmul.f32 %v5636, %v5639
  %5643 = vrot.lane.b32.xlu0 %v5637, 96
  %v5644 = vpop.permute.xlu0 %5643
  %v5646 = vmul.f32 %v5636, %v5644
  %5648 = vrot.lane.b32.xlu0 %v5646, 16
  %v5649 = vpop.permute.xlu0 %5648
  %v5651 = vadd.f32 %v5641, %v5649
  %v5652 = vtanh.pop %v5651
  %5654 = vrot.lane.b32.xlu0 %v5652, 32
  %v5655 = vpop.permute.xlu0 %5654
  %v5657 = vmul.f32 %v5636, %v5655
  %v5658 = vsel %vm4878, %v5127, %v5233
  %v5659 = vsel %vm4882, %v5658, %v5340
  %v5660 = vsel %vm4886, %v5659, %v5447
  %v5661 = vsel %vm4878, %v5551, %v5657
  %v5662 = vld [vmem:[%s0 + $0x340] sm:$0xff]
  %v5663 = vld [vmem:[%s0 + $0x348] sm:$0xff]
  %v5664 = vld [vmem:[%s0 + $0x360] sm:$0x1]
  %v5665 = vlaneseq
  %v5666 = vshrl.u32 %v5665, 7
  %v5667 = vsub.s32 0, %v5666
  %v5668 = vrot.slane %v5664, %v5667
  %5671 = vrot.lane.b32.xlu0 %v5660, 80
  %v5672 = vpop.permute.xlu0 %5671
  %5673 = vrot.lane.b32.xlu0 %v5661, 80
  %v5674 = vpop.permute.xlu0 %5673
  %v5675 = vsel %vm5029, %v5672, 0
  %v5677 = vsel %vm5029, %v5674, 0
  %5679 = vmatprep.subr.mxu0 0.0
  %5680 = vmatpush1.msra.mxu0 %v5662
  %5681 = vmatprep.subr.mxu0 0.0
  %5682 = vmatpush1.msra.mxu0 %v5663
  %5683 = vmatprep.subr.mxu0 0.0
  %5684 = vmatpush1.msra.mxu0 0.0
  %5685 = vmatprep.subr.mxu0 0.0
  %5686 = vmatpush1.msra.mxu0 0.0
  %5687 = vmatprep.subr.mxu0 0.0
  %5688 = vmatpush1.msra.mxu0 0.0
  %5689 = vmatprep.subr.mxu0 0.0
  %5690 = vmatpush1.msra.mxu0 0.0
  %5691 = vmatprep.subr.mxu0 0.0
  %5692 = vmatpush1.msra.mxu0 0.0
  %5693 = vmatprep.subr.mxu0 0.0
  %5694 = vmatpush1.msra.mxu0 0.0
  %5695 = vmatprep.subr.mxu0 0.0
  %5696 = vmatpush1.msra.mxu0 0.0
  %5697 = vmatprep.subr.mxu0 0.0
  %5698 = vmatpush1.msra.mxu0 0.0
  %5699 = vmatprep.subr.mxu0 0.0
  %5700 = vmatpush1.msra.mxu0 0.0
  %5701 = vmatprep.subr.mxu0 0.0
  %5702 = vmatpush1.msra.mxu0 0.0
  %5703 = vmatprep.subr.mxu0 0.0
  %5704 = vmatpush1.msra.mxu0 0.0
  %5705 = vmatprep.subr.mxu0 0.0
  %5706 = vmatpush1.msra.mxu0 0.0
  %5707 = vmatprep.subr.mxu0 0.0
  %5708 = vmatpush1.msra.mxu0 0.0
  %5709 = vmatprep.subr.mxu0 0.0
  %5710 = vmatpush1.msra.mxu0 0.0
  %5711 = vmatprep.subr.mxu0 0.0
  %5712 = vmatpush1.msra.mxu0 0.0
  %5713 = vmatprep.subr.mxu0 0.0
  %5714 = vmatpush1.msra.mxu0 0.0
  %5715 = vmatprep.subr.mxu0 0.0
  %5716 = vmatpush1.msra.mxu0 0.0
  %5717 = vmatprep.subr.mxu0 0.0
  %5718 = vmatpush1.msra.mxu0 0.0
  %5719 = vmatprep.subr.mxu0 0.0
  %5720 = vmatpush1.msra.mxu0 0.0
  %5721 = vmatprep.subr.mxu0 0.0
  %5722 = vmatpush1.msra.mxu0 0.0
  %5723 = vmatprep.subr.mxu0 0.0
  %5724 = vmatpush1.msra.mxu0 0.0
  %5725 = vmatprep.subr.mxu0 0.0
  %5726 = vmatpush1.msra.mxu0 0.0
  %5727 = vmatprep.subr.mxu0 0.0
  %5728 = vmatpush1.msra.mxu0 0.0
  %5729 = vmatprep.subr.mxu0 0.0
  %5730 = vmatpush1.msra.mxu0 0.0
  %5731 = vmatprep.subr.mxu0 0.0
  %5732 = vmatpush1.msra.mxu0 0.0
  %5733 = vmatprep.subr.mxu0 0.0
  %5734 = vmatpush1.msra.mxu0 0.0
  %5735 = vmatprep.subr.mxu0 0.0
  %5736 = vmatpush1.msra.mxu0 0.0
  %5737 = vmatprep.subr.mxu0 0.0
  %5738 = vmatpush1.msra.mxu0 0.0
  %5739 = vmatprep.subr.mxu0 0.0
  %5740 = vmatpush1.msra.mxu0 0.0
  %5741 = vmatprep.subr.mxu0 0.0
  %5742 = vmatpush1.msra.mxu0 0.0
  %5743 = vmatprep.mubr.f32.mxu0 0.0
  %5744 = vmatmul.mubr.f32.gmra.mrb[0].mxu0 %v5675
  %v5745 = vpop.f32.mrb[0].mxu0
  %v5746 = vadd.f32 %v5668, %v5745
  %v5747 = vpop.f32.mrb[0].mxu0
  %5748 = vmatprep.mubr.f32.mxu0 0.0
  %5749 = vmatmul.mubr.f32.gmra.mrb[0].mxu0 %v5677
  %v5750 = vpop.f32.mrb[0].mxu0
  %v5751 = vadd.f32 %v5668, %v5750
  %v5752 = vpop.f32.mrb[0].mxu0
  %5753 = vdwg.mxu0
  %v5754 = vld [vmem:[%s0 + $0x350] sm:$0xff]
  %v5755 = vld [vmem:[%s0 + $0x358] sm:$0xff]
  %5756 = vmatprep.subr.mxu0 0.0
  %5757 = vmatpush1.msra.mxu0 %v5754
  %5758 = vmatprep.subr.mxu0 0.0
  %5759 = vmatpush1.msra.mxu0 %v5755
  %5760 = vmatprep.subr.mxu0 0.0
  %5761 = vmatpush1.msra.mxu0 0.0
  %5762 = vmatprep.subr.mxu0 0.0
  %5763 = vmatpush1.msra.mxu0 0.0
  %5764 = vmatprep.subr.mxu0 0.0
  %5765 = vmatpush1.msra.mxu0 0.0
  %5766 = vmatprep.subr.mxu0 0.0
  %5767 = vmatpush1.msra.mxu0 0.0
  %5768 = vmatprep.subr.mxu0 0.0
  %5769 = vmatpush1.msra.mxu0 0.0
  %5770 = vmatprep.subr.mxu0 0.0
  %5771 = vmatpush1.msra.mxu0 0.0
  %5772 = vmatprep.subr.mxu0 0.0
  %5773 = vmatpush1.msra.mxu0 0.0
  %5774 = vmatprep.subr.mxu0 0.0
  %5775 = vmatpush1.msra.mxu0 0.0
  %5776 = vmatprep.subr.mxu0 0.0
  %5777 = vmatpush1.msra.mxu0 0.0
  %5778 = vmatprep.subr.mxu0 0.0
  %5779 = vmatpush1.msra.mxu0 0.0
  %5780 = vmatprep.subr.mxu0 0.0
  %5781 = vmatpush1.msra.mxu0 0.0
  %5782 = vmatprep.subr.mxu0 0.0
  %5783 = vmatpush1.msra.mxu0 0.0
  %5784 = vmatprep.subr.mxu0 0.0
  %5785 = vmatpush1.msra.mxu0 0.0
  %5786 = vmatprep.subr.mxu0 0.0
  %5787 = vmatpush1.msra.mxu0 0.0
  %5788 = vmatprep.subr.mxu0 0.0
  %5789 = vmatpush1.msra.mxu0 0.0
  %5790 = vmatprep.subr.mxu0 0.0
  %5791 = vmatpush1.msra.mxu0 0.0
  %5792 = vmatprep.subr.mxu0 0.0
  %5793 = vmatpush1.msra.mxu0 0.0
  %5794 = vmatprep.subr.mxu0 0.0
  %5795 = vmatpush1.msra.mxu0 0.0
  %5796 = vmatprep.subr.mxu0 0.0
  %5797 = vmatpush1.msra.mxu0 0.0
  %5798 = vmatprep.subr.mxu0 0.0
  %5799 = vmatpush1.msra.mxu0 0.0
  %5800 = vmatprep.subr.mxu0 0.0
  %5801 = vmatpush1.msra.mxu0 0.0
  %5802 = vmatprep.subr.mxu0 0.0
  %5803 = vmatpush1.msra.mxu0 0.0
  %5804 = vmatprep.subr.mxu0 0.0
  %5805 = vmatpush1.msra.mxu0 0.0
  %5806 = vmatprep.subr.mxu0 0.0
  %5807 = vmatpush1.msra.mxu0 0.0
  %5808 = vmatprep.subr.mxu0 0.0
  %5809 = vmatpush1.msra.mxu0 0.0
  %5810 = vmatprep.subr.mxu0 0.0
  %5811 = vmatpush1.msra.mxu0 0.0
  %5812 = vmatprep.subr.mxu0 0.0
  %5813 = vmatpush1.msra.mxu0 0.0
  %5814 = vmatprep.subr.mxu0 0.0
  %5815 = vmatpush1.msra.mxu0 0.0
  %5816 = vmatprep.subr.mxu0 0.0
  %5817 = vmatpush1.msra.mxu0 0.0
  %5818 = vmatprep.subr.mxu0 0.0
  %5819 = vmatpush1.msra.mxu0 0.0
  %5820 = vmatprep.mubr.f32.mxu0 0.0
  %5821 = vmatmul.mubr.f32.gmra.mrb[0].mxu0 %v5031
  %v5822 = vpop.f32.mrb[0].mxu0
  %v5823 = vadd.f32 0.0, %v5822
  %v5824 = vpop.f32.mrb[0].mxu0
  %5825 = vdwg.mxu0
  %v5826 = vadd.f32 %v5746, %v5823
  %v5827 = vxor.u32 %v5826, 2147483648
  %v5828 = vmul.f32 %v5827, 1.442695
  %v5829 = vpow.pop %v5828
  %v5830 = vadd.f32 %v5829, 1.0
  %v5831 = vrcp.pop %v5830
  %v5832 = vmul.f32 1.0, %v5831
  %v5833 = vtanh.pop %v5826
  %v5834 = vmul.f32 %v5832, 0.0
  %5836 = vrot.lane.b32.xlu0 %v5833, 96
  %v5837 = vpop.permute.xlu0 %5836
  %v5839 = vmul.f32 %v5832, %v5837
  %5841 = vrot.lane.b32.xlu0 %v5839, 16
  %v5842 = vpop.permute.xlu0 %5841
  %v5844 = vadd.f32 %v5834, %v5842
  %v5845 = vtanh.pop %v5844
  %5847 = vrot.lane.b32.xlu0 %v5845, 32
  %v5848 = vpop.permute.xlu0 %5847
  %v5850 = vmul.f32 %v5832, %v5848
  %5852 = vrot.lane.b32.xlu0 %v5850, 80
  %v5853 = vpop.permute.xlu0 %5852
  %v5854 = vsel %vm5029, %v5853, 0
  %5856 = vmatprep.subr.mxu0 0.0
  %5857 = vmatpush1.msra.mxu0 %v5754
  %5858 = vmatprep.subr.mxu0 0.0
  %5859 = vmatpush1.msra.mxu0 %v5755
  %5860 = vmatprep.subr.mxu0 0.0
  %5861 = vmatpush1.msra.mxu0 0.0
  %5862 = vmatprep.subr.mxu0 0.0
  %5863 = vmatpush1.msra.mxu0 0.0
  %5864 = vmatprep.subr.mxu0 0.0
  %5865 = vmatpush1.msra.mxu0 0.0
  %5866 = vmatprep.subr.mxu0 0.0
  %5867 = vmatpush1.msra.mxu0 0.0
  %5868 = vmatprep.subr.mxu0 0.0
  %5869 = vmatpush1.msra.mxu0 0.0
  %5870 = vmatprep.subr.mxu0 0.0
  %5871 = vmatpush1.msra.mxu0 0.0
  %5872 = vmatprep.subr.mxu0 0.0
  %5873 = vmatpush1.msra.mxu0 0.0
  %5874 = vmatprep.subr.mxu0 0.0
  %5875 = vmatpush1.msra.mxu0 0.0
  %5876 = vmatprep.subr.mxu0 0.0
  %5877 = vmatpush1.msra.mxu0 0.0
  %5878 = vmatprep.subr.mxu0 0.0
  %5879 = vmatpush1.msra.mxu0 0.0
  %5880 = vmatprep.subr.mxu0 0.0
  %5881 = vmatpush1.msra.mxu0 0.0
  %5882 = vmatprep.subr.mxu0 0.0
  %5883 = vmatpush1.msra.mxu0 0.0
  %5884 = vmatprep.subr.mxu0 0.0
  %5885 = vmatpush1.msra.mxu0 0.0
  %5886 = vmatprep.subr.mxu0 0.0
  %5887 = vmatpush1.msra.mxu0 0.0
  %5888 = vmatprep.subr.mxu0 0.0
  %5889 = vmatpush1.msra.mxu0 0.0
  %5890 = vmatprep.subr.mxu0 0.0
  %5891 = vmatpush1.msra.mxu0 0.0
  %5892 = vmatprep.subr.mxu0 0.0
  %5893 = vmatpush1.msra.mxu0 0.0
  %5894 = vmatprep.subr.mxu0 0.0
  %5895 = vmatpush1.msra.mxu0 0.0
  %5896 = vmatprep.subr.mxu0 0.0
  %5897 = vmatpush1.msra.mxu0 0.0
  %5898 = vmatprep.subr.mxu0 0.0
  %5899 = vmatpush1.msra.mxu0 0.0
  %5900 = vmatprep.subr.mxu0 0.0
  %5901 = vmatpush1.msra.mxu0 0.0
  %5902 = vmatprep.subr.mxu0 0.0
  %5903 = vmatpush1.msra.mxu0 0.0
  %5904 = vmatprep.subr.mxu0 0.0
  %5905 = vmatpush1.msra.mxu0 0.0
  %5906 = vmatprep.subr.mxu0 0.0
  %5907 = vmatpush1.msra.mxu0 0.0
  %5908 = vmatprep.subr.mxu0 0.0
  %5909 = vmatpush1.msra.mxu0 0.0
  %5910 = vmatprep.subr.mxu0 0.0
  %5911 = vmatpush1.msra.mxu0 0.0
  %5912 = vmatprep.subr.mxu0 0.0
  %5913 = vmatpush1.msra.mxu0 0.0
  %5914 = vmatprep.subr.mxu0 0.0
  %5915 = vmatpush1.msra.mxu0 0.0
  %5916 = vmatprep.subr.mxu0 0.0
  %5917 = vmatpush1.msra.mxu0 0.0
  %5918 = vmatprep.subr.mxu0 0.0
  %5919 = vmatpush1.msra.mxu0 0.0
  %5920 = vmatprep.mubr.f32.mxu0 0.0
  %5921 = vmatmul.mubr.f32.gmra.mrb[0].mxu0 %v5854
  %v5922 = vpop.f32.mrb[0].mxu0
  %v5923 = vadd.f32 0.0, %v5922
  %v5924 = vpop.f32.mrb[0].mxu0
  %5925 = vdwg.mxu0
  %v5927 = vrot.slane %v5923, 6
  %v5929 = vadd.f32 %v5746, %v5927
  %v5930 = vxor.u32 %v5929, 2147483648
  %v5931 = vmul.f32 %v5930, 1.442695
  %v5932 = vpow.pop %v5931
  %v5933 = vadd.f32 %v5932, 1.0
  %v5934 = vrcp.pop %v5933
  %v5935 = vmul.f32 1.0, %v5934
  %v5936 = vtanh.pop %v5929
  %v5938 = vrot.slane %v5844, 6
  %v5940 = vmul.f32 %v5935, %v5938
  %5942 = vrot.lane.b32.xlu0 %v5936, 96
  %v5943 = vpop.permute.xlu0 %5942
  %v5945 = vmul.f32 %v5935, %v5943
  %5947 = vrot.lane.b32.xlu0 %v5945, 16
  %v5948 = vpop.permute.xlu0 %5947
  %v5950 = vadd.f32 %v5940, %v5948
  %v5951 = vtanh.pop %v5950
  %5953 = vrot.lane.b32.xlu0 %v5951, 32
  %v5954 = vpop.permute.xlu0 %5953
  %v5956 = vmul.f32 %v5935, %v5954
  %v5958 = vrot.slane %v5956, 2
  %5959 = vrot.lane.b32.xlu0 %v5958, 80
  %v5960 = vpop.permute.xlu0 %5959
  %v5961 = vsel %vm5029, %v5960, 0
  %5963 = vmatprep.subr.mxu0 0.0
  %5964 = vmatpush1.msra.mxu0 %v5754
  %5965 = vmatprep.subr.mxu0 0.0
  %5966 = vmatpush1.msra.mxu0 %v5755
  %5967 = vmatprep.subr.mxu0 0.0
  %5968 = vmatpush1.msra.mxu0 0.0
  %5969 = vmatprep.subr.mxu0 0.0
  %5970 = vmatpush1.msra.mxu0 0.0
  %5971 = vmatprep.subr.mxu0 0.0
  %5972 = vmatpush1.msra.mxu0 0.0
  %5973 = vmatprep.subr.mxu0 0.0
  %5974 = vmatpush1.msra.mxu0 0.0
  %5975 = vmatprep.subr.mxu0 0.0
  %5976 = vmatpush1.msra.mxu0 0.0
  %5977 = vmatprep.subr.mxu0 0.0
  %5978 = vmatpush1.msra.mxu0 0.0
  %5979 = vmatprep.subr.mxu0 0.0
  %5980 = vmatpush1.msra.mxu0 0.0
  %5981 = vmatprep.subr.mxu0 0.0
  %5982 = vmatpush1.msra.mxu0 0.0
  %5983 = vmatprep.subr.mxu0 0.0
  %5984 = vmatpush1.msra.mxu0 0.0
  %5985 = vmatprep.subr.mxu0 0.0
  %5986 = vmatpush1.msra.mxu0 0.0
  %5987 = vmatprep.subr.mxu0 0.0
  %5988 = vmatpush1.msra.mxu0 0.0
  %5989 = vmatprep.subr.mxu0 0.0
  %5990 = vmatpush1.msra.mxu0 0.0
  %5991 = vmatprep.subr.mxu0 0.0
  %5992 = vmatpush1.msra.mxu0 0.0
  %5993 = vmatprep.subr.mxu0 0.0
  %5994 = vmatpush1.msra.mxu0 0.0
  %5995 = vmatprep.subr.mxu0 0.0
  %5996 = vmatpush1.msra.mxu0 0.0
  %5997 = vmatprep.subr.mxu0 0.0
  %5998 = vmatpush1.msra.mxu0 0.0
  %5999 = vmatprep.subr.mxu0 0.0
  %6000 = vmatpush1.msra.mxu0 0.0
  %6001 = vmatprep.subr.mxu0 0.0
  %6002 = vmatpush1.msra.mxu0 0.0
  %6003 = vmatprep.subr.mxu0 0.0
  %6004 = vmatpush1.msra.mxu0 0.0
  %6005 = vmatprep.subr.mxu0 0.0
  %6006 = vmatpush1.msra.mxu0 0.0
  %6007 = vmatprep.subr.mxu0 0.0
  %6008 = vmatpush1.msra.mxu0 0.0
  %6009 = vmatprep.subr.mxu0 0.0
  %6010 = vmatpush1.msra.mxu0 0.0
  %6011 = vmatprep.subr.mxu0 0.0
  %6012 = vmatpush1.msra.mxu0 0.0
  %6013 = vmatprep.subr.mxu0 0.0
  %6014 = vmatpush1.msra.mxu0 0.0
  %6015 = vmatprep.subr.mxu0 0.0
  %6016 = vmatpush1.msra.mxu0 0.0
  %6017 = vmatprep.subr.mxu0 0.0
  %6018 = vmatpush1.msra.mxu0 0.0
  %6019 = vmatprep.subr.mxu0 0.0
  %6020 = vmatpush1.msra.mxu0 0.0
  %6021 = vmatprep.subr.mxu0 0.0
  %6022 = vmatpush1.msra.mxu0 0.0
  %6023 = vmatprep.subr.mxu0 0.0
  %6024 = vmatpush1.msra.mxu0 0.0
  %6025 = vmatprep.subr.mxu0 0.0
  %6026 = vmatpush1.msra.mxu0 0.0
  %6027 = vmatprep.mubr.f32.mxu0 0.0
  %6028 = vmatmul.mubr.f32.gmra.mrb[0].mxu0 %v5961
  %v6029 = vpop.f32.mrb[0].mxu0
  %v6030 = vadd.f32 0.0, %v6029
  %v6031 = vpop.f32.mrb[0].mxu0
  %6032 = vdwg.mxu0
  %v6034 = vrot.slane %v6030, 4
  %v6036 = vadd.f32 %v5746, %v6034
  %v6037 = vxor.u32 %v6036, 2147483648
  %v6038 = vmul.f32 %v6037, 1.442695
  %v6039 = vpow.pop %v6038
  %v6040 = vadd.f32 %v6039, 1.0
  %v6041 = vrcp.pop %v6040
  %v6042 = vmul.f32 1.0, %v6041
  %v6043 = vtanh.pop %v6036
  %v6045 = vrot.slane %v5950, 6
  %v6047 = vmul.f32 %v6042, %v6045
  %6049 = vrot.lane.b32.xlu0 %v6043, 96
  %v6050 = vpop.permute.xlu0 %6049
  %v6052 = vmul.f32 %v6042, %v6050
  %6054 = vrot.lane.b32.xlu0 %v6052, 16
  %v6055 = vpop.permute.xlu0 %6054
  %v6057 = vadd.f32 %v6047, %v6055
  %v6058 = vtanh.pop %v6057
  %6060 = vrot.lane.b32.xlu0 %v6058, 32
  %v6061 = vpop.permute.xlu0 %6060
  %v6063 = vmul.f32 %v6042, %v6061
  %v6065 = vrot.slane %v6063, 4
  %6066 = vrot.lane.b32.xlu0 %v6065, 80
  %v6067 = vpop.permute.xlu0 %6066
  %v6068 = vsel %vm5029, %v6067, 0
  %6070 = vmatprep.subr.mxu0 0.0
  %6071 = vmatpush1.msra.mxu0 %v5754
  %6072 = vmatprep.subr.mxu0 0.0
  %6073 = vmatpush1.msra.mxu0 %v5755
  %6074 = vmatprep.subr.mxu0 0.0
  %6075 = vmatpush1.msra.mxu0 0.0
  %6076 = vmatprep.subr.mxu0 0.0
  %6077 = vmatpush1.msra.mxu0 0.0
  %6078 = vmatprep.subr.mxu0 0.0
  %6079 = vmatpush1.msra.mxu0 0.0
  %6080 = vmatprep.subr.mxu0 0.0
  %6081 = vmatpush1.msra.mxu0 0.0
  %6082 = vmatprep.subr.mxu0 0.0
  %6083 = vmatpush1.msra.mxu0 0.0
  %6084 = vmatprep.subr.mxu0 0.0
  %6085 = vmatpush1.msra.mxu0 0.0
  %6086 = vmatprep.subr.mxu0 0.0
  %6087 = vmatpush1.msra.mxu0 0.0
  %6088 = vmatprep.subr.mxu0 0.0
  %6089 = vmatpush1.msra.mxu0 0.0
  %6090 = vmatprep.subr.mxu0 0.0
  %6091 = vmatpush1.msra.mxu0 0.0
  %6092 = vmatprep.subr.mxu0 0.0
  %6093 = vmatpush1.msra.mxu0 0.0
  %6094 = vmatprep.subr.mxu0 0.0
  %6095 = vmatpush1.msra.mxu0 0.0
  %6096 = vmatprep.subr.mxu0 0.0
  %6097 = vmatpush1.msra.mxu0 0.0
  %6098 = vmatprep.subr.mxu0 0.0
  %6099 = vmatpush1.msra.mxu0 0.0
  %6100 = vmatprep.subr.mxu0 0.0
  %6101 = vmatpush1.msra.mxu0 0.0
  %6102 = vmatprep.subr.mxu0 0.0
  %6103 = vmatpush1.msra.mxu0 0.0
  %6104 = vmatprep.subr.mxu0 0.0
  %6105 = vmatpush1.msra.mxu0 0.0
  %6106 = vmatprep.subr.mxu0 0.0
  %6107 = vmatpush1.msra.mxu0 0.0
  %6108 = vmatprep.subr.mxu0 0.0
  %6109 = vmatpush1.msra.mxu0 0.0
  %6110 = vmatprep.subr.mxu0 0.0
  %6111 = vmatpush1.msra.mxu0 0.0
  %6112 = vmatprep.subr.mxu0 0.0
  %6113 = vmatpush1.msra.mxu0 0.0
  %6114 = vmatprep.subr.mxu0 0.0
  %6115 = vmatpush1.msra.mxu0 0.0
  %6116 = vmatprep.subr.mxu0 0.0
  %6117 = vmatpush1.msra.mxu0 0.0
  %6118 = vmatprep.subr.mxu0 0.0
  %6119 = vmatpush1.msra.mxu0 0.0
  %6120 = vmatprep.subr.mxu0 0.0
  %6121 = vmatpush1.msra.mxu0 0.0
  %6122 = vmatprep.subr.mxu0 0.0
  %6123 = vmatpush1.msra.mxu0 0.0
  %6124 = vmatprep.subr.mxu0 0.0
  %6125 = vmatpush1.msra.mxu0 0.0
  %6126 = vmatprep.subr.mxu0 0.0
  %6127 = vmatpush1.msra.mxu0 0.0
  %6128 = vmatprep.subr.mxu0 0.0
  %6129 = vmatpush1.msra.mxu0 0.0
  %6130 = vmatprep.subr.mxu0 0.0
  %6131 = vmatpush1.msra.mxu0 0.0
  %6132 = vmatprep.subr.mxu0 0.0
  %6133 = vmatpush1.msra.mxu0 0.0
  %6134 = vmatprep.mubr.f32.mxu0 0.0
  %6135 = vmatmul.mubr.f32.gmra.mrb[0].mxu0 %v6068
  %v6136 = vpop.f32.mrb[0].mxu0
  %v6137 = vadd.f32 0.0, %v6136
  %v6138 = vpop.f32.mrb[0].mxu0
  %6139 = vdwg.mxu0
  %v6141 = vrot.slane %v6137, 2
  %v6143 = vadd.f32 %v5746, %v6141
  %v6144 = vxor.u32 %v6143, 2147483648
  %v6145 = vmul.f32 %v6144, 1.442695
  %v6146 = vpow.pop %v6145
  %v6147 = vadd.f32 %v6146, 1.0
  %v6148 = vrcp.pop %v6147
  %v6149 = vmul.f32 1.0, %v6148
  %v6150 = vtanh.pop %v6143
  %v6152 = vrot.slane %v6057, 6
  %v6154 = vmul.f32 %v6149, %v6152
  %6156 = vrot.lane.b32.xlu0 %v6150, 96
  %v6157 = vpop.permute.xlu0 %6156
  %v6159 = vmul.f32 %v6149, %v6157
  %6161 = vrot.lane.b32.xlu0 %v6159, 16
  %v6162 = vpop.permute.xlu0 %6161
  %v6164 = vadd.f32 %v6154, %v6162
  %v6165 = vtanh.pop %v6164
  %6167 = vrot.lane.b32.xlu0 %v6165, 32
  %v6168 = vpop.permute.xlu0 %6167
  %v6170 = vmul.f32 %v6149, %v6168
  %v6172 = vrot.slane %v6170, 6
  %6173 = vrot.lane.b32.xlu0 %v6172, 80
  %v6174 = vpop.permute.xlu0 %6173
  %v6175 = vsel %vm5029, %v6174, 0
  %6177 = vmatprep.subr.mxu0 0.0
  %6178 = vmatpush1.msra.mxu0 %v5754
  %6179 = vmatprep.subr.mxu0 0.0
  %6180 = vmatpush1.msra.mxu0 %v5755
  %6181 = vmatprep.subr.mxu0 0.0
  %6182 = vmatpush1.msra.mxu0 0.0
  %6183 = vmatprep.subr.mxu0 0.0
  %6184 = vmatpush1.msra.mxu0 0.0
  %6185 = vmatprep.subr.mxu0 0.0
  %6186 = vmatpush1.msra.mxu0 0.0
  %6187 = vmatprep.subr.mxu0 0.0
  %6188 = vmatpush1.msra.mxu0 0.0
  %6189 = vmatprep.subr.mxu0 0.0
  %6190 = vmatpush1.msra.mxu0 0.0
  %6191 = vmatprep.subr.mxu0 0.0
  %6192 = vmatpush1.msra.mxu0 0.0
  %6193 = vmatprep.subr.mxu0 0.0
  %6194 = vmatpush1.msra.mxu0 0.0
  %6195 = vmatprep.subr.mxu0 0.0
  %6196 = vmatpush1.msra.mxu0 0.0
  %6197 = vmatprep.subr.mxu0 0.0
  %6198 = vmatpush1.msra.mxu0 0.0
  %6199 = vmatprep.subr.mxu0 0.0
  %6200 = vmatpush1.msra.mxu0 0.0
  %6201 = vmatprep.subr.mxu0 0.0
  %6202 = vmatpush1.msra.mxu0 0.0
  %6203 = vmatprep.subr.mxu0 0.0
  %6204 = vmatpush1.msra.mxu0 0.0
  %6205 = vmatprep.subr.mxu0 0.0
  %6206 = vmatpush1.msra.mxu0 0.0
  %6207 = vmatprep.subr.mxu0 0.0
  %6208 = vmatpush1.msra.mxu0 0.0
  %6209 = vmatprep.subr.mxu0 0.0
  %6210 = vmatpush1.msra.mxu0 0.0
  %6211 = vmatprep.subr.mxu0 0.0
  %6212 = vmatpush1.msra.mxu0 0.0
  %6213 = vmatprep.subr.mxu0 0.0
  %6214 = vmatpush1.msra.mxu0 0.0
  %6215 = vmatprep.subr.mxu0 0.0
  %6216 = vmatpush1.msra.mxu0 0.0
  %6217 = vmatprep.subr.mxu0 0.0
  %6218 = vmatpush1.msra.mxu0 0.0
  %6219 = vmatprep.subr.mxu0 0.0
  %6220 = vmatpush1.msra.mxu0 0.0
  %6221 = vmatprep.subr.mxu0 0.0
  %6222 = vmatpush1.msra.mxu0 0.0
  %6223 = vmatprep.subr.mxu0 0.0
  %6224 = vmatpush1.msra.mxu0 0.0
  %6225 = vmatprep.subr.mxu0 0.0
  %6226 = vmatpush1.msra.mxu0 0.0
  %6227 = vmatprep.subr.mxu0 0.0
  %6228 = vmatpush1.msra.mxu0 0.0
  %6229 = vmatprep.subr.mxu0 0.0
  %6230 = vmatpush1.msra.mxu0 0.0
  %6231 = vmatprep.subr.mxu0 0.0
  %6232 = vmatpush1.msra.mxu0 0.0
  %6233 = vmatprep.subr.mxu0 0.0
  %6234 = vmatpush1.msra.mxu0 0.0
  %6235 = vmatprep.subr.mxu0 0.0
  %6236 = vmatpush1.msra.mxu0 0.0
  %6237 = vmatprep.subr.mxu0 0.0
  %6238 = vmatpush1.msra.mxu0 0.0
  %6239 = vmatprep.subr.mxu0 0.0
  %6240 = vmatpush1.msra.mxu0 0.0
  %6241 = vmatprep.mubr.f32.mxu0 0.0
  %6242 = vmatmul.mubr.f32.gmra.mrb[0].mxu0 %v6175
  %v6243 = vpop.f32.mrb[0].mxu0
  %v6244 = vadd.f32 0.0, %v6243
  %v6245 = vpop.f32.mrb[0].mxu0
  %6246 = vdwg.mxu0
  %v6247 = vadd.f32 %v5751, %v6244
  %v6248 = vxor.u32 %v6247, 2147483648
  %v6249 = vmul.f32 %v6248, 1.442695
  %v6250 = vpow.pop %v6249
  %v6251 = vadd.f32 %v6250, 1.0
  %v6252 = vrcp.pop %v6251
  %v6253 = vmul.f32 1.0, %v6252
  %v6254 = vtanh.pop %v6247
  %v6256 = vrot.slane %v6164, 6
  %v6258 = vmul.f32 %v6253, %v6256
  %6260 = vrot.lane.b32.xlu0 %v6254, 96
  %v6261 = vpop.permute.xlu0 %6260
  %v6263 = vmul.f32 %v6253, %v6261
  %6265 = vrot.lane.b32.xlu0 %v6263, 16
  %v6266 = vpop.permute.xlu0 %6265
  %v6268 = vadd.f32 %v6258, %v6266
  %v6269 = vtanh.pop %v6268
  %6271 = vrot.lane.b32.xlu0 %v6269, 32
  %v6272 = vpop.permute.xlu0 %6271
  %v6274 = vmul.f32 %v6253, %v6272
  %6276 = vrot.lane.b32.xlu0 %v6274, 80
  %v6277 = vpop.permute.xlu0 %6276
  %v6278 = vsel %vm5029, %v6277, 0
  %6280 = vmatprep.subr.mxu0 0.0
  %6281 = vmatpush1.msra.mxu0 %v5754
  %6282 = vmatprep.subr.mxu0 0.0
  %6283 = vmatpush1.msra.mxu0 %v5755
  %6284 = vmatprep.subr.mxu0 0.0
  %6285 = vmatpush1.msra.mxu0 0.0
  %6286 = vmatprep.subr.mxu0 0.0
  %6287 = vmatpush1.msra.mxu0 0.0
  %6288 = vmatprep.subr.mxu0 0.0
  %6289 = vmatpush1.msra.mxu0 0.0
  %6290 = vmatprep.subr.mxu0 0.0
  %6291 = vmatpush1.msra.mxu0 0.0
  %6292 = vmatprep.subr.mxu0 0.0
  %6293 = vmatpush1.msra.mxu0 0.0
  %6294 = vmatprep.subr.mxu0 0.0
  %6295 = vmatpush1.msra.mxu0 0.0
  %6296 = vmatprep.subr.mxu0 0.0
  %6297 = vmatpush1.msra.mxu0 0.0
  %6298 = vmatprep.subr.mxu0 0.0
  %6299 = vmatpush1.msra.mxu0 0.0
  %6300 = vmatprep.subr.mxu0 0.0
  %6301 = vmatpush1.msra.mxu0 0.0
  %6302 = vmatprep.subr.mxu0 0.0
  %6303 = vmatpush1.msra.mxu0 0.0
  %6304 = vmatprep.subr.mxu0 0.0
  %6305 = vmatpush1.msra.mxu0 0.0
  %6306 = vmatprep.subr.mxu0 0.0
  %6307 = vmatpush1.msra.mxu0 0.0
  %6308 = vmatprep.subr.mxu0 0.0
  %6309 = vmatpush1.msra.mxu0 0.0
  %6310 = vmatprep.subr.mxu0 0.0
  %6311 = vmatpush1.msra.mxu0 0.0
  %6312 = vmatprep.subr.mxu0 0.0
  %6313 = vmatpush1.msra.mxu0 0.0
  %6314 = vmatprep.subr.mxu0 0.0
  %6315 = vmatpush1.msra.mxu0 0.0
  %6316 = vmatprep.subr.mxu0 0.0
  %6317 = vmatpush1.msra.mxu0 0.0
  %6318 = vmatprep.subr.mxu0 0.0
  %6319 = vmatpush1.msra.mxu0 0.0
  %6320 = vmatprep.subr.mxu0 0.0
  %6321 = vmatpush1.msra.mxu0 0.0
  %6322 = vmatprep.subr.mxu0 0.0
  %6323 = vmatpush1.msra.mxu0 0.0
  %6324 = vmatprep.subr.mxu0 0.0
  %6325 = vmatpush1.msra.mxu0 0.0
  %6326 = vmatprep.subr.mxu0 0.0
  %6327 = vmatpush1.msra.mxu0 0.0
  %6328 = vmatprep.subr.mxu0 0.0
  %6329 = vmatpush1.msra.mxu0 0.0
  %6330 = vmatprep.subr.mxu0 0.0
  %6331 = vmatpush1.msra.mxu0 0.0
  %6332 = vmatprep.subr.mxu0 0.0
  %6333 = vmatpush1.msra.mxu0 0.0
  %6334 = vmatprep.subr.mxu0 0.0
  %6335 = vmatpush1.msra.mxu0 0.0
  %6336 = vmatprep.subr.mxu0 0.0
  %6337 = vmatpush1.msra.mxu0 0.0
  %6338 = vmatprep.subr.mxu0 0.0
  %6339 = vmatpush1.msra.mxu0 0.0
  %6340 = vmatprep.subr.mxu0 0.0
  %6341 = vmatpush1.msra.mxu0 0.0
  %6342 = vmatprep.subr.mxu0 0.0
  %6343 = vmatpush1.msra.mxu0 0.0
  %6344 = vmatprep.mubr.f32.mxu0 0.0
  %6345 = vmatmul.mubr.f32.gmra.mrb[0].mxu0 %v6278
  %v6346 = vpop.f32.mrb[0].mxu0
  %v6347 = vadd.f32 0.0, %v6346
  %v6348 = vpop.f32.mrb[0].mxu0
  %6349 = vdwg.mxu0
  %v6351 = vrot.slane %v6347, 6
  %v6353 = vadd.f32 %v5751, %v6351
  %v6354 = vxor.u32 %v6353, 2147483648
  %v6355 = vmul.f32 %v6354, 1.442695
  %v6356 = vpow.pop %v6355
  %v6357 = vadd.f32 %v6356, 1.0
  %v6358 = vrcp.pop %v6357
  %v6359 = vmul.f32 1.0, %v6358
  %v6360 = vtanh.pop %v6353
  %v6362 = vrot.slane %v6268, 6
  %v6364 = vmul.f32 %v6359, %v6362
  %6366 = vrot.lane.b32.xlu0 %v6360, 96
  %v6367 = vpop.permute.xlu0 %6366
  %v6369 = vmul.f32 %v6359, %v6367
  %6371 = vrot.lane.b32.xlu0 %v6369, 16
  %v6372 = vpop.permute.xlu0 %6371
  %v6374 = vadd.f32 %v6364, %v6372
  %v6375 = vtanh.pop %v6374
  %6377 = vrot.lane.b32.xlu0 %v6375, 32
  %v6378 = vpop.permute.xlu0 %6377
  %v6380 = vmul.f32 %v6359, %v6378
  %v6381 = vld [vmem:[%s0 + $0x368] sm:$0xff]
  %v6382 = vld [vmem:[%s0 + $0x370] sm:$0xff]
  %v6383 = vld [vmem:[%s0 + $0x378] sm:$0xff]
  %v6384 = vld [vmem:[%s0 + $0x380] sm:$0xff]
  %v6385 = vld [vmem:[%s0 + $0x388] sm:$0xff]
  %v6386 = vld [vmem:[%s0 + $0x390] sm:$0xff]
  %v6387 = vld [vmem:[%s0 + $0x398] sm:$0xff]
  %v6388 = vld [vmem:[%s0 + $0x3a0] sm:$0xff]
  %v6390 = vrot.slane %v5657, 2
  %6391 = vrot.lane.b32.xlu0 %v6390, 80
  %v6392 = vpop.permute.xlu0 %6391
  %v6393 = vsel %vm5029, %v6392, 0
  %6395 = vmatprep.subr.mxu0 0.0
  %6396 = vmatpush1.msra.mxu0 %v6385
  %6397 = vmatprep.subr.mxu0 0.0
  %6398 = vmatpush1.msra.mxu0 %v6386
  %6399 = vmatprep.subr.mxu0 0.0
  %6400 = vmatpush1.msra.mxu0 0.0
  %6401 = vmatprep.subr.mxu0 0.0
  %6402 = vmatpush1.msra.mxu0 0.0
  %6403 = vmatprep.subr.mxu0 0.0
  %6404 = vmatpush1.msra.mxu0 0.0
  %6405 = vmatprep.subr.mxu0 0.0
  %6406 = vmatpush1.msra.mxu0 0.0
  %6407 = vmatprep.subr.mxu0 0.0
  %6408 = vmatpush1.msra.mxu0 0.0
  %6409 = vmatprep.subr.mxu0 0.0
  %6410 = vmatpush1.msra.mxu0 0.0
  %6411 = vmatprep.subr.mxu0 0.0
  %6412 = vmatpush1.msra.mxu0 0.0
  %6413 = vmatprep.subr.mxu0 0.0
  %6414 = vmatpush1.msra.mxu0 0.0
  %6415 = vmatprep.subr.mxu0 0.0
  %6416 = vmatpush1.msra.mxu0 0.0
  %6417 = vmatprep.subr.mxu0 0.0
  %6418 = vmatpush1.msra.mxu0 0.0
  %6419 = vmatprep.subr.mxu0 0.0
  %6420 = vmatpush1.msra.mxu0 0.0
  %6421 = vmatprep.subr.mxu0 0.0
  %6422 = vmatpush1.msra.mxu0 0.0
  %6423 = vmatprep.subr.mxu0 0.0
  %6424 = vmatpush1.msra.mxu0 0.0
  %6425 = vmatprep.subr.mxu0 0.0
  %6426 = vmatpush1.msra.mxu0 0.0
  %6427 = vmatprep.subr.mxu0 0.0
  %6428 = vmatpush1.msra.mxu0 0.0
  %6429 = vmatprep.subr.mxu0 0.0
  %6430 = vmatpush1.msra.mxu0 0.0
  %6431 = vmatprep.subr.mxu0 0.0
  %6432 = vmatpush1.msra.mxu0 0.0
  %6433 = vmatprep.subr.mxu0 0.0
  %6434 = vmatpush1.msra.mxu0 0.0
  %6435 = vmatprep.subr.mxu0 0.0
  %6436 = vmatpush1.msra.mxu0 0.0
  %6437 = vmatprep.subr.mxu0 0.0
  %6438 = vmatpush1.msra.mxu0 0.0
  %6439 = vmatprep.subr.mxu0 0.0
  %6440 = vmatpush1.msra.mxu0 0.0
  %6441 = vmatprep.subr.mxu0 0.0
  %6442 = vmatpush1.msra.mxu0 0.0
  %6443 = vmatprep.subr.mxu0 0.0
  %6444 = vmatpush1.msra.mxu0 0.0
  %6445 = vmatprep.subr.mxu0 0.0
  %6446 = vmatpush1.msra.mxu0 0.0
  %6447 = vmatprep.subr.mxu0 0.0
  %6448 = vmatpush1.msra.mxu0 0.0
  %6449 = vmatprep.subr.mxu0 0.0
  %6450 = vmatpush1.msra.mxu0 0.0
  %6451 = vmatprep.subr.mxu0 0.0
  %6452 = vmatpush1.msra.mxu0 0.0
  %6453 = vmatprep.subr.mxu0 0.0
  %6454 = vmatpush1.msra.mxu0 0.0
  %6455 = vmatprep.subr.mxu0 0.0
  %6456 = vmatpush1.msra.mxu0 0.0
  %6457 = vmatprep.subr.mxu0 0.0
  %6458 = vmatpush1.msra.mxu0 0.0
  %6459 = vmatprep.mubr.f32.mxu0 0.0
  %6460 = vmatmul.mubr.f32.gmra.mrb[0].mxu0 %v6393
  %v6461 = vpop.f32.mrb[0].mxu0
  %v6462 = vadd.f32 0.0, %v6461
  %v6463 = vpop.f32.mrb[0].mxu0
  %6464 = vdwg.mxu0
  %v6466 = vsel %vm153, %v4933, 0
  %6468 = vmatprep.subr.mxu0 0.0
  %6469 = vmatpush1.msra.mxu0 %v6381
  %6470 = vmatprep.subr.mxu0 0.0
  %6471 = vmatpush1.msra.mxu0 %v6382
  %6472 = vmatprep.subr.mxu0 0.0
  %6473 = vmatpush1.msra.mxu0 %v6383
  %6474 = vmatprep.subr.mxu0 0.0
  %6475 = vmatpush1.msra.mxu0 %v6384
  %6476 = vmatprep.subr.mxu0 0.0
  %6477 = vmatpush1.msra.mxu0 0.0
  %6478 = vmatprep.subr.mxu0 0.0
  %6479 = vmatpush1.msra.mxu0 0.0
  %6480 = vmatprep.subr.mxu0 0.0
  %6481 = vmatpush1.msra.mxu0 0.0
  %6482 = vmatprep.subr.mxu0 0.0
  %6483 = vmatpush1.msra.mxu0 0.0
  %6484 = vmatprep.subr.mxu0 0.0
  %6485 = vmatpush1.msra.mxu0 0.0
  %6486 = vmatprep.subr.mxu0 0.0
  %6487 = vmatpush1.msra.mxu0 0.0
  %6488 = vmatprep.subr.mxu0 0.0
  %6489 = vmatpush1.msra.mxu0 0.0
  %6490 = vmatprep.subr.mxu0 0.0
  %6491 = vmatpush1.msra.mxu0 0.0
  %6492 = vmatprep.subr.mxu0 0.0
  %6493 = vmatpush1.msra.mxu0 0.0
  %6494 = vmatprep.subr.mxu0 0.0
  %6495 = vmatpush1.msra.mxu0 0.0
  %6496 = vmatprep.subr.mxu0 0.0
  %6497 = vmatpush1.msra.mxu0 0.0
  %6498 = vmatprep.subr.mxu0 0.0
  %6499 = vmatpush1.msra.mxu0 0.0
  %6500 = vmatprep.subr.mxu0 0.0
  %6501 = vmatpush1.msra.mxu0 0.0
  %6502 = vmatprep.subr.mxu0 0.0
  %6503 = vmatpush1.msra.mxu0 0.0
  %6504 = vmatprep.subr.mxu0 0.0
  %6505 = vmatpush1.msra.mxu0 0.0
  %6506 = vmatprep.subr.mxu0 0.0
  %6507 = vmatpush1.msra.mxu0 0.0
  %6508 = vmatprep.subr.mxu0 0.0
  %6509 = vmatpush1.msra.mxu0 0.0
  %6510 = vmatprep.subr.mxu0 0.0
  %6511 = vmatpush1.msra.mxu0 0.0
  %6512 = vmatprep.subr.mxu0 0.0
  %6513 = vmatpush1.msra.mxu0 0.0
  %6514 = vmatprep.subr.mxu0 0.0
  %6515 = vmatpush1.msra.mxu0 0.0
  %6516 = vmatprep.subr.mxu0 0.0
  %6517 = vmatpush1.msra.mxu0 0.0
  %6518 = vmatprep.subr.mxu0 0.0
  %6519 = vmatpush1.msra.mxu0 0.0
  %6520 = vmatprep.subr.mxu0 0.0
  %6521 = vmatpush1.msra.mxu0 0.0
  %6522 = vmatprep.subr.mxu0 0.0
  %6523 = vmatpush1.msra.mxu0 0.0
  %6524 = vmatprep.subr.mxu0 0.0
  %6525 = vmatpush1.msra.mxu0 0.0
  %6526 = vmatprep.subr.mxu0 0.0
  %6527 = vmatpush1.msra.mxu0 0.0
  %6528 = vmatprep.subr.mxu0 0.0
  %6529 = vmatpush1.msra.mxu0 0.0
  %6530 = vmatprep.subr.mxu0 0.0
  %6531 = vmatpush1.msra.mxu0 0.0
  %6532 = vmatprep.mubr.f32.mxu0 0.0
  %6533 = vmatmul.mubr.f32.gmra.mrb[0].mxu0 %v6466
  %v6534 = vpop.f32.mrb[0].mxu0
  %v6535 = vadd.f32 %v6462, %v6534
  %v6536 = vpop.f32.mrb[0].mxu0
  %6537 = vdwg.mxu0
  %v6539 = vrot.slane %v6380, 2
  %6540 = vrot.lane.b32.xlu0 %v6539, 80
  %v6541 = vpop.permute.xlu0 %6540
  %v6542 = vsel %vm5029, %v6541, 0
  %6544 = vmatprep.subr.mxu0 0.0
  %6545 = vmatpush1.msra.mxu0 %v6387
  %6546 = vmatprep.subr.mxu0 0.0
  %6547 = vmatpush1.msra.mxu0 %v6388
  %6548 = vmatprep.subr.mxu0 0.0
  %6549 = vmatpush1.msra.mxu0 0.0
  %6550 = vmatprep.subr.mxu0 0.0
  %6551 = vmatpush1.msra.mxu0 0.0
  %6552 = vmatprep.subr.mxu0 0.0
  %6553 = vmatpush1.msra.mxu0 0.0
  %6554 = vmatprep.subr.mxu0 0.0
  %6555 = vmatpush1.msra.mxu0 0.0
  %6556 = vmatprep.subr.mxu0 0.0
  %6557 = vmatpush1.msra.mxu0 0.0
  %6558 = vmatprep.subr.mxu0 0.0
  %6559 = vmatpush1.msra.mxu0 0.0
  %6560 = vmatprep.subr.mxu0 0.0
  %6561 = vmatpush1.msra.mxu0 0.0
  %6562 = vmatprep.subr.mxu0 0.0
  %6563 = vmatpush1.msra.mxu0 0.0
  %6564 = vmatprep.subr.mxu0 0.0
  %6565 = vmatpush1.msra.mxu0 0.0
  %6566 = vmatprep.subr.mxu0 0.0
  %6567 = vmatpush1.msra.mxu0 0.0
  %6568 = vmatprep.subr.mxu0 0.0
  %6569 = vmatpush1.msra.mxu0 0.0
  %6570 = vmatprep.subr.mxu0 0.0
  %6571 = vmatpush1.msra.mxu0 0.0
  %6572 = vmatprep.subr.mxu0 0.0
  %6573 = vmatpush1.msra.mxu0 0.0
  %6574 = vmatprep.subr.mxu0 0.0
  %6575 = vmatpush1.msra.mxu0 0.0
  %6576 = vmatprep.subr.mxu0 0.0
  %6577 = vmatpush1.msra.mxu0 0.0
  %6578 = vmatprep.subr.mxu0 0.0
  %6579 = vmatpush1.msra.mxu0 0.0
  %6580 = vmatprep.subr.mxu0 0.0
  %6581 = vmatpush1.msra.mxu0 0.0
  %6582 = vmatprep.subr.mxu0 0.0
  %6583 = vmatpush1.msra.mxu0 0.0
  %6584 = vmatprep.subr.mxu0 0.0
  %6585 = vmatpush1.msra.mxu0 0.0
  %6586 = vmatprep.subr.mxu0 0.0
  %6587 = vmatpush1.msra.mxu0 0.0
  %6588 = vmatprep.subr.mxu0 0.0
  %6589 = vmatpush1.msra.mxu0 0.0
  %6590 = vmatprep.subr.mxu0 0.0
  %6591 = vmatpush1.msra.mxu0 0.0
  %6592 = vmatprep.subr.mxu0 0.0
  %6593 = vmatpush1.msra.mxu0 0.0
  %6594 = vmatprep.subr.mxu0 0.0
  %6595 = vmatpush1.msra.mxu0 0.0
  %6596 = vmatprep.subr.mxu0 0.0
  %6597 = vmatpush1.msra.mxu0 0.0
  %6598 = vmatprep.subr.mxu0 0.0
  %6599 = vmatpush1.msra.mxu0 0.0
  %6600 = vmatprep.subr.mxu0 0.0
  %6601 = vmatpush1.msra.mxu0 0.0
  %6602 = vmatprep.subr.mxu0 0.0
  %6603 = vmatpush1.msra.mxu0 0.0
  %6604 = vmatprep.subr.mxu0 0.0
  %6605 = vmatpush1.msra.mxu0 0.0
  %6606 = vmatprep.subr.mxu0 0.0
  %6607 = vmatpush1.msra.mxu0 0.0
  %6608 = vmatprep.mubr.f32.mxu0 0.0
  %6609 = vmatmul.mubr.f32.gmra.mrb[0].mxu0 %v6542
  %v6610 = vpop.f32.mrb[0].mxu0
  %v6611 = vadd.f32 0.0, %v6610
  %v6612 = vpop.f32.mrb[0].mxu0
  %6613 = vdwg.mxu0
  %v6614 = vadd.f32 %v6535, %v6611
  %v6615 = vld [vmem:[%s0 + $0x3a8] sm:$0x1]
  %v6616 = vlaneseq
  %v6617 = vshrl.u32 %v6616, 7
  %v6618 = vsub.s32 0, %v6617
  %v6619 = vrot.slane %v6615, %v6618
  %v6620 = vadd.f32 %v6614, %v6619
  %6621 = vst [vmem:[%s3] sm:$0xff] 0.0
  %vm6622 = vcmask 50176
  %6623 = vst.msk [vmem:[%s3] sm:$0x3] %vm6622, %v6620
  %6625 = vrot.lane.b32.xlu0 %v4889, 64
  %v6626 = vpop.permute.xlu0 %6625
  %vm6628 = vcmask 589312
  %6629 = vst.msk [vmem:[%s3] sm:$0xff] %vm6628, %v6626
  // Predicated region
  $region14: #{forward.1} parent=0 // pred_check
    _
  $region15: #{forward.1} parent=0 // pred_check_branch
    %6631 = sbr.rel (0) target = $region17
  $region16: #{forward.1} parent=0 // pred_region
    _
  $region17: #{forward.1} parent=0 // pred_fallthru
    _
  // Predicated region
  $region18: #{forward.1} parent=0 // pred_check
    _
  $region19: #{forward.1} parent=0 // pred_check_branch
    %6633 = sbr.rel (0) target = $region21
  $region20: #{forward.1} parent=0 // pred_region
    _
  $region21: #{forward.1} parent=0 // pred_fallthru
    _

</llo_original>
